<compile_context>
chip_gen: v7x
topology: tpu7x:2x2x1
jax: 0.10.0
libtpu: 0.0.40
codegen_flags: <defaults>
</compile_context>

<pallas_src>
import jax
import jax.numpy as jnp
from jax import lax
from jax.experimental import pallas as pl
from jax.experimental.pallas import tpu as pltpu


_VMEM_LIMIT = 48 * 1024 * 1024  # fits v7x's 64 MiB physical VMEM with headroom


# --------------------------------------------------------------------------- #
# In-kernel math helpers
# --------------------------------------------------------------------------- #
def _mish(x):
    # x * tanh(softplus(x)) == x * (e^2 + 2e) / (e^2 + 2e + 2),  e = exp(x).
    # One exp (EUP) + one divide instead of exp + log1p + tanh (exact algebra).
    e = jnp.exp(jnp.minimum(x, 20.0))
    num = e * (e + 2.0)
    return jnp.where(x > 20.0, x, x * (num / (num + 2.0)))


def _pick_tile(m, target):
    """Largest divisor of m that is <= target and a multiple of 8."""
    if m <= target:
        return m
    for t in range(target, 7, -1):
        if m % t == 0 and t % 8 == 0:
            return t
    return m  # full extent is always a legal block


def _split_grid(nblk):
    """2-way split of the M-block axis so v7x's two TensorCores both get work."""
    if nblk >= 2 and nblk % 2 == 0:
        return 2, nblk // 2
    return 1, nblk


def _fold_bn(sums, sumsqs, count, gamma, beta, eps):
    mean = sums / count
    var = jnp.maximum(sumsqs / count - mean * mean, 0.0)
    scale = gamma / jnp.sqrt(var + eps)
    bias = beta - mean * scale
    return scale, bias


# --------------------------------------------------------------------------- #
# Kernel 1: per-channel batch sums (tiled over M, per-core partial accumulators)
# --------------------------------------------------------------------------- #
def _channel_sums_kernel(x_ref, sum_ref, sumsq_ref):
    @pl.when(pl.program_id(1) == 0)
    def _():
        sum_ref[...] = jnp.zeros_like(sum_ref)
        sumsq_ref[...] = jnp.zeros_like(sumsq_ref)

    x = x_ref[...]
    sum_ref[0] += jnp.sum(x, axis=0, keepdims=True)
    sumsq_ref[0] += jnp.sum(x * x, axis=0, keepdims=True)


def channel_sums(x2d, tile_m=4096):
    m, c = x2d.shape
    tm = _pick_tile(m, tile_m)
    nblk = m // tm
    p, npb = _split_grid(nblk)
    sums, sumsqs = pl.pallas_call(
        _channel_sums_kernel,
        out_shape=(jax.ShapeDtypeStruct((p, 1, c), jnp.float32),
                   jax.ShapeDtypeStruct((p, 1, c), jnp.float32)),
        grid=(p, npb),
        in_specs=[pl.BlockSpec((tm, c), lambda pp, i: (pp * npb + i, 0))],
        out_specs=(pl.BlockSpec((1, 1, c), lambda pp, i: (pp, 0, 0)),
                   pl.BlockSpec((1, 1, c), lambda pp, i: (pp, 0, 0))),
        compiler_params=pltpu.CompilerParams(
            dimension_semantics=("parallel", "arbitrary"),
            vmem_limit_bytes=_VMEM_LIMIT),
    )(x2d)
    return jnp.sum(sums, axis=0), jnp.sum(sumsqs, axis=0)  # (1, c) each


# --------------------------------------------------------------------------- #
# Kernel 2: bn1-affine + Mish + 1x1x1 conv, with bn2 batch stats fused in
# --------------------------------------------------------------------------- #
def _bn_mish_matmul_stats_kernel(x_ref, s_ref, b_ref, w_ref,
                                 y_ref, sum_ref, sumsq_ref):
    a = _mish(x_ref[...] * s_ref[...] + b_ref[...])
    y = jnp.dot(a.astype(jnp.bfloat16), w_ref[...],
                preferred_element_type=jnp.float32)
    y_ref[...] = y

    @pl.when(pl.program_id(1) == 0)
    def _():
        sum_ref[...] = jnp.zeros_like(sum_ref)
        sumsq_ref[...] = jnp.zeros_like(sumsq_ref)

    sum_ref[0] += jnp.sum(y, axis=0, keepdims=True)
    sumsq_ref[0] += jnp.sum(y * y, axis=0, keepdims=True)


def bn_mish_matmul_with_stats(x2d, scale, bias, w_bf16, tile_m=4096):
    m, cin = x2d.shape
    cout = w_bf16.shape[1]
    tm = _pick_tile(m, tile_m)
    nblk = m // tm
    p, npb = _split_grid(nblk)
    y, sums, sumsqs = pl.pallas_call(
        _bn_mish_matmul_stats_kernel,
        out_shape=(jax.ShapeDtypeStruct((m, cout), jnp.float32),
                   jax.ShapeDtypeStruct((p, 1, cout), jnp.float32),
                   jax.ShapeDtypeStruct((p, 1, cout), jnp.float32)),
        grid=(p, npb),
        in_specs=[
            pl.BlockSpec((tm, cin), lambda pp, i: (pp * npb + i, 0)),
            pl.BlockSpec((1, cin), lambda pp, i: (0, 0)),
            pl.BlockSpec((1, cin), lambda pp, i: (0, 0)),
            pl.BlockSpec((cin, cout), lambda pp, i: (0, 0)),
        ],
        out_specs=(pl.BlockSpec((tm, cout), lambda pp, i: (pp * npb + i, 0)),
                   pl.BlockSpec((1, 1, cout), lambda pp, i: (pp, 0, 0)),
                   pl.BlockSpec((1, 1, cout), lambda pp, i: (pp, 0, 0))),
        compiler_params=pltpu.CompilerParams(
            dimension_semantics=("parallel", "arbitrary"),
            vmem_limit_bytes=_VMEM_LIMIT),
    )(x2d, scale, bias, w_bf16)
    return y, jnp.sum(sums, axis=0), jnp.sum(sumsqs, axis=0)


# --------------------------------------------------------------------------- #
# Kernel 3: fused bn2-affine + Mish + 3x3x3 conv (stride 1, pad 1) + bn3 stats
#   grid (N,) parallel; per step: one raw (1,D,H,W,Cin) slab is DMA'd once,
#   activated once, zero-padded in VMEM, and folded into a single im2col
#   matmul of (D*H*W, 27*Cin) x (27*Cin, Cout).  Per-N bn3 stat partials out.
# --------------------------------------------------------------------------- #
def _conv3x3x3_kernel(x_ref, s_ref, b_ref, w_ref,
                      o_ref, sum_ref, sumsq_ref, act_scr):
    # x_ref   : (1, D, H, W, Cin)        raw y1 for one batch element
    # s/b_ref : (1, Cin)                 bn2 affine (resident)
    # w_ref   : (27*Cin, Cout) bf16      resident, tap order (kd, kh, kw, ci)
    # o_ref   : (1, D*H*W, Cout)
    # sum/sumsq_ref : (1, 1, Cout)       per-N partial bn3 stats
    # act_scr : (D+2, H+2, W+2, Cin) f32 zero-padded mish(bn2(.)) scratch
    d = x_ref.shape[1]
    h = x_ref.shape[2]
    w = x_ref.shape[3]
    ci = x_ref.shape[4]

    # Zero the whole scratch (cheap, keeps the border = 0 regardless of which
    # core / grid step runs), then fill the interior with the activation.
    act_scr[...] = jnp.zeros_like(act_scr)
    s = s_ref[...].reshape(1, 1, 1, ci)
    b = b_ref[...].reshape(1, 1, 1, ci)
    act_scr[1:d + 1, 1:h + 1, 1:w + 1, :] = _mish(x_ref[0] * s + b)

    # im2col: 27 static slices -> one (D*H*W, 27*Cin) lhs -> one MXU matmul.
    pieces = []
    for kd in range(3):
        for kh in range(3):
            for kw in range(3):
                pieces.append(
                    act_scr[kd:kd + d, kh:kh + h, kw:kw + w, :]
                    .reshape(d * h * w, ci))
    lhs = jnp.concatenate(pieces, axis=1).astype(jnp.bfloat16)
    y = jnp.dot(lhs, w_ref[...], preferred_element_type=jnp.float32)

    o_ref[0] = y
    sum_ref[0] = jnp.sum(y, axis=0, keepdims=True)
    sumsq_ref[0] = jnp.sum(y * y, axis=0, keepdims=True)


def conv3x3x3_bn_mish_stats(y1_5d, scale, bias, w2_mat_bf16):
    n, d, h, w, ci = y1_5d.shape
    co = w2_mat_bf16.shape[-1]
    out, sums, sumsqs = pl.pallas_call(
        _conv3x3x3_kernel,
        out_shape=(jax.ShapeDtypeStruct((n, d * h * w, co), jnp.float32),
                   jax.ShapeDtypeStruct((n, 1, co), jnp.float32),
                   jax.ShapeDtypeStruct((n, 1, co), jnp.float32)),
        grid=(n,),
        in_specs=[
            pl.BlockSpec((1, d, h, w, ci), lambda nn: (nn, 0, 0, 0, 0)),
            pl.BlockSpec((1, ci), lambda nn: (0, 0)),
            pl.BlockSpec((1, ci), lambda nn: (0, 0)),
            pl.BlockSpec((27 * ci, co), lambda nn: (0, 0)),
        ],
        out_specs=(pl.BlockSpec((1, d * h * w, co), lambda nn: (nn, 0, 0)),
                   pl.BlockSpec((1, 1, co), lambda nn: (nn, 0, 0)),
                   pl.BlockSpec((1, 1, co), lambda nn: (nn, 0, 0))),
        scratch_shapes=[pltpu.VMEM((d + 2, h + 2, w + 2, ci), jnp.float32)],
        compiler_params=pltpu.CompilerParams(
            dimension_semantics=("parallel",),
            vmem_limit_bytes=_VMEM_LIMIT),
    )(y1_5d, scale, bias, w2_mat_bf16)
    return out, jnp.sum(sums, axis=0), jnp.sum(sumsqs, axis=0)


# --------------------------------------------------------------------------- #
# Kernel 4: bn3-affine + Mish + 1x1x1 conv + residual add (output aliases the
#           residual input buffer)
# --------------------------------------------------------------------------- #
def _bn_mish_matmul_res_kernel(x_ref, s_ref, b_ref, w_ref, r_ref, o_ref):
    a = _mish(x_ref[...] * s_ref[...] + b_ref[...])
    o_ref[...] = (jnp.dot(a.astype(jnp.bfloat16), w_ref[...],
                          preferred_element_type=jnp.float32)
                  + r_ref[...])


def bn_mish_matmul_residual(x2d, scale, bias, w_bf16, res2d, tile_m=4096):
    m, cin = x2d.shape
    cout = w_bf16.shape[1]
    tm = _pick_tile(m, tile_m)
    return pl.pallas_call(
        _bn_mish_matmul_res_kernel,
        out_shape=jax.ShapeDtypeStruct((m, cout), jnp.float32),
        grid=(m // tm,),
        in_specs=[
            pl.BlockSpec((tm, cin), lambda i: (i, 0)),
            pl.BlockSpec((1, cin), lambda i: (0, 0)),
            pl.BlockSpec((1, cin), lambda i: (0, 0)),
            pl.BlockSpec((cin, cout), lambda i: (0, 0)),
            pl.BlockSpec((tm, cout), lambda i: (i, 0)),
        ],
        out_specs=pl.BlockSpec((tm, cout), lambda i: (i, 0)),
        input_output_aliases={4: 0},          # residual buffer -> output buffer
        compiler_params=pltpu.CompilerParams(
            dimension_semantics=("parallel",),
            vmem_limit_bytes=_VMEM_LIMIT),
    )(x2d, scale, bias, w_bf16, res2d)


# --------------------------------------------------------------------------- #
# Full forward pass (matches Bottleneck_Mish.forward, stride=1, downsample=None)
# --------------------------------------------------------------------------- #
def bottleneck_mish_forward(x_ncdhw, params, eps=1e-5):
    n, c, d, h, w = x_ncdhw.shape
    m = n * d * h * w
    cp = params["w1"].shape[1]

    x = jnp.transpose(x_ncdhw, (0, 2, 3, 4, 1)).astype(jnp.float32)  # NDHWC
    x2d = x.reshape(m, c)

    # bf16 weights (MXU-native), f32 accumulation everywhere.
    w1 = params["w1"].astype(jnp.bfloat16)
    w2 = params["w2"].reshape(27 * cp, cp).astype(jnp.bfloat16)
    w3 = params["w3"].astype(jnp.bfloat16)

    # bn1 (batch stats over x) -> Mish -> conv1, with bn2's batch stats fused.
    s_x, ss_x = channel_sums(x2d)
    s1, b1 = _fold_bn(s_x, ss_x, m, params["gamma1"], params["beta1"], eps)
    y1_2d, s_y1, ss_y1 = bn_mish_matmul_with_stats(x2d, s1, b1, w1)

    # bn2 -> Mish fused into the 3x3x3 conv; bn3 batch stats fused in as well.
    s2, b2 = _fold_bn(s_y1, ss_y1, m, params["gamma2"], params["beta2"], eps)
    y2, s_y2, ss_y2 = conv3x3x3_bn_mish_stats(
        y1_2d.reshape(n, d, h, w, cp), s2, b2, w2)
    y2_2d = y2.reshape(m, cp)

    # bn3 -> Mish -> conv3 (1x1x1) + residual.
    s3, b3 = _fold_bn(s_y2, ss_y2, m, params["gamma3"], params["beta3"], eps)
    out2d = bn_mish_matmul_residual(y2_2d, s3, b3, w3, x2d)

    out = out2d.reshape(n, d, h, w, c)
    return jnp.transpose(out, (0, 4, 1, 2, 3))                       # NCDHW


# --------------------------------------------------------------------------- #
# Pure-JAX reference (mirrors the PyTorch forward, training-mode BN, f32)
# --------------------------------------------------------------------------- #
def _mish_ref(x):
    return x * jnp.tanh(jax.nn.softplus(x))


def _bn_train_ref(x, gamma, beta, eps=1e-5):
    mean = jnp.mean(x, axis=(0, 1, 2, 3))
    var = jnp.mean((x - mean) ** 2, axis=(0, 1, 2, 3))
    return (x - mean) / jnp.sqrt(var + eps) * gamma.reshape(-1) + beta.reshape(-1)


def reference_forward(x_ncdhw, params, eps=1e-5):
    x = jnp.transpose(x_ncdhw, (0, 2, 3, 4, 1))
    out = _mish_ref(_bn_train_ref(x, params["gamma1"], params["beta1"], eps))
    out = jnp.einsum("ndhwc,cp->ndhwp", out, params["w1"])
    out = _mish_ref(_bn_train_ref(out, params["gamma2"], params["beta2"], eps))
    out = lax.conv_general_dilated(
        out, params["w2"], window_strides=(1, 1, 1),
        padding=((1, 1), (1, 1), (1, 1)),
        dimension_numbers=("NDHWC", "DHWIO", "NDHWC"))
    out = _mish_ref(_bn_train_ref(out, params["gamma3"], params["beta3"], eps))
    out = jnp.einsum("ndhwc,co->ndhwo", out, params["w3"]) + x
    return jnp.transpose(out, (0, 4, 1, 2, 3))


# --------------------------------------------------------------------------- #
if __name__ == "__main__":
    inplanes, planes = 16, 4          # expansion = 4 -> planes = inplanes // 4
    n, d, h, w = 2, 4, 8, 8

    keys = jax.random.split(jax.random.PRNGKey(0), 10)
    params = {
        # conv weights in channels-last matmul / DHWIO layouts
        "w1": 0.2 * jax.random.normal(keys[0], (inplanes, planes), jnp.float32),
        "w2": 0.2 * jax.random.normal(keys[1], (3, 3, 3, planes, planes), jnp.float32),
        "w3": 0.2 * jax.random.normal(keys[2], (planes, inplanes), jnp.float32),
        # BatchNorm affine parameters (deterministic, non-trivial)
        "gamma1": 1.0 + 0.1 * jax.random.normal(keys[3], (1, inplanes), jnp.float32),
        "beta1": 0.1 * jax.random.normal(keys[4], (1, inplanes), jnp.float32),
        "gamma2": 1.0 + 0.1 * jax.random.normal(keys[5], (1, planes), jnp.float32),
        "beta2": 0.1 * jax.random.normal(keys[6], (1, planes), jnp.float32),
        "gamma3": 1.0 + 0.1 * jax.random.normal(keys[7], (1, planes), jnp.float32),
        "beta3": 0.1 * jax.random.normal(keys[8], (1, planes), jnp.float32),
    }
    x = jax.random.normal(keys[9], (n, inplanes, d, h, w), jnp.float32)

    fwd = jax.jit(bottleneck_mish_forward)
    out = jax.block_until_ready(fwd(x, params))
    ref = jax.block_until_ready(reference_forward(x, params))

    assert out.shape == (n, inplanes, d, h, w)
    # bf16 MXU operands vs. f32 reference -> allow small numeric drift.
    max_err = float(jnp.max(jnp.abs(out - ref)))
    rel_fro = float(jnp.linalg.norm((out - ref).ravel())
                    / (jnp.linalg.norm(ref.ravel()) + 1e-12))
    assert max_err < 1e-1, f"mismatch vs reference: max_err={max_err}"
    assert rel_fro < 3e-2, f"mismatch vs reference: rel_fro={rel_fro}"
    print("KERNEL_OK")
</pallas_src>

<mosaic_0001>
module attributes {stable_mosaic.version = 11 : i64} {
  func.func @_channel_sums_kernel(%arg0: i32, %arg1: i32, %arg2: memref<512x16xf32, #tpu.memory_space<vmem>>, %arg3: memref<1x1x16xf32, #tpu.memory_space<vmem>>, %arg4: memref<1x1x16xf32, #tpu.memory_space<vmem>>) attributes {dimension_semantics = [#tpu.dimension_semantics<parallel>, #tpu.dimension_semantics<arbitrary>], iteration_bounds = array<i64: 1, 1>, scalar_prefetch = 0 : i64, scratch_operands = 0 : i64, tpu.core_type = #tpu.core_type<tc>, window_params = [{transform_indices = @transform_0, window_bounds = array<i64: 512, 16>}, {transform_indices = @transform_1, window_bounds = array<i64: 1, 1, 16>}, {transform_indices = @transform_2, window_bounds = array<i64: 1, 1, 16>}]} {
    %c0_i32 = arith.constant 0 : i32
    %0 = arith.cmpi eq, %arg1, %c0_i32 : i32
    %1 = arith.extui %0 : i1 to i32
    %c0_i32_0 = arith.constant 0 : i32
    %2 = arith.cmpi ne, %1, %c0_i32_0 : i32
    scf.if %2 {
      %cst_15 = arith.constant 0.000000e+00 : f32
      %21 = vector.broadcast %cst_15 : f32 to vector<1x1x16xf32>
      %c0_16 = arith.constant 0 : index
      %c0_17 = arith.constant 0 : index
      %c0_18 = arith.constant 0 : index
      %22 = vector.load %arg3[%c0_16, %c0_17, %c0_18] : memref<1x1x16xf32, #tpu.memory_space<vmem>>, vector<1x1x16xf32>
      tpu.vector_store %arg3[%c0_16, %c0_17, %c0_18], %21 {strides = array<i32>} : memref<1x1x16xf32, #tpu.memory_space<vmem>>, vector<1x1x16xf32>,
      %cst_19 = arith.constant 0.000000e+00 : f32
      %23 = vector.broadcast %cst_19 : f32 to vector<1x1x16xf32>
      %c0_20 = arith.constant 0 : index
      %c0_21 = arith.constant 0 : index
      %c0_22 = arith.constant 0 : index
      %24 = vector.load %arg4[%c0_20, %c0_21, %c0_22] : memref<1x1x16xf32, #tpu.memory_space<vmem>>, vector<1x1x16xf32>
      tpu.vector_store %arg4[%c0_20, %c0_21, %c0_22], %23 {strides = array<i32>} : memref<1x1x16xf32, #tpu.memory_space<vmem>>, vector<1x1x16xf32>,
    } else {
    }
    %c0 = arith.constant 0 : index
    %c0_1 = arith.constant 0 : index
    %3 = vector.load %arg2[%c0, %c0_1] : memref<512x16xf32, #tpu.memory_space<vmem>>, vector<512x16xf32>
    %c0_2 = arith.constant 0 : index
    %c0_3 = arith.constant 0 : index
    %c0_4 = arith.constant 0 : index
    %4 = vector.load %arg3[%c0_2, %c0_3, %c0_4] : memref<1x1x16xf32, #tpu.memory_space<vmem>>, vector<1x1x16xf32>
    %5 = vector.shape_cast %4 : vector<1x1x16xf32> to vector<1x16xf32>
    %cst = arith.constant dense<0.000000e+00> : vector<16xf32>
    %6 = vector.multi_reduction <add>, %3, %cst [0] : vector<512x16xf32> to vector<16xf32>
    %7 = vector.shape_cast %6 : vector<16xf32> to vector<1x16xf32>
    %8 = arith.addf %5, %7 : vector<1x16xf32>
    %c0_5 = arith.constant 0 : index
    %c0_6 = arith.constant 0 : index
    %c0_7 = arith.constant 0 : index
    %9 = vector.load %arg3[%c0_5, %c0_6, %c0_7] : memref<1x1x16xf32, #tpu.memory_space<vmem>>, vector<1x1x16xf32>
    %10 = vector.shape_cast %9 : vector<1x1x16xf32> to vector<1x16xf32>
    %11 = vector.shape_cast %8 : vector<1x16xf32> to vector<1x1x16xf32>
    tpu.vector_store %arg3[%c0_5, %c0_6, %c0_7], %11 {strides = array<i32>} : memref<1x1x16xf32, #tpu.memory_space<vmem>>, vector<1x1x16xf32>,
    %c0_8 = arith.constant 0 : index
    %c0_9 = arith.constant 0 : index
    %c0_10 = arith.constant 0 : index
    %12 = vector.load %arg4[%c0_8, %c0_9, %c0_10] : memref<1x1x16xf32, #tpu.memory_space<vmem>>, vector<1x1x16xf32>
    %13 = vector.shape_cast %12 : vector<1x1x16xf32> to vector<1x16xf32>
    %14 = arith.mulf %3, %3 : vector<512x16xf32>
    %cst_11 = arith.constant dense<0.000000e+00> : vector<16xf32>
    %15 = vector.multi_reduction <add>, %14, %cst_11 [0] : vector<512x16xf32> to vector<16xf32>
    %16 = vector.shape_cast %15 : vector<16xf32> to vector<1x16xf32>
    %17 = arith.addf %13, %16 : vector<1x16xf32>
    %c0_12 = arith.constant 0 : index
    %c0_13 = arith.constant 0 : index
    %c0_14 = arith.constant 0 : index
    %18 = vector.load %arg4[%c0_12, %c0_13, %c0_14] : memref<1x1x16xf32, #tpu.memory_space<vmem>>, vector<1x1x16xf32>
    %19 = vector.shape_cast %18 : vector<1x1x16xf32> to vector<1x16xf32>
    %20 = vector.shape_cast %17 : vector<1x16xf32> to vector<1x1x16xf32>
    tpu.vector_store %arg4[%c0_12, %c0_13, %c0_14], %20 {strides = array<i32>} : memref<1x1x16xf32, #tpu.memory_space<vmem>>, vector<1x1x16xf32>,
    return
  }
  func.func @transform_0(%arg0: i32, %arg1: i32) -> (i32, i32) {
    %c1_i32 = arith.constant 1 : i32
    %0 = arith.muli %arg0, %c1_i32 : i32
    %1 = arith.addi %0, %arg1 : i32
    %c0_i32 = arith.constant 0 : i32
    %c0_i32_0 = arith.constant 0 : i32
    return %1, %c0_i32 : i32, i32
  }
  func.func @transform_1(%arg0: i32, %arg1: i32) -> (i32, i32, i32) {
    %c0_i32 = arith.constant 0 : i32
    %c0_i32_0 = arith.constant 0 : i32
    %c0_i32_1 = arith.constant 0 : i32
    return %arg0, %c0_i32, %c0_i32_0 : i32, i32, i32
  }
  func.func @transform_2(%arg0: i32, %arg1: i32) -> (i32, i32, i32) {
    %c0_i32 = arith.constant 0 : i32
    %c0_i32_0 = arith.constant 0 : i32
    %c0_i32_1 = arith.constant 0 : i32
    return %arg0, %c0_i32, %c0_i32_0 : i32, i32, i32
  }
}

module attributes {stable_mosaic.version = 11 : i64} {
  func.func @_bn_mish_matmul_stats_kernel(%arg0: i32, %arg1: i32, %arg2: memref<512x16xf32, #tpu.memory_space<vmem>>, %arg3: memref<1x16xf32, #tpu.memory_space<vmem>>, %arg4: memref<1x16xf32, #tpu.memory_space<vmem>>, %arg5: memref<16x4xbf16, #tpu.memory_space<vmem>>, %arg6: memref<512x4xf32, #tpu.memory_space<vmem>>, %arg7: memref<1x1x4xf32, #tpu.memory_space<vmem>>, %arg8: memref<1x1x4xf32, #tpu.memory_space<vmem>>) attributes {dimension_semantics = [#tpu.dimension_semantics<parallel>, #tpu.dimension_semantics<arbitrary>], iteration_bounds = array<i64: 1, 1>, scalar_prefetch = 0 : i64, scratch_operands = 0 : i64, tpu.core_type = #tpu.core_type<tc>, window_params = [{transform_indices = @transform_0, window_bounds = array<i64: 512, 16>}, {pipeline_mode = #tpu.pipeline_mode<synchronous>, transform_indices = @transform_1, window_bounds = array<i64: 1, 16>}, {pipeline_mode = #tpu.pipeline_mode<synchronous>, transform_indices = @transform_2, window_bounds = array<i64: 1, 16>}, {pipeline_mode = #tpu.pipeline_mode<synchronous>, transform_indices = @transform_3, window_bounds = array<i64: 16, 4>}, {transform_indices = @transform_4, window_bounds = array<i64: 512, 4>}, {transform_indices = @transform_5, window_bounds = array<i64: 1, 1, 4>}, {transform_indices = @transform_6, window_bounds = array<i64: 1, 1, 4>}]} {
    %c0 = arith.constant 0 : index
    %c0_0 = arith.constant 0 : index
    %0 = vector.load %arg2[%c0, %c0_0] : memref<512x16xf32, #tpu.memory_space<vmem>>, vector<512x16xf32>
    %c0_1 = arith.constant 0 : index
    %c0_2 = arith.constant 0 : index
    %1 = vector.load %arg3[%c0_1, %c0_2] : memref<1x16xf32, #tpu.memory_space<vmem>>, vector<1x16xf32>
    %2 = vector.broadcast %1 : vector<1x16xf32> to vector<512x16xf32>
    %3 = arith.mulf %0, %2 : vector<512x16xf32>
    %c0_3 = arith.constant 0 : index
    %c0_4 = arith.constant 0 : index
    %4 = vector.load %arg4[%c0_3, %c0_4] : memref<1x16xf32, #tpu.memory_space<vmem>>, vector<1x16xf32>
    %5 = vector.broadcast %4 : vector<1x16xf32> to vector<512x16xf32>
    %6 = arith.addf %3, %5 : vector<512x16xf32>
    %cst = arith.constant 2.000000e+01 : f32
    %7 = vector.broadcast %cst : f32 to vector<512x16xf32>
    %8 = arith.minimumf %6, %7 : vector<512x16xf32>
    %9 = math.exp %8 : vector<512x16xf32>
    %cst_5 = arith.constant 2.000000e+00 : f32
    %10 = vector.broadcast %cst_5 : f32 to vector<512x16xf32>
    %11 = arith.addf %9, %10 : vector<512x16xf32>
    %12 = arith.mulf %9, %11 : vector<512x16xf32>
    %cst_6 = arith.constant 2.000000e+01 : f32
    %13 = vector.broadcast %cst_6 : f32 to vector<512x16xf32>
    %14 = arith.cmpf ogt, %6, %13 : vector<512x16xf32>
    %cst_7 = arith.constant 2.000000e+00 : f32
    %15 = vector.broadcast %cst_7 : f32 to vector<512x16xf32>
    %16 = arith.addf %12, %15 : vector<512x16xf32>
    %17 = arith.divf %12, %16 : vector<512x16xf32>
    %18 = arith.mulf %6, %17 : vector<512x16xf32>
    %19 = arith.select %14, %6, %18 : vector<512x16xi1>, vector<512x16xf32>
    %20 = arith.truncf %19 : vector<512x16xf32> to vector<512x16xbf16>
    %c0_8 = arith.constant 0 : index
    %c0_9 = arith.constant 0 : index
    %21 = vector.load %arg5[%c0_8, %c0_9] : memref<16x4xbf16, #tpu.memory_space<vmem>>, vector<16x4xbf16>
    %cst_10 = arith.constant dense<0.000000e+00> : vector<512x4xf32>
    %22 = tpu.matmul %20, %21, %cst_10 {dimension_numbers = #tpu.dot_dimension_numbers<[1], [0], [0], [1], [0, 0, 1, 1], [], []>} : vector<512x16xbf16>, vector<16x4xbf16>, vector<512x4xf32> -> vector<512x4xf32>
    %c0_11 = arith.constant 0 : index
    %c0_12 = arith.constant 0 : index
    %23 = vector.load %arg6[%c0_11, %c0_12] : memref<512x4xf32, #tpu.memory_space<vmem>>, vector<512x4xf32>
    tpu.vector_store %arg6[%c0_11, %c0_12], %22 {strides = array<i32>} : memref<512x4xf32, #tpu.memory_space<vmem>>, vector<512x4xf32>,
    %c0_i32 = arith.constant 0 : i32
    %24 = arith.cmpi eq, %arg1, %c0_i32 : i32
    %25 = arith.extui %24 : i1 to i32
    %c0_i32_13 = arith.constant 0 : i32
    %26 = arith.cmpi ne, %25, %c0_i32_13 : i32
    scf.if %26 {
      %cst_28 = arith.constant 0.000000e+00 : f32
      %44 = vector.broadcast %cst_28 : f32 to vector<1x1x4xf32>
      %c0_29 = arith.constant 0 : index
      %c0_30 = arith.constant 0 : index
      %c0_31 = arith.constant 0 : index
      %45 = vector.load %arg7[%c0_29, %c0_30, %c0_31] : memref<1x1x4xf32, #tpu.memory_space<vmem>>, vector<1x1x4xf32>
      tpu.vector_store %arg7[%c0_29, %c0_30, %c0_31], %44 {strides = array<i32>} : memref<1x1x4xf32, #tpu.memory_space<vmem>>, vector<1x1x4xf32>,
      %cst_32 = arith.constant 0.000000e+00 : f32
      %46 = vector.broadcast %cst_32 : f32 to vector<1x1x4xf32>
      %c0_33 = arith.constant 0 : index
      %c0_34 = arith.constant 0 : index
      %c0_35 = arith.constant 0 : index
      %47 = vector.load %arg8[%c0_33, %c0_34, %c0_35] : memref<1x1x4xf32, #tpu.memory_space<vmem>>, vector<1x1x4xf32>
      tpu.vector_store %arg8[%c0_33, %c0_34, %c0_35], %46 {strides = array<i32>} : memref<1x1x4xf32, #tpu.memory_space<vmem>>, vector<1x1x4xf32>,
    } else {
    }
    %c0_14 = arith.constant 0 : index
    %c0_15 = arith.constant 0 : index
    %c0_16 = arith.constant 0 : index
    %27 = vector.load %arg7[%c0_14, %c0_15, %c0_16] : memref<1x1x4xf32, #tpu.memory_space<vmem>>, vector<1x1x4xf32>
    %28 = vector.shape_cast %27 : vector<1x1x4xf32> to vector<1x4xf32>
    %cst_17 = arith.constant dense<0.000000e+00> : vector<4xf32>
    %29 = vector.multi_reduction <add>, %22, %cst_17 [0] : vector<512x4xf32> to vector<4xf32>
    %30 = vector.shape_cast %29 : vector<4xf32> to vector<1x4xf32>
    %31 = arith.addf %28, %30 : vector<1x4xf32>
    %c0_18 = arith.constant 0 : index
    %c0_19 = arith.constant 0 : index
    %c0_20 = arith.constant 0 : index
    %32 = vector.load %arg7[%c0_18, %c0_19, %c0_20] : memref<1x1x4xf32, #tpu.memory_space<vmem>>, vector<1x1x4xf32>
    %33 = vector.shape_cast %32 : vector<1x1x4xf32> to vector<1x4xf32>
    %34 = vector.shape_cast %31 : vector<1x4xf32> to vector<1x1x4xf32>
    tpu.vector_store %arg7[%c0_18, %c0_19, %c0_20], %34 {strides = array<i32>} : memref<1x1x4xf32, #tpu.memory_space<vmem>>, vector<1x1x4xf32>,
    %c0_21 = arith.constant 0 : index
    %c0_22 = arith.constant 0 : index
    %c0_23 = arith.constant 0 : index
    %35 = vector.load %arg8[%c0_21, %c0_22, %c0_23] : memref<1x1x4xf32, #tpu.memory_space<vmem>>, vector<1x1x4xf32>
    %36 = vector.shape_cast %35 : vector<1x1x4xf32> to vector<1x4xf32>
    %37 = arith.mulf %22, %22 : vector<512x4xf32>
    %cst_24 = arith.constant dense<0.000000e+00> : vector<4xf32>
    %38 = vector.multi_reduction <add>, %37, %cst_24 [0] : vector<512x4xf32> to vector<4xf32>
    %39 = vector.shape_cast %38 : vector<4xf32> to vector<1x4xf32>
    %40 = arith.addf %36, %39 : vector<1x4xf32>
    %c0_25 = arith.constant 0 : index
    %c0_26 = arith.constant 0 : index
    %c0_27 = arith.constant 0 : index
    %41 = vector.load %arg8[%c0_25, %c0_26, %c0_27] : memref<1x1x4xf32, #tpu.memory_space<vmem>>, vector<1x1x4xf32>
    %42 = vector.shape_cast %41 : vector<1x1x4xf32> to vector<1x4xf32>
    %43 = vector.shape_cast %40 : vector<1x4xf32> to vector<1x1x4xf32>
    tpu.vector_store %arg8[%c0_25, %c0_26, %c0_27], %43 {strides = array<i32>} : memref<1x1x4xf32, #tpu.memory_space<vmem>>, vector<1x1x4xf32>,
    return
  }
  func.func @transform_0(%arg0: i32, %arg1: i32) -> (i32, i32) {
    %c1_i32 = arith.constant 1 : i32
    %0 = arith.muli %arg0, %c1_i32 : i32
    %1 = arith.addi %0, %arg1 : i32
    %c0_i32 = arith.constant 0 : i32
    %c0_i32_0 = arith.constant 0 : i32
    return %1, %c0_i32 : i32, i32
  }
  func.func @transform_1(%arg0: i32, %arg1: i32) -> (i32, i32) {
    %c0_i32 = arith.constant 0 : i32
    %c0_i32_0 = arith.constant 0 : i32
    %c0_i32_1 = arith.constant 0 : i32
    return %c0_i32, %c0_i32_0 : i32, i32
  }
  func.func @transform_2(%arg0: i32, %arg1: i32) -> (i32, i32) {
    %c0_i32 = arith.constant 0 : i32
    %c0_i32_0 = arith.constant 0 : i32
    %c0_i32_1 = arith.constant 0 : i32
    return %c0_i32, %c0_i32_0 : i32, i32
  }
  func.func @transform_3(%arg0: i32, %arg1: i32) -> (i32, i32) {
    %c0_i32 = arith.constant 0 : i32
    %c0_i32_0 = arith.constant 0 : i32
    %c0_i32_1 = arith.constant 0 : i32
    return %c0_i32, %c0_i32_0 : i32, i32
  }
  func.func @transform_4(%arg0: i32, %arg1: i32) -> (i32, i32) {
    %c1_i32 = arith.constant 1 : i32
    %0 = arith.muli %arg0, %c1_i32 : i32
    %1 = arith.addi %0, %arg1 : i32
    %c0_i32 = arith.constant 0 : i32
    %c0_i32_0 = arith.constant 0 : i32
    return %1, %c0_i32 : i32, i32
  }
  func.func @transform_5(%arg0: i32, %arg1: i32) -> (i32, i32, i32) {
    %c0_i32 = arith.constant 0 : i32
    %c0_i32_0 = arith.constant 0 : i32
    %c0_i32_1 = arith.constant 0 : i32
    return %arg0, %c0_i32, %c0_i32_0 : i32, i32, i32
  }
  func.func @transform_6(%arg0: i32, %arg1: i32) -> (i32, i32, i32) {
    %c0_i32 = arith.constant 0 : i32
    %c0_i32_0 = arith.constant 0 : i32
    %c0_i32_1 = arith.constant 0 : i32
    return %arg0, %c0_i32, %c0_i32_0 : i32, i32, i32
  }
}

module attributes {stable_mosaic.version = 11 : i64} {
  func.func @_bn_mish_matmul_res_kernel(%arg0: i32, %arg1: memref<512x4xf32, #tpu.memory_space<vmem>>, %arg2: memref<1x4xf32, #tpu.memory_space<vmem>>, %arg3: memref<1x4xf32, #tpu.memory_space<vmem>>, %arg4: memref<4x16xbf16, #tpu.memory_space<vmem>>, %arg5: memref<512x16xf32, #tpu.memory_space<vmem>>, %arg6: memref<512x16xf32, #tpu.memory_space<vmem>>) attributes {dimension_semantics = [#tpu.dimension_semantics<parallel>], iteration_bounds = array<i64: 1>, scalar_prefetch = 0 : i64, scratch_operands = 0 : i64, tpu.core_type = #tpu.core_type<tc>, window_params = [{transform_indices = @transform_0, window_bounds = array<i64: 512, 4>}, {pipeline_mode = #tpu.pipeline_mode<synchronous>, transform_indices = @transform_1, window_bounds = array<i64: 1, 4>}, {pipeline_mode = #tpu.pipeline_mode<synchronous>, transform_indices = @transform_2, window_bounds = array<i64: 1, 4>}, {pipeline_mode = #tpu.pipeline_mode<synchronous>, transform_indices = @transform_3, window_bounds = array<i64: 4, 16>}, {transform_indices = @transform_4, window_bounds = array<i64: 512, 16>}, {transform_indices = @transform_5, window_bounds = array<i64: 512, 16>}]} {
    %c0 = arith.constant 0 : index
    %c0_0 = arith.constant 0 : index
    %0 = vector.load %arg1[%c0, %c0_0] : memref<512x4xf32, #tpu.memory_space<vmem>>, vector<512x4xf32>
    %c0_1 = arith.constant 0 : index
    %c0_2 = arith.constant 0 : index
    %1 = vector.load %arg2[%c0_1, %c0_2] : memref<1x4xf32, #tpu.memory_space<vmem>>, vector<1x4xf32>
    %2 = vector.broadcast %1 : vector<1x4xf32> to vector<512x4xf32>
    %3 = arith.mulf %0, %2 : vector<512x4xf32>
    %c0_3 = arith.constant 0 : index
    %c0_4 = arith.constant 0 : index
    %4 = vector.load %arg3[%c0_3, %c0_4] : memref<1x4xf32, #tpu.memory_space<vmem>>, vector<1x4xf32>
    %5 = vector.broadcast %4 : vector<1x4xf32> to vector<512x4xf32>
    %6 = arith.addf %3, %5 : vector<512x4xf32>
    %cst = arith.constant 2.000000e+01 : f32
    %7 = vector.broadcast %cst : f32 to vector<512x4xf32>
    %8 = arith.minimumf %6, %7 : vector<512x4xf32>
    %9 = math.exp %8 : vector<512x4xf32>
    %cst_5 = arith.constant 2.000000e+00 : f32
    %10 = vector.broadcast %cst_5 : f32 to vector<512x4xf32>
    %11 = arith.addf %9, %10 : vector<512x4xf32>
    %12 = arith.mulf %9, %11 : vector<512x4xf32>
    %cst_6 = arith.constant 2.000000e+01 : f32
    %13 = vector.broadcast %cst_6 : f32 to vector<512x4xf32>
    %14 = arith.cmpf ogt, %6, %13 : vector<512x4xf32>
    %cst_7 = arith.constant 2.000000e+00 : f32
    %15 = vector.broadcast %cst_7 : f32 to vector<512x4xf32>
    %16 = arith.addf %12, %15 : vector<512x4xf32>
    %17 = arith.divf %12, %16 : vector<512x4xf32>
    %18 = arith.mulf %6, %17 : vector<512x4xf32>
    %19 = arith.select %14, %6, %18 : vector<512x4xi1>, vector<512x4xf32>
    %20 = arith.truncf %19 : vector<512x4xf32> to vector<512x4xbf16>
    %c0_8 = arith.constant 0 : index
    %c0_9 = arith.constant 0 : index
    %21 = vector.load %arg4[%c0_8, %c0_9] : memref<4x16xbf16, #tpu.memory_space<vmem>>, vector<4x16xbf16>
    %cst_10 = arith.constant dense<0.000000e+00> : vector<512x16xf32>
    %22 = tpu.matmul %20, %21, %cst_10 {dimension_numbers = #tpu.dot_dimension_numbers<[1], [0], [0], [1], [0, 0, 1, 1], [], []>} : vector<512x4xbf16>, vector<4x16xbf16>, vector<512x16xf32> -> vector<512x16xf32>
    %c0_11 = arith.constant 0 : index
    %c0_12 = arith.constant 0 : index
    %23 = vector.load %arg5[%c0_11, %c0_12] : memref<512x16xf32, #tpu.memory_space<vmem>>, vector<512x16xf32>
    %24 = arith.addf %22, %23 : vector<512x16xf32>
    %c0_13 = arith.constant 0 : index
    %c0_14 = arith.constant 0 : index
    %25 = vector.load %arg6[%c0_13, %c0_14] : memref<512x16xf32, #tpu.memory_space<vmem>>, vector<512x16xf32>
    tpu.vector_store %arg6[%c0_13, %c0_14], %24 {strides = array<i32>} : memref<512x16xf32, #tpu.memory_space<vmem>>, vector<512x16xf32>,
    return
  }
  func.func @transform_0(%arg0: i32) -> (i32, i32) {
    %c0_i32 = arith.constant 0 : i32
    %c0_i32_0 = arith.constant 0 : i32
    return %arg0, %c0_i32 : i32, i32
  }
  func.func @transform_1(%arg0: i32) -> (i32, i32) {
    %c0_i32 = arith.constant 0 : i32
    %c0_i32_0 = arith.constant 0 : i32
    %c0_i32_1 = arith.constant 0 : i32
    return %c0_i32, %c0_i32_0 : i32, i32
  }
  func.func @transform_2(%arg0: i32) -> (i32, i32) {
    %c0_i32 = arith.constant 0 : i32
    %c0_i32_0 = arith.constant 0 : i32
    %c0_i32_1 = arith.constant 0 : i32
    return %c0_i32, %c0_i32_0 : i32, i32
  }
  func.func @transform_3(%arg0: i32) -> (i32, i32) {
    %c0_i32 = arith.constant 0 : i32
    %c0_i32_0 = arith.constant 0 : i32
    %c0_i32_1 = arith.constant 0 : i32
    return %c0_i32, %c0_i32_0 : i32, i32
  }
  func.func @transform_4(%arg0: i32) -> (i32, i32) {
    %c0_i32 = arith.constant 0 : i32
    %c0_i32_0 = arith.constant 0 : i32
    return %arg0, %c0_i32 : i32, i32
  }
  func.func @transform_5(%arg0: i32) -> (i32, i32) {
    %c0_i32 = arith.constant 0 : i32
    %c0_i32_0 = arith.constant 0 : i32
    return %arg0, %c0_i32 : i32, i32
  }
}

module attributes {stable_mosaic.version = 11 : i64} {
  func.func @_conv3x3x3_kernel(%arg0: i32, %arg1: memref<1x4x8x8x4xf32, #tpu.memory_space<vmem>>, %arg2: memref<1x4xf32, #tpu.memory_space<vmem>>, %arg3: memref<1x4xf32, #tpu.memory_space<vmem>>, %arg4: memref<108x4xbf16, #tpu.memory_space<vmem>>, %arg5: memref<1x256x4xf32, #tpu.memory_space<vmem>>, %arg6: memref<1x1x4xf32, #tpu.memory_space<vmem>>, %arg7: memref<1x1x4xf32, #tpu.memory_space<vmem>>, %arg8: memref<6x10x10x4xf32, #tpu.memory_space<vmem>>) attributes {dimension_semantics = [#tpu.dimension_semantics<parallel>], iteration_bounds = array<i64: 2>, scalar_prefetch = 0 : i64, scratch_operands = 1 : i64, tpu.core_type = #tpu.core_type<tc>, window_params = [{transform_indices = @transform_0, window_bounds = array<i64: 1, 4, 8, 8, 4>}, {pipeline_mode = #tpu.pipeline_mode<synchronous>, transform_indices = @transform_1, window_bounds = array<i64: 1, 4>}, {pipeline_mode = #tpu.pipeline_mode<synchronous>, transform_indices = @transform_2, window_bounds = array<i64: 1, 4>}, {pipeline_mode = #tpu.pipeline_mode<synchronous>, transform_indices = @transform_3, window_bounds = array<i64: 108, 4>}, {transform_indices = @transform_4, window_bounds = array<i64: 1, 256, 4>}, {transform_indices = @transform_5, window_bounds = array<i64: 1, 1, 4>}, {transform_indices = @transform_6, window_bounds = array<i64: 1, 1, 4>}]} {
    %cst = arith.constant 0.000000e+00 : f32
    %0 = vector.broadcast %cst : f32 to vector<6x10x10x4xf32>
    %c0 = arith.constant 0 : index
    %c0_0 = arith.constant 0 : index
    %c0_1 = arith.constant 0 : index
    %c0_2 = arith.constant 0 : index
    %1 = vector.load %arg8[%c0, %c0_0, %c0_1, %c0_2] : memref<6x10x10x4xf32, #tpu.memory_space<vmem>>, vector<6x10x10x4xf32>
    tpu.vector_store %arg8[%c0, %c0_0, %c0_1, %c0_2], %0 {strides = array<i32>} : memref<6x10x10x4xf32, #tpu.memory_space<vmem>>, vector<6x10x10x4xf32>,
    %c0_3 = arith.constant 0 : index
    %c0_4 = arith.constant 0 : index
    %2 = vector.load %arg2[%c0_3, %c0_4] : memref<1x4xf32, #tpu.memory_space<vmem>>, vector<1x4xf32>
    %3 = vector.shape_cast %2 : vector<1x4xf32> to vector<1x1x1x4xf32>
    %c0_5 = arith.constant 0 : index
    %c0_6 = arith.constant 0 : index
    %4 = vector.load %arg3[%c0_5, %c0_6] : memref<1x4xf32, #tpu.memory_space<vmem>>, vector<1x4xf32>
    %5 = vector.shape_cast %4 : vector<1x4xf32> to vector<1x1x1x4xf32>
    %c0_7 = arith.constant 0 : index
    %c0_8 = arith.constant 0 : index
    %c0_9 = arith.constant 0 : index
    %c0_10 = arith.constant 0 : index
    %c0_11 = arith.constant 0 : index
    %6 = vector.load %arg1[%c0_7, %c0_8, %c0_9, %c0_10, %c0_11] : memref<1x4x8x8x4xf32, #tpu.memory_space<vmem>>, vector<1x4x8x8x4xf32>
    %7 = vector.shape_cast %6 : vector<1x4x8x8x4xf32> to vector<4x8x8x4xf32>
    %8 = vector.broadcast %3 : vector<1x1x1x4xf32> to vector<4x8x8x4xf32>
    %9 = arith.mulf %7, %8 : vector<4x8x8x4xf32>
    %10 = vector.broadcast %5 : vector<1x1x1x4xf32> to vector<4x8x8x4xf32>
    %11 = arith.addf %9, %10 : vector<4x8x8x4xf32>
    %cst_12 = arith.constant 2.000000e+01 : f32
    %12 = vector.broadcast %cst_12 : f32 to vector<4x8x8x4xf32>
    %13 = arith.minimumf %11, %12 : vector<4x8x8x4xf32>
    %14 = math.exp %13 : vector<4x8x8x4xf32>
    %cst_13 = arith.constant 2.000000e+00 : f32
    %15 = vector.broadcast %cst_13 : f32 to vector<4x8x8x4xf32>
    %16 = arith.addf %14, %15 : vector<4x8x8x4xf32>
    %17 = arith.mulf %14, %16 : vector<4x8x8x4xf32>
    %cst_14 = arith.constant 2.000000e+01 : f32
    %18 = vector.broadcast %cst_14 : f32 to vector<4x8x8x4xf32>
    %19 = arith.cmpf ogt, %11, %18 : vector<4x8x8x4xf32>
    %cst_15 = arith.constant 2.000000e+00 : f32
    %20 = vector.broadcast %cst_15 : f32 to vector<4x8x8x4xf32>
    %21 = arith.addf %17, %20 : vector<4x8x8x4xf32>
    %22 = arith.divf %17, %21 : vector<4x8x8x4xf32>
    %23 = arith.mulf %11, %22 : vector<4x8x8x4xf32>
    %24 = arith.select %19, %11, %23 : vector<4x8x8x4xi1>, vector<4x8x8x4xf32>
    %c1 = arith.constant 1 : index
    %c1_16 = arith.constant 1 : index
    %c1_17 = arith.constant 1 : index
    %c0_18 = arith.constant 0 : index
    %25 = vector.load %arg8[%c1, %c1_16, %c1_17, %c0_18] : memref<6x10x10x4xf32, #tpu.memory_space<vmem>>, vector<4x8x8x4xf32>
    tpu.vector_store %arg8[%c1, %c1_16, %c1_17, %c0_18], %24 {strides = array<i32>} : memref<6x10x10x4xf32, #tpu.memory_space<vmem>>, vector<4x8x8x4xf32>,
    %c0_19 = arith.constant 0 : index
    %c0_20 = arith.constant 0 : index
    %c0_21 = arith.constant 0 : index
    %c0_22 = arith.constant 0 : index
    %26 = vector.load %arg8[%c0_19, %c0_20, %c0_21, %c0_22] : memref<6x10x10x4xf32, #tpu.memory_space<vmem>>, vector<4x8x8x4xf32>
    %27 = vector.shape_cast %26 : vector<4x8x8x4xf32> to vector<256x4xf32>
    %c0_23 = arith.constant 0 : index
    %c0_24 = arith.constant 0 : index
    %c1_25 = arith.constant 1 : index
    %c0_26 = arith.constant 0 : index
    %28 = vector.load %arg8[%c0_23, %c0_24, %c1_25, %c0_26] : memref<6x10x10x4xf32, #tpu.memory_space<vmem>>, vector<4x8x8x4xf32>
    %29 = vector.shape_cast %28 : vector<4x8x8x4xf32> to vector<256x4xf32>
    %c0_27 = arith.constant 0 : index
    %c0_28 = arith.constant 0 : index
    %c2 = arith.constant 2 : index
    %c0_29 = arith.constant 0 : index
    %30 = vector.load %arg8[%c0_27, %c0_28, %c2, %c0_29] : memref<6x10x10x4xf32, #tpu.memory_space<vmem>>, vector<4x8x8x4xf32>
    %31 = vector.shape_cast %30 : vector<4x8x8x4xf32> to vector<256x4xf32>
    %c0_30 = arith.constant 0 : index
    %c1_31 = arith.constant 1 : index
    %c0_32 = arith.constant 0 : index
    %c0_33 = arith.constant 0 : index
    %32 = vector.load %arg8[%c0_30, %c1_31, %c0_32, %c0_33] : memref<6x10x10x4xf32, #tpu.memory_space<vmem>>, vector<4x8x8x4xf32>
    %33 = vector.shape_cast %32 : vector<4x8x8x4xf32> to vector<256x4xf32>
    %c0_34 = arith.constant 0 : index
    %c1_35 = arith.constant 1 : index
    %c1_36 = arith.constant 1 : index
    %c0_37 = arith.constant 0 : index
    %34 = vector.load %arg8[%c0_34, %c1_35, %c1_36, %c0_37] : memref<6x10x10x4xf32, #tpu.memory_space<vmem>>, vector<4x8x8x4xf32>
    %35 = vector.shape_cast %34 : vector<4x8x8x4xf32> to vector<256x4xf32>
    %c0_38 = arith.constant 0 : index
    %c1_39 = arith.constant 1 : index
    %c2_40 = arith.constant 2 : index
    %c0_41 = arith.constant 0 : index
    %36 = vector.load %arg8[%c0_38, %c1_39, %c2_40, %c0_41] : memref<6x10x10x4xf32, #tpu.memory_space<vmem>>, vector<4x8x8x4xf32>
    %37 = vector.shape_cast %36 : vector<4x8x8x4xf32> to vector<256x4xf32>
    %c0_42 = arith.constant 0 : index
    %c2_43 = arith.constant 2 : index
    %c0_44 = arith.constant 0 : index
    %c0_45 = arith.constant 0 : index
    %38 = vector.load %arg8[%c0_42, %c2_43, %c0_44, %c0_45] : memref<6x10x10x4xf32, #tpu.memory_space<vmem>>, vector<4x8x8x4xf32>
    %39 = vector.shape_cast %38 : vector<4x8x8x4xf32> to vector<256x4xf32>
    %c0_46 = arith.constant 0 : index
    %c2_47 = arith.constant 2 : index
    %c1_48 = arith.constant 1 : index
    %c0_49 = arith.constant 0 : index
    %40 = vector.load %arg8[%c0_46, %c2_47, %c1_48, %c0_49] : memref<6x10x10x4xf32, #tpu.memory_space<vmem>>, vector<4x8x8x4xf32>
    %41 = vector.shape_cast %40 : vector<4x8x8x4xf32> to vector<256x4xf32>
    %c0_50 = arith.constant 0 : index
    %c2_51 = arith.constant 2 : index
    %c2_52 = arith.constant 2 : index
    %c0_53 = arith.constant 0 : index
    %42 = vector.load %arg8[%c0_50, %c2_51, %c2_52, %c0_53] : memref<6x10x10x4xf32, #tpu.memory_space<vmem>>, vector<4x8x8x4xf32>
    %43 = vector.shape_cast %42 : vector<4x8x8x4xf32> to vector<256x4xf32>
    %c1_54 = arith.constant 1 : index
    %c0_55 = arith.constant 0 : index
    %c0_56 = arith.constant 0 : index
    %c0_57 = arith.constant 0 : index
    %44 = vector.load %arg8[%c1_54, %c0_55, %c0_56, %c0_57] : memref<6x10x10x4xf32, #tpu.memory_space<vmem>>, vector<4x8x8x4xf32>
    %45 = vector.shape_cast %44 : vector<4x8x8x4xf32> to vector<256x4xf32>
    %c1_58 = arith.constant 1 : index
    %c0_59 = arith.constant 0 : index
    %c1_60 = arith.constant 1 : index
    %c0_61 = arith.constant 0 : index
    %46 = vector.load %arg8[%c1_58, %c0_59, %c1_60, %c0_61] : memref<6x10x10x4xf32, #tpu.memory_space<vmem>>, vector<4x8x8x4xf32>
    %47 = vector.shape_cast %46 : vector<4x8x8x4xf32> to vector<256x4xf32>
    %c1_62 = arith.constant 1 : index
    %c0_63 = arith.constant 0 : index
    %c2_64 = arith.constant 2 : index
    %c0_65 = arith.constant 0 : index
    %48 = vector.load %arg8[%c1_62, %c0_63, %c2_64, %c0_65] : memref<6x10x10x4xf32, #tpu.memory_space<vmem>>, vector<4x8x8x4xf32>
    %49 = vector.shape_cast %48 : vector<4x8x8x4xf32> to vector<256x4xf32>
    %c1_66 = arith.constant 1 : index
    %c1_67 = arith.constant 1 : index
    %c0_68 = arith.constant 0 : index
    %c0_69 = arith.constant 0 : index
    %50 = vector.load %arg8[%c1_66, %c1_67, %c0_68, %c0_69] : memref<6x10x10x4xf32, #tpu.memory_space<vmem>>, vector<4x8x8x4xf32>
    %51 = vector.shape_cast %50 : vector<4x8x8x4xf32> to vector<256x4xf32>
    %c1_70 = arith.constant 1 : index
    %c1_71 = arith.constant 1 : index
    %c1_72 = arith.constant 1 : index
    %c0_73 = arith.constant 0 : index
    %52 = vector.load %arg8[%c1_70, %c1_71, %c1_72, %c0_73] : memref<6x10x10x4xf32, #tpu.memory_space<vmem>>, vector<4x8x8x4xf32>
    %53 = vector.shape_cast %52 : vector<4x8x8x4xf32> to vector<256x4xf32>
    %c1_74 = arith.constant 1 : index
    %c1_75 = arith.constant 1 : index
    %c2_76 = arith.constant 2 : index
    %c0_77 = arith.constant 0 : index
    %54 = vector.load %arg8[%c1_74, %c1_75, %c2_76, %c0_77] : memref<6x10x10x4xf32, #tpu.memory_space<vmem>>, vector<4x8x8x4xf32>
    %55 = vector.shape_cast %54 : vector<4x8x8x4xf32> to vector<256x4xf32>
    %c1_78 = arith.constant 1 : index
    %c2_79 = arith.constant 2 : index
    %c0_80 = arith.constant 0 : index
    %c0_81 = arith.constant 0 : index
    %56 = vector.load %arg8[%c1_78, %c2_79, %c0_80, %c0_81] : memref<6x10x10x4xf32, #tpu.memory_space<vmem>>, vector<4x8x8x4xf32>
    %57 = vector.shape_cast %56 : vector<4x8x8x4xf32> to vector<256x4xf32>
    %c1_82 = arith.constant 1 : index
    %c2_83 = arith.constant 2 : index
    %c1_84 = arith.constant 1 : index
    %c0_85 = arith.constant 0 : index
    %58 = vector.load %arg8[%c1_82, %c2_83, %c1_84, %c0_85] : memref<6x10x10x4xf32, #tpu.memory_space<vmem>>, vector<4x8x8x4xf32>
    %59 = vector.shape_cast %58 : vector<4x8x8x4xf32> to vector<256x4xf32>
    %c1_86 = arith.constant 1 : index
    %c2_87 = arith.constant 2 : index
    %c2_88 = arith.constant 2 : index
    %c0_89 = arith.constant 0 : index
    %60 = vector.load %arg8[%c1_86, %c2_87, %c2_88, %c0_89] : memref<6x10x10x4xf32, #tpu.memory_space<vmem>>, vector<4x8x8x4xf32>
    %61 = vector.shape_cast %60 : vector<4x8x8x4xf32> to vector<256x4xf32>
    %c2_90 = arith.constant 2 : index
    %c0_91 = arith.constant 0 : index
    %c0_92 = arith.constant 0 : index
    %c0_93 = arith.constant 0 : index
    %62 = vector.load %arg8[%c2_90, %c0_91, %c0_92, %c0_93] : memref<6x10x10x4xf32, #tpu.memory_space<vmem>>, vector<4x8x8x4xf32>
    %63 = vector.shape_cast %62 : vector<4x8x8x4xf32> to vector<256x4xf32>
    %c2_94 = arith.constant 2 : index
    %c0_95 = arith.constant 0 : index
    %c1_96 = arith.constant 1 : index
    %c0_97 = arith.constant 0 : index
    %64 = vector.load %arg8[%c2_94, %c0_95, %c1_96, %c0_97] : memref<6x10x10x4xf32, #tpu.memory_space<vmem>>, vector<4x8x8x4xf32>
    %65 = vector.shape_cast %64 : vector<4x8x8x4xf32> to vector<256x4xf32>
    %c2_98 = arith.constant 2 : index
    %c0_99 = arith.constant 0 : index
    %c2_100 = arith.constant 2 : index
    %c0_101 = arith.constant 0 : index
    %66 = vector.load %arg8[%c2_98, %c0_99, %c2_100, %c0_101] : memref<6x10x10x4xf32, #tpu.memory_space<vmem>>, vector<4x8x8x4xf32>
    %67 = vector.shape_cast %66 : vector<4x8x8x4xf32> to vector<256x4xf32>
    %c2_102 = arith.constant 2 : index
    %c1_103 = arith.constant 1 : index
    %c0_104 = arith.constant 0 : index
    %c0_105 = arith.constant 0 : index
    %68 = vector.load %arg8[%c2_102, %c1_103, %c0_104, %c0_105] : memref<6x10x10x4xf32, #tpu.memory_space<vmem>>, vector<4x8x8x4xf32>
    %69 = vector.shape_cast %68 : vector<4x8x8x4xf32> to vector<256x4xf32>
    %c2_106 = arith.constant 2 : index
    %c1_107 = arith.constant 1 : index
    %c1_108 = arith.constant 1 : index
    %c0_109 = arith.constant 0 : index
    %70 = vector.load %arg8[%c2_106, %c1_107, %c1_108, %c0_109] : memref<6x10x10x4xf32, #tpu.memory_space<vmem>>, vector<4x8x8x4xf32>
    %71 = vector.shape_cast %70 : vector<4x8x8x4xf32> to vector<256x4xf32>
    %c2_110 = arith.constant 2 : index
    %c1_111 = arith.constant 1 : index
    %c2_112 = arith.constant 2 : index
    %c0_113 = arith.constant 0 : index
    %72 = vector.load %arg8[%c2_110, %c1_111, %c2_112, %c0_113] : memref<6x10x10x4xf32, #tpu.memory_space<vmem>>, vector<4x8x8x4xf32>
    %73 = vector.shape_cast %72 : vector<4x8x8x4xf32> to vector<256x4xf32>
    %c2_114 = arith.constant 2 : index
    %c2_115 = arith.constant 2 : index
    %c0_116 = arith.constant 0 : index
    %c0_117 = arith.constant 0 : index
    %74 = vector.load %arg8[%c2_114, %c2_115, %c0_116, %c0_117] : memref<6x10x10x4xf32, #tpu.memory_space<vmem>>, vector<4x8x8x4xf32>
    %75 = vector.shape_cast %74 : vector<4x8x8x4xf32> to vector<256x4xf32>
    %c2_118 = arith.constant 2 : index
    %c2_119 = arith.constant 2 : index
    %c1_120 = arith.constant 1 : index
    %c0_121 = arith.constant 0 : index
    %76 = vector.load %arg8[%c2_118, %c2_119, %c1_120, %c0_121] : memref<6x10x10x4xf32, #tpu.memory_space<vmem>>, vector<4x8x8x4xf32>
    %77 = vector.shape_cast %76 : vector<4x8x8x4xf32> to vector<256x4xf32>
    %c2_122 = arith.constant 2 : index
    %c2_123 = arith.constant 2 : index
    %c2_124 = arith.constant 2 : index
    %c0_125 = arith.constant 0 : index
    %78 = vector.load %arg8[%c2_122, %c2_123, %c2_124, %c0_125] : memref<6x10x10x4xf32, #tpu.memory_space<vmem>>, vector<4x8x8x4xf32>
    %79 = vector.shape_cast %78 : vector<4x8x8x4xf32> to vector<256x4xf32>
    %80 = tpu.concatenate %27, %29, %31, %33, %35, %37, %39, %41, %43, %45, %47, %49, %51, %53, %55, %57 in 1 : vector<256x4xf32>, vector<256x4xf32>, vector<256x4xf32>, vector<256x4xf32>, vector<256x4xf32>, vector<256x4xf32>, vector<256x4xf32>, vector<256x4xf32>, vector<256x4xf32>, vector<256x4xf32>, vector<256x4xf32>, vector<256x4xf32>, vector<256x4xf32>, vector<256x4xf32>, vector<256x4xf32>, vector<256x4xf32> -> vector<256x64xf32>
    %81 = tpu.concatenate %59, %61, %63, %65, %67, %69, %71, %73, %75, %77, %79 in 1 : vector<256x4xf32>, vector<256x4xf32>, vector<256x4xf32>, vector<256x4xf32>, vector<256x4xf32>, vector<256x4xf32>, vector<256x4xf32>, vector<256x4xf32>, vector<256x4xf32>, vector<256x4xf32>, vector<256x4xf32> -> vector<256x44xf32>
    %82 = tpu.concatenate %80, %81 in 1 : vector<256x64xf32>, vector<256x44xf32> -> vector<256x108xf32>
    %83 = arith.truncf %82 : vector<256x108xf32> to vector<256x108xbf16>
    %c0_126 = arith.constant 0 : index
    %c0_127 = arith.constant 0 : index
    %84 = vector.load %arg4[%c0_126, %c0_127] : memref<108x4xbf16, #tpu.memory_space<vmem>>, vector<108x4xbf16>
    %cst_128 = arith.constant dense<0.000000e+00> : vector<256x4xf32>
    %85 = tpu.matmul %83, %84, %cst_128 {dimension_numbers = #tpu.dot_dimension_numbers<[1], [0], [0], [1], [0, 0, 1, 1], [], []>} : vector<256x108xbf16>, vector<108x4xbf16>, vector<256x4xf32> -> vector<256x4xf32>
    %c0_129 = arith.constant 0 : index
    %c0_130 = arith.constant 0 : index
    %c0_131 = arith.constant 0 : index
    %86 = vector.load %arg5[%c0_129, %c0_130, %c0_131] : memref<1x256x4xf32, #tpu.memory_space<vmem>>, vector<1x256x4xf32>
    %87 = vector.shape_cast %86 : vector<1x256x4xf32> to vector<256x4xf32>
    %88 = vector.shape_cast %85 : vector<256x4xf32> to vector<1x256x4xf32>
    tpu.vector_store %arg5[%c0_129, %c0_130, %c0_131], %88 {strides = array<i32>} : memref<1x256x4xf32, #tpu.memory_space<vmem>>, vector<1x256x4xf32>,
    %cst_132 = arith.constant dense<0.000000e+00> : vector<4xf32>
    %89 = vector.multi_reduction <add>, %85, %cst_132 [0] : vector<256x4xf32> to vector<4xf32>
    %90 = vector.shape_cast %89 : vector<4xf32> to vector<1x4xf32>
    %c0_133 = arith.constant 0 : index
    %c0_134 = arith.constant 0 : index
    %c0_135 = arith.constant 0 : index
    %91 = vector.load %arg6[%c0_133, %c0_134, %c0_135] : memref<1x1x4xf32, #tpu.memory_space<vmem>>, vector<1x1x4xf32>
    %92 = vector.shape_cast %91 : vector<1x1x4xf32> to vector<1x4xf32>
    %93 = vector.shape_cast %90 : vector<1x4xf32> to vector<1x1x4xf32>
    tpu.vector_store %arg6[%c0_133, %c0_134, %c0_135], %93 {strides = array<i32>} : memref<1x1x4xf32, #tpu.memory_space<vmem>>, vector<1x1x4xf32>,
    %94 = arith.mulf %85, %85 : vector<256x4xf32>
    %cst_136 = arith.constant dense<0.000000e+00> : vector<4xf32>
    %95 = vector.multi_reduction <add>, %94, %cst_136 [0] : vector<256x4xf32> to vector<4xf32>
    %96 = vector.shape_cast %95 : vector<4xf32> to vector<1x4xf32>
    %c0_137 = arith.constant 0 : index
    %c0_138 = arith.constant 0 : index
    %c0_139 = arith.constant 0 : index
    %97 = vector.load %arg7[%c0_137, %c0_138, %c0_139] : memref<1x1x4xf32, #tpu.memory_space<vmem>>, vector<1x1x4xf32>
    %98 = vector.shape_cast %97 : vector<1x1x4xf32> to vector<1x4xf32>
    %99 = vector.shape_cast %96 : vector<1x4xf32> to vector<1x1x4xf32>
    tpu.vector_store %arg7[%c0_137, %c0_138, %c0_139], %99 {strides = array<i32>} : memref<1x1x4xf32, #tpu.memory_space<vmem>>, vector<1x1x4xf32>,
    return
  }
  func.func @transform_0(%arg0: i32) -> (i32, i32, i32, i32, i32) {
    %c0_i32 = arith.constant 0 : i32
    %c0_i32_0 = arith.constant 0 : i32
    %c0_i32_1 = arith.constant 0 : i32
    %c0_i32_2 = arith.constant 0 : i32
    %c0_i32_3 = arith.constant 0 : i32
    return %arg0, %c0_i32, %c0_i32_0, %c0_i32_1, %c0_i32_2 : i32, i32, i32, i32, i32
  }
  func.func @transform_1(%arg0: i32) -> (i32, i32) {
    %c0_i32 = arith.constant 0 : i32
    %c0_i32_0 = arith.constant 0 : i32
    %c0_i32_1 = arith.constant 0 : i32
    return %c0_i32, %c0_i32_0 : i32, i32
  }
  func.func @transform_2(%arg0: i32) -> (i32, i32) {
    %c0_i32 = arith.constant 0 : i32
    %c0_i32_0 = arith.constant 0 : i32
    %c0_i32_1 = arith.constant 0 : i32
    return %c0_i32, %c0_i32_0 : i32, i32
  }
  func.func @transform_3(%arg0: i32) -> (i32, i32) {
    %c0_i32 = arith.constant 0 : i32
    %c0_i32_0 = arith.constant 0 : i32
    %c0_i32_1 = arith.constant 0 : i32
    return %c0_i32, %c0_i32_0 : i32, i32
  }
  func.func @transform_4(%arg0: i32) -> (i32, i32, i32) {
    %c0_i32 = arith.constant 0 : i32
    %c0_i32_0 = arith.constant 0 : i32
    %c0_i32_1 = arith.constant 0 : i32
    return %arg0, %c0_i32, %c0_i32_0 : i32, i32, i32
  }
  func.func @transform_5(%arg0: i32) -> (i32, i32, i32) {
    %c0_i32 = arith.constant 0 : i32
    %c0_i32_0 = arith.constant 0 : i32
    %c0_i32_1 = arith.constant 0 : i32
    return %arg0, %c0_i32, %c0_i32_0 : i32, i32, i32
  }
  func.func @transform_6(%arg0: i32) -> (i32, i32, i32) {
    %c0_i32 = arith.constant 0 : i32
    %c0_i32_0 = arith.constant 0 : i32
    %c0_i32_1 = arith.constant 0 : i32
    return %arg0, %c0_i32, %c0_i32_0 : i32, i32, i32
  }
}

</mosaic_0001>

<llo_original>
// kernel: bottleneck_mish_forward.4
$region0: #{bottleneck_mish_forward.4}
  #allocation0 [shape = 'u32[]', space=smem, size = 0x4, offset = 0x4, fixed_abs, tag = 'smem constant byte address 0x4 - core index']
  #allocation1 [shape = 'u32[144,128]{1,0:T(1,128)}', space=vmem, size = 0x12000, scoped, tag = 'internal scratch']
  %s0 = inlined_call_operand.vmem [shape: f32[512,16], index: 0, kind: input, shape index: {}]
  %s1 = inlined_call_operand.vmem [shape: f32[1,1,16], index: 1, kind: output, shape index: {0}]
  %s2 = inlined_call_operand.vmem [shape: f32[1,1,16], index: 2, kind: output, shape index: {1}]
  %3 = xla_tuple %s1, %s2
  %s4 = sld [smem:[#allocation0]]
  $region26: #{bottleneck_mish_forward.4} parent=0
    _
  %s6 = ssub.s32 1, %s4
  %s7 = scalar_select 0, %s6, %s4
  // Predicated region
  $region2: #{bottleneck_mish_forward.4} parent=0 // pred_check
    _
  $region3: #{bottleneck_mish_forward.4} parent=0 // pred_check_branch
    %9 = sbr.rel (0) target = $region5
  $region4: #{bottleneck_mish_forward.4} parent=0 // pred_region
    %s10 = sadd.s32 0, 0
    %s11 = smul.u32 64, %s10
    %p12 = scmp.lt.s32.totalorder %s11, 63
    %s13 = scalar_select %p12, %s11, 63
    %s14 = smul.addr %s13, 8
    %s15 = scalar_lea.vmem %s0, %s14
    %s16 = sadd.s32 0, 0
    %s17 = smul.u32 64, %s16
  $region5: #{bottleneck_mish_forward.4} parent=0 // pred_fallthru
    _
  %s18 = sadd.s32 0, 0
  %s19 = smul.u32 64, %s18
  %p20 = scmp.lt.s32.totalorder %s19, 63
  %s21 = scalar_select %p20, %s19, 63
  %s22 = smul.addr %s21, 8
  %s23 = scalar_lea.vmem %s0, %s22
  %s24 = sadd.s32 0, 0
  %s25 = smul.u32 64, %s24
  %p26 = scmp.lt.s32.totalorder %s25, 63
  %s27 = scalar_select %p26, %s25, 63
  %s28 = smul.addr %s27, 8
  %s29 = scalar_lea.vmem %s0, %s28
  %s30 = sadd.s32 0, 0
  %s31 = smul.u32 64, %s30
  %p32 = scmp.eq.s32.totalorder 0, 0
  // Predicated region
  $region6: #{bottleneck_mish_forward.4} parent=0 // pred_check
    %p33 = pneg %p32
  $region7: #{bottleneck_mish_forward.4} parent=0 // pred_check_branch
    %35 = sbr.rel (%p33) target = $region9
  $region8: #{bottleneck_mish_forward.4} parent=0 // pred_region
    %vm36 = vcmask 122880
    %37 = vst.msk [vmem:[%s1] sm:$0x1] %vm36, 0.0
    %38 = vst.msk [vmem:[%s2] sm:$0x1] %vm36, 0.0
  $region9: #{bottleneck_mish_forward.4} parent=0 // pred_fallthru
    _
  %v39 = vld [vmem:[%s29] sm:$0xff]
  %v40 = vld [vmem:[%s29 + $0x8] sm:$0xff]
  %v41 = vld [vmem:[%s29 + $0x10] sm:$0xff]
  %v42 = vld [vmem:[%s29 + $0x18] sm:$0xff]
  %v43 = vld [vmem:[%s29 + $0x20] sm:$0xff]
  %v44 = vld [vmem:[%s29 + $0x28] sm:$0xff]
  %v45 = vld [vmem:[%s29 + $0x30] sm:$0xff]
  %v46 = vld [vmem:[%s29 + $0x38] sm:$0xff]
  %v47 = vld [vmem:[%s29 + $0x40] sm:$0xff]
  %v48 = vld [vmem:[%s29 + $0x48] sm:$0xff]
  %v49 = vld [vmem:[%s29 + $0x50] sm:$0xff]
  %v50 = vld [vmem:[%s29 + $0x58] sm:$0xff]
  %v51 = vld [vmem:[%s29 + $0x60] sm:$0xff]
  %v52 = vld [vmem:[%s29 + $0x68] sm:$0xff]
  %v53 = vld [vmem:[%s29 + $0x70] sm:$0xff]
  %v54 = vld [vmem:[%s29 + $0x78] sm:$0xff]
  %v55 = vld [vmem:[%s29 + $0x80] sm:$0xff]
  %v56 = vld [vmem:[%s29 + $0x88] sm:$0xff]
  %v57 = vld [vmem:[%s29 + $0x90] sm:$0xff]
  %v58 = vld [vmem:[%s29 + $0x98] sm:$0xff]
  %v59 = vld [vmem:[%s29 + $0xa0] sm:$0xff]
  %v60 = vld [vmem:[%s29 + $0xa8] sm:$0xff]
  %v61 = vld [vmem:[%s29 + $0xb0] sm:$0xff]
  %v62 = vld [vmem:[%s29 + $0xb8] sm:$0xff]
  %v63 = vld [vmem:[%s29 + $0xc0] sm:$0xff]
  %v64 = vld [vmem:[%s29 + $0xc8] sm:$0xff]
  %v65 = vld [vmem:[%s29 + $0xd0] sm:$0xff]
  %v66 = vld [vmem:[%s29 + $0xd8] sm:$0xff]
  %v67 = vld [vmem:[%s29 + $0xe0] sm:$0xff]
  %v68 = vld [vmem:[%s29 + $0xe8] sm:$0xff]
  %v69 = vld [vmem:[%s29 + $0xf0] sm:$0xff]
  %v70 = vld [vmem:[%s29 + $0xf8] sm:$0xff]
  %v71 = vld [vmem:[%s29 + $0x100] sm:$0xff]
  %v72 = vld [vmem:[%s29 + $0x108] sm:$0xff]
  %v73 = vld [vmem:[%s29 + $0x110] sm:$0xff]
  %v74 = vld [vmem:[%s29 + $0x118] sm:$0xff]
  %v75 = vld [vmem:[%s29 + $0x120] sm:$0xff]
  %v76 = vld [vmem:[%s29 + $0x128] sm:$0xff]
  %v77 = vld [vmem:[%s29 + $0x130] sm:$0xff]
  %v78 = vld [vmem:[%s29 + $0x138] sm:$0xff]
  %v79 = vld [vmem:[%s29 + $0x140] sm:$0xff]
  %v80 = vld [vmem:[%s29 + $0x148] sm:$0xff]
  %v81 = vld [vmem:[%s29 + $0x150] sm:$0xff]
  %v82 = vld [vmem:[%s29 + $0x158] sm:$0xff]
  %v83 = vld [vmem:[%s29 + $0x160] sm:$0xff]
  %v84 = vld [vmem:[%s29 + $0x168] sm:$0xff]
  %v85 = vld [vmem:[%s29 + $0x170] sm:$0xff]
  %v86 = vld [vmem:[%s29 + $0x178] sm:$0xff]
  %v87 = vld [vmem:[%s29 + $0x180] sm:$0xff]
  %v88 = vld [vmem:[%s29 + $0x188] sm:$0xff]
  %v89 = vld [vmem:[%s29 + $0x190] sm:$0xff]
  %v90 = vld [vmem:[%s29 + $0x198] sm:$0xff]
  %v91 = vld [vmem:[%s29 + $0x1a0] sm:$0xff]
  %v92 = vld [vmem:[%s29 + $0x1a8] sm:$0xff]
  %v93 = vld [vmem:[%s29 + $0x1b0] sm:$0xff]
  %v94 = vld [vmem:[%s29 + $0x1b8] sm:$0xff]
  %v95 = vld [vmem:[%s29 + $0x1c0] sm:$0xff]
  %v96 = vld [vmem:[%s29 + $0x1c8] sm:$0xff]
  %v97 = vld [vmem:[%s29 + $0x1d0] sm:$0xff]
  %v98 = vld [vmem:[%s29 + $0x1d8] sm:$0xff]
  %v99 = vld [vmem:[%s29 + $0x1e0] sm:$0xff]
  %v100 = vld [vmem:[%s29 + $0x1e8] sm:$0xff]
  %v101 = vld [vmem:[%s29 + $0x1f0] sm:$0xff]
  %v102 = vld [vmem:[%s29 + $0x1f8] sm:$0xff]
  %v103 = vld [vmem:[%s1] sm:$0x1]
  %vm104 = vcmask 130048
  %v105 = vsel %vm104, %v39, 0.0
  %v106 = vsel %vm104, %v40, 0.0
  %v107 = vadd.f32 %v105, %v106
  %v108 = vsel %vm104, %v41, 0.0
  %v109 = vadd.f32 %v107, %v108
  %v110 = vsel %vm104, %v42, 0.0
  %v111 = vadd.f32 %v109, %v110
  %v112 = vsel %vm104, %v43, 0.0
  %v113 = vadd.f32 %v111, %v112
  %v114 = vsel %vm104, %v44, 0.0
  %v115 = vadd.f32 %v113, %v114
  %v116 = vsel %vm104, %v45, 0.0
  %v117 = vadd.f32 %v115, %v116
  %v118 = vsel %vm104, %v46, 0.0
  %v119 = vadd.f32 %v117, %v118
  %v120 = vsel %vm104, %v47, 0.0
  %v121 = vadd.f32 %v119, %v120
  %v122 = vsel %vm104, %v48, 0.0
  %v123 = vadd.f32 %v121, %v122
  %v124 = vsel %vm104, %v49, 0.0
  %v125 = vadd.f32 %v123, %v124
  %v126 = vsel %vm104, %v50, 0.0
  %v127 = vadd.f32 %v125, %v126
  %v128 = vsel %vm104, %v51, 0.0
  %v129 = vadd.f32 %v127, %v128
  %v130 = vsel %vm104, %v52, 0.0
  %v131 = vadd.f32 %v129, %v130
  %v132 = vsel %vm104, %v53, 0.0
  %v133 = vadd.f32 %v131, %v132
  %v134 = vsel %vm104, %v54, 0.0
  %v135 = vadd.f32 %v133, %v134
  %v136 = vsel %vm104, %v55, 0.0
  %v137 = vadd.f32 %v135, %v136
  %v138 = vsel %vm104, %v56, 0.0
  %v139 = vadd.f32 %v137, %v138
  %v140 = vsel %vm104, %v57, 0.0
  %v141 = vadd.f32 %v139, %v140
  %v142 = vsel %vm104, %v58, 0.0
  %v143 = vadd.f32 %v141, %v142
  %v144 = vsel %vm104, %v59, 0.0
  %v145 = vadd.f32 %v143, %v144
  %v146 = vsel %vm104, %v60, 0.0
  %v147 = vadd.f32 %v145, %v146
  %v148 = vsel %vm104, %v61, 0.0
  %v149 = vadd.f32 %v147, %v148
  %v150 = vsel %vm104, %v62, 0.0
  %v151 = vadd.f32 %v149, %v150
  %v152 = vsel %vm104, %v63, 0.0
  %v153 = vadd.f32 %v151, %v152
  %v154 = vsel %vm104, %v64, 0.0
  %v155 = vadd.f32 %v153, %v154
  %v156 = vsel %vm104, %v65, 0.0
  %v157 = vadd.f32 %v155, %v156
  %v158 = vsel %vm104, %v66, 0.0
  %v159 = vadd.f32 %v157, %v158
  %v160 = vsel %vm104, %v67, 0.0
  %v161 = vadd.f32 %v159, %v160
  %v162 = vsel %vm104, %v68, 0.0
  %v163 = vadd.f32 %v161, %v162
  %v164 = vsel %vm104, %v69, 0.0
  %v165 = vadd.f32 %v163, %v164
  %v166 = vsel %vm104, %v70, 0.0
  %v167 = vadd.f32 %v165, %v166
  %v168 = vsel %vm104, %v71, 0.0
  %v169 = vadd.f32 %v167, %v168
  %v170 = vsel %vm104, %v72, 0.0
  %v171 = vadd.f32 %v169, %v170
  %v172 = vsel %vm104, %v73, 0.0
  %v173 = vadd.f32 %v171, %v172
  %v174 = vsel %vm104, %v74, 0.0
  %v175 = vadd.f32 %v173, %v174
  %v176 = vsel %vm104, %v75, 0.0
  %v177 = vadd.f32 %v175, %v176
  %v178 = vsel %vm104, %v76, 0.0
  %v179 = vadd.f32 %v177, %v178
  %v180 = vsel %vm104, %v77, 0.0
  %v181 = vadd.f32 %v179, %v180
  %v182 = vsel %vm104, %v78, 0.0
  %v183 = vadd.f32 %v181, %v182
  %v184 = vsel %vm104, %v79, 0.0
  %v185 = vadd.f32 %v183, %v184
  %v186 = vsel %vm104, %v80, 0.0
  %v187 = vadd.f32 %v185, %v186
  %v188 = vsel %vm104, %v81, 0.0
  %v189 = vadd.f32 %v187, %v188
  %v190 = vsel %vm104, %v82, 0.0
  %v191 = vadd.f32 %v189, %v190
  %v192 = vsel %vm104, %v83, 0.0
  %v193 = vadd.f32 %v191, %v192
  %v194 = vsel %vm104, %v84, 0.0
  %v195 = vadd.f32 %v193, %v194
  %v196 = vsel %vm104, %v85, 0.0
  %v197 = vadd.f32 %v195, %v196
  %v198 = vsel %vm104, %v86, 0.0
  %v199 = vadd.f32 %v197, %v198
  %v200 = vsel %vm104, %v87, 0.0
  %v201 = vadd.f32 %v199, %v200
  %v202 = vsel %vm104, %v88, 0.0
  %v203 = vadd.f32 %v201, %v202
  %v204 = vsel %vm104, %v89, 0.0
  %v205 = vadd.f32 %v203, %v204
  %v206 = vsel %vm104, %v90, 0.0
  %v207 = vadd.f32 %v205, %v206
  %v208 = vsel %vm104, %v91, 0.0
  %v209 = vadd.f32 %v207, %v208
  %v210 = vsel %vm104, %v92, 0.0
  %v211 = vadd.f32 %v209, %v210
  %v212 = vsel %vm104, %v93, 0.0
  %v213 = vadd.f32 %v211, %v212
  %v214 = vsel %vm104, %v94, 0.0
  %v215 = vadd.f32 %v213, %v214
  %v216 = vsel %vm104, %v95, 0.0
  %v217 = vadd.f32 %v215, %v216
  %v218 = vsel %vm104, %v96, 0.0
  %v219 = vadd.f32 %v217, %v218
  %v220 = vsel %vm104, %v97, 0.0
  %v221 = vadd.f32 %v219, %v220
  %v222 = vsel %vm104, %v98, 0.0
  %v223 = vadd.f32 %v221, %v222
  %v224 = vsel %vm104, %v99, 0.0
  %v225 = vadd.f32 %v223, %v224
  %v226 = vsel %vm104, %v100, 0.0
  %v227 = vadd.f32 %v225, %v226
  %v228 = vsel %vm104, %v101, 0.0
  %v229 = vadd.f32 %v227, %v228
  %v230 = vsel %vm104, %v102, 0.0
  %v231 = vadd.f32 %v229, %v230
  %v232 = vrot.slane %v231, 4
  %v233 = vadd.f32 %v231, %v232
  %v234 = vrot.slane %v233, 2
  %v235 = vadd.f32 %v233, %v234
  %v236 = vrot.slane %v235, 1
  %v237 = vadd.f32 %v235, %v236
  %v238 = vadd.f32 %v103, %v237
  %vm239 = vcmask 122880
  %240 = vst.msk [vmem:[%s1] sm:$0x1] %vm239, %v238
  %v241 = vld [vmem:[%s2] sm:$0x1]
  %v242 = vmul.f32 %v39, %v39
  %v243 = vmul.f32 %v40, %v40
  %v244 = vmul.f32 %v41, %v41
  %v245 = vmul.f32 %v42, %v42
  %v246 = vmul.f32 %v43, %v43
  %v247 = vmul.f32 %v44, %v44
  %v248 = vmul.f32 %v45, %v45
  %v249 = vmul.f32 %v46, %v46
  %v250 = vmul.f32 %v47, %v47
  %v251 = vmul.f32 %v48, %v48
  %v252 = vmul.f32 %v49, %v49
  %v253 = vmul.f32 %v50, %v50
  %v254 = vmul.f32 %v51, %v51
  %v255 = vmul.f32 %v52, %v52
  %v256 = vmul.f32 %v53, %v53
  %v257 = vmul.f32 %v54, %v54
  %v258 = vmul.f32 %v55, %v55
  %v259 = vmul.f32 %v56, %v56
  %v260 = vmul.f32 %v57, %v57
  %v261 = vmul.f32 %v58, %v58
  %v262 = vmul.f32 %v59, %v59
  %v263 = vmul.f32 %v60, %v60
  %v264 = vmul.f32 %v61, %v61
  %v265 = vmul.f32 %v62, %v62
  %v266 = vmul.f32 %v63, %v63
  %v267 = vmul.f32 %v64, %v64
  %v268 = vmul.f32 %v65, %v65
  %v269 = vmul.f32 %v66, %v66
  %v270 = vmul.f32 %v67, %v67
  %v271 = vmul.f32 %v68, %v68
  %v272 = vmul.f32 %v69, %v69
  %v273 = vmul.f32 %v70, %v70
  %v274 = vmul.f32 %v71, %v71
  %v275 = vmul.f32 %v72, %v72
  %v276 = vmul.f32 %v73, %v73
  %v277 = vmul.f32 %v74, %v74
  %v278 = vmul.f32 %v75, %v75
  %v279 = vmul.f32 %v76, %v76
  %v280 = vmul.f32 %v77, %v77
  %v281 = vmul.f32 %v78, %v78
  %v282 = vmul.f32 %v79, %v79
  %v283 = vmul.f32 %v80, %v80
  %v284 = vmul.f32 %v81, %v81
  %v285 = vmul.f32 %v82, %v82
  %v286 = vmul.f32 %v83, %v83
  %v287 = vmul.f32 %v84, %v84
  %v288 = vmul.f32 %v85, %v85
  %v289 = vmul.f32 %v86, %v86
  %v290 = vmul.f32 %v87, %v87
  %v291 = vmul.f32 %v88, %v88
  %v292 = vmul.f32 %v89, %v89
  %v293 = vmul.f32 %v90, %v90
  %v294 = vmul.f32 %v91, %v91
  %v295 = vmul.f32 %v92, %v92
  %v296 = vmul.f32 %v93, %v93
  %v297 = vmul.f32 %v94, %v94
  %v298 = vmul.f32 %v95, %v95
  %v299 = vmul.f32 %v96, %v96
  %v300 = vmul.f32 %v97, %v97
  %v301 = vmul.f32 %v98, %v98
  %v302 = vmul.f32 %v99, %v99
  %v303 = vmul.f32 %v100, %v100
  %v304 = vmul.f32 %v101, %v101
  %v305 = vmul.f32 %v102, %v102
  %v306 = vsel %vm104, %v242, 0.0
  %v307 = vsel %vm104, %v243, 0.0
  %v308 = vadd.f32 %v306, %v307
  %v309 = vsel %vm104, %v244, 0.0
  %v310 = vadd.f32 %v308, %v309
  %v311 = vsel %vm104, %v245, 0.0
  %v312 = vadd.f32 %v310, %v311
  %v313 = vsel %vm104, %v246, 0.0
  %v314 = vadd.f32 %v312, %v313
  %v315 = vsel %vm104, %v247, 0.0
  %v316 = vadd.f32 %v314, %v315
  %v317 = vsel %vm104, %v248, 0.0
  %v318 = vadd.f32 %v316, %v317
  %v319 = vsel %vm104, %v249, 0.0
  %v320 = vadd.f32 %v318, %v319
  %v321 = vsel %vm104, %v250, 0.0
  %v322 = vadd.f32 %v320, %v321
  %v323 = vsel %vm104, %v251, 0.0
  %v324 = vadd.f32 %v322, %v323
  %v325 = vsel %vm104, %v252, 0.0
  %v326 = vadd.f32 %v324, %v325
  %v327 = vsel %vm104, %v253, 0.0
  %v328 = vadd.f32 %v326, %v327
  %v329 = vsel %vm104, %v254, 0.0
  %v330 = vadd.f32 %v328, %v329
  %v331 = vsel %vm104, %v255, 0.0
  %v332 = vadd.f32 %v330, %v331
  %v333 = vsel %vm104, %v256, 0.0
  %v334 = vadd.f32 %v332, %v333
  %v335 = vsel %vm104, %v257, 0.0
  %v336 = vadd.f32 %v334, %v335
  %v337 = vsel %vm104, %v258, 0.0
  %v338 = vadd.f32 %v336, %v337
  %v339 = vsel %vm104, %v259, 0.0
  %v340 = vadd.f32 %v338, %v339
  %v341 = vsel %vm104, %v260, 0.0
  %v342 = vadd.f32 %v340, %v341
  %v343 = vsel %vm104, %v261, 0.0
  %v344 = vadd.f32 %v342, %v343
  %v345 = vsel %vm104, %v262, 0.0
  %v346 = vadd.f32 %v344, %v345
  %v347 = vsel %vm104, %v263, 0.0
  %v348 = vadd.f32 %v346, %v347
  %v349 = vsel %vm104, %v264, 0.0
  %v350 = vadd.f32 %v348, %v349
  %v351 = vsel %vm104, %v265, 0.0
  %v352 = vadd.f32 %v350, %v351
  %v353 = vsel %vm104, %v266, 0.0
  %v354 = vadd.f32 %v352, %v353
  %v355 = vsel %vm104, %v267, 0.0
  %v356 = vadd.f32 %v354, %v355
  %v357 = vsel %vm104, %v268, 0.0
  %v358 = vadd.f32 %v356, %v357
  %v359 = vsel %vm104, %v269, 0.0
  %v360 = vadd.f32 %v358, %v359
  %v361 = vsel %vm104, %v270, 0.0
  %v362 = vadd.f32 %v360, %v361
  %v363 = vsel %vm104, %v271, 0.0
  %v364 = vadd.f32 %v362, %v363
  %v365 = vsel %vm104, %v272, 0.0
  %v366 = vadd.f32 %v364, %v365
  %v367 = vsel %vm104, %v273, 0.0
  %v368 = vadd.f32 %v366, %v367
  %v369 = vsel %vm104, %v274, 0.0
  %v370 = vadd.f32 %v368, %v369
  %v371 = vsel %vm104, %v275, 0.0
  %v372 = vadd.f32 %v370, %v371
  %v373 = vsel %vm104, %v276, 0.0
  %v374 = vadd.f32 %v372, %v373
  %v375 = vsel %vm104, %v277, 0.0
  %v376 = vadd.f32 %v374, %v375
  %v377 = vsel %vm104, %v278, 0.0
  %v378 = vadd.f32 %v376, %v377
  %v379 = vsel %vm104, %v279, 0.0
  %v380 = vadd.f32 %v378, %v379
  %v381 = vsel %vm104, %v280, 0.0
  %v382 = vadd.f32 %v380, %v381
  %v383 = vsel %vm104, %v281, 0.0
  %v384 = vadd.f32 %v382, %v383
  %v385 = vsel %vm104, %v282, 0.0
  %v386 = vadd.f32 %v384, %v385
  %v387 = vsel %vm104, %v283, 0.0
  %v388 = vadd.f32 %v386, %v387
  %v389 = vsel %vm104, %v284, 0.0
  %v390 = vadd.f32 %v388, %v389
  %v391 = vsel %vm104, %v285, 0.0
  %v392 = vadd.f32 %v390, %v391
  %v393 = vsel %vm104, %v286, 0.0
  %v394 = vadd.f32 %v392, %v393
  %v395 = vsel %vm104, %v287, 0.0
  %v396 = vadd.f32 %v394, %v395
  %v397 = vsel %vm104, %v288, 0.0
  %v398 = vadd.f32 %v396, %v397
  %v399 = vsel %vm104, %v289, 0.0
  %v400 = vadd.f32 %v398, %v399
  %v401 = vsel %vm104, %v290, 0.0
  %v402 = vadd.f32 %v400, %v401
  %v403 = vsel %vm104, %v291, 0.0
  %v404 = vadd.f32 %v402, %v403
  %v405 = vsel %vm104, %v292, 0.0
  %v406 = vadd.f32 %v404, %v405
  %v407 = vsel %vm104, %v293, 0.0
  %v408 = vadd.f32 %v406, %v407
  %v409 = vsel %vm104, %v294, 0.0
  %v410 = vadd.f32 %v408, %v409
  %v411 = vsel %vm104, %v295, 0.0
  %v412 = vadd.f32 %v410, %v411
  %v413 = vsel %vm104, %v296, 0.0
  %v414 = vadd.f32 %v412, %v413
  %v415 = vsel %vm104, %v297, 0.0
  %v416 = vadd.f32 %v414, %v415
  %v417 = vsel %vm104, %v298, 0.0
  %v418 = vadd.f32 %v416, %v417
  %v419 = vsel %vm104, %v299, 0.0
  %v420 = vadd.f32 %v418, %v419
  %v421 = vsel %vm104, %v300, 0.0
  %v422 = vadd.f32 %v420, %v421
  %v423 = vsel %vm104, %v301, 0.0
  %v424 = vadd.f32 %v422, %v423
  %v425 = vsel %vm104, %v302, 0.0
  %v426 = vadd.f32 %v424, %v425
  %v427 = vsel %vm104, %v303, 0.0
  %v428 = vadd.f32 %v426, %v427
  %v429 = vsel %vm104, %v304, 0.0
  %v430 = vadd.f32 %v428, %v429
  %v431 = vsel %vm104, %v305, 0.0
  %v432 = vadd.f32 %v430, %v431
  %v433 = vrot.slane %v432, 4
  %v434 = vadd.f32 %v432, %v433
  %v435 = vrot.slane %v434, 2
  %v436 = vadd.f32 %v434, %v435
  %v437 = vrot.slane %v436, 1
  %v438 = vadd.f32 %v436, %v437
  %v439 = vadd.f32 %v241, %v438
  %440 = vst.msk [vmem:[%s2] sm:$0x1] %vm239, %v439
  // Predicated region
  $region10: #{bottleneck_mish_forward.4} parent=0 // pred_check
    _
  $region11: #{bottleneck_mish_forward.4} parent=0 // pred_check_branch
    %442 = sbr.rel (0) target = $region13
  $region12: #{bottleneck_mish_forward.4} parent=0 // pred_region
    _
  $region13: #{bottleneck_mish_forward.4} parent=0 // pred_fallthru
    _
  // Predicated region
  $region14: #{bottleneck_mish_forward.4} parent=0 // pred_check
    _
  $region15: #{bottleneck_mish_forward.4} parent=0 // pred_check_branch
    %444 = sbr.rel (0) target = $region17
  $region16: #{bottleneck_mish_forward.4} parent=0 // pred_region
    _
  $region17: #{bottleneck_mish_forward.4} parent=0 // pred_fallthru
    _
  // Predicated region
  $region18: #{bottleneck_mish_forward.4} parent=0 // pred_check
    _
  $region19: #{bottleneck_mish_forward.4} parent=0 // pred_check_branch
    %446 = sbr.rel (0) target = $region21
  $region20: #{bottleneck_mish_forward.4} parent=0 // pred_region
    _
  $region21: #{bottleneck_mish_forward.4} parent=0 // pred_fallthru
    _
  // Predicated region
  $region22: #{bottleneck_mish_forward.4} parent=0 // pred_check
    _
  $region23: #{bottleneck_mish_forward.4} parent=0 // pred_check_branch
    %448 = sbr.rel (0) target = $region25
  $region24: #{bottleneck_mish_forward.4} parent=0 // pred_region
    _
  $region25: #{bottleneck_mish_forward.4} parent=0 // pred_fallthru
    _

// kernel: bottleneck_mish_forward.5
$region0: #{bottleneck_mish_forward.5}
  #allocation0 [shape = 'u32[]', space=smem, size = 0x4, offset = 0x4, fixed_abs, tag = 'smem constant byte address 0x4 - core index']
  #allocation1 [shape = 'u32[144,128]{1,0:T(1,128)}', space=vmem, size = 0x12000, scoped, tag = 'internal scratch']
  %s0 = inlined_call_operand.vmem [shape: f32[512,16], index: 0, kind: input, shape index: {}]
  %s1 = inlined_call_operand.vmem [shape: f32[1,16], index: 1, kind: input, shape index: {}]
  %s2 = inlined_call_operand.vmem [shape: f32[1,16], index: 2, kind: input, shape index: {}]
  %s3 = inlined_call_operand.vmem [shape: bf16[16,4], index: 3, kind: input, shape index: {}]
  %s4 = inlined_call_operand.vmem [shape: f32[512,4], index: 4, kind: output, shape index: {0}]
  %s5 = inlined_call_operand.vmem [shape: f32[1,1,4], index: 5, kind: output, shape index: {1}]
  %s6 = inlined_call_operand.vmem [shape: f32[1,1,4], index: 6, kind: output, shape index: {2}]
  %7 = xla_tuple %s4, %s5, %s6
  %s8 = sld [smem:[#allocation0]]
  $region46: #{bottleneck_mish_forward.5} parent=0
    _
  %s10 = ssub.s32 1, %s8
  %s11 = scalar_select 0, %s10, %s8
  // Predicated region
  $region2: #{bottleneck_mish_forward.5} parent=0 // pred_check
    _
  $region3: #{bottleneck_mish_forward.5} parent=0 // pred_check_branch
    %13 = sbr.rel (0) target = $region5
  $region4: #{bottleneck_mish_forward.5} parent=0 // pred_region
    %s14 = sadd.s32 0, 0
    %s15 = smul.u32 64, %s14
    %p16 = scmp.lt.s32.totalorder %s15, 63
    %s17 = scalar_select %p16, %s15, 63
    %s18 = smul.addr %s17, 8
    %s19 = scalar_lea.vmem %s0, %s18
    %s20 = sadd.s32 0, 0
    %s21 = smul.u32 64, %s20
  $region5: #{bottleneck_mish_forward.5} parent=0 // pred_fallthru
    _
  // Predicated region
  $region6: #{bottleneck_mish_forward.5} parent=0 // pred_check
    _
  $region7: #{bottleneck_mish_forward.5} parent=0 // pred_check_branch
    %23 = sbr.rel (0) target = $region9
  $region8: #{bottleneck_mish_forward.5} parent=0 // pred_region
    _
  $region9: #{bottleneck_mish_forward.5} parent=0 // pred_fallthru
    _
  // Predicated region
  $region10: #{bottleneck_mish_forward.5} parent=0 // pred_check
    _
  $region11: #{bottleneck_mish_forward.5} parent=0 // pred_check_branch
    %25 = sbr.rel (0) target = $region13
  $region12: #{bottleneck_mish_forward.5} parent=0 // pred_region
    _
  $region13: #{bottleneck_mish_forward.5} parent=0 // pred_fallthru
    _
  // Predicated region
  $region14: #{bottleneck_mish_forward.5} parent=0 // pred_check
    _
  $region15: #{bottleneck_mish_forward.5} parent=0 // pred_check_branch
    %27 = sbr.rel (0) target = $region17
  $region16: #{bottleneck_mish_forward.5} parent=0 // pred_region
    _
  $region17: #{bottleneck_mish_forward.5} parent=0 // pred_fallthru
    _
  %s28 = sadd.s32 0, 0
  %s29 = smul.u32 64, %s28
  %p30 = scmp.lt.s32.totalorder %s29, 63
  %s31 = scalar_select %p30, %s29, 63
  %s32 = smul.addr %s31, 8
  %s33 = scalar_lea.vmem %s0, %s32
  %s34 = sadd.s32 0, 0
  %s35 = smul.u32 64, %s34
  %p36 = scmp.lt.s32.totalorder %s35, 63
  %s37 = scalar_select %p36, %s35, 63
  %s38 = smul.addr %s37, 8
  %s39 = scalar_lea.vmem %s4, %s38
  %s40 = sadd.s32 0, 0
  %s41 = smul.u32 64, %s40
  %p42 = scmp.lt.s32.totalorder %s41, 63
  %s43 = scalar_select %p42, %s41, 63
  %s44 = smul.addr %s43, 8
  %s45 = scalar_lea.vmem %s0, %s44
  %s46 = sadd.s32 0, 0
  %s47 = smul.u32 64, %s46
  %s48 = sadd.s32 0, 0
  %s49 = smul.u32 64, %s48
  %p50 = scmp.lt.s32.totalorder %s49, 63
  %s51 = scalar_select %p50, %s49, 63
  %s52 = smul.addr %s51, 8
  %s53 = scalar_lea.vmem %s4, %s52
  %s54 = sadd.s32 0, 0
  %s55 = smul.u32 64, %s54
  %v57 = vld [vmem:[%s45] sm:$0xff]
  %v58 = vld [vmem:[%s45 + $0x8] sm:$0xff]
  %v59 = vld [vmem:[%s45 + $0x10] sm:$0xff]
  %v60 = vld [vmem:[%s45 + $0x18] sm:$0xff]
  %v61 = vld [vmem:[%s45 + $0x20] sm:$0xff]
  %v62 = vld [vmem:[%s45 + $0x28] sm:$0xff]
  %v63 = vld [vmem:[%s45 + $0x30] sm:$0xff]
  %v64 = vld [vmem:[%s45 + $0x38] sm:$0xff]
  %v65 = vld [vmem:[%s45 + $0x40] sm:$0xff]
  %v66 = vld [vmem:[%s45 + $0x48] sm:$0xff]
  %v67 = vld [vmem:[%s45 + $0x50] sm:$0xff]
  %v68 = vld [vmem:[%s45 + $0x58] sm:$0xff]
  %v69 = vld [vmem:[%s45 + $0x60] sm:$0xff]
  %v70 = vld [vmem:[%s45 + $0x68] sm:$0xff]
  %v71 = vld [vmem:[%s45 + $0x70] sm:$0xff]
  %v72 = vld [vmem:[%s45 + $0x78] sm:$0xff]
  %v73 = vld [vmem:[%s45 + $0x80] sm:$0xff]
  %v74 = vld [vmem:[%s45 + $0x88] sm:$0xff]
  %v75 = vld [vmem:[%s45 + $0x90] sm:$0xff]
  %v76 = vld [vmem:[%s45 + $0x98] sm:$0xff]
  %v77 = vld [vmem:[%s45 + $0xa0] sm:$0xff]
  %v78 = vld [vmem:[%s45 + $0xa8] sm:$0xff]
  %v79 = vld [vmem:[%s45 + $0xb0] sm:$0xff]
  %v80 = vld [vmem:[%s45 + $0xb8] sm:$0xff]
  %v81 = vld [vmem:[%s45 + $0xc0] sm:$0xff]
  %v82 = vld [vmem:[%s45 + $0xc8] sm:$0xff]
  %v83 = vld [vmem:[%s45 + $0xd0] sm:$0xff]
  %v84 = vld [vmem:[%s45 + $0xd8] sm:$0xff]
  %v85 = vld [vmem:[%s45 + $0xe0] sm:$0xff]
  %v86 = vld [vmem:[%s45 + $0xe8] sm:$0xff]
  %v87 = vld [vmem:[%s45 + $0xf0] sm:$0xff]
  %v88 = vld [vmem:[%s45 + $0xf8] sm:$0xff]
  %v89 = vld [vmem:[%s45 + $0x100] sm:$0xff]
  %v90 = vld [vmem:[%s45 + $0x108] sm:$0xff]
  %v91 = vld [vmem:[%s45 + $0x110] sm:$0xff]
  %v92 = vld [vmem:[%s45 + $0x118] sm:$0xff]
  %v93 = vld [vmem:[%s45 + $0x120] sm:$0xff]
  %v94 = vld [vmem:[%s45 + $0x128] sm:$0xff]
  %v95 = vld [vmem:[%s45 + $0x130] sm:$0xff]
  %v96 = vld [vmem:[%s45 + $0x138] sm:$0xff]
  %v97 = vld [vmem:[%s45 + $0x140] sm:$0xff]
  %v98 = vld [vmem:[%s45 + $0x148] sm:$0xff]
  %v99 = vld [vmem:[%s45 + $0x150] sm:$0xff]
  %v100 = vld [vmem:[%s45 + $0x158] sm:$0xff]
  %v101 = vld [vmem:[%s45 + $0x160] sm:$0xff]
  %v102 = vld [vmem:[%s45 + $0x168] sm:$0xff]
  %v103 = vld [vmem:[%s45 + $0x170] sm:$0xff]
  %v104 = vld [vmem:[%s45 + $0x178] sm:$0xff]
  %v105 = vld [vmem:[%s45 + $0x180] sm:$0xff]
  %v106 = vld [vmem:[%s45 + $0x188] sm:$0xff]
  %v107 = vld [vmem:[%s45 + $0x190] sm:$0xff]
  %v108 = vld [vmem:[%s45 + $0x198] sm:$0xff]
  %v109 = vld [vmem:[%s45 + $0x1a0] sm:$0xff]
  %v110 = vld [vmem:[%s45 + $0x1a8] sm:$0xff]
  %v111 = vld [vmem:[%s45 + $0x1b0] sm:$0xff]
  %v112 = vld [vmem:[%s45 + $0x1b8] sm:$0xff]
  %v113 = vld [vmem:[%s45 + $0x1c0] sm:$0xff]
  %v114 = vld [vmem:[%s45 + $0x1c8] sm:$0xff]
  %v115 = vld [vmem:[%s45 + $0x1d0] sm:$0xff]
  %v116 = vld [vmem:[%s45 + $0x1d8] sm:$0xff]
  %v117 = vld [vmem:[%s45 + $0x1e0] sm:$0xff]
  %v118 = vld [vmem:[%s45 + $0x1e8] sm:$0xff]
  %v119 = vld [vmem:[%s45 + $0x1f0] sm:$0xff]
  %v120 = vld [vmem:[%s45 + $0x1f8] sm:$0xff]
  %v121 = vld [vmem:[%s1] sm:$0x1]
  %v123 = vlaneseq
  %v124 = vshrl.u32 %v123, 7
  %v125 = vsub.s32 0, %v124
  %v126 = vrot.slane %v121, %v125
  %v128 = vmul.f32 %v57, %v126
  %v129 = vmul.f32 %v58, %v126
  %v130 = vmul.f32 %v59, %v126
  %v131 = vmul.f32 %v60, %v126
  %v132 = vmul.f32 %v61, %v126
  %v133 = vmul.f32 %v62, %v126
  %v134 = vmul.f32 %v63, %v126
  %v135 = vmul.f32 %v64, %v126
  %v136 = vmul.f32 %v65, %v126
  %v137 = vmul.f32 %v66, %v126
  %v138 = vmul.f32 %v67, %v126
  %v139 = vmul.f32 %v68, %v126
  %v140 = vmul.f32 %v69, %v126
  %v141 = vmul.f32 %v70, %v126
  %v142 = vmul.f32 %v71, %v126
  %v143 = vmul.f32 %v72, %v126
  %v144 = vmul.f32 %v73, %v126
  %v145 = vmul.f32 %v74, %v126
  %v146 = vmul.f32 %v75, %v126
  %v147 = vmul.f32 %v76, %v126
  %v148 = vmul.f32 %v77, %v126
  %v149 = vmul.f32 %v78, %v126
  %v150 = vmul.f32 %v79, %v126
  %v151 = vmul.f32 %v80, %v126
  %v152 = vmul.f32 %v81, %v126
  %v153 = vmul.f32 %v82, %v126
  %v154 = vmul.f32 %v83, %v126
  %v155 = vmul.f32 %v84, %v126
  %v156 = vmul.f32 %v85, %v126
  %v157 = vmul.f32 %v86, %v126
  %v158 = vmul.f32 %v87, %v126
  %v159 = vmul.f32 %v88, %v126
  %v160 = vmul.f32 %v89, %v126
  %v161 = vmul.f32 %v90, %v126
  %v162 = vmul.f32 %v91, %v126
  %v163 = vmul.f32 %v92, %v126
  %v164 = vmul.f32 %v93, %v126
  %v165 = vmul.f32 %v94, %v126
  %v166 = vmul.f32 %v95, %v126
  %v167 = vmul.f32 %v96, %v126
  %v168 = vmul.f32 %v97, %v126
  %v169 = vmul.f32 %v98, %v126
  %v170 = vmul.f32 %v99, %v126
  %v171 = vmul.f32 %v100, %v126
  %v172 = vmul.f32 %v101, %v126
  %v173 = vmul.f32 %v102, %v126
  %v174 = vmul.f32 %v103, %v126
  %v175 = vmul.f32 %v104, %v126
  %v176 = vmul.f32 %v105, %v126
  %v177 = vmul.f32 %v106, %v126
  %v178 = vmul.f32 %v107, %v126
  %v179 = vmul.f32 %v108, %v126
  %v180 = vmul.f32 %v109, %v126
  %v181 = vmul.f32 %v110, %v126
  %v182 = vmul.f32 %v111, %v126
  %v183 = vmul.f32 %v112, %v126
  %v184 = vmul.f32 %v113, %v126
  %v185 = vmul.f32 %v114, %v126
  %v186 = vmul.f32 %v115, %v126
  %v187 = vmul.f32 %v116, %v126
  %v188 = vmul.f32 %v117, %v126
  %v189 = vmul.f32 %v118, %v126
  %v190 = vmul.f32 %v119, %v126
  %v191 = vmul.f32 %v120, %v126
  %v192 = vld [vmem:[%s2] sm:$0x1]
  %v194 = vlaneseq
  %v195 = vshrl.u32 %v194, 7
  %v196 = vsub.s32 0, %v195
  %v197 = vrot.slane %v192, %v196
  %v199 = vadd.f32 %v128, %v197
  %v200 = vadd.f32 %v129, %v197
  %v201 = vadd.f32 %v130, %v197
  %v202 = vadd.f32 %v131, %v197
  %v203 = vadd.f32 %v132, %v197
  %v204 = vadd.f32 %v133, %v197
  %v205 = vadd.f32 %v134, %v197
  %v206 = vadd.f32 %v135, %v197
  %v207 = vadd.f32 %v136, %v197
  %v208 = vadd.f32 %v137, %v197
  %v209 = vadd.f32 %v138, %v197
  %v210 = vadd.f32 %v139, %v197
  %v211 = vadd.f32 %v140, %v197
  %v212 = vadd.f32 %v141, %v197
  %v213 = vadd.f32 %v142, %v197
  %v214 = vadd.f32 %v143, %v197
  %v215 = vadd.f32 %v144, %v197
  %v216 = vadd.f32 %v145, %v197
  %v217 = vadd.f32 %v146, %v197
  %v218 = vadd.f32 %v147, %v197
  %v219 = vadd.f32 %v148, %v197
  %v220 = vadd.f32 %v149, %v197
  %v221 = vadd.f32 %v150, %v197
  %v222 = vadd.f32 %v151, %v197
  %v223 = vadd.f32 %v152, %v197
  %v224 = vadd.f32 %v153, %v197
  %v225 = vadd.f32 %v154, %v197
  %v226 = vadd.f32 %v155, %v197
  %v227 = vadd.f32 %v156, %v197
  %v228 = vadd.f32 %v157, %v197
  %v229 = vadd.f32 %v158, %v197
  %v230 = vadd.f32 %v159, %v197
  %v231 = vadd.f32 %v160, %v197
  %v232 = vadd.f32 %v161, %v197
  %v233 = vadd.f32 %v162, %v197
  %v234 = vadd.f32 %v163, %v197
  %v235 = vadd.f32 %v164, %v197
  %v236 = vadd.f32 %v165, %v197
  %v237 = vadd.f32 %v166, %v197
  %v238 = vadd.f32 %v167, %v197
  %v239 = vadd.f32 %v168, %v197
  %v240 = vadd.f32 %v169, %v197
  %v241 = vadd.f32 %v170, %v197
  %v242 = vadd.f32 %v171, %v197
  %v243 = vadd.f32 %v172, %v197
  %v244 = vadd.f32 %v173, %v197
  %v245 = vadd.f32 %v174, %v197
  %v246 = vadd.f32 %v175, %v197
  %v247 = vadd.f32 %v176, %v197
  %v248 = vadd.f32 %v177, %v197
  %v249 = vadd.f32 %v178, %v197
  %v250 = vadd.f32 %v179, %v197
  %v251 = vadd.f32 %v180, %v197
  %v252 = vadd.f32 %v181, %v197
  %v253 = vadd.f32 %v182, %v197
  %v254 = vadd.f32 %v183, %v197
  %v255 = vadd.f32 %v184, %v197
  %v256 = vadd.f32 %v185, %v197
  %v257 = vadd.f32 %v186, %v197
  %v258 = vadd.f32 %v187, %v197
  %v259 = vadd.f32 %v188, %v197
  %v260 = vadd.f32 %v189, %v197
  %v261 = vadd.f32 %v190, %v197
  %v262 = vadd.f32 %v191, %v197
  %v263 = vmin.f32 %v199, 20.0
  %v264 = vmin.f32 %v200, 20.0
  %v265 = vmin.f32 %v201, 20.0
  %v266 = vmin.f32 %v202, 20.0
  %v267 = vmin.f32 %v203, 20.0
  %v268 = vmin.f32 %v204, 20.0
  %v269 = vmin.f32 %v205, 20.0
  %v270 = vmin.f32 %v206, 20.0
  %v271 = vmin.f32 %v207, 20.0
  %v272 = vmin.f32 %v208, 20.0
  %v273 = vmin.f32 %v209, 20.0
  %v274 = vmin.f32 %v210, 20.0
  %v275 = vmin.f32 %v211, 20.0
  %v276 = vmin.f32 %v212, 20.0
  %v277 = vmin.f32 %v213, 20.0
  %v278 = vmin.f32 %v214, 20.0
  %v279 = vmin.f32 %v215, 20.0
  %v280 = vmin.f32 %v216, 20.0
  %v281 = vmin.f32 %v217, 20.0
  %v282 = vmin.f32 %v218, 20.0
  %v283 = vmin.f32 %v219, 20.0
  %v284 = vmin.f32 %v220, 20.0
  %v285 = vmin.f32 %v221, 20.0
  %v286 = vmin.f32 %v222, 20.0
  %v287 = vmin.f32 %v223, 20.0
  %v288 = vmin.f32 %v224, 20.0
  %v289 = vmin.f32 %v225, 20.0
  %v290 = vmin.f32 %v226, 20.0
  %v291 = vmin.f32 %v227, 20.0
  %v292 = vmin.f32 %v228, 20.0
  %v293 = vmin.f32 %v229, 20.0
  %v294 = vmin.f32 %v230, 20.0
  %v295 = vmin.f32 %v231, 20.0
  %v296 = vmin.f32 %v232, 20.0
  %v297 = vmin.f32 %v233, 20.0
  %v298 = vmin.f32 %v234, 20.0
  %v299 = vmin.f32 %v235, 20.0
  %v300 = vmin.f32 %v236, 20.0
  %v301 = vmin.f32 %v237, 20.0
  %v302 = vmin.f32 %v238, 20.0
  %v303 = vmin.f32 %v239, 20.0
  %v304 = vmin.f32 %v240, 20.0
  %v305 = vmin.f32 %v241, 20.0
  %v306 = vmin.f32 %v242, 20.0
  %v307 = vmin.f32 %v243, 20.0
  %v308 = vmin.f32 %v244, 20.0
  %v309 = vmin.f32 %v245, 20.0
  %v310 = vmin.f32 %v246, 20.0
  %v311 = vmin.f32 %v247, 20.0
  %v312 = vmin.f32 %v248, 20.0
  %v313 = vmin.f32 %v249, 20.0
  %v314 = vmin.f32 %v250, 20.0
  %v315 = vmin.f32 %v251, 20.0
  %v316 = vmin.f32 %v252, 20.0
  %v317 = vmin.f32 %v253, 20.0
  %v318 = vmin.f32 %v254, 20.0
  %v319 = vmin.f32 %v255, 20.0
  %v320 = vmin.f32 %v256, 20.0
  %v321 = vmin.f32 %v257, 20.0
  %v322 = vmin.f32 %v258, 20.0
  %v323 = vmin.f32 %v259, 20.0
  %v324 = vmin.f32 %v260, 20.0
  %v325 = vmin.f32 %v261, 20.0
  %v326 = vmin.f32 %v262, 20.0
  %v327 = vmul.f32 %v263, 1.442695
  %v328 = vpow.pop %v327
  %v329 = vmul.f32 %v264, 1.442695
  %v330 = vpow.pop %v329
  %v331 = vmul.f32 %v265, 1.442695
  %v332 = vpow.pop %v331
  %v333 = vmul.f32 %v266, 1.442695
  %v334 = vpow.pop %v333
  %v335 = vmul.f32 %v267, 1.442695
  %v336 = vpow.pop %v335
  %v337 = vmul.f32 %v268, 1.442695
  %v338 = vpow.pop %v337
  %v339 = vmul.f32 %v269, 1.442695
  %v340 = vpow.pop %v339
  %v341 = vmul.f32 %v270, 1.442695
  %v342 = vpow.pop %v341
  %v343 = vmul.f32 %v271, 1.442695
  %v344 = vpow.pop %v343
  %v345 = vmul.f32 %v272, 1.442695
  %v346 = vpow.pop %v345
  %v347 = vmul.f32 %v273, 1.442695
  %v348 = vpow.pop %v347
  %v349 = vmul.f32 %v274, 1.442695
  %v350 = vpow.pop %v349
  %v351 = vmul.f32 %v275, 1.442695
  %v352 = vpow.pop %v351
  %v353 = vmul.f32 %v276, 1.442695
  %v354 = vpow.pop %v353
  %v355 = vmul.f32 %v277, 1.442695
  %v356 = vpow.pop %v355
  %v357 = vmul.f32 %v278, 1.442695
  %v358 = vpow.pop %v357
  %v359 = vmul.f32 %v279, 1.442695
  %v360 = vpow.pop %v359
  %v361 = vmul.f32 %v280, 1.442695
  %v362 = vpow.pop %v361
  %v363 = vmul.f32 %v281, 1.442695
  %v364 = vpow.pop %v363
  %v365 = vmul.f32 %v282, 1.442695
  %v366 = vpow.pop %v365
  %v367 = vmul.f32 %v283, 1.442695
  %v368 = vpow.pop %v367
  %v369 = vmul.f32 %v284, 1.442695
  %v370 = vpow.pop %v369
  %v371 = vmul.f32 %v285, 1.442695
  %v372 = vpow.pop %v371
  %v373 = vmul.f32 %v286, 1.442695
  %v374 = vpow.pop %v373
  %v375 = vmul.f32 %v287, 1.442695
  %v376 = vpow.pop %v375
  %v377 = vmul.f32 %v288, 1.442695
  %v378 = vpow.pop %v377
  %v379 = vmul.f32 %v289, 1.442695
  %v380 = vpow.pop %v379
  %v381 = vmul.f32 %v290, 1.442695
  %v382 = vpow.pop %v381
  %v383 = vmul.f32 %v291, 1.442695
  %v384 = vpow.pop %v383
  %v385 = vmul.f32 %v292, 1.442695
  %v386 = vpow.pop %v385
  %v387 = vmul.f32 %v293, 1.442695
  %v388 = vpow.pop %v387
  %v389 = vmul.f32 %v294, 1.442695
  %v390 = vpow.pop %v389
  %v391 = vmul.f32 %v295, 1.442695
  %v392 = vpow.pop %v391
  %v393 = vmul.f32 %v296, 1.442695
  %v394 = vpow.pop %v393
  %v395 = vmul.f32 %v297, 1.442695
  %v396 = vpow.pop %v395
  %v397 = vmul.f32 %v298, 1.442695
  %v398 = vpow.pop %v397
  %v399 = vmul.f32 %v299, 1.442695
  %v400 = vpow.pop %v399
  %v401 = vmul.f32 %v300, 1.442695
  %v402 = vpow.pop %v401
  %v403 = vmul.f32 %v301, 1.442695
  %v404 = vpow.pop %v403
  %v405 = vmul.f32 %v302, 1.442695
  %v406 = vpow.pop %v405
  %v407 = vmul.f32 %v303, 1.442695
  %v408 = vpow.pop %v407
  %v409 = vmul.f32 %v304, 1.442695
  %v410 = vpow.pop %v409
  %v411 = vmul.f32 %v305, 1.442695
  %v412 = vpow.pop %v411
  %v413 = vmul.f32 %v306, 1.442695
  %v414 = vpow.pop %v413
  %v415 = vmul.f32 %v307, 1.442695
  %v416 = vpow.pop %v415
  %v417 = vmul.f32 %v308, 1.442695
  %v418 = vpow.pop %v417
  %v419 = vmul.f32 %v309, 1.442695
  %v420 = vpow.pop %v419
  %v421 = vmul.f32 %v310, 1.442695
  %v422 = vpow.pop %v421
  %v423 = vmul.f32 %v311, 1.442695
  %v424 = vpow.pop %v423
  %v425 = vmul.f32 %v312, 1.442695
  %v426 = vpow.pop %v425
  %v427 = vmul.f32 %v313, 1.442695
  %v428 = vpow.pop %v427
  %v429 = vmul.f32 %v314, 1.442695
  %v430 = vpow.pop %v429
  %v431 = vmul.f32 %v315, 1.442695
  %v432 = vpow.pop %v431
  %v433 = vmul.f32 %v316, 1.442695
  %v434 = vpow.pop %v433
  %v435 = vmul.f32 %v317, 1.442695
  %v436 = vpow.pop %v435
  %v437 = vmul.f32 %v318, 1.442695
  %v438 = vpow.pop %v437
  %v439 = vmul.f32 %v319, 1.442695
  %v440 = vpow.pop %v439
  %v441 = vmul.f32 %v320, 1.442695
  %v442 = vpow.pop %v441
  %v443 = vmul.f32 %v321, 1.442695
  %v444 = vpow.pop %v443
  %v445 = vmul.f32 %v322, 1.442695
  %v446 = vpow.pop %v445
  %v447 = vmul.f32 %v323, 1.442695
  %v448 = vpow.pop %v447
  %v449 = vmul.f32 %v324, 1.442695
  %v450 = vpow.pop %v449
  %v451 = vmul.f32 %v325, 1.442695
  %v452 = vpow.pop %v451
  %v453 = vmul.f32 %v326, 1.442695
  %v454 = vpow.pop %v453
  %v455 = vadd.f32 %v328, 2.0
  %v456 = vadd.f32 %v330, 2.0
  %v457 = vadd.f32 %v332, 2.0
  %v458 = vadd.f32 %v334, 2.0
  %v459 = vadd.f32 %v336, 2.0
  %v460 = vadd.f32 %v338, 2.0
  %v461 = vadd.f32 %v340, 2.0
  %v462 = vadd.f32 %v342, 2.0
  %v463 = vadd.f32 %v344, 2.0
  %v464 = vadd.f32 %v346, 2.0
  %v465 = vadd.f32 %v348, 2.0
  %v466 = vadd.f32 %v350, 2.0
  %v467 = vadd.f32 %v352, 2.0
  %v468 = vadd.f32 %v354, 2.0
  %v469 = vadd.f32 %v356, 2.0
  %v470 = vadd.f32 %v358, 2.0
  %v471 = vadd.f32 %v360, 2.0
  %v472 = vadd.f32 %v362, 2.0
  %v473 = vadd.f32 %v364, 2.0
  %v474 = vadd.f32 %v366, 2.0
  %v475 = vadd.f32 %v368, 2.0
  %v476 = vadd.f32 %v370, 2.0
  %v477 = vadd.f32 %v372, 2.0
  %v478 = vadd.f32 %v374, 2.0
  %v479 = vadd.f32 %v376, 2.0
  %v480 = vadd.f32 %v378, 2.0
  %v481 = vadd.f32 %v380, 2.0
  %v482 = vadd.f32 %v382, 2.0
  %v483 = vadd.f32 %v384, 2.0
  %v484 = vadd.f32 %v386, 2.0
  %v485 = vadd.f32 %v388, 2.0
  %v486 = vadd.f32 %v390, 2.0
  %v487 = vadd.f32 %v392, 2.0
  %v488 = vadd.f32 %v394, 2.0
  %v489 = vadd.f32 %v396, 2.0
  %v490 = vadd.f32 %v398, 2.0
  %v491 = vadd.f32 %v400, 2.0
  %v492 = vadd.f32 %v402, 2.0
  %v493 = vadd.f32 %v404, 2.0
  %v494 = vadd.f32 %v406, 2.0
  %v495 = vadd.f32 %v408, 2.0
  %v496 = vadd.f32 %v410, 2.0
  %v497 = vadd.f32 %v412, 2.0
  %v498 = vadd.f32 %v414, 2.0
  %v499 = vadd.f32 %v416, 2.0
  %v500 = vadd.f32 %v418, 2.0
  %v501 = vadd.f32 %v420, 2.0
  %v502 = vadd.f32 %v422, 2.0
  %v503 = vadd.f32 %v424, 2.0
  %v504 = vadd.f32 %v426, 2.0
  %v505 = vadd.f32 %v428, 2.0
  %v506 = vadd.f32 %v430, 2.0
  %v507 = vadd.f32 %v432, 2.0
  %v508 = vadd.f32 %v434, 2.0
  %v509 = vadd.f32 %v436, 2.0
  %v510 = vadd.f32 %v438, 2.0
  %v511 = vadd.f32 %v440, 2.0
  %v512 = vadd.f32 %v442, 2.0
  %v513 = vadd.f32 %v444, 2.0
  %v514 = vadd.f32 %v446, 2.0
  %v515 = vadd.f32 %v448, 2.0
  %v516 = vadd.f32 %v450, 2.0
  %v517 = vadd.f32 %v452, 2.0
  %v518 = vadd.f32 %v454, 2.0
  %v519 = vmul.f32 %v328, %v455
  %v520 = vmul.f32 %v330, %v456
  %v521 = vmul.f32 %v332, %v457
  %v522 = vmul.f32 %v334, %v458
  %v523 = vmul.f32 %v336, %v459
  %v524 = vmul.f32 %v338, %v460
  %v525 = vmul.f32 %v340, %v461
  %v526 = vmul.f32 %v342, %v462
  %v527 = vmul.f32 %v344, %v463
  %v528 = vmul.f32 %v346, %v464
  %v529 = vmul.f32 %v348, %v465
  %v530 = vmul.f32 %v350, %v466
  %v531 = vmul.f32 %v352, %v467
  %v532 = vmul.f32 %v354, %v468
  %v533 = vmul.f32 %v356, %v469
  %v534 = vmul.f32 %v358, %v470
  %v535 = vmul.f32 %v360, %v471
  %v536 = vmul.f32 %v362, %v472
  %v537 = vmul.f32 %v364, %v473
  %v538 = vmul.f32 %v366, %v474
  %v539 = vmul.f32 %v368, %v475
  %v540 = vmul.f32 %v370, %v476
  %v541 = vmul.f32 %v372, %v477
  %v542 = vmul.f32 %v374, %v478
  %v543 = vmul.f32 %v376, %v479
  %v544 = vmul.f32 %v378, %v480
  %v545 = vmul.f32 %v380, %v481
  %v546 = vmul.f32 %v382, %v482
  %v547 = vmul.f32 %v384, %v483
  %v548 = vmul.f32 %v386, %v484
  %v549 = vmul.f32 %v388, %v485
  %v550 = vmul.f32 %v390, %v486
  %v551 = vmul.f32 %v392, %v487
  %v552 = vmul.f32 %v394, %v488
  %v553 = vmul.f32 %v396, %v489
  %v554 = vmul.f32 %v398, %v490
  %v555 = vmul.f32 %v400, %v491
  %v556 = vmul.f32 %v402, %v492
  %v557 = vmul.f32 %v404, %v493
  %v558 = vmul.f32 %v406, %v494
  %v559 = vmul.f32 %v408, %v495
  %v560 = vmul.f32 %v410, %v496
  %v561 = vmul.f32 %v412, %v497
  %v562 = vmul.f32 %v414, %v498
  %v563 = vmul.f32 %v416, %v499
  %v564 = vmul.f32 %v418, %v500
  %v565 = vmul.f32 %v420, %v501
  %v566 = vmul.f32 %v422, %v502
  %v567 = vmul.f32 %v424, %v503
  %v568 = vmul.f32 %v426, %v504
  %v569 = vmul.f32 %v428, %v505
  %v570 = vmul.f32 %v430, %v506
  %v571 = vmul.f32 %v432, %v507
  %v572 = vmul.f32 %v434, %v508
  %v573 = vmul.f32 %v436, %v509
  %v574 = vmul.f32 %v438, %v510
  %v575 = vmul.f32 %v440, %v511
  %v576 = vmul.f32 %v442, %v512
  %v577 = vmul.f32 %v444, %v513
  %v578 = vmul.f32 %v446, %v514
  %v579 = vmul.f32 %v448, %v515
  %v580 = vmul.f32 %v450, %v516
  %v581 = vmul.f32 %v452, %v517
  %v582 = vmul.f32 %v454, %v518
  %vm583 = vcmp.gt.f32.partialorder %v199, 20.0
  %vm584 = vcmp.gt.f32.partialorder %v200, 20.0
  %vm585 = vcmp.gt.f32.partialorder %v201, 20.0
  %vm586 = vcmp.gt.f32.partialorder %v202, 20.0
  %vm587 = vcmp.gt.f32.partialorder %v203, 20.0
  %vm588 = vcmp.gt.f32.partialorder %v204, 20.0
  %vm589 = vcmp.gt.f32.partialorder %v205, 20.0
  %vm590 = vcmp.gt.f32.partialorder %v206, 20.0
  %vm591 = vcmp.gt.f32.partialorder %v207, 20.0
  %vm592 = vcmp.gt.f32.partialorder %v208, 20.0
  %vm593 = vcmp.gt.f32.partialorder %v209, 20.0
  %vm594 = vcmp.gt.f32.partialorder %v210, 20.0
  %vm595 = vcmp.gt.f32.partialorder %v211, 20.0
  %vm596 = vcmp.gt.f32.partialorder %v212, 20.0
  %vm597 = vcmp.gt.f32.partialorder %v213, 20.0
  %vm598 = vcmp.gt.f32.partialorder %v214, 20.0
  %vm599 = vcmp.gt.f32.partialorder %v215, 20.0
  %vm600 = vcmp.gt.f32.partialorder %v216, 20.0
  %vm601 = vcmp.gt.f32.partialorder %v217, 20.0
  %vm602 = vcmp.gt.f32.partialorder %v218, 20.0
  %vm603 = vcmp.gt.f32.partialorder %v219, 20.0
  %vm604 = vcmp.gt.f32.partialorder %v220, 20.0
  %vm605 = vcmp.gt.f32.partialorder %v221, 20.0
  %vm606 = vcmp.gt.f32.partialorder %v222, 20.0
  %vm607 = vcmp.gt.f32.partialorder %v223, 20.0
  %vm608 = vcmp.gt.f32.partialorder %v224, 20.0
  %vm609 = vcmp.gt.f32.partialorder %v225, 20.0
  %vm610 = vcmp.gt.f32.partialorder %v226, 20.0
  %vm611 = vcmp.gt.f32.partialorder %v227, 20.0
  %vm612 = vcmp.gt.f32.partialorder %v228, 20.0
  %vm613 = vcmp.gt.f32.partialorder %v229, 20.0
  %vm614 = vcmp.gt.f32.partialorder %v230, 20.0
  %vm615 = vcmp.gt.f32.partialorder %v231, 20.0
  %vm616 = vcmp.gt.f32.partialorder %v232, 20.0
  %vm617 = vcmp.gt.f32.partialorder %v233, 20.0
  %vm618 = vcmp.gt.f32.partialorder %v234, 20.0
  %vm619 = vcmp.gt.f32.partialorder %v235, 20.0
  %vm620 = vcmp.gt.f32.partialorder %v236, 20.0
  %vm621 = vcmp.gt.f32.partialorder %v237, 20.0
  %vm622 = vcmp.gt.f32.partialorder %v238, 20.0
  %vm623 = vcmp.gt.f32.partialorder %v239, 20.0
  %vm624 = vcmp.gt.f32.partialorder %v240, 20.0
  %vm625 = vcmp.gt.f32.partialorder %v241, 20.0
  %vm626 = vcmp.gt.f32.partialorder %v242, 20.0
  %vm627 = vcmp.gt.f32.partialorder %v243, 20.0
  %vm628 = vcmp.gt.f32.partialorder %v244, 20.0
  %vm629 = vcmp.gt.f32.partialorder %v245, 20.0
  %vm630 = vcmp.gt.f32.partialorder %v246, 20.0
  %vm631 = vcmp.gt.f32.partialorder %v247, 20.0
  %vm632 = vcmp.gt.f32.partialorder %v248, 20.0
  %vm633 = vcmp.gt.f32.partialorder %v249, 20.0
  %vm634 = vcmp.gt.f32.partialorder %v250, 20.0
  %vm635 = vcmp.gt.f32.partialorder %v251, 20.0
  %vm636 = vcmp.gt.f32.partialorder %v252, 20.0
  %vm637 = vcmp.gt.f32.partialorder %v253, 20.0
  %vm638 = vcmp.gt.f32.partialorder %v254, 20.0
  %vm639 = vcmp.gt.f32.partialorder %v255, 20.0
  %vm640 = vcmp.gt.f32.partialorder %v256, 20.0
  %vm641 = vcmp.gt.f32.partialorder %v257, 20.0
  %vm642 = vcmp.gt.f32.partialorder %v258, 20.0
  %vm643 = vcmp.gt.f32.partialorder %v259, 20.0
  %vm644 = vcmp.gt.f32.partialorder %v260, 20.0
  %vm645 = vcmp.gt.f32.partialorder %v261, 20.0
  %vm646 = vcmp.gt.f32.partialorder %v262, 20.0
  %v647 = vadd.f32 %v519, 2.0
  %v648 = vadd.f32 %v520, 2.0
  %v649 = vadd.f32 %v521, 2.0
  %v650 = vadd.f32 %v522, 2.0
  %v651 = vadd.f32 %v523, 2.0
  %v652 = vadd.f32 %v524, 2.0
  %v653 = vadd.f32 %v525, 2.0
  %v654 = vadd.f32 %v526, 2.0
  %v655 = vadd.f32 %v527, 2.0
  %v656 = vadd.f32 %v528, 2.0
  %v657 = vadd.f32 %v529, 2.0
  %v658 = vadd.f32 %v530, 2.0
  %v659 = vadd.f32 %v531, 2.0
  %v660 = vadd.f32 %v532, 2.0
  %v661 = vadd.f32 %v533, 2.0
  %v662 = vadd.f32 %v534, 2.0
  %v663 = vadd.f32 %v535, 2.0
  %v664 = vadd.f32 %v536, 2.0
  %v665 = vadd.f32 %v537, 2.0
  %v666 = vadd.f32 %v538, 2.0
  %v667 = vadd.f32 %v539, 2.0
  %v668 = vadd.f32 %v540, 2.0
  %v669 = vadd.f32 %v541, 2.0
  %v670 = vadd.f32 %v542, 2.0
  %v671 = vadd.f32 %v543, 2.0
  %v672 = vadd.f32 %v544, 2.0
  %v673 = vadd.f32 %v545, 2.0
  %v674 = vadd.f32 %v546, 2.0
  %v675 = vadd.f32 %v547, 2.0
  %v676 = vadd.f32 %v548, 2.0
  %v677 = vadd.f32 %v549, 2.0
  %v678 = vadd.f32 %v550, 2.0
  %v679 = vadd.f32 %v551, 2.0
  %v680 = vadd.f32 %v552, 2.0
  %v681 = vadd.f32 %v553, 2.0
  %v682 = vadd.f32 %v554, 2.0
  %v683 = vadd.f32 %v555, 2.0
  %v684 = vadd.f32 %v556, 2.0
  %v685 = vadd.f32 %v557, 2.0
  %v686 = vadd.f32 %v558, 2.0
  %v687 = vadd.f32 %v559, 2.0
  %v688 = vadd.f32 %v560, 2.0
  %v689 = vadd.f32 %v561, 2.0
  %v690 = vadd.f32 %v562, 2.0
  %v691 = vadd.f32 %v563, 2.0
  %v692 = vadd.f32 %v564, 2.0
  %v693 = vadd.f32 %v565, 2.0
  %v694 = vadd.f32 %v566, 2.0
  %v695 = vadd.f32 %v567, 2.0
  %v696 = vadd.f32 %v568, 2.0
  %v697 = vadd.f32 %v569, 2.0
  %v698 = vadd.f32 %v570, 2.0
  %v699 = vadd.f32 %v571, 2.0
  %v700 = vadd.f32 %v572, 2.0
  %v701 = vadd.f32 %v573, 2.0
  %v702 = vadd.f32 %v574, 2.0
  %v703 = vadd.f32 %v575, 2.0
  %v704 = vadd.f32 %v576, 2.0
  %v705 = vadd.f32 %v577, 2.0
  %v706 = vadd.f32 %v578, 2.0
  %v707 = vadd.f32 %v579, 2.0
  %v708 = vadd.f32 %v580, 2.0
  %v709 = vadd.f32 %v581, 2.0
  %v710 = vadd.f32 %v582, 2.0
  %v711 = vrcp.pop %v647
  %v712 = vmul.f32 %v519, %v711
  %v713 = vrcp.pop %v648
  %v714 = vmul.f32 %v520, %v713
  %v715 = vrcp.pop %v649
  %v716 = vmul.f32 %v521, %v715
  %v717 = vrcp.pop %v650
  %v718 = vmul.f32 %v522, %v717
  %v719 = vrcp.pop %v651
  %v720 = vmul.f32 %v523, %v719
  %v721 = vrcp.pop %v652
  %v722 = vmul.f32 %v524, %v721
  %v723 = vrcp.pop %v653
  %v724 = vmul.f32 %v525, %v723
  %v725 = vrcp.pop %v654
  %v726 = vmul.f32 %v526, %v725
  %v727 = vrcp.pop %v655
  %v728 = vmul.f32 %v527, %v727
  %v729 = vrcp.pop %v656
  %v730 = vmul.f32 %v528, %v729
  %v731 = vrcp.pop %v657
  %v732 = vmul.f32 %v529, %v731
  %v733 = vrcp.pop %v658
  %v734 = vmul.f32 %v530, %v733
  %v735 = vrcp.pop %v659
  %v736 = vmul.f32 %v531, %v735
  %v737 = vrcp.pop %v660
  %v738 = vmul.f32 %v532, %v737
  %v739 = vrcp.pop %v661
  %v740 = vmul.f32 %v533, %v739
  %v741 = vrcp.pop %v662
  %v742 = vmul.f32 %v534, %v741
  %v743 = vrcp.pop %v663
  %v744 = vmul.f32 %v535, %v743
  %v745 = vrcp.pop %v664
  %v746 = vmul.f32 %v536, %v745
  %v747 = vrcp.pop %v665
  %v748 = vmul.f32 %v537, %v747
  %v749 = vrcp.pop %v666
  %v750 = vmul.f32 %v538, %v749
  %v751 = vrcp.pop %v667
  %v752 = vmul.f32 %v539, %v751
  %v753 = vrcp.pop %v668
  %v754 = vmul.f32 %v540, %v753
  %v755 = vrcp.pop %v669
  %v756 = vmul.f32 %v541, %v755
  %v757 = vrcp.pop %v670
  %v758 = vmul.f32 %v542, %v757
  %v759 = vrcp.pop %v671
  %v760 = vmul.f32 %v543, %v759
  %v761 = vrcp.pop %v672
  %v762 = vmul.f32 %v544, %v761
  %v763 = vrcp.pop %v673
  %v764 = vmul.f32 %v545, %v763
  %v765 = vrcp.pop %v674
  %v766 = vmul.f32 %v546, %v765
  %v767 = vrcp.pop %v675
  %v768 = vmul.f32 %v547, %v767
  %v769 = vrcp.pop %v676
  %v770 = vmul.f32 %v548, %v769
  %v771 = vrcp.pop %v677
  %v772 = vmul.f32 %v549, %v771
  %v773 = vrcp.pop %v678
  %v774 = vmul.f32 %v550, %v773
  %v775 = vrcp.pop %v679
  %v776 = vmul.f32 %v551, %v775
  %v777 = vrcp.pop %v680
  %v778 = vmul.f32 %v552, %v777
  %v779 = vrcp.pop %v681
  %v780 = vmul.f32 %v553, %v779
  %v781 = vrcp.pop %v682
  %v782 = vmul.f32 %v554, %v781
  %v783 = vrcp.pop %v683
  %v784 = vmul.f32 %v555, %v783
  %v785 = vrcp.pop %v684
  %v786 = vmul.f32 %v556, %v785
  %v787 = vrcp.pop %v685
  %v788 = vmul.f32 %v557, %v787
  %v789 = vrcp.pop %v686
  %v790 = vmul.f32 %v558, %v789
  %v791 = vrcp.pop %v687
  %v792 = vmul.f32 %v559, %v791
  %v793 = vrcp.pop %v688
  %v794 = vmul.f32 %v560, %v793
  %v795 = vrcp.pop %v689
  %v796 = vmul.f32 %v561, %v795
  %v797 = vrcp.pop %v690
  %v798 = vmul.f32 %v562, %v797
  %v799 = vrcp.pop %v691
  %v800 = vmul.f32 %v563, %v799
  %v801 = vrcp.pop %v692
  %v802 = vmul.f32 %v564, %v801
  %v803 = vrcp.pop %v693
  %v804 = vmul.f32 %v565, %v803
  %v805 = vrcp.pop %v694
  %v806 = vmul.f32 %v566, %v805
  %v807 = vrcp.pop %v695
  %v808 = vmul.f32 %v567, %v807
  %v809 = vrcp.pop %v696
  %v810 = vmul.f32 %v568, %v809
  %v811 = vrcp.pop %v697
  %v812 = vmul.f32 %v569, %v811
  %v813 = vrcp.pop %v698
  %v814 = vmul.f32 %v570, %v813
  %v815 = vrcp.pop %v699
  %v816 = vmul.f32 %v571, %v815
  %v817 = vrcp.pop %v700
  %v818 = vmul.f32 %v572, %v817
  %v819 = vrcp.pop %v701
  %v820 = vmul.f32 %v573, %v819
  %v821 = vrcp.pop %v702
  %v822 = vmul.f32 %v574, %v821
  %v823 = vrcp.pop %v703
  %v824 = vmul.f32 %v575, %v823
  %v825 = vrcp.pop %v704
  %v826 = vmul.f32 %v576, %v825
  %v827 = vrcp.pop %v705
  %v828 = vmul.f32 %v577, %v827
  %v829 = vrcp.pop %v706
  %v830 = vmul.f32 %v578, %v829
  %v831 = vrcp.pop %v707
  %v832 = vmul.f32 %v579, %v831
  %v833 = vrcp.pop %v708
  %v834 = vmul.f32 %v580, %v833
  %v835 = vrcp.pop %v709
  %v836 = vmul.f32 %v581, %v835
  %v837 = vrcp.pop %v710
  %v838 = vmul.f32 %v582, %v837
  %v839 = vmul.f32 %v199, %v712
  %v840 = vmul.f32 %v200, %v714
  %v841 = vmul.f32 %v201, %v716
  %v842 = vmul.f32 %v202, %v718
  %v843 = vmul.f32 %v203, %v720
  %v844 = vmul.f32 %v204, %v722
  %v845 = vmul.f32 %v205, %v724
  %v846 = vmul.f32 %v206, %v726
  %v847 = vmul.f32 %v207, %v728
  %v848 = vmul.f32 %v208, %v730
  %v849 = vmul.f32 %v209, %v732
  %v850 = vmul.f32 %v210, %v734
  %v851 = vmul.f32 %v211, %v736
  %v852 = vmul.f32 %v212, %v738
  %v853 = vmul.f32 %v213, %v740
  %v854 = vmul.f32 %v214, %v742
  %v855 = vmul.f32 %v215, %v744
  %v856 = vmul.f32 %v216, %v746
  %v857 = vmul.f32 %v217, %v748
  %v858 = vmul.f32 %v218, %v750
  %v859 = vmul.f32 %v219, %v752
  %v860 = vmul.f32 %v220, %v754
  %v861 = vmul.f32 %v221, %v756
  %v862 = vmul.f32 %v222, %v758
  %v863 = vmul.f32 %v223, %v760
  %v864 = vmul.f32 %v224, %v762
  %v865 = vmul.f32 %v225, %v764
  %v866 = vmul.f32 %v226, %v766
  %v867 = vmul.f32 %v227, %v768
  %v868 = vmul.f32 %v228, %v770
  %v869 = vmul.f32 %v229, %v772
  %v870 = vmul.f32 %v230, %v774
  %v871 = vmul.f32 %v231, %v776
  %v872 = vmul.f32 %v232, %v778
  %v873 = vmul.f32 %v233, %v780
  %v874 = vmul.f32 %v234, %v782
  %v875 = vmul.f32 %v235, %v784
  %v876 = vmul.f32 %v236, %v786
  %v877 = vmul.f32 %v237, %v788
  %v878 = vmul.f32 %v238, %v790
  %v879 = vmul.f32 %v239, %v792
  %v880 = vmul.f32 %v240, %v794
  %v881 = vmul.f32 %v241, %v796
  %v882 = vmul.f32 %v242, %v798
  %v883 = vmul.f32 %v243, %v800
  %v884 = vmul.f32 %v244, %v802
  %v885 = vmul.f32 %v245, %v804
  %v886 = vmul.f32 %v246, %v806
  %v887 = vmul.f32 %v247, %v808
  %v888 = vmul.f32 %v248, %v810
  %v889 = vmul.f32 %v249, %v812
  %v890 = vmul.f32 %v250, %v814
  %v891 = vmul.f32 %v251, %v816
  %v892 = vmul.f32 %v252, %v818
  %v893 = vmul.f32 %v253, %v820
  %v894 = vmul.f32 %v254, %v822
  %v895 = vmul.f32 %v255, %v824
  %v896 = vmul.f32 %v256, %v826
  %v897 = vmul.f32 %v257, %v828
  %v898 = vmul.f32 %v258, %v830
  %v899 = vmul.f32 %v259, %v832
  %v900 = vmul.f32 %v260, %v834
  %v901 = vmul.f32 %v261, %v836
  %v902 = vmul.f32 %v262, %v838
  %v903 = vsel %vm583, %v199, %v839
  %v904 = vsel %vm584, %v200, %v840
  %v905 = vsel %vm585, %v201, %v841
  %v906 = vsel %vm586, %v202, %v842
  %v907 = vsel %vm587, %v203, %v843
  %v908 = vsel %vm588, %v204, %v844
  %v909 = vsel %vm589, %v205, %v845
  %v910 = vsel %vm590, %v206, %v846
  %v911 = vsel %vm591, %v207, %v847
  %v912 = vsel %vm592, %v208, %v848
  %v913 = vsel %vm593, %v209, %v849
  %v914 = vsel %vm594, %v210, %v850
  %v915 = vsel %vm595, %v211, %v851
  %v916 = vsel %vm596, %v212, %v852
  %v917 = vsel %vm597, %v213, %v853
  %v918 = vsel %vm598, %v214, %v854
  %v919 = vsel %vm599, %v215, %v855
  %v920 = vsel %vm600, %v216, %v856
  %v921 = vsel %vm601, %v217, %v857
  %v922 = vsel %vm602, %v218, %v858
  %v923 = vsel %vm603, %v219, %v859
  %v924 = vsel %vm604, %v220, %v860
  %v925 = vsel %vm605, %v221, %v861
  %v926 = vsel %vm606, %v222, %v862
  %v927 = vsel %vm607, %v223, %v863
  %v928 = vsel %vm608, %v224, %v864
  %v929 = vsel %vm609, %v225, %v865
  %v930 = vsel %vm610, %v226, %v866
  %v931 = vsel %vm611, %v227, %v867
  %v932 = vsel %vm612, %v228, %v868
  %v933 = vsel %vm613, %v229, %v869
  %v934 = vsel %vm614, %v230, %v870
  %v935 = vsel %vm615, %v231, %v871
  %v936 = vsel %vm616, %v232, %v872
  %v937 = vsel %vm617, %v233, %v873
  %v938 = vsel %vm618, %v234, %v874
  %v939 = vsel %vm619, %v235, %v875
  %v940 = vsel %vm620, %v236, %v876
  %v941 = vsel %vm621, %v237, %v877
  %v942 = vsel %vm622, %v238, %v878
  %v943 = vsel %vm623, %v239, %v879
  %v944 = vsel %vm624, %v240, %v880
  %v945 = vsel %vm625, %v241, %v881
  %v946 = vsel %vm626, %v242, %v882
  %v947 = vsel %vm627, %v243, %v883
  %v948 = vsel %vm628, %v244, %v884
  %v949 = vsel %vm629, %v245, %v885
  %v950 = vsel %vm630, %v246, %v886
  %v951 = vsel %vm631, %v247, %v887
  %v952 = vsel %vm632, %v248, %v888
  %v953 = vsel %vm633, %v249, %v889
  %v954 = vsel %vm634, %v250, %v890
  %v955 = vsel %vm635, %v251, %v891
  %v956 = vsel %vm636, %v252, %v892
  %v957 = vsel %vm637, %v253, %v893
  %v958 = vsel %vm638, %v254, %v894
  %v959 = vsel %vm639, %v255, %v895
  %v960 = vsel %vm640, %v256, %v896
  %v961 = vsel %vm641, %v257, %v897
  %v962 = vsel %vm642, %v258, %v898
  %v963 = vsel %vm643, %v259, %v899
  %v964 = vsel %vm644, %v260, %v900
  %v965 = vsel %vm645, %v261, %v901
  %v966 = vsel %vm646, %v262, %v902
  %v967 = vpack.c.bf16 %v904, %v903
  %v968 = vpack.c.bf16 %v906, %v905
  %v969 = vpack.c.bf16 %v908, %v907
  %v970 = vpack.c.bf16 %v910, %v909
  %v971 = vpack.c.bf16 %v912, %v911
  %v972 = vpack.c.bf16 %v914, %v913
  %v973 = vpack.c.bf16 %v916, %v915
  %v974 = vpack.c.bf16 %v918, %v917
  %v975 = vpack.c.bf16 %v920, %v919
  %v976 = vpack.c.bf16 %v922, %v921
  %v977 = vpack.c.bf16 %v924, %v923
  %v978 = vpack.c.bf16 %v926, %v925
  %v979 = vpack.c.bf16 %v928, %v927
  %v980 = vpack.c.bf16 %v930, %v929
  %v981 = vpack.c.bf16 %v932, %v931
  %v982 = vpack.c.bf16 %v934, %v933
  %v983 = vpack.c.bf16 %v936, %v935
  %v984 = vpack.c.bf16 %v938, %v937
  %v985 = vpack.c.bf16 %v940, %v939
  %v986 = vpack.c.bf16 %v942, %v941
  %v987 = vpack.c.bf16 %v944, %v943
  %v988 = vpack.c.bf16 %v946, %v945
  %v989 = vpack.c.bf16 %v948, %v947
  %v990 = vpack.c.bf16 %v950, %v949
  %v991 = vpack.c.bf16 %v952, %v951
  %v992 = vpack.c.bf16 %v954, %v953
  %v993 = vpack.c.bf16 %v956, %v955
  %v994 = vpack.c.bf16 %v958, %v957
  %v995 = vpack.c.bf16 %v960, %v959
  %v996 = vpack.c.bf16 %v962, %v961
  %v997 = vpack.c.bf16 %v964, %v963
  %v998 = vpack.c.bf16 %v966, %v965
  %v999 = vld [vmem:[%s3] sm:$0xf]
  %v1000 = vld [vmem:[%s3 + $0x4] sm:$0xf]
  %v1003 = vunpack.c.l.b16 %v999
  %v1004 = vunpack.c.l.b16 %v1000
  %v1005 = vpack.c.b16 %v1004, %v1003
  %vm1007 = vcmask 130048
  %v1009 = vsel %vm1007, %v967, 0
  %v1012 = vsel %vm1007, %v968, 0
  %v1015 = vsel %vm1007, %v969, 0
  %v1018 = vsel %vm1007, %v970, 0
  %v1021 = vsel %vm1007, %v971, 0
  %v1024 = vsel %vm1007, %v972, 0
  %v1027 = vsel %vm1007, %v973, 0
  %v1030 = vsel %vm1007, %v974, 0
  %v1033 = vsel %vm1007, %v975, 0
  %v1036 = vsel %vm1007, %v976, 0
  %v1039 = vsel %vm1007, %v977, 0
  %v1042 = vsel %vm1007, %v978, 0
  %v1045 = vsel %vm1007, %v979, 0
  %v1048 = vsel %vm1007, %v980, 0
  %v1051 = vsel %vm1007, %v981, 0
  %v1054 = vsel %vm1007, %v982, 0
  %v1057 = vsel %vm1007, %v983, 0
  %v1060 = vsel %vm1007, %v984, 0
  %v1063 = vsel %vm1007, %v985, 0
  %v1066 = vsel %vm1007, %v986, 0
  %v1069 = vsel %vm1007, %v987, 0
  %v1072 = vsel %vm1007, %v988, 0
  %v1075 = vsel %vm1007, %v989, 0
  %v1078 = vsel %vm1007, %v990, 0
  %v1081 = vsel %vm1007, %v991, 0
  %v1084 = vsel %vm1007, %v992, 0
  %v1087 = vsel %vm1007, %v993, 0
  %v1090 = vsel %vm1007, %v994, 0
  %v1093 = vsel %vm1007, %v995, 0
  %v1096 = vsel %vm1007, %v996, 0
  %v1099 = vsel %vm1007, %v997, 0
  %v1102 = vsel %vm1007, %v998, 0
  %1104 = vmatprep.subr.bf16.mxu0 0
  %1105 = vmatpush1.bf16.msra.mxu0 %v1005
  %1106 = vmatprep.subr.bf16.mxu0 0
  %1107 = vmatpush1.bf16.msra.mxu0 0
  %1108 = vmatprep.subr.bf16.mxu0 0
  %1109 = vmatpush1.bf16.msra.mxu0 0
  %1110 = vmatprep.subr.bf16.mxu0 0
  %1111 = vmatpush1.bf16.msra.mxu0 0
  %1112 = vmatprep.subr.bf16.mxu0 0
  %1113 = vmatpush1.bf16.msra.mxu0 0
  %1114 = vmatprep.subr.bf16.mxu0 0
  %1115 = vmatpush1.bf16.msra.mxu0 0
  %1116 = vmatprep.subr.bf16.mxu0 0
  %1117 = vmatpush1.bf16.msra.mxu0 0
  %1118 = vmatprep.subr.bf16.mxu0 0
  %1119 = vmatpush1.bf16.msra.mxu0 0
  %1120 = vmatprep.subr.bf16.mxu0 0
  %1121 = vmatpush1.bf16.msra.mxu0 0
  %1122 = vmatprep.subr.bf16.mxu0 0
  %1123 = vmatpush1.bf16.msra.mxu0 0
  %1124 = vmatprep.subr.bf16.mxu0 0
  %1125 = vmatpush1.bf16.msra.mxu0 0
  %1126 = vmatprep.subr.bf16.mxu0 0
  %1127 = vmatpush1.bf16.msra.mxu0 0
  %1128 = vmatprep.subr.bf16.mxu0 0
  %1129 = vmatpush1.bf16.msra.mxu0 0
  %1130 = vmatprep.subr.bf16.mxu0 0
  %1131 = vmatpush1.bf16.msra.mxu0 0
  %1132 = vmatprep.subr.bf16.mxu0 0
  %1133 = vmatpush1.bf16.msra.mxu0 0
  %1134 = vmatprep.subr.bf16.mxu0 0
  %1135 = vmatpush1.bf16.msra.mxu0 0
  %1136 = vmatprep.mubr.bf16.mxu0 0
  %1137 = vmatmul.mubr.bf16.gmra.mrb[0].mxu0 %v1009
  %v1138 = vpop.f32.mrb[0].mxu0
  %v1139 = vadd.f32 0.0, %v1138
  %v1140 = vpop.f32.mrb[0].mxu0
  %v1141 = vpop.f32.mrb[0].mxu0
  %v1142 = vadd.f32 0.0, %v1141
  %v1143 = vpop.f32.mrb[0].mxu0
  %1144 = vmatprep.mubr.bf16.mxu0 0
  %1145 = vmatmul.mubr.bf16.gmra.mrb[0].mxu0 %v1012
  %v1146 = vpop.f32.mrb[0].mxu0
  %v1147 = vadd.f32 0.0, %v1146
  %v1148 = vpop.f32.mrb[0].mxu0
  %v1149 = vpop.f32.mrb[0].mxu0
  %v1150 = vadd.f32 0.0, %v1149
  %v1151 = vpop.f32.mrb[0].mxu0
  %1152 = vmatprep.mubr.bf16.mxu0 0
  %1153 = vmatmul.mubr.bf16.gmra.mrb[0].mxu0 %v1015
  %v1154 = vpop.f32.mrb[0].mxu0
  %v1155 = vadd.f32 0.0, %v1154
  %v1156 = vpop.f32.mrb[0].mxu0
  %v1157 = vpop.f32.mrb[0].mxu0
  %v1158 = vadd.f32 0.0, %v1157
  %v1159 = vpop.f32.mrb[0].mxu0
  %1160 = vmatprep.mubr.bf16.mxu0 0
  %1161 = vmatmul.mubr.bf16.gmra.mrb[0].mxu0 %v1018
  %v1162 = vpop.f32.mrb[0].mxu0
  %v1163 = vadd.f32 0.0, %v1162
  %v1164 = vpop.f32.mrb[0].mxu0
  %v1165 = vpop.f32.mrb[0].mxu0
  %v1166 = vadd.f32 0.0, %v1165
  %v1167 = vpop.f32.mrb[0].mxu0
  %1168 = vmatprep.mubr.bf16.mxu0 0
  %1169 = vmatmul.mubr.bf16.gmra.mrb[0].mxu0 %v1021
  %v1170 = vpop.f32.mrb[0].mxu0
  %v1171 = vadd.f32 0.0, %v1170
  %v1172 = vpop.f32.mrb[0].mxu0
  %v1173 = vpop.f32.mrb[0].mxu0
  %v1174 = vadd.f32 0.0, %v1173
  %v1175 = vpop.f32.mrb[0].mxu0
  %1176 = vmatprep.mubr.bf16.mxu0 0
  %1177 = vmatmul.mubr.bf16.gmra.mrb[0].mxu0 %v1024
  %v1178 = vpop.f32.mrb[0].mxu0
  %v1179 = vadd.f32 0.0, %v1178
  %v1180 = vpop.f32.mrb[0].mxu0
  %v1181 = vpop.f32.mrb[0].mxu0
  %v1182 = vadd.f32 0.0, %v1181
  %v1183 = vpop.f32.mrb[0].mxu0
  %1184 = vmatprep.mubr.bf16.mxu0 0
  %1185 = vmatmul.mubr.bf16.gmra.mrb[0].mxu0 %v1027
  %v1186 = vpop.f32.mrb[0].mxu0
  %v1187 = vadd.f32 0.0, %v1186
  %v1188 = vpop.f32.mrb[0].mxu0
  %v1189 = vpop.f32.mrb[0].mxu0
  %v1190 = vadd.f32 0.0, %v1189
  %v1191 = vpop.f32.mrb[0].mxu0
  %1192 = vmatprep.mubr.bf16.mxu0 0
  %1193 = vmatmul.mubr.bf16.gmra.mrb[0].mxu0 %v1030
  %v1194 = vpop.f32.mrb[0].mxu0
  %v1195 = vadd.f32 0.0, %v1194
  %v1196 = vpop.f32.mrb[0].mxu0
  %v1197 = vpop.f32.mrb[0].mxu0
  %v1198 = vadd.f32 0.0, %v1197
  %v1199 = vpop.f32.mrb[0].mxu0
  %1200 = vmatprep.mubr.bf16.mxu0 0
  %1201 = vmatmul.mubr.bf16.gmra.mrb[0].mxu0 %v1033
  %v1202 = vpop.f32.mrb[0].mxu0
  %v1203 = vadd.f32 0.0, %v1202
  %v1204 = vpop.f32.mrb[0].mxu0
  %v1205 = vpop.f32.mrb[0].mxu0
  %v1206 = vadd.f32 0.0, %v1205
  %v1207 = vpop.f32.mrb[0].mxu0
  %1208 = vmatprep.mubr.bf16.mxu0 0
  %1209 = vmatmul.mubr.bf16.gmra.mrb[0].mxu0 %v1036
  %v1210 = vpop.f32.mrb[0].mxu0
  %v1211 = vadd.f32 0.0, %v1210
  %v1212 = vpop.f32.mrb[0].mxu0
  %v1213 = vpop.f32.mrb[0].mxu0
  %v1214 = vadd.f32 0.0, %v1213
  %v1215 = vpop.f32.mrb[0].mxu0
  %1216 = vmatprep.mubr.bf16.mxu0 0
  %1217 = vmatmul.mubr.bf16.gmra.mrb[0].mxu0 %v1039
  %v1218 = vpop.f32.mrb[0].mxu0
  %v1219 = vadd.f32 0.0, %v1218
  %v1220 = vpop.f32.mrb[0].mxu0
  %v1221 = vpop.f32.mrb[0].mxu0
  %v1222 = vadd.f32 0.0, %v1221
  %v1223 = vpop.f32.mrb[0].mxu0
  %1224 = vmatprep.mubr.bf16.mxu0 0
  %1225 = vmatmul.mubr.bf16.gmra.mrb[0].mxu0 %v1042
  %v1226 = vpop.f32.mrb[0].mxu0
  %v1227 = vadd.f32 0.0, %v1226
  %v1228 = vpop.f32.mrb[0].mxu0
  %v1229 = vpop.f32.mrb[0].mxu0
  %v1230 = vadd.f32 0.0, %v1229
  %v1231 = vpop.f32.mrb[0].mxu0
  %1232 = vmatprep.mubr.bf16.mxu0 0
  %1233 = vmatmul.mubr.bf16.gmra.mrb[0].mxu0 %v1045
  %v1234 = vpop.f32.mrb[0].mxu0
  %v1235 = vadd.f32 0.0, %v1234
  %v1236 = vpop.f32.mrb[0].mxu0
  %v1237 = vpop.f32.mrb[0].mxu0
  %v1238 = vadd.f32 0.0, %v1237
  %v1239 = vpop.f32.mrb[0].mxu0
  %1240 = vmatprep.mubr.bf16.mxu0 0
  %1241 = vmatmul.mubr.bf16.gmra.mrb[0].mxu0 %v1048
  %v1242 = vpop.f32.mrb[0].mxu0
  %v1243 = vadd.f32 0.0, %v1242
  %v1244 = vpop.f32.mrb[0].mxu0
  %v1245 = vpop.f32.mrb[0].mxu0
  %v1246 = vadd.f32 0.0, %v1245
  %v1247 = vpop.f32.mrb[0].mxu0
  %1248 = vmatprep.mubr.bf16.mxu0 0
  %1249 = vmatmul.mubr.bf16.gmra.mrb[0].mxu0 %v1051
  %v1250 = vpop.f32.mrb[0].mxu0
  %v1251 = vadd.f32 0.0, %v1250
  %v1252 = vpop.f32.mrb[0].mxu0
  %v1253 = vpop.f32.mrb[0].mxu0
  %v1254 = vadd.f32 0.0, %v1253
  %v1255 = vpop.f32.mrb[0].mxu0
  %1256 = vmatprep.mubr.bf16.mxu0 0
  %1257 = vmatmul.mubr.bf16.gmra.mrb[0].mxu0 %v1054
  %v1258 = vpop.f32.mrb[0].mxu0
  %v1259 = vadd.f32 0.0, %v1258
  %v1260 = vpop.f32.mrb[0].mxu0
  %v1261 = vpop.f32.mrb[0].mxu0
  %v1262 = vadd.f32 0.0, %v1261
  %v1263 = vpop.f32.mrb[0].mxu0
  %1264 = vmatprep.mubr.bf16.mxu0 0
  %1265 = vmatmul.mubr.bf16.gmra.mrb[0].mxu0 %v1057
  %v1266 = vpop.f32.mrb[0].mxu0
  %v1267 = vadd.f32 0.0, %v1266
  %v1268 = vpop.f32.mrb[0].mxu0
  %v1269 = vpop.f32.mrb[0].mxu0
  %v1270 = vadd.f32 0.0, %v1269
  %v1271 = vpop.f32.mrb[0].mxu0
  %1272 = vmatprep.mubr.bf16.mxu0 0
  %1273 = vmatmul.mubr.bf16.gmra.mrb[0].mxu0 %v1060
  %v1274 = vpop.f32.mrb[0].mxu0
  %v1275 = vadd.f32 0.0, %v1274
  %v1276 = vpop.f32.mrb[0].mxu0
  %v1277 = vpop.f32.mrb[0].mxu0
  %v1278 = vadd.f32 0.0, %v1277
  %v1279 = vpop.f32.mrb[0].mxu0
  %1280 = vmatprep.mubr.bf16.mxu0 0
  %1281 = vmatmul.mubr.bf16.gmra.mrb[0].mxu0 %v1063
  %v1282 = vpop.f32.mrb[0].mxu0
  %v1283 = vadd.f32 0.0, %v1282
  %v1284 = vpop.f32.mrb[0].mxu0
  %v1285 = vpop.f32.mrb[0].mxu0
  %v1286 = vadd.f32 0.0, %v1285
  %v1287 = vpop.f32.mrb[0].mxu0
  %1288 = vmatprep.mubr.bf16.mxu0 0
  %1289 = vmatmul.mubr.bf16.gmra.mrb[0].mxu0 %v1066
  %v1290 = vpop.f32.mrb[0].mxu0
  %v1291 = vadd.f32 0.0, %v1290
  %v1292 = vpop.f32.mrb[0].mxu0
  %v1293 = vpop.f32.mrb[0].mxu0
  %v1294 = vadd.f32 0.0, %v1293
  %v1295 = vpop.f32.mrb[0].mxu0
  %1296 = vmatprep.mubr.bf16.mxu0 0
  %1297 = vmatmul.mubr.bf16.gmra.mrb[0].mxu0 %v1069
  %v1298 = vpop.f32.mrb[0].mxu0
  %v1299 = vadd.f32 0.0, %v1298
  %v1300 = vpop.f32.mrb[0].mxu0
  %v1301 = vpop.f32.mrb[0].mxu0
  %v1302 = vadd.f32 0.0, %v1301
  %v1303 = vpop.f32.mrb[0].mxu0
  %1304 = vmatprep.mubr.bf16.mxu0 0
  %1305 = vmatmul.mubr.bf16.gmra.mrb[0].mxu0 %v1072
  %v1306 = vpop.f32.mrb[0].mxu0
  %v1307 = vadd.f32 0.0, %v1306
  %v1308 = vpop.f32.mrb[0].mxu0
  %v1309 = vpop.f32.mrb[0].mxu0
  %v1310 = vadd.f32 0.0, %v1309
  %v1311 = vpop.f32.mrb[0].mxu0
  %1312 = vmatprep.mubr.bf16.mxu0 0
  %1313 = vmatmul.mubr.bf16.gmra.mrb[0].mxu0 %v1075
  %v1314 = vpop.f32.mrb[0].mxu0
  %v1315 = vadd.f32 0.0, %v1314
  %v1316 = vpop.f32.mrb[0].mxu0
  %v1317 = vpop.f32.mrb[0].mxu0
  %v1318 = vadd.f32 0.0, %v1317
  %v1319 = vpop.f32.mrb[0].mxu0
  %1320 = vmatprep.mubr.bf16.mxu0 0
  %1321 = vmatmul.mubr.bf16.gmra.mrb[0].mxu0 %v1078
  %v1322 = vpop.f32.mrb[0].mxu0
  %v1323 = vadd.f32 0.0, %v1322
  %v1324 = vpop.f32.mrb[0].mxu0
  %v1325 = vpop.f32.mrb[0].mxu0
  %v1326 = vadd.f32 0.0, %v1325
  %v1327 = vpop.f32.mrb[0].mxu0
  %1328 = vmatprep.mubr.bf16.mxu0 0
  %1329 = vmatmul.mubr.bf16.gmra.mrb[0].mxu0 %v1081
  %v1330 = vpop.f32.mrb[0].mxu0
  %v1331 = vadd.f32 0.0, %v1330
  %v1332 = vpop.f32.mrb[0].mxu0
  %v1333 = vpop.f32.mrb[0].mxu0
  %v1334 = vadd.f32 0.0, %v1333
  %v1335 = vpop.f32.mrb[0].mxu0
  %1336 = vmatprep.mubr.bf16.mxu0 0
  %1337 = vmatmul.mubr.bf16.gmra.mrb[0].mxu0 %v1084
  %v1338 = vpop.f32.mrb[0].mxu0
  %v1339 = vadd.f32 0.0, %v1338
  %v1340 = vpop.f32.mrb[0].mxu0
  %v1341 = vpop.f32.mrb[0].mxu0
  %v1342 = vadd.f32 0.0, %v1341
  %v1343 = vpop.f32.mrb[0].mxu0
  %1344 = vmatprep.mubr.bf16.mxu0 0
  %1345 = vmatmul.mubr.bf16.gmra.mrb[0].mxu0 %v1087
  %v1346 = vpop.f32.mrb[0].mxu0
  %v1347 = vadd.f32 0.0, %v1346
  %v1348 = vpop.f32.mrb[0].mxu0
  %v1349 = vpop.f32.mrb[0].mxu0
  %v1350 = vadd.f32 0.0, %v1349
  %v1351 = vpop.f32.mrb[0].mxu0
  %1352 = vmatprep.mubr.bf16.mxu0 0
  %1353 = vmatmul.mubr.bf16.gmra.mrb[0].mxu0 %v1090
  %v1354 = vpop.f32.mrb[0].mxu0
  %v1355 = vadd.f32 0.0, %v1354
  %v1356 = vpop.f32.mrb[0].mxu0
  %v1357 = vpop.f32.mrb[0].mxu0
  %v1358 = vadd.f32 0.0, %v1357
  %v1359 = vpop.f32.mrb[0].mxu0
  %1360 = vmatprep.mubr.bf16.mxu0 0
  %1361 = vmatmul.mubr.bf16.gmra.mrb[0].mxu0 %v1093
  %v1362 = vpop.f32.mrb[0].mxu0
  %v1363 = vadd.f32 0.0, %v1362
  %v1364 = vpop.f32.mrb[0].mxu0
  %v1365 = vpop.f32.mrb[0].mxu0
  %v1366 = vadd.f32 0.0, %v1365
  %v1367 = vpop.f32.mrb[0].mxu0
  %1368 = vmatprep.mubr.bf16.mxu0 0
  %1369 = vmatmul.mubr.bf16.gmra.mrb[0].mxu0 %v1096
  %v1370 = vpop.f32.mrb[0].mxu0
  %v1371 = vadd.f32 0.0, %v1370
  %v1372 = vpop.f32.mrb[0].mxu0
  %v1373 = vpop.f32.mrb[0].mxu0
  %v1374 = vadd.f32 0.0, %v1373
  %v1375 = vpop.f32.mrb[0].mxu0
  %1376 = vmatprep.mubr.bf16.mxu0 0
  %1377 = vmatmul.mubr.bf16.gmra.mrb[0].mxu0 %v1099
  %v1378 = vpop.f32.mrb[0].mxu0
  %v1379 = vadd.f32 0.0, %v1378
  %v1380 = vpop.f32.mrb[0].mxu0
  %v1381 = vpop.f32.mrb[0].mxu0
  %v1382 = vadd.f32 0.0, %v1381
  %v1383 = vpop.f32.mrb[0].mxu0
  %1384 = vmatprep.mubr.bf16.mxu0 0
  %1385 = vmatmul.mubr.bf16.gmra.mrb[0].mxu0 %v1102
  %v1386 = vpop.f32.mrb[0].mxu0
  %v1387 = vadd.f32 0.0, %v1386
  %v1388 = vpop.f32.mrb[0].mxu0
  %v1389 = vpop.f32.mrb[0].mxu0
  %v1390 = vadd.f32 0.0, %v1389
  %v1391 = vpop.f32.mrb[0].mxu0
  %1392 = vdwg.mxu0
  %vm1393 = vcmask 31744
  %1394 = vst.msk [vmem:[%s53] sm:$0xff] %vm1393, %v1139
  %1395 = vst.msk [vmem:[%s53 + $0x8] sm:$0xff] %vm1393, %v1142
  %1396 = vst.msk [vmem:[%s53 + $0x10] sm:$0xff] %vm1393, %v1147
  %1397 = vst.msk [vmem:[%s53 + $0x18] sm:$0xff] %vm1393, %v1150
  %1398 = vst.msk [vmem:[%s53 + $0x20] sm:$0xff] %vm1393, %v1155
  %1399 = vst.msk [vmem:[%s53 + $0x28] sm:$0xff] %vm1393, %v1158
  %1400 = vst.msk [vmem:[%s53 + $0x30] sm:$0xff] %vm1393, %v1163
  %1401 = vst.msk [vmem:[%s53 + $0x38] sm:$0xff] %vm1393, %v1166
  %1402 = vst.msk [vmem:[%s53 + $0x40] sm:$0xff] %vm1393, %v1171
  %1403 = vst.msk [vmem:[%s53 + $0x48] sm:$0xff] %vm1393, %v1174
  %1404 = vst.msk [vmem:[%s53 + $0x50] sm:$0xff] %vm1393, %v1179
  %1405 = vst.msk [vmem:[%s53 + $0x58] sm:$0xff] %vm1393, %v1182
  %1406 = vst.msk [vmem:[%s53 + $0x60] sm:$0xff] %vm1393, %v1187
  %1407 = vst.msk [vmem:[%s53 + $0x68] sm:$0xff] %vm1393, %v1190
  %1408 = vst.msk [vmem:[%s53 + $0x70] sm:$0xff] %vm1393, %v1195
  %1409 = vst.msk [vmem:[%s53 + $0x78] sm:$0xff] %vm1393, %v1198
  %1410 = vst.msk [vmem:[%s53 + $0x80] sm:$0xff] %vm1393, %v1203
  %1411 = vst.msk [vmem:[%s53 + $0x88] sm:$0xff] %vm1393, %v1206
  %1412 = vst.msk [vmem:[%s53 + $0x90] sm:$0xff] %vm1393, %v1211
  %1413 = vst.msk [vmem:[%s53 + $0x98] sm:$0xff] %vm1393, %v1214
  %1414 = vst.msk [vmem:[%s53 + $0xa0] sm:$0xff] %vm1393, %v1219
  %1415 = vst.msk [vmem:[%s53 + $0xa8] sm:$0xff] %vm1393, %v1222
  %1416 = vst.msk [vmem:[%s53 + $0xb0] sm:$0xff] %vm1393, %v1227
  %1417 = vst.msk [vmem:[%s53 + $0xb8] sm:$0xff] %vm1393, %v1230
  %1418 = vst.msk [vmem:[%s53 + $0xc0] sm:$0xff] %vm1393, %v1235
  %1419 = vst.msk [vmem:[%s53 + $0xc8] sm:$0xff] %vm1393, %v1238
  %1420 = vst.msk [vmem:[%s53 + $0xd0] sm:$0xff] %vm1393, %v1243
  %1421 = vst.msk [vmem:[%s53 + $0xd8] sm:$0xff] %vm1393, %v1246
  %1422 = vst.msk [vmem:[%s53 + $0xe0] sm:$0xff] %vm1393, %v1251
  %1423 = vst.msk [vmem:[%s53 + $0xe8] sm:$0xff] %vm1393, %v1254
  %1424 = vst.msk [vmem:[%s53 + $0xf0] sm:$0xff] %vm1393, %v1259
  %1425 = vst.msk [vmem:[%s53 + $0xf8] sm:$0xff] %vm1393, %v1262
  %1426 = vst.msk [vmem:[%s53 + $0x100] sm:$0xff] %vm1393, %v1267
  %1427 = vst.msk [vmem:[%s53 + $0x108] sm:$0xff] %vm1393, %v1270
  %1428 = vst.msk [vmem:[%s53 + $0x110] sm:$0xff] %vm1393, %v1275
  %1429 = vst.msk [vmem:[%s53 + $0x118] sm:$0xff] %vm1393, %v1278
  %1430 = vst.msk [vmem:[%s53 + $0x120] sm:$0xff] %vm1393, %v1283
  %1431 = vst.msk [vmem:[%s53 + $0x128] sm:$0xff] %vm1393, %v1286
  %1432 = vst.msk [vmem:[%s53 + $0x130] sm:$0xff] %vm1393, %v1291
  %1433 = vst.msk [vmem:[%s53 + $0x138] sm:$0xff] %vm1393, %v1294
  %1434 = vst.msk [vmem:[%s53 + $0x140] sm:$0xff] %vm1393, %v1299
  %1435 = vst.msk [vmem:[%s53 + $0x148] sm:$0xff] %vm1393, %v1302
  %1436 = vst.msk [vmem:[%s53 + $0x150] sm:$0xff] %vm1393, %v1307
  %1437 = vst.msk [vmem:[%s53 + $0x158] sm:$0xff] %vm1393, %v1310
  %1438 = vst.msk [vmem:[%s53 + $0x160] sm:$0xff] %vm1393, %v1315
  %1439 = vst.msk [vmem:[%s53 + $0x168] sm:$0xff] %vm1393, %v1318
  %1440 = vst.msk [vmem:[%s53 + $0x170] sm:$0xff] %vm1393, %v1323
  %1441 = vst.msk [vmem:[%s53 + $0x178] sm:$0xff] %vm1393, %v1326
  %1442 = vst.msk [vmem:[%s53 + $0x180] sm:$0xff] %vm1393, %v1331
  %1443 = vst.msk [vmem:[%s53 + $0x188] sm:$0xff] %vm1393, %v1334
  %1444 = vst.msk [vmem:[%s53 + $0x190] sm:$0xff] %vm1393, %v1339
  %1445 = vst.msk [vmem:[%s53 + $0x198] sm:$0xff] %vm1393, %v1342
  %1446 = vst.msk [vmem:[%s53 + $0x1a0] sm:$0xff] %vm1393, %v1347
  %1447 = vst.msk [vmem:[%s53 + $0x1a8] sm:$0xff] %vm1393, %v1350
  %1448 = vst.msk [vmem:[%s53 + $0x1b0] sm:$0xff] %vm1393, %v1355
  %1449 = vst.msk [vmem:[%s53 + $0x1b8] sm:$0xff] %vm1393, %v1358
  %1450 = vst.msk [vmem:[%s53 + $0x1c0] sm:$0xff] %vm1393, %v1363
  %1451 = vst.msk [vmem:[%s53 + $0x1c8] sm:$0xff] %vm1393, %v1366
  %1452 = vst.msk [vmem:[%s53 + $0x1d0] sm:$0xff] %vm1393, %v1371
  %1453 = vst.msk [vmem:[%s53 + $0x1d8] sm:$0xff] %vm1393, %v1374
  %1454 = vst.msk [vmem:[%s53 + $0x1e0] sm:$0xff] %vm1393, %v1379
  %1455 = vst.msk [vmem:[%s53 + $0x1e8] sm:$0xff] %vm1393, %v1382
  %1456 = vst.msk [vmem:[%s53 + $0x1f0] sm:$0xff] %vm1393, %v1387
  %1457 = vst.msk [vmem:[%s53 + $0x1f8] sm:$0xff] %vm1393, %v1390
  %p1458 = scmp.eq.s32.totalorder 0, 0
  // Predicated region
  $region18: #{bottleneck_mish_forward.5} parent=0 // pred_check
    %p1459 = pneg %p1458
  $region19: #{bottleneck_mish_forward.5} parent=0 // pred_check_branch
    %1461 = sbr.rel (%p1459) target = $region21
  $region20: #{bottleneck_mish_forward.5} parent=0 // pred_region
    %vm1462 = vcmask 24576
    %1463 = vst.msk [vmem:[%s5] sm:$0x1] %vm1462, 0.0
    %1464 = vst.msk [vmem:[%s6] sm:$0x1] %vm1462, 0.0
  $region21: #{bottleneck_mish_forward.5} parent=0 // pred_fallthru
    _
  %v1465 = vld [vmem:[%s5] sm:$0x1]
  %v1466 = vsel %vm1393, %v1139, 0.0
  %v1467 = vsel %vm1393, %v1142, 0.0
  %v1468 = vadd.f32 %v1466, %v1467
  %v1469 = vsel %vm1393, %v1147, 0.0
  %v1470 = vadd.f32 %v1468, %v1469
  %v1471 = vsel %vm1393, %v1150, 0.0
  %v1472 = vadd.f32 %v1470, %v1471
  %v1473 = vsel %vm1393, %v1155, 0.0
  %v1474 = vadd.f32 %v1472, %v1473
  %v1475 = vsel %vm1393, %v1158, 0.0
  %v1476 = vadd.f32 %v1474, %v1475
  %v1477 = vsel %vm1393, %v1163, 0.0
  %v1478 = vadd.f32 %v1476, %v1477
  %v1479 = vsel %vm1393, %v1166, 0.0
  %v1480 = vadd.f32 %v1478, %v1479
  %v1481 = vsel %vm1393, %v1171, 0.0
  %v1482 = vadd.f32 %v1480, %v1481
  %v1483 = vsel %vm1393, %v1174, 0.0
  %v1484 = vadd.f32 %v1482, %v1483
  %v1485 = vsel %vm1393, %v1179, 0.0
  %v1486 = vadd.f32 %v1484, %v1485
  %v1487 = vsel %vm1393, %v1182, 0.0
  %v1488 = vadd.f32 %v1486, %v1487
  %v1489 = vsel %vm1393, %v1187, 0.0
  %v1490 = vadd.f32 %v1488, %v1489
  %v1491 = vsel %vm1393, %v1190, 0.0
  %v1492 = vadd.f32 %v1490, %v1491
  %v1493 = vsel %vm1393, %v1195, 0.0
  %v1494 = vadd.f32 %v1492, %v1493
  %v1495 = vsel %vm1393, %v1198, 0.0
  %v1496 = vadd.f32 %v1494, %v1495
  %v1497 = vsel %vm1393, %v1203, 0.0
  %v1498 = vadd.f32 %v1496, %v1497
  %v1499 = vsel %vm1393, %v1206, 0.0
  %v1500 = vadd.f32 %v1498, %v1499
  %v1501 = vsel %vm1393, %v1211, 0.0
  %v1502 = vadd.f32 %v1500, %v1501
  %v1503 = vsel %vm1393, %v1214, 0.0
  %v1504 = vadd.f32 %v1502, %v1503
  %v1505 = vsel %vm1393, %v1219, 0.0
  %v1506 = vadd.f32 %v1504, %v1505
  %v1507 = vsel %vm1393, %v1222, 0.0
  %v1508 = vadd.f32 %v1506, %v1507
  %v1509 = vsel %vm1393, %v1227, 0.0
  %v1510 = vadd.f32 %v1508, %v1509
  %v1511 = vsel %vm1393, %v1230, 0.0
  %v1512 = vadd.f32 %v1510, %v1511
  %v1513 = vsel %vm1393, %v1235, 0.0
  %v1514 = vadd.f32 %v1512, %v1513
  %v1515 = vsel %vm1393, %v1238, 0.0
  %v1516 = vadd.f32 %v1514, %v1515
  %v1517 = vsel %vm1393, %v1243, 0.0
  %v1518 = vadd.f32 %v1516, %v1517
  %v1519 = vsel %vm1393, %v1246, 0.0
  %v1520 = vadd.f32 %v1518, %v1519
  %v1521 = vsel %vm1393, %v1251, 0.0
  %v1522 = vadd.f32 %v1520, %v1521
  %v1523 = vsel %vm1393, %v1254, 0.0
  %v1524 = vadd.f32 %v1522, %v1523
  %v1525 = vsel %vm1393, %v1259, 0.0
  %v1526 = vadd.f32 %v1524, %v1525
  %v1527 = vsel %vm1393, %v1262, 0.0
  %v1528 = vadd.f32 %v1526, %v1527
  %v1529 = vsel %vm1393, %v1267, 0.0
  %v1530 = vadd.f32 %v1528, %v1529
  %v1531 = vsel %vm1393, %v1270, 0.0
  %v1532 = vadd.f32 %v1530, %v1531
  %v1533 = vsel %vm1393, %v1275, 0.0
  %v1534 = vadd.f32 %v1532, %v1533
  %v1535 = vsel %vm1393, %v1278, 0.0
  %v1536 = vadd.f32 %v1534, %v1535
  %v1537 = vsel %vm1393, %v1283, 0.0
  %v1538 = vadd.f32 %v1536, %v1537
  %v1539 = vsel %vm1393, %v1286, 0.0
  %v1540 = vadd.f32 %v1538, %v1539
  %v1541 = vsel %vm1393, %v1291, 0.0
  %v1542 = vadd.f32 %v1540, %v1541
  %v1543 = vsel %vm1393, %v1294, 0.0
  %v1544 = vadd.f32 %v1542, %v1543
  %v1545 = vsel %vm1393, %v1299, 0.0
  %v1546 = vadd.f32 %v1544, %v1545
  %v1547 = vsel %vm1393, %v1302, 0.0
  %v1548 = vadd.f32 %v1546, %v1547
  %v1549 = vsel %vm1393, %v1307, 0.0
  %v1550 = vadd.f32 %v1548, %v1549
  %v1551 = vsel %vm1393, %v1310, 0.0
  %v1552 = vadd.f32 %v1550, %v1551
  %v1553 = vsel %vm1393, %v1315, 0.0
  %v1554 = vadd.f32 %v1552, %v1553
  %v1555 = vsel %vm1393, %v1318, 0.0
  %v1556 = vadd.f32 %v1554, %v1555
  %v1557 = vsel %vm1393, %v1323, 0.0
  %v1558 = vadd.f32 %v1556, %v1557
  %v1559 = vsel %vm1393, %v1326, 0.0
  %v1560 = vadd.f32 %v1558, %v1559
  %v1561 = vsel %vm1393, %v1331, 0.0
  %v1562 = vadd.f32 %v1560, %v1561
  %v1563 = vsel %vm1393, %v1334, 0.0
  %v1564 = vadd.f32 %v1562, %v1563
  %v1565 = vsel %vm1393, %v1339, 0.0
  %v1566 = vadd.f32 %v1564, %v1565
  %v1567 = vsel %vm1393, %v1342, 0.0
  %v1568 = vadd.f32 %v1566, %v1567
  %v1569 = vsel %vm1393, %v1347, 0.0
  %v1570 = vadd.f32 %v1568, %v1569
  %v1571 = vsel %vm1393, %v1350, 0.0
  %v1572 = vadd.f32 %v1570, %v1571
  %v1573 = vsel %vm1393, %v1355, 0.0
  %v1574 = vadd.f32 %v1572, %v1573
  %v1575 = vsel %vm1393, %v1358, 0.0
  %v1576 = vadd.f32 %v1574, %v1575
  %v1577 = vsel %vm1393, %v1363, 0.0
  %v1578 = vadd.f32 %v1576, %v1577
  %v1579 = vsel %vm1393, %v1366, 0.0
  %v1580 = vadd.f32 %v1578, %v1579
  %v1581 = vsel %vm1393, %v1371, 0.0
  %v1582 = vadd.f32 %v1580, %v1581
  %v1583 = vsel %vm1393, %v1374, 0.0
  %v1584 = vadd.f32 %v1582, %v1583
  %v1585 = vsel %vm1393, %v1379, 0.0
  %v1586 = vadd.f32 %v1584, %v1585
  %v1587 = vsel %vm1393, %v1382, 0.0
  %v1588 = vadd.f32 %v1586, %v1587
  %v1589 = vsel %vm1393, %v1387, 0.0
  %v1590 = vadd.f32 %v1588, %v1589
  %v1591 = vsel %vm1393, %v1390, 0.0
  %v1592 = vadd.f32 %v1590, %v1591
  %v1593 = vrot.slane %v1592, 4
  %v1594 = vadd.f32 %v1592, %v1593
  %v1595 = vrot.slane %v1594, 2
  %v1596 = vadd.f32 %v1594, %v1595
  %v1597 = vrot.slane %v1596, 1
  %v1598 = vadd.f32 %v1596, %v1597
  %v1599 = vadd.f32 %v1465, %v1598
  %vm1600 = vcmask 24576
  %1601 = vst.msk [vmem:[%s5] sm:$0x1] %vm1600, %v1599
  %v1602 = vld [vmem:[%s6] sm:$0x1]
  %v1603 = vmul.f32 %v1139, %v1139
  %v1604 = vmul.f32 %v1142, %v1142
  %v1605 = vmul.f32 %v1147, %v1147
  %v1606 = vmul.f32 %v1150, %v1150
  %v1607 = vmul.f32 %v1155, %v1155
  %v1608 = vmul.f32 %v1158, %v1158
  %v1609 = vmul.f32 %v1163, %v1163
  %v1610 = vmul.f32 %v1166, %v1166
  %v1611 = vmul.f32 %v1171, %v1171
  %v1612 = vmul.f32 %v1174, %v1174
  %v1613 = vmul.f32 %v1179, %v1179
  %v1614 = vmul.f32 %v1182, %v1182
  %v1615 = vmul.f32 %v1187, %v1187
  %v1616 = vmul.f32 %v1190, %v1190
  %v1617 = vmul.f32 %v1195, %v1195
  %v1618 = vmul.f32 %v1198, %v1198
  %v1619 = vmul.f32 %v1203, %v1203
  %v1620 = vmul.f32 %v1206, %v1206
  %v1621 = vmul.f32 %v1211, %v1211
  %v1622 = vmul.f32 %v1214, %v1214
  %v1623 = vmul.f32 %v1219, %v1219
  %v1624 = vmul.f32 %v1222, %v1222
  %v1625 = vmul.f32 %v1227, %v1227
  %v1626 = vmul.f32 %v1230, %v1230
  %v1627 = vmul.f32 %v1235, %v1235
  %v1628 = vmul.f32 %v1238, %v1238
  %v1629 = vmul.f32 %v1243, %v1243
  %v1630 = vmul.f32 %v1246, %v1246
  %v1631 = vmul.f32 %v1251, %v1251
  %v1632 = vmul.f32 %v1254, %v1254
  %v1633 = vmul.f32 %v1259, %v1259
  %v1634 = vmul.f32 %v1262, %v1262
  %v1635 = vmul.f32 %v1267, %v1267
  %v1636 = vmul.f32 %v1270, %v1270
  %v1637 = vmul.f32 %v1275, %v1275
  %v1638 = vmul.f32 %v1278, %v1278
  %v1639 = vmul.f32 %v1283, %v1283
  %v1640 = vmul.f32 %v1286, %v1286
  %v1641 = vmul.f32 %v1291, %v1291
  %v1642 = vmul.f32 %v1294, %v1294
  %v1643 = vmul.f32 %v1299, %v1299
  %v1644 = vmul.f32 %v1302, %v1302
  %v1645 = vmul.f32 %v1307, %v1307
  %v1646 = vmul.f32 %v1310, %v1310
  %v1647 = vmul.f32 %v1315, %v1315
  %v1648 = vmul.f32 %v1318, %v1318
  %v1649 = vmul.f32 %v1323, %v1323
  %v1650 = vmul.f32 %v1326, %v1326
  %v1651 = vmul.f32 %v1331, %v1331
  %v1652 = vmul.f32 %v1334, %v1334
  %v1653 = vmul.f32 %v1339, %v1339
  %v1654 = vmul.f32 %v1342, %v1342
  %v1655 = vmul.f32 %v1347, %v1347
  %v1656 = vmul.f32 %v1350, %v1350
  %v1657 = vmul.f32 %v1355, %v1355
  %v1658 = vmul.f32 %v1358, %v1358
  %v1659 = vmul.f32 %v1363, %v1363
  %v1660 = vmul.f32 %v1366, %v1366
  %v1661 = vmul.f32 %v1371, %v1371
  %v1662 = vmul.f32 %v1374, %v1374
  %v1663 = vmul.f32 %v1379, %v1379
  %v1664 = vmul.f32 %v1382, %v1382
  %v1665 = vmul.f32 %v1387, %v1387
  %v1666 = vmul.f32 %v1390, %v1390
  %v1667 = vsel %vm1393, %v1603, 0.0
  %v1668 = vsel %vm1393, %v1604, 0.0
  %v1669 = vadd.f32 %v1667, %v1668
  %v1670 = vsel %vm1393, %v1605, 0.0
  %v1671 = vadd.f32 %v1669, %v1670
  %v1672 = vsel %vm1393, %v1606, 0.0
  %v1673 = vadd.f32 %v1671, %v1672
  %v1674 = vsel %vm1393, %v1607, 0.0
  %v1675 = vadd.f32 %v1673, %v1674
  %v1676 = vsel %vm1393, %v1608, 0.0
  %v1677 = vadd.f32 %v1675, %v1676
  %v1678 = vsel %vm1393, %v1609, 0.0
  %v1679 = vadd.f32 %v1677, %v1678
  %v1680 = vsel %vm1393, %v1610, 0.0
  %v1681 = vadd.f32 %v1679, %v1680
  %v1682 = vsel %vm1393, %v1611, 0.0
  %v1683 = vadd.f32 %v1681, %v1682
  %v1684 = vsel %vm1393, %v1612, 0.0
  %v1685 = vadd.f32 %v1683, %v1684
  %v1686 = vsel %vm1393, %v1613, 0.0
  %v1687 = vadd.f32 %v1685, %v1686
  %v1688 = vsel %vm1393, %v1614, 0.0
  %v1689 = vadd.f32 %v1687, %v1688
  %v1690 = vsel %vm1393, %v1615, 0.0
  %v1691 = vadd.f32 %v1689, %v1690
  %v1692 = vsel %vm1393, %v1616, 0.0
  %v1693 = vadd.f32 %v1691, %v1692
  %v1694 = vsel %vm1393, %v1617, 0.0
  %v1695 = vadd.f32 %v1693, %v1694
  %v1696 = vsel %vm1393, %v1618, 0.0
  %v1697 = vadd.f32 %v1695, %v1696
  %v1698 = vsel %vm1393, %v1619, 0.0
  %v1699 = vadd.f32 %v1697, %v1698
  %v1700 = vsel %vm1393, %v1620, 0.0
  %v1701 = vadd.f32 %v1699, %v1700
  %v1702 = vsel %vm1393, %v1621, 0.0
  %v1703 = vadd.f32 %v1701, %v1702
  %v1704 = vsel %vm1393, %v1622, 0.0
  %v1705 = vadd.f32 %v1703, %v1704
  %v1706 = vsel %vm1393, %v1623, 0.0
  %v1707 = vadd.f32 %v1705, %v1706
  %v1708 = vsel %vm1393, %v1624, 0.0
  %v1709 = vadd.f32 %v1707, %v1708
  %v1710 = vsel %vm1393, %v1625, 0.0
  %v1711 = vadd.f32 %v1709, %v1710
  %v1712 = vsel %vm1393, %v1626, 0.0
  %v1713 = vadd.f32 %v1711, %v1712
  %v1714 = vsel %vm1393, %v1627, 0.0
  %v1715 = vadd.f32 %v1713, %v1714
  %v1716 = vsel %vm1393, %v1628, 0.0
  %v1717 = vadd.f32 %v1715, %v1716
  %v1718 = vsel %vm1393, %v1629, 0.0
  %v1719 = vadd.f32 %v1717, %v1718
  %v1720 = vsel %vm1393, %v1630, 0.0
  %v1721 = vadd.f32 %v1719, %v1720
  %v1722 = vsel %vm1393, %v1631, 0.0
  %v1723 = vadd.f32 %v1721, %v1722
  %v1724 = vsel %vm1393, %v1632, 0.0
  %v1725 = vadd.f32 %v1723, %v1724
  %v1726 = vsel %vm1393, %v1633, 0.0
  %v1727 = vadd.f32 %v1725, %v1726
  %v1728 = vsel %vm1393, %v1634, 0.0
  %v1729 = vadd.f32 %v1727, %v1728
  %v1730 = vsel %vm1393, %v1635, 0.0
  %v1731 = vadd.f32 %v1729, %v1730
  %v1732 = vsel %vm1393, %v1636, 0.0
  %v1733 = vadd.f32 %v1731, %v1732
  %v1734 = vsel %vm1393, %v1637, 0.0
  %v1735 = vadd.f32 %v1733, %v1734
  %v1736 = vsel %vm1393, %v1638, 0.0
  %v1737 = vadd.f32 %v1735, %v1736
  %v1738 = vsel %vm1393, %v1639, 0.0
  %v1739 = vadd.f32 %v1737, %v1738
  %v1740 = vsel %vm1393, %v1640, 0.0
  %v1741 = vadd.f32 %v1739, %v1740
  %v1742 = vsel %vm1393, %v1641, 0.0
  %v1743 = vadd.f32 %v1741, %v1742
  %v1744 = vsel %vm1393, %v1642, 0.0
  %v1745 = vadd.f32 %v1743, %v1744
  %v1746 = vsel %vm1393, %v1643, 0.0
  %v1747 = vadd.f32 %v1745, %v1746
  %v1748 = vsel %vm1393, %v1644, 0.0
  %v1749 = vadd.f32 %v1747, %v1748
  %v1750 = vsel %vm1393, %v1645, 0.0
  %v1751 = vadd.f32 %v1749, %v1750
  %v1752 = vsel %vm1393, %v1646, 0.0
  %v1753 = vadd.f32 %v1751, %v1752
  %v1754 = vsel %vm1393, %v1647, 0.0
  %v1755 = vadd.f32 %v1753, %v1754
  %v1756 = vsel %vm1393, %v1648, 0.0
  %v1757 = vadd.f32 %v1755, %v1756
  %v1758 = vsel %vm1393, %v1649, 0.0
  %v1759 = vadd.f32 %v1757, %v1758
  %v1760 = vsel %vm1393, %v1650, 0.0
  %v1761 = vadd.f32 %v1759, %v1760
  %v1762 = vsel %vm1393, %v1651, 0.0
  %v1763 = vadd.f32 %v1761, %v1762
  %v1764 = vsel %vm1393, %v1652, 0.0
  %v1765 = vadd.f32 %v1763, %v1764
  %v1766 = vsel %vm1393, %v1653, 0.0
  %v1767 = vadd.f32 %v1765, %v1766
  %v1768 = vsel %vm1393, %v1654, 0.0
  %v1769 = vadd.f32 %v1767, %v1768
  %v1770 = vsel %vm1393, %v1655, 0.0
  %v1771 = vadd.f32 %v1769, %v1770
  %v1772 = vsel %vm1393, %v1656, 0.0
  %v1773 = vadd.f32 %v1771, %v1772
  %v1774 = vsel %vm1393, %v1657, 0.0
  %v1775 = vadd.f32 %v1773, %v1774
  %v1776 = vsel %vm1393, %v1658, 0.0
  %v1777 = vadd.f32 %v1775, %v1776
  %v1778 = vsel %vm1393, %v1659, 0.0
  %v1779 = vadd.f32 %v1777, %v1778
  %v1780 = vsel %vm1393, %v1660, 0.0
  %v1781 = vadd.f32 %v1779, %v1780
  %v1782 = vsel %vm1393, %v1661, 0.0
  %v1783 = vadd.f32 %v1781, %v1782
  %v1784 = vsel %vm1393, %v1662, 0.0
  %v1785 = vadd.f32 %v1783, %v1784
  %v1786 = vsel %vm1393, %v1663, 0.0
  %v1787 = vadd.f32 %v1785, %v1786
  %v1788 = vsel %vm1393, %v1664, 0.0
  %v1789 = vadd.f32 %v1787, %v1788
  %v1790 = vsel %vm1393, %v1665, 0.0
  %v1791 = vadd.f32 %v1789, %v1790
  %v1792 = vsel %vm1393, %v1666, 0.0
  %v1793 = vadd.f32 %v1791, %v1792
  %v1794 = vrot.slane %v1793, 4
  %v1795 = vadd.f32 %v1793, %v1794
  %v1796 = vrot.slane %v1795, 2
  %v1797 = vadd.f32 %v1795, %v1796
  %v1798 = vrot.slane %v1797, 1
  %v1799 = vadd.f32 %v1797, %v1798
  %v1800 = vadd.f32 %v1602, %v1799
  %1801 = vst.msk [vmem:[%s6] sm:$0x1] %vm1600, %v1800
  %s1802 = sadd.s32 0, 0
  %s1803 = smul.u32 64, %s1802
  %p1804 = scmp.lt.s32.totalorder %s1803, 63
  %s1805 = scalar_select %p1804, %s1803, 63
  %s1806 = smul.addr %s1805, 8
  %s1807 = scalar_lea.vmem %s4, %s1806
  // Predicated region
  $region22: #{bottleneck_mish_forward.5} parent=0 // pred_check
    _
  $region23: #{bottleneck_mish_forward.5} parent=0 // pred_check_branch
    %1809 = sbr.rel (0) target = $region25
  $region24: #{bottleneck_mish_forward.5} parent=0 // pred_region
    %s1810 = sadd.s32 0, 0
    %s1811 = smul.u32 64, %s1810
  $region25: #{bottleneck_mish_forward.5} parent=0 // pred_fallthru
    _
  // Predicated region
  $region26: #{bottleneck_mish_forward.5} parent=0 // pred_check
    _
  $region27: #{bottleneck_mish_forward.5} parent=0 // pred_check_branch
    %1813 = sbr.rel (0) target = $region29
  $region28: #{bottleneck_mish_forward.5} parent=0 // pred_region
    _
  $region29: #{bottleneck_mish_forward.5} parent=0 // pred_fallthru
    _
  // Predicated region
  $region30: #{bottleneck_mish_forward.5} parent=0 // pred_check
    _
  $region31: #{bottleneck_mish_forward.5} parent=0 // pred_check_branch
    %1815 = sbr.rel (0) target = $region33
  $region32: #{bottleneck_mish_forward.5} parent=0 // pred_region
    _
  $region33: #{bottleneck_mish_forward.5} parent=0 // pred_fallthru
    _
  // Predicated region
  $region34: #{bottleneck_mish_forward.5} parent=0 // pred_check
    _
  $region35: #{bottleneck_mish_forward.5} parent=0 // pred_check_branch
    %1817 = sbr.rel (0) target = $region37
  $region36: #{bottleneck_mish_forward.5} parent=0 // pred_region
    %s1818 = sadd.s32 0, 0
    %s1819 = smul.u32 64, %s1818
    %p1820 = scmp.lt.s32.totalorder %s1819, 63
    %s1821 = scalar_select %p1820, %s1819, 63
    %s1822 = smul.addr %s1821, 8
    %s1823 = scalar_lea.vmem %s4, %s1822
  $region37: #{bottleneck_mish_forward.5} parent=0 // pred_fallthru
    _
  // Predicated region
  $region38: #{bottleneck_mish_forward.5} parent=0 // pred_check
    _
  $region39: #{bottleneck_mish_forward.5} parent=0 // pred_check_branch
    %1825 = sbr.rel (0) target = $region41
  $region40: #{bottleneck_mish_forward.5} parent=0 // pred_region
    _
  $region41: #{bottleneck_mish_forward.5} parent=0 // pred_fallthru
    _
  // Predicated region
  $region42: #{bottleneck_mish_forward.5} parent=0 // pred_check
    _
  $region43: #{bottleneck_mish_forward.5} parent=0 // pred_check_branch
    %1827 = sbr.rel (0) target = $region45
  $region44: #{bottleneck_mish_forward.5} parent=0 // pred_region
    _
  $region45: #{bottleneck_mish_forward.5} parent=0 // pred_fallthru
    _

// kernel: bottleneck_mish_forward.7
$region0: #{bottleneck_mish_forward.7}
  #allocation0 [shape = 'u32[]', space=smem, size = 0x4, offset = 0x4, fixed_abs, tag = 'smem constant byte address 0x4 - core index']
  #allocation1 [shape = 'u32[144,128]{1,0:T(1,128)}', space=vmem, size = 0x12000, scoped, tag = 'internal scratch']
  %s0 = inlined_call_operand.vmem [shape: f32[512,4], index: 0, kind: input, shape index: {}]
  %s1 = inlined_call_operand.vmem [shape: f32[1,4], index: 1, kind: input, shape index: {}]
  %s2 = inlined_call_operand.vmem [shape: f32[1,4], index: 2, kind: input, shape index: {}]
  %s3 = inlined_call_operand.vmem [shape: bf16[4,16], index: 3, kind: input, shape index: {}]
  %s4 = inlined_call_operand.vmem [shape: f32[512,16], index: 4, kind: input, shape index: {}, may-alias: {4,5}]
  %s5 = inlined_call_operand.vmem [shape: f32[512,16], index: 5, kind: output, shape index: {}, may-alias: {4,5}]
  %s6 = sld [smem:[#allocation0]]
  $region30: #{bottleneck_mish_forward.7} parent=0
    _
  %s8 = ssub.s32 1, %s6
  %s9 = scalar_select 0, %s8, %s6
  // Predicated region
  $region2: #{bottleneck_mish_forward.7} parent=0 // pred_check
    _
  $region3: #{bottleneck_mish_forward.7} parent=0 // pred_check_branch
    %11 = sbr.rel (0) target = $region5
  $region4: #{bottleneck_mish_forward.7} parent=0 // pred_region
    _
  $region5: #{bottleneck_mish_forward.7} parent=0 // pred_fallthru
    _
  // Predicated region
  $region6: #{bottleneck_mish_forward.7} parent=0 // pred_check
    _
  $region7: #{bottleneck_mish_forward.7} parent=0 // pred_check_branch
    %13 = sbr.rel (0) target = $region9
  $region8: #{bottleneck_mish_forward.7} parent=0 // pred_region
    _
  $region9: #{bottleneck_mish_forward.7} parent=0 // pred_fallthru
    _
  // Predicated region
  $region10: #{bottleneck_mish_forward.7} parent=0 // pred_check
    _
  $region11: #{bottleneck_mish_forward.7} parent=0 // pred_check_branch
    %15 = sbr.rel (0) target = $region13
  $region12: #{bottleneck_mish_forward.7} parent=0 // pred_region
    _
  $region13: #{bottleneck_mish_forward.7} parent=0 // pred_fallthru
    _
  // Predicated region
  $region14: #{bottleneck_mish_forward.7} parent=0 // pred_check
    _
  $region15: #{bottleneck_mish_forward.7} parent=0 // pred_check_branch
    %17 = sbr.rel (0) target = $region17
  $region16: #{bottleneck_mish_forward.7} parent=0 // pred_region
    _
  $region17: #{bottleneck_mish_forward.7} parent=0 // pred_fallthru
    _
  // Predicated region
  $region18: #{bottleneck_mish_forward.7} parent=0 // pred_check
    _
  $region19: #{bottleneck_mish_forward.7} parent=0 // pred_check_branch
    %19 = sbr.rel (0) target = $region21
  $region20: #{bottleneck_mish_forward.7} parent=0 // pred_region
    _
  $region21: #{bottleneck_mish_forward.7} parent=0 // pred_fallthru
    _
  %v21 = vld [vmem:[%s0] sm:$0xff]
  %v22 = vld [vmem:[%s0 + $0x8] sm:$0xff]
  %v23 = vld [vmem:[%s0 + $0x10] sm:$0xff]
  %v24 = vld [vmem:[%s0 + $0x18] sm:$0xff]
  %v25 = vld [vmem:[%s0 + $0x20] sm:$0xff]
  %v26 = vld [vmem:[%s0 + $0x28] sm:$0xff]
  %v27 = vld [vmem:[%s0 + $0x30] sm:$0xff]
  %v28 = vld [vmem:[%s0 + $0x38] sm:$0xff]
  %v29 = vld [vmem:[%s0 + $0x40] sm:$0xff]
  %v30 = vld [vmem:[%s0 + $0x48] sm:$0xff]
  %v31 = vld [vmem:[%s0 + $0x50] sm:$0xff]
  %v32 = vld [vmem:[%s0 + $0x58] sm:$0xff]
  %v33 = vld [vmem:[%s0 + $0x60] sm:$0xff]
  %v34 = vld [vmem:[%s0 + $0x68] sm:$0xff]
  %v35 = vld [vmem:[%s0 + $0x70] sm:$0xff]
  %v36 = vld [vmem:[%s0 + $0x78] sm:$0xff]
  %v37 = vld [vmem:[%s0 + $0x80] sm:$0xff]
  %v38 = vld [vmem:[%s0 + $0x88] sm:$0xff]
  %v39 = vld [vmem:[%s0 + $0x90] sm:$0xff]
  %v40 = vld [vmem:[%s0 + $0x98] sm:$0xff]
  %v41 = vld [vmem:[%s0 + $0xa0] sm:$0xff]
  %v42 = vld [vmem:[%s0 + $0xa8] sm:$0xff]
  %v43 = vld [vmem:[%s0 + $0xb0] sm:$0xff]
  %v44 = vld [vmem:[%s0 + $0xb8] sm:$0xff]
  %v45 = vld [vmem:[%s0 + $0xc0] sm:$0xff]
  %v46 = vld [vmem:[%s0 + $0xc8] sm:$0xff]
  %v47 = vld [vmem:[%s0 + $0xd0] sm:$0xff]
  %v48 = vld [vmem:[%s0 + $0xd8] sm:$0xff]
  %v49 = vld [vmem:[%s0 + $0xe0] sm:$0xff]
  %v50 = vld [vmem:[%s0 + $0xe8] sm:$0xff]
  %v51 = vld [vmem:[%s0 + $0xf0] sm:$0xff]
  %v52 = vld [vmem:[%s0 + $0xf8] sm:$0xff]
  %v53 = vld [vmem:[%s0 + $0x100] sm:$0xff]
  %v54 = vld [vmem:[%s0 + $0x108] sm:$0xff]
  %v55 = vld [vmem:[%s0 + $0x110] sm:$0xff]
  %v56 = vld [vmem:[%s0 + $0x118] sm:$0xff]
  %v57 = vld [vmem:[%s0 + $0x120] sm:$0xff]
  %v58 = vld [vmem:[%s0 + $0x128] sm:$0xff]
  %v59 = vld [vmem:[%s0 + $0x130] sm:$0xff]
  %v60 = vld [vmem:[%s0 + $0x138] sm:$0xff]
  %v61 = vld [vmem:[%s0 + $0x140] sm:$0xff]
  %v62 = vld [vmem:[%s0 + $0x148] sm:$0xff]
  %v63 = vld [vmem:[%s0 + $0x150] sm:$0xff]
  %v64 = vld [vmem:[%s0 + $0x158] sm:$0xff]
  %v65 = vld [vmem:[%s0 + $0x160] sm:$0xff]
  %v66 = vld [vmem:[%s0 + $0x168] sm:$0xff]
  %v67 = vld [vmem:[%s0 + $0x170] sm:$0xff]
  %v68 = vld [vmem:[%s0 + $0x178] sm:$0xff]
  %v69 = vld [vmem:[%s0 + $0x180] sm:$0xff]
  %v70 = vld [vmem:[%s0 + $0x188] sm:$0xff]
  %v71 = vld [vmem:[%s0 + $0x190] sm:$0xff]
  %v72 = vld [vmem:[%s0 + $0x198] sm:$0xff]
  %v73 = vld [vmem:[%s0 + $0x1a0] sm:$0xff]
  %v74 = vld [vmem:[%s0 + $0x1a8] sm:$0xff]
  %v75 = vld [vmem:[%s0 + $0x1b0] sm:$0xff]
  %v76 = vld [vmem:[%s0 + $0x1b8] sm:$0xff]
  %v77 = vld [vmem:[%s0 + $0x1c0] sm:$0xff]
  %v78 = vld [vmem:[%s0 + $0x1c8] sm:$0xff]
  %v79 = vld [vmem:[%s0 + $0x1d0] sm:$0xff]
  %v80 = vld [vmem:[%s0 + $0x1d8] sm:$0xff]
  %v81 = vld [vmem:[%s0 + $0x1e0] sm:$0xff]
  %v82 = vld [vmem:[%s0 + $0x1e8] sm:$0xff]
  %v83 = vld [vmem:[%s0 + $0x1f0] sm:$0xff]
  %v84 = vld [vmem:[%s0 + $0x1f8] sm:$0xff]
  %v85 = vld [vmem:[%s1] sm:$0x1]
  %v87 = vlaneseq
  %v88 = vshrl.u32 %v87, 7
  %v89 = vsub.s32 0, %v88
  %v90 = vrot.slane %v85, %v89
  %v92 = vmul.f32 %v21, %v90
  %v93 = vmul.f32 %v22, %v90
  %v94 = vmul.f32 %v23, %v90
  %v95 = vmul.f32 %v24, %v90
  %v96 = vmul.f32 %v25, %v90
  %v97 = vmul.f32 %v26, %v90
  %v98 = vmul.f32 %v27, %v90
  %v99 = vmul.f32 %v28, %v90
  %v100 = vmul.f32 %v29, %v90
  %v101 = vmul.f32 %v30, %v90
  %v102 = vmul.f32 %v31, %v90
  %v103 = vmul.f32 %v32, %v90
  %v104 = vmul.f32 %v33, %v90
  %v105 = vmul.f32 %v34, %v90
  %v106 = vmul.f32 %v35, %v90
  %v107 = vmul.f32 %v36, %v90
  %v108 = vmul.f32 %v37, %v90
  %v109 = vmul.f32 %v38, %v90
  %v110 = vmul.f32 %v39, %v90
  %v111 = vmul.f32 %v40, %v90
  %v112 = vmul.f32 %v41, %v90
  %v113 = vmul.f32 %v42, %v90
  %v114 = vmul.f32 %v43, %v90
  %v115 = vmul.f32 %v44, %v90
  %v116 = vmul.f32 %v45, %v90
  %v117 = vmul.f32 %v46, %v90
  %v118 = vmul.f32 %v47, %v90
  %v119 = vmul.f32 %v48, %v90
  %v120 = vmul.f32 %v49, %v90
  %v121 = vmul.f32 %v50, %v90
  %v122 = vmul.f32 %v51, %v90
  %v123 = vmul.f32 %v52, %v90
  %v124 = vmul.f32 %v53, %v90
  %v125 = vmul.f32 %v54, %v90
  %v126 = vmul.f32 %v55, %v90
  %v127 = vmul.f32 %v56, %v90
  %v128 = vmul.f32 %v57, %v90
  %v129 = vmul.f32 %v58, %v90
  %v130 = vmul.f32 %v59, %v90
  %v131 = vmul.f32 %v60, %v90
  %v132 = vmul.f32 %v61, %v90
  %v133 = vmul.f32 %v62, %v90
  %v134 = vmul.f32 %v63, %v90
  %v135 = vmul.f32 %v64, %v90
  %v136 = vmul.f32 %v65, %v90
  %v137 = vmul.f32 %v66, %v90
  %v138 = vmul.f32 %v67, %v90
  %v139 = vmul.f32 %v68, %v90
  %v140 = vmul.f32 %v69, %v90
  %v141 = vmul.f32 %v70, %v90
  %v142 = vmul.f32 %v71, %v90
  %v143 = vmul.f32 %v72, %v90
  %v144 = vmul.f32 %v73, %v90
  %v145 = vmul.f32 %v74, %v90
  %v146 = vmul.f32 %v75, %v90
  %v147 = vmul.f32 %v76, %v90
  %v148 = vmul.f32 %v77, %v90
  %v149 = vmul.f32 %v78, %v90
  %v150 = vmul.f32 %v79, %v90
  %v151 = vmul.f32 %v80, %v90
  %v152 = vmul.f32 %v81, %v90
  %v153 = vmul.f32 %v82, %v90
  %v154 = vmul.f32 %v83, %v90
  %v155 = vmul.f32 %v84, %v90
  %v156 = vld [vmem:[%s2] sm:$0x1]
  %v158 = vlaneseq
  %v159 = vshrl.u32 %v158, 7
  %v160 = vsub.s32 0, %v159
  %v161 = vrot.slane %v156, %v160
  %v163 = vadd.f32 %v92, %v161
  %v164 = vadd.f32 %v93, %v161
  %v165 = vadd.f32 %v94, %v161
  %v166 = vadd.f32 %v95, %v161
  %v167 = vadd.f32 %v96, %v161
  %v168 = vadd.f32 %v97, %v161
  %v169 = vadd.f32 %v98, %v161
  %v170 = vadd.f32 %v99, %v161
  %v171 = vadd.f32 %v100, %v161
  %v172 = vadd.f32 %v101, %v161
  %v173 = vadd.f32 %v102, %v161
  %v174 = vadd.f32 %v103, %v161
  %v175 = vadd.f32 %v104, %v161
  %v176 = vadd.f32 %v105, %v161
  %v177 = vadd.f32 %v106, %v161
  %v178 = vadd.f32 %v107, %v161
  %v179 = vadd.f32 %v108, %v161
  %v180 = vadd.f32 %v109, %v161
  %v181 = vadd.f32 %v110, %v161
  %v182 = vadd.f32 %v111, %v161
  %v183 = vadd.f32 %v112, %v161
  %v184 = vadd.f32 %v113, %v161
  %v185 = vadd.f32 %v114, %v161
  %v186 = vadd.f32 %v115, %v161
  %v187 = vadd.f32 %v116, %v161
  %v188 = vadd.f32 %v117, %v161
  %v189 = vadd.f32 %v118, %v161
  %v190 = vadd.f32 %v119, %v161
  %v191 = vadd.f32 %v120, %v161
  %v192 = vadd.f32 %v121, %v161
  %v193 = vadd.f32 %v122, %v161
  %v194 = vadd.f32 %v123, %v161
  %v195 = vadd.f32 %v124, %v161
  %v196 = vadd.f32 %v125, %v161
  %v197 = vadd.f32 %v126, %v161
  %v198 = vadd.f32 %v127, %v161
  %v199 = vadd.f32 %v128, %v161
  %v200 = vadd.f32 %v129, %v161
  %v201 = vadd.f32 %v130, %v161
  %v202 = vadd.f32 %v131, %v161
  %v203 = vadd.f32 %v132, %v161
  %v204 = vadd.f32 %v133, %v161
  %v205 = vadd.f32 %v134, %v161
  %v206 = vadd.f32 %v135, %v161
  %v207 = vadd.f32 %v136, %v161
  %v208 = vadd.f32 %v137, %v161
  %v209 = vadd.f32 %v138, %v161
  %v210 = vadd.f32 %v139, %v161
  %v211 = vadd.f32 %v140, %v161
  %v212 = vadd.f32 %v141, %v161
  %v213 = vadd.f32 %v142, %v161
  %v214 = vadd.f32 %v143, %v161
  %v215 = vadd.f32 %v144, %v161
  %v216 = vadd.f32 %v145, %v161
  %v217 = vadd.f32 %v146, %v161
  %v218 = vadd.f32 %v147, %v161
  %v219 = vadd.f32 %v148, %v161
  %v220 = vadd.f32 %v149, %v161
  %v221 = vadd.f32 %v150, %v161
  %v222 = vadd.f32 %v151, %v161
  %v223 = vadd.f32 %v152, %v161
  %v224 = vadd.f32 %v153, %v161
  %v225 = vadd.f32 %v154, %v161
  %v226 = vadd.f32 %v155, %v161
  %v227 = vmin.f32 %v163, 20.0
  %v228 = vmin.f32 %v164, 20.0
  %v229 = vmin.f32 %v165, 20.0
  %v230 = vmin.f32 %v166, 20.0
  %v231 = vmin.f32 %v167, 20.0
  %v232 = vmin.f32 %v168, 20.0
  %v233 = vmin.f32 %v169, 20.0
  %v234 = vmin.f32 %v170, 20.0
  %v235 = vmin.f32 %v171, 20.0
  %v236 = vmin.f32 %v172, 20.0
  %v237 = vmin.f32 %v173, 20.0
  %v238 = vmin.f32 %v174, 20.0
  %v239 = vmin.f32 %v175, 20.0
  %v240 = vmin.f32 %v176, 20.0
  %v241 = vmin.f32 %v177, 20.0
  %v242 = vmin.f32 %v178, 20.0
  %v243 = vmin.f32 %v179, 20.0
  %v244 = vmin.f32 %v180, 20.0
  %v245 = vmin.f32 %v181, 20.0
  %v246 = vmin.f32 %v182, 20.0
  %v247 = vmin.f32 %v183, 20.0
  %v248 = vmin.f32 %v184, 20.0
  %v249 = vmin.f32 %v185, 20.0
  %v250 = vmin.f32 %v186, 20.0
  %v251 = vmin.f32 %v187, 20.0
  %v252 = vmin.f32 %v188, 20.0
  %v253 = vmin.f32 %v189, 20.0
  %v254 = vmin.f32 %v190, 20.0
  %v255 = vmin.f32 %v191, 20.0
  %v256 = vmin.f32 %v192, 20.0
  %v257 = vmin.f32 %v193, 20.0
  %v258 = vmin.f32 %v194, 20.0
  %v259 = vmin.f32 %v195, 20.0
  %v260 = vmin.f32 %v196, 20.0
  %v261 = vmin.f32 %v197, 20.0
  %v262 = vmin.f32 %v198, 20.0
  %v263 = vmin.f32 %v199, 20.0
  %v264 = vmin.f32 %v200, 20.0
  %v265 = vmin.f32 %v201, 20.0
  %v266 = vmin.f32 %v202, 20.0
  %v267 = vmin.f32 %v203, 20.0
  %v268 = vmin.f32 %v204, 20.0
  %v269 = vmin.f32 %v205, 20.0
  %v270 = vmin.f32 %v206, 20.0
  %v271 = vmin.f32 %v207, 20.0
  %v272 = vmin.f32 %v208, 20.0
  %v273 = vmin.f32 %v209, 20.0
  %v274 = vmin.f32 %v210, 20.0
  %v275 = vmin.f32 %v211, 20.0
  %v276 = vmin.f32 %v212, 20.0
  %v277 = vmin.f32 %v213, 20.0
  %v278 = vmin.f32 %v214, 20.0
  %v279 = vmin.f32 %v215, 20.0
  %v280 = vmin.f32 %v216, 20.0
  %v281 = vmin.f32 %v217, 20.0
  %v282 = vmin.f32 %v218, 20.0
  %v283 = vmin.f32 %v219, 20.0
  %v284 = vmin.f32 %v220, 20.0
  %v285 = vmin.f32 %v221, 20.0
  %v286 = vmin.f32 %v222, 20.0
  %v287 = vmin.f32 %v223, 20.0
  %v288 = vmin.f32 %v224, 20.0
  %v289 = vmin.f32 %v225, 20.0
  %v290 = vmin.f32 %v226, 20.0
  %v291 = vmul.f32 %v227, 1.442695
  %v292 = vpow.pop %v291
  %v293 = vmul.f32 %v228, 1.442695
  %v294 = vpow.pop %v293
  %v295 = vmul.f32 %v229, 1.442695
  %v296 = vpow.pop %v295
  %v297 = vmul.f32 %v230, 1.442695
  %v298 = vpow.pop %v297
  %v299 = vmul.f32 %v231, 1.442695
  %v300 = vpow.pop %v299
  %v301 = vmul.f32 %v232, 1.442695
  %v302 = vpow.pop %v301
  %v303 = vmul.f32 %v233, 1.442695
  %v304 = vpow.pop %v303
  %v305 = vmul.f32 %v234, 1.442695
  %v306 = vpow.pop %v305
  %v307 = vmul.f32 %v235, 1.442695
  %v308 = vpow.pop %v307
  %v309 = vmul.f32 %v236, 1.442695
  %v310 = vpow.pop %v309
  %v311 = vmul.f32 %v237, 1.442695
  %v312 = vpow.pop %v311
  %v313 = vmul.f32 %v238, 1.442695
  %v314 = vpow.pop %v313
  %v315 = vmul.f32 %v239, 1.442695
  %v316 = vpow.pop %v315
  %v317 = vmul.f32 %v240, 1.442695
  %v318 = vpow.pop %v317
  %v319 = vmul.f32 %v241, 1.442695
  %v320 = vpow.pop %v319
  %v321 = vmul.f32 %v242, 1.442695
  %v322 = vpow.pop %v321
  %v323 = vmul.f32 %v243, 1.442695
  %v324 = vpow.pop %v323
  %v325 = vmul.f32 %v244, 1.442695
  %v326 = vpow.pop %v325
  %v327 = vmul.f32 %v245, 1.442695
  %v328 = vpow.pop %v327
  %v329 = vmul.f32 %v246, 1.442695
  %v330 = vpow.pop %v329
  %v331 = vmul.f32 %v247, 1.442695
  %v332 = vpow.pop %v331
  %v333 = vmul.f32 %v248, 1.442695
  %v334 = vpow.pop %v333
  %v335 = vmul.f32 %v249, 1.442695
  %v336 = vpow.pop %v335
  %v337 = vmul.f32 %v250, 1.442695
  %v338 = vpow.pop %v337
  %v339 = vmul.f32 %v251, 1.442695
  %v340 = vpow.pop %v339
  %v341 = vmul.f32 %v252, 1.442695
  %v342 = vpow.pop %v341
  %v343 = vmul.f32 %v253, 1.442695
  %v344 = vpow.pop %v343
  %v345 = vmul.f32 %v254, 1.442695
  %v346 = vpow.pop %v345
  %v347 = vmul.f32 %v255, 1.442695
  %v348 = vpow.pop %v347
  %v349 = vmul.f32 %v256, 1.442695
  %v350 = vpow.pop %v349
  %v351 = vmul.f32 %v257, 1.442695
  %v352 = vpow.pop %v351
  %v353 = vmul.f32 %v258, 1.442695
  %v354 = vpow.pop %v353
  %v355 = vmul.f32 %v259, 1.442695
  %v356 = vpow.pop %v355
  %v357 = vmul.f32 %v260, 1.442695
  %v358 = vpow.pop %v357
  %v359 = vmul.f32 %v261, 1.442695
  %v360 = vpow.pop %v359
  %v361 = vmul.f32 %v262, 1.442695
  %v362 = vpow.pop %v361
  %v363 = vmul.f32 %v263, 1.442695
  %v364 = vpow.pop %v363
  %v365 = vmul.f32 %v264, 1.442695
  %v366 = vpow.pop %v365
  %v367 = vmul.f32 %v265, 1.442695
  %v368 = vpow.pop %v367
  %v369 = vmul.f32 %v266, 1.442695
  %v370 = vpow.pop %v369
  %v371 = vmul.f32 %v267, 1.442695
  %v372 = vpow.pop %v371
  %v373 = vmul.f32 %v268, 1.442695
  %v374 = vpow.pop %v373
  %v375 = vmul.f32 %v269, 1.442695
  %v376 = vpow.pop %v375
  %v377 = vmul.f32 %v270, 1.442695
  %v378 = vpow.pop %v377
  %v379 = vmul.f32 %v271, 1.442695
  %v380 = vpow.pop %v379
  %v381 = vmul.f32 %v272, 1.442695
  %v382 = vpow.pop %v381
  %v383 = vmul.f32 %v273, 1.442695
  %v384 = vpow.pop %v383
  %v385 = vmul.f32 %v274, 1.442695
  %v386 = vpow.pop %v385
  %v387 = vmul.f32 %v275, 1.442695
  %v388 = vpow.pop %v387
  %v389 = vmul.f32 %v276, 1.442695
  %v390 = vpow.pop %v389
  %v391 = vmul.f32 %v277, 1.442695
  %v392 = vpow.pop %v391
  %v393 = vmul.f32 %v278, 1.442695
  %v394 = vpow.pop %v393
  %v395 = vmul.f32 %v279, 1.442695
  %v396 = vpow.pop %v395
  %v397 = vmul.f32 %v280, 1.442695
  %v398 = vpow.pop %v397
  %v399 = vmul.f32 %v281, 1.442695
  %v400 = vpow.pop %v399
  %v401 = vmul.f32 %v282, 1.442695
  %v402 = vpow.pop %v401
  %v403 = vmul.f32 %v283, 1.442695
  %v404 = vpow.pop %v403
  %v405 = vmul.f32 %v284, 1.442695
  %v406 = vpow.pop %v405
  %v407 = vmul.f32 %v285, 1.442695
  %v408 = vpow.pop %v407
  %v409 = vmul.f32 %v286, 1.442695
  %v410 = vpow.pop %v409
  %v411 = vmul.f32 %v287, 1.442695
  %v412 = vpow.pop %v411
  %v413 = vmul.f32 %v288, 1.442695
  %v414 = vpow.pop %v413
  %v415 = vmul.f32 %v289, 1.442695
  %v416 = vpow.pop %v415
  %v417 = vmul.f32 %v290, 1.442695
  %v418 = vpow.pop %v417
  %v419 = vadd.f32 %v292, 2.0
  %v420 = vadd.f32 %v294, 2.0
  %v421 = vadd.f32 %v296, 2.0
  %v422 = vadd.f32 %v298, 2.0
  %v423 = vadd.f32 %v300, 2.0
  %v424 = vadd.f32 %v302, 2.0
  %v425 = vadd.f32 %v304, 2.0
  %v426 = vadd.f32 %v306, 2.0
  %v427 = vadd.f32 %v308, 2.0
  %v428 = vadd.f32 %v310, 2.0
  %v429 = vadd.f32 %v312, 2.0
  %v430 = vadd.f32 %v314, 2.0
  %v431 = vadd.f32 %v316, 2.0
  %v432 = vadd.f32 %v318, 2.0
  %v433 = vadd.f32 %v320, 2.0
  %v434 = vadd.f32 %v322, 2.0
  %v435 = vadd.f32 %v324, 2.0
  %v436 = vadd.f32 %v326, 2.0
  %v437 = vadd.f32 %v328, 2.0
  %v438 = vadd.f32 %v330, 2.0
  %v439 = vadd.f32 %v332, 2.0
  %v440 = vadd.f32 %v334, 2.0
  %v441 = vadd.f32 %v336, 2.0
  %v442 = vadd.f32 %v338, 2.0
  %v443 = vadd.f32 %v340, 2.0
  %v444 = vadd.f32 %v342, 2.0
  %v445 = vadd.f32 %v344, 2.0
  %v446 = vadd.f32 %v346, 2.0
  %v447 = vadd.f32 %v348, 2.0
  %v448 = vadd.f32 %v350, 2.0
  %v449 = vadd.f32 %v352, 2.0
  %v450 = vadd.f32 %v354, 2.0
  %v451 = vadd.f32 %v356, 2.0
  %v452 = vadd.f32 %v358, 2.0
  %v453 = vadd.f32 %v360, 2.0
  %v454 = vadd.f32 %v362, 2.0
  %v455 = vadd.f32 %v364, 2.0
  %v456 = vadd.f32 %v366, 2.0
  %v457 = vadd.f32 %v368, 2.0
  %v458 = vadd.f32 %v370, 2.0
  %v459 = vadd.f32 %v372, 2.0
  %v460 = vadd.f32 %v374, 2.0
  %v461 = vadd.f32 %v376, 2.0
  %v462 = vadd.f32 %v378, 2.0
  %v463 = vadd.f32 %v380, 2.0
  %v464 = vadd.f32 %v382, 2.0
  %v465 = vadd.f32 %v384, 2.0
  %v466 = vadd.f32 %v386, 2.0
  %v467 = vadd.f32 %v388, 2.0
  %v468 = vadd.f32 %v390, 2.0
  %v469 = vadd.f32 %v392, 2.0
  %v470 = vadd.f32 %v394, 2.0
  %v471 = vadd.f32 %v396, 2.0
  %v472 = vadd.f32 %v398, 2.0
  %v473 = vadd.f32 %v400, 2.0
  %v474 = vadd.f32 %v402, 2.0
  %v475 = vadd.f32 %v404, 2.0
  %v476 = vadd.f32 %v406, 2.0
  %v477 = vadd.f32 %v408, 2.0
  %v478 = vadd.f32 %v410, 2.0
  %v479 = vadd.f32 %v412, 2.0
  %v480 = vadd.f32 %v414, 2.0
  %v481 = vadd.f32 %v416, 2.0
  %v482 = vadd.f32 %v418, 2.0
  %v483 = vmul.f32 %v292, %v419
  %v484 = vmul.f32 %v294, %v420
  %v485 = vmul.f32 %v296, %v421
  %v486 = vmul.f32 %v298, %v422
  %v487 = vmul.f32 %v300, %v423
  %v488 = vmul.f32 %v302, %v424
  %v489 = vmul.f32 %v304, %v425
  %v490 = vmul.f32 %v306, %v426
  %v491 = vmul.f32 %v308, %v427
  %v492 = vmul.f32 %v310, %v428
  %v493 = vmul.f32 %v312, %v429
  %v494 = vmul.f32 %v314, %v430
  %v495 = vmul.f32 %v316, %v431
  %v496 = vmul.f32 %v318, %v432
  %v497 = vmul.f32 %v320, %v433
  %v498 = vmul.f32 %v322, %v434
  %v499 = vmul.f32 %v324, %v435
  %v500 = vmul.f32 %v326, %v436
  %v501 = vmul.f32 %v328, %v437
  %v502 = vmul.f32 %v330, %v438
  %v503 = vmul.f32 %v332, %v439
  %v504 = vmul.f32 %v334, %v440
  %v505 = vmul.f32 %v336, %v441
  %v506 = vmul.f32 %v338, %v442
  %v507 = vmul.f32 %v340, %v443
  %v508 = vmul.f32 %v342, %v444
  %v509 = vmul.f32 %v344, %v445
  %v510 = vmul.f32 %v346, %v446
  %v511 = vmul.f32 %v348, %v447
  %v512 = vmul.f32 %v350, %v448
  %v513 = vmul.f32 %v352, %v449
  %v514 = vmul.f32 %v354, %v450
  %v515 = vmul.f32 %v356, %v451
  %v516 = vmul.f32 %v358, %v452
  %v517 = vmul.f32 %v360, %v453
  %v518 = vmul.f32 %v362, %v454
  %v519 = vmul.f32 %v364, %v455
  %v520 = vmul.f32 %v366, %v456
  %v521 = vmul.f32 %v368, %v457
  %v522 = vmul.f32 %v370, %v458
  %v523 = vmul.f32 %v372, %v459
  %v524 = vmul.f32 %v374, %v460
  %v525 = vmul.f32 %v376, %v461
  %v526 = vmul.f32 %v378, %v462
  %v527 = vmul.f32 %v380, %v463
  %v528 = vmul.f32 %v382, %v464
  %v529 = vmul.f32 %v384, %v465
  %v530 = vmul.f32 %v386, %v466
  %v531 = vmul.f32 %v388, %v467
  %v532 = vmul.f32 %v390, %v468
  %v533 = vmul.f32 %v392, %v469
  %v534 = vmul.f32 %v394, %v470
  %v535 = vmul.f32 %v396, %v471
  %v536 = vmul.f32 %v398, %v472
  %v537 = vmul.f32 %v400, %v473
  %v538 = vmul.f32 %v402, %v474
  %v539 = vmul.f32 %v404, %v475
  %v540 = vmul.f32 %v406, %v476
  %v541 = vmul.f32 %v408, %v477
  %v542 = vmul.f32 %v410, %v478
  %v543 = vmul.f32 %v412, %v479
  %v544 = vmul.f32 %v414, %v480
  %v545 = vmul.f32 %v416, %v481
  %v546 = vmul.f32 %v418, %v482
  %vm547 = vcmp.gt.f32.partialorder %v163, 20.0
  %vm548 = vcmp.gt.f32.partialorder %v164, 20.0
  %vm549 = vcmp.gt.f32.partialorder %v165, 20.0
  %vm550 = vcmp.gt.f32.partialorder %v166, 20.0
  %vm551 = vcmp.gt.f32.partialorder %v167, 20.0
  %vm552 = vcmp.gt.f32.partialorder %v168, 20.0
  %vm553 = vcmp.gt.f32.partialorder %v169, 20.0
  %vm554 = vcmp.gt.f32.partialorder %v170, 20.0
  %vm555 = vcmp.gt.f32.partialorder %v171, 20.0
  %vm556 = vcmp.gt.f32.partialorder %v172, 20.0
  %vm557 = vcmp.gt.f32.partialorder %v173, 20.0
  %vm558 = vcmp.gt.f32.partialorder %v174, 20.0
  %vm559 = vcmp.gt.f32.partialorder %v175, 20.0
  %vm560 = vcmp.gt.f32.partialorder %v176, 20.0
  %vm561 = vcmp.gt.f32.partialorder %v177, 20.0
  %vm562 = vcmp.gt.f32.partialorder %v178, 20.0
  %vm563 = vcmp.gt.f32.partialorder %v179, 20.0
  %vm564 = vcmp.gt.f32.partialorder %v180, 20.0
  %vm565 = vcmp.gt.f32.partialorder %v181, 20.0
  %vm566 = vcmp.gt.f32.partialorder %v182, 20.0
  %vm567 = vcmp.gt.f32.partialorder %v183, 20.0
  %vm568 = vcmp.gt.f32.partialorder %v184, 20.0
  %vm569 = vcmp.gt.f32.partialorder %v185, 20.0
  %vm570 = vcmp.gt.f32.partialorder %v186, 20.0
  %vm571 = vcmp.gt.f32.partialorder %v187, 20.0
  %vm572 = vcmp.gt.f32.partialorder %v188, 20.0
  %vm573 = vcmp.gt.f32.partialorder %v189, 20.0
  %vm574 = vcmp.gt.f32.partialorder %v190, 20.0
  %vm575 = vcmp.gt.f32.partialorder %v191, 20.0
  %vm576 = vcmp.gt.f32.partialorder %v192, 20.0
  %vm577 = vcmp.gt.f32.partialorder %v193, 20.0
  %vm578 = vcmp.gt.f32.partialorder %v194, 20.0
  %vm579 = vcmp.gt.f32.partialorder %v195, 20.0
  %vm580 = vcmp.gt.f32.partialorder %v196, 20.0
  %vm581 = vcmp.gt.f32.partialorder %v197, 20.0
  %vm582 = vcmp.gt.f32.partialorder %v198, 20.0
  %vm583 = vcmp.gt.f32.partialorder %v199, 20.0
  %vm584 = vcmp.gt.f32.partialorder %v200, 20.0
  %vm585 = vcmp.gt.f32.partialorder %v201, 20.0
  %vm586 = vcmp.gt.f32.partialorder %v202, 20.0
  %vm587 = vcmp.gt.f32.partialorder %v203, 20.0
  %vm588 = vcmp.gt.f32.partialorder %v204, 20.0
  %vm589 = vcmp.gt.f32.partialorder %v205, 20.0
  %vm590 = vcmp.gt.f32.partialorder %v206, 20.0
  %vm591 = vcmp.gt.f32.partialorder %v207, 20.0
  %vm592 = vcmp.gt.f32.partialorder %v208, 20.0
  %vm593 = vcmp.gt.f32.partialorder %v209, 20.0
  %vm594 = vcmp.gt.f32.partialorder %v210, 20.0
  %vm595 = vcmp.gt.f32.partialorder %v211, 20.0
  %vm596 = vcmp.gt.f32.partialorder %v212, 20.0
  %vm597 = vcmp.gt.f32.partialorder %v213, 20.0
  %vm598 = vcmp.gt.f32.partialorder %v214, 20.0
  %vm599 = vcmp.gt.f32.partialorder %v215, 20.0
  %vm600 = vcmp.gt.f32.partialorder %v216, 20.0
  %vm601 = vcmp.gt.f32.partialorder %v217, 20.0
  %vm602 = vcmp.gt.f32.partialorder %v218, 20.0
  %vm603 = vcmp.gt.f32.partialorder %v219, 20.0
  %vm604 = vcmp.gt.f32.partialorder %v220, 20.0
  %vm605 = vcmp.gt.f32.partialorder %v221, 20.0
  %vm606 = vcmp.gt.f32.partialorder %v222, 20.0
  %vm607 = vcmp.gt.f32.partialorder %v223, 20.0
  %vm608 = vcmp.gt.f32.partialorder %v224, 20.0
  %vm609 = vcmp.gt.f32.partialorder %v225, 20.0
  %vm610 = vcmp.gt.f32.partialorder %v226, 20.0
  %v611 = vadd.f32 %v483, 2.0
  %v612 = vadd.f32 %v484, 2.0
  %v613 = vadd.f32 %v485, 2.0
  %v614 = vadd.f32 %v486, 2.0
  %v615 = vadd.f32 %v487, 2.0
  %v616 = vadd.f32 %v488, 2.0
  %v617 = vadd.f32 %v489, 2.0
  %v618 = vadd.f32 %v490, 2.0
  %v619 = vadd.f32 %v491, 2.0
  %v620 = vadd.f32 %v492, 2.0
  %v621 = vadd.f32 %v493, 2.0
  %v622 = vadd.f32 %v494, 2.0
  %v623 = vadd.f32 %v495, 2.0
  %v624 = vadd.f32 %v496, 2.0
  %v625 = vadd.f32 %v497, 2.0
  %v626 = vadd.f32 %v498, 2.0
  %v627 = vadd.f32 %v499, 2.0
  %v628 = vadd.f32 %v500, 2.0
  %v629 = vadd.f32 %v501, 2.0
  %v630 = vadd.f32 %v502, 2.0
  %v631 = vadd.f32 %v503, 2.0
  %v632 = vadd.f32 %v504, 2.0
  %v633 = vadd.f32 %v505, 2.0
  %v634 = vadd.f32 %v506, 2.0
  %v635 = vadd.f32 %v507, 2.0
  %v636 = vadd.f32 %v508, 2.0
  %v637 = vadd.f32 %v509, 2.0
  %v638 = vadd.f32 %v510, 2.0
  %v639 = vadd.f32 %v511, 2.0
  %v640 = vadd.f32 %v512, 2.0
  %v641 = vadd.f32 %v513, 2.0
  %v642 = vadd.f32 %v514, 2.0
  %v643 = vadd.f32 %v515, 2.0
  %v644 = vadd.f32 %v516, 2.0
  %v645 = vadd.f32 %v517, 2.0
  %v646 = vadd.f32 %v518, 2.0
  %v647 = vadd.f32 %v519, 2.0
  %v648 = vadd.f32 %v520, 2.0
  %v649 = vadd.f32 %v521, 2.0
  %v650 = vadd.f32 %v522, 2.0
  %v651 = vadd.f32 %v523, 2.0
  %v652 = vadd.f32 %v524, 2.0
  %v653 = vadd.f32 %v525, 2.0
  %v654 = vadd.f32 %v526, 2.0
  %v655 = vadd.f32 %v527, 2.0
  %v656 = vadd.f32 %v528, 2.0
  %v657 = vadd.f32 %v529, 2.0
  %v658 = vadd.f32 %v530, 2.0
  %v659 = vadd.f32 %v531, 2.0
  %v660 = vadd.f32 %v532, 2.0
  %v661 = vadd.f32 %v533, 2.0
  %v662 = vadd.f32 %v534, 2.0
  %v663 = vadd.f32 %v535, 2.0
  %v664 = vadd.f32 %v536, 2.0
  %v665 = vadd.f32 %v537, 2.0
  %v666 = vadd.f32 %v538, 2.0
  %v667 = vadd.f32 %v539, 2.0
  %v668 = vadd.f32 %v540, 2.0
  %v669 = vadd.f32 %v541, 2.0
  %v670 = vadd.f32 %v542, 2.0
  %v671 = vadd.f32 %v543, 2.0
  %v672 = vadd.f32 %v544, 2.0
  %v673 = vadd.f32 %v545, 2.0
  %v674 = vadd.f32 %v546, 2.0
  %v675 = vrcp.pop %v611
  %v676 = vmul.f32 %v483, %v675
  %v677 = vrcp.pop %v612
  %v678 = vmul.f32 %v484, %v677
  %v679 = vrcp.pop %v613
  %v680 = vmul.f32 %v485, %v679
  %v681 = vrcp.pop %v614
  %v682 = vmul.f32 %v486, %v681
  %v683 = vrcp.pop %v615
  %v684 = vmul.f32 %v487, %v683
  %v685 = vrcp.pop %v616
  %v686 = vmul.f32 %v488, %v685
  %v687 = vrcp.pop %v617
  %v688 = vmul.f32 %v489, %v687
  %v689 = vrcp.pop %v618
  %v690 = vmul.f32 %v490, %v689
  %v691 = vrcp.pop %v619
  %v692 = vmul.f32 %v491, %v691
  %v693 = vrcp.pop %v620
  %v694 = vmul.f32 %v492, %v693
  %v695 = vrcp.pop %v621
  %v696 = vmul.f32 %v493, %v695
  %v697 = vrcp.pop %v622
  %v698 = vmul.f32 %v494, %v697
  %v699 = vrcp.pop %v623
  %v700 = vmul.f32 %v495, %v699
  %v701 = vrcp.pop %v624
  %v702 = vmul.f32 %v496, %v701
  %v703 = vrcp.pop %v625
  %v704 = vmul.f32 %v497, %v703
  %v705 = vrcp.pop %v626
  %v706 = vmul.f32 %v498, %v705
  %v707 = vrcp.pop %v627
  %v708 = vmul.f32 %v499, %v707
  %v709 = vrcp.pop %v628
  %v710 = vmul.f32 %v500, %v709
  %v711 = vrcp.pop %v629
  %v712 = vmul.f32 %v501, %v711
  %v713 = vrcp.pop %v630
  %v714 = vmul.f32 %v502, %v713
  %v715 = vrcp.pop %v631
  %v716 = vmul.f32 %v503, %v715
  %v717 = vrcp.pop %v632
  %v718 = vmul.f32 %v504, %v717
  %v719 = vrcp.pop %v633
  %v720 = vmul.f32 %v505, %v719
  %v721 = vrcp.pop %v634
  %v722 = vmul.f32 %v506, %v721
  %v723 = vrcp.pop %v635
  %v724 = vmul.f32 %v507, %v723
  %v725 = vrcp.pop %v636
  %v726 = vmul.f32 %v508, %v725
  %v727 = vrcp.pop %v637
  %v728 = vmul.f32 %v509, %v727
  %v729 = vrcp.pop %v638
  %v730 = vmul.f32 %v510, %v729
  %v731 = vrcp.pop %v639
  %v732 = vmul.f32 %v511, %v731
  %v733 = vrcp.pop %v640
  %v734 = vmul.f32 %v512, %v733
  %v735 = vrcp.pop %v641
  %v736 = vmul.f32 %v513, %v735
  %v737 = vrcp.pop %v642
  %v738 = vmul.f32 %v514, %v737
  %v739 = vrcp.pop %v643
  %v740 = vmul.f32 %v515, %v739
  %v741 = vrcp.pop %v644
  %v742 = vmul.f32 %v516, %v741
  %v743 = vrcp.pop %v645
  %v744 = vmul.f32 %v517, %v743
  %v745 = vrcp.pop %v646
  %v746 = vmul.f32 %v518, %v745
  %v747 = vrcp.pop %v647
  %v748 = vmul.f32 %v519, %v747
  %v749 = vrcp.pop %v648
  %v750 = vmul.f32 %v520, %v749
  %v751 = vrcp.pop %v649
  %v752 = vmul.f32 %v521, %v751
  %v753 = vrcp.pop %v650
  %v754 = vmul.f32 %v522, %v753
  %v755 = vrcp.pop %v651
  %v756 = vmul.f32 %v523, %v755
  %v757 = vrcp.pop %v652
  %v758 = vmul.f32 %v524, %v757
  %v759 = vrcp.pop %v653
  %v760 = vmul.f32 %v525, %v759
  %v761 = vrcp.pop %v654
  %v762 = vmul.f32 %v526, %v761
  %v763 = vrcp.pop %v655
  %v764 = vmul.f32 %v527, %v763
  %v765 = vrcp.pop %v656
  %v766 = vmul.f32 %v528, %v765
  %v767 = vrcp.pop %v657
  %v768 = vmul.f32 %v529, %v767
  %v769 = vrcp.pop %v658
  %v770 = vmul.f32 %v530, %v769
  %v771 = vrcp.pop %v659
  %v772 = vmul.f32 %v531, %v771
  %v773 = vrcp.pop %v660
  %v774 = vmul.f32 %v532, %v773
  %v775 = vrcp.pop %v661
  %v776 = vmul.f32 %v533, %v775
  %v777 = vrcp.pop %v662
  %v778 = vmul.f32 %v534, %v777
  %v779 = vrcp.pop %v663
  %v780 = vmul.f32 %v535, %v779
  %v781 = vrcp.pop %v664
  %v782 = vmul.f32 %v536, %v781
  %v783 = vrcp.pop %v665
  %v784 = vmul.f32 %v537, %v783
  %v785 = vrcp.pop %v666
  %v786 = vmul.f32 %v538, %v785
  %v787 = vrcp.pop %v667
  %v788 = vmul.f32 %v539, %v787
  %v789 = vrcp.pop %v668
  %v790 = vmul.f32 %v540, %v789
  %v791 = vrcp.pop %v669
  %v792 = vmul.f32 %v541, %v791
  %v793 = vrcp.pop %v670
  %v794 = vmul.f32 %v542, %v793
  %v795 = vrcp.pop %v671
  %v796 = vmul.f32 %v543, %v795
  %v797 = vrcp.pop %v672
  %v798 = vmul.f32 %v544, %v797
  %v799 = vrcp.pop %v673
  %v800 = vmul.f32 %v545, %v799
  %v801 = vrcp.pop %v674
  %v802 = vmul.f32 %v546, %v801
  %v803 = vmul.f32 %v163, %v676
  %v804 = vmul.f32 %v164, %v678
  %v805 = vmul.f32 %v165, %v680
  %v806 = vmul.f32 %v166, %v682
  %v807 = vmul.f32 %v167, %v684
  %v808 = vmul.f32 %v168, %v686
  %v809 = vmul.f32 %v169, %v688
  %v810 = vmul.f32 %v170, %v690
  %v811 = vmul.f32 %v171, %v692
  %v812 = vmul.f32 %v172, %v694
  %v813 = vmul.f32 %v173, %v696
  %v814 = vmul.f32 %v174, %v698
  %v815 = vmul.f32 %v175, %v700
  %v816 = vmul.f32 %v176, %v702
  %v817 = vmul.f32 %v177, %v704
  %v818 = vmul.f32 %v178, %v706
  %v819 = vmul.f32 %v179, %v708
  %v820 = vmul.f32 %v180, %v710
  %v821 = vmul.f32 %v181, %v712
  %v822 = vmul.f32 %v182, %v714
  %v823 = vmul.f32 %v183, %v716
  %v824 = vmul.f32 %v184, %v718
  %v825 = vmul.f32 %v185, %v720
  %v826 = vmul.f32 %v186, %v722
  %v827 = vmul.f32 %v187, %v724
  %v828 = vmul.f32 %v188, %v726
  %v829 = vmul.f32 %v189, %v728
  %v830 = vmul.f32 %v190, %v730
  %v831 = vmul.f32 %v191, %v732
  %v832 = vmul.f32 %v192, %v734
  %v833 = vmul.f32 %v193, %v736
  %v834 = vmul.f32 %v194, %v738
  %v835 = vmul.f32 %v195, %v740
  %v836 = vmul.f32 %v196, %v742
  %v837 = vmul.f32 %v197, %v744
  %v838 = vmul.f32 %v198, %v746
  %v839 = vmul.f32 %v199, %v748
  %v840 = vmul.f32 %v200, %v750
  %v841 = vmul.f32 %v201, %v752
  %v842 = vmul.f32 %v202, %v754
  %v843 = vmul.f32 %v203, %v756
  %v844 = vmul.f32 %v204, %v758
  %v845 = vmul.f32 %v205, %v760
  %v846 = vmul.f32 %v206, %v762
  %v847 = vmul.f32 %v207, %v764
  %v848 = vmul.f32 %v208, %v766
  %v849 = vmul.f32 %v209, %v768
  %v850 = vmul.f32 %v210, %v770
  %v851 = vmul.f32 %v211, %v772
  %v852 = vmul.f32 %v212, %v774
  %v853 = vmul.f32 %v213, %v776
  %v854 = vmul.f32 %v214, %v778
  %v855 = vmul.f32 %v215, %v780
  %v856 = vmul.f32 %v216, %v782
  %v857 = vmul.f32 %v217, %v784
  %v858 = vmul.f32 %v218, %v786
  %v859 = vmul.f32 %v219, %v788
  %v860 = vmul.f32 %v220, %v790
  %v861 = vmul.f32 %v221, %v792
  %v862 = vmul.f32 %v222, %v794
  %v863 = vmul.f32 %v223, %v796
  %v864 = vmul.f32 %v224, %v798
  %v865 = vmul.f32 %v225, %v800
  %v866 = vmul.f32 %v226, %v802
  %v867 = vsel %vm547, %v163, %v803
  %v868 = vsel %vm548, %v164, %v804
  %v869 = vsel %vm549, %v165, %v805
  %v870 = vsel %vm550, %v166, %v806
  %v871 = vsel %vm551, %v167, %v807
  %v872 = vsel %vm552, %v168, %v808
  %v873 = vsel %vm553, %v169, %v809
  %v874 = vsel %vm554, %v170, %v810
  %v875 = vsel %vm555, %v171, %v811
  %v876 = vsel %vm556, %v172, %v812
  %v877 = vsel %vm557, %v173, %v813
  %v878 = vsel %vm558, %v174, %v814
  %v879 = vsel %vm559, %v175, %v815
  %v880 = vsel %vm560, %v176, %v816
  %v881 = vsel %vm561, %v177, %v817
  %v882 = vsel %vm562, %v178, %v818
  %v883 = vsel %vm563, %v179, %v819
  %v884 = vsel %vm564, %v180, %v820
  %v885 = vsel %vm565, %v181, %v821
  %v886 = vsel %vm566, %v182, %v822
  %v887 = vsel %vm567, %v183, %v823
  %v888 = vsel %vm568, %v184, %v824
  %v889 = vsel %vm569, %v185, %v825
  %v890 = vsel %vm570, %v186, %v826
  %v891 = vsel %vm571, %v187, %v827
  %v892 = vsel %vm572, %v188, %v828
  %v893 = vsel %vm573, %v189, %v829
  %v894 = vsel %vm574, %v190, %v830
  %v895 = vsel %vm575, %v191, %v831
  %v896 = vsel %vm576, %v192, %v832
  %v897 = vsel %vm577, %v193, %v833
  %v898 = vsel %vm578, %v194, %v834
  %v899 = vsel %vm579, %v195, %v835
  %v900 = vsel %vm580, %v196, %v836
  %v901 = vsel %vm581, %v197, %v837
  %v902 = vsel %vm582, %v198, %v838
  %v903 = vsel %vm583, %v199, %v839
  %v904 = vsel %vm584, %v200, %v840
  %v905 = vsel %vm585, %v201, %v841
  %v906 = vsel %vm586, %v202, %v842
  %v907 = vsel %vm587, %v203, %v843
  %v908 = vsel %vm588, %v204, %v844
  %v909 = vsel %vm589, %v205, %v845
  %v910 = vsel %vm590, %v206, %v846
  %v911 = vsel %vm591, %v207, %v847
  %v912 = vsel %vm592, %v208, %v848
  %v913 = vsel %vm593, %v209, %v849
  %v914 = vsel %vm594, %v210, %v850
  %v915 = vsel %vm595, %v211, %v851
  %v916 = vsel %vm596, %v212, %v852
  %v917 = vsel %vm597, %v213, %v853
  %v918 = vsel %vm598, %v214, %v854
  %v919 = vsel %vm599, %v215, %v855
  %v920 = vsel %vm600, %v216, %v856
  %v921 = vsel %vm601, %v217, %v857
  %v922 = vsel %vm602, %v218, %v858
  %v923 = vsel %vm603, %v219, %v859
  %v924 = vsel %vm604, %v220, %v860
  %v925 = vsel %vm605, %v221, %v861
  %v926 = vsel %vm606, %v222, %v862
  %v927 = vsel %vm607, %v223, %v863
  %v928 = vsel %vm608, %v224, %v864
  %v929 = vsel %vm609, %v225, %v865
  %v930 = vsel %vm610, %v226, %v866
  %v931 = vpack.c.bf16 %v868, %v867
  %v932 = vpack.c.bf16 %v870, %v869
  %v933 = vpack.c.bf16 %v872, %v871
  %v934 = vpack.c.bf16 %v874, %v873
  %v935 = vpack.c.bf16 %v876, %v875
  %v936 = vpack.c.bf16 %v878, %v877
  %v937 = vpack.c.bf16 %v880, %v879
  %v938 = vpack.c.bf16 %v882, %v881
  %v939 = vpack.c.bf16 %v884, %v883
  %v940 = vpack.c.bf16 %v886, %v885
  %v941 = vpack.c.bf16 %v888, %v887
  %v942 = vpack.c.bf16 %v890, %v889
  %v943 = vpack.c.bf16 %v892, %v891
  %v944 = vpack.c.bf16 %v894, %v893
  %v945 = vpack.c.bf16 %v896, %v895
  %v946 = vpack.c.bf16 %v898, %v897
  %v947 = vpack.c.bf16 %v900, %v899
  %v948 = vpack.c.bf16 %v902, %v901
  %v949 = vpack.c.bf16 %v904, %v903
  %v950 = vpack.c.bf16 %v906, %v905
  %v951 = vpack.c.bf16 %v908, %v907
  %v952 = vpack.c.bf16 %v910, %v909
  %v953 = vpack.c.bf16 %v912, %v911
  %v954 = vpack.c.bf16 %v914, %v913
  %v955 = vpack.c.bf16 %v916, %v915
  %v956 = vpack.c.bf16 %v918, %v917
  %v957 = vpack.c.bf16 %v920, %v919
  %v958 = vpack.c.bf16 %v922, %v921
  %v959 = vpack.c.bf16 %v924, %v923
  %v960 = vpack.c.bf16 %v926, %v925
  %v961 = vpack.c.bf16 %v928, %v927
  %v962 = vpack.c.bf16 %v930, %v929
  %v963 = vld [vmem:[%s3] sm:$0x3]
  %v964 = vld [vmem:[%s4] sm:$0xff]
  %v965 = vld [vmem:[%s4 + $0x8] sm:$0xff]
  %v966 = vld [vmem:[%s4 + $0x10] sm:$0xff]
  %v967 = vld [vmem:[%s4 + $0x18] sm:$0xff]
  %v968 = vld [vmem:[%s4 + $0x20] sm:$0xff]
  %v969 = vld [vmem:[%s4 + $0x28] sm:$0xff]
  %v970 = vld [vmem:[%s4 + $0x30] sm:$0xff]
  %v971 = vld [vmem:[%s4 + $0x38] sm:$0xff]
  %v972 = vld [vmem:[%s4 + $0x40] sm:$0xff]
  %v973 = vld [vmem:[%s4 + $0x48] sm:$0xff]
  %v974 = vld [vmem:[%s4 + $0x50] sm:$0xff]
  %v975 = vld [vmem:[%s4 + $0x58] sm:$0xff]
  %v976 = vld [vmem:[%s4 + $0x60] sm:$0xff]
  %v977 = vld [vmem:[%s4 + $0x68] sm:$0xff]
  %v978 = vld [vmem:[%s4 + $0x70] sm:$0xff]
  %v979 = vld [vmem:[%s4 + $0x78] sm:$0xff]
  %v980 = vld [vmem:[%s4 + $0x80] sm:$0xff]
  %v981 = vld [vmem:[%s4 + $0x88] sm:$0xff]
  %v982 = vld [vmem:[%s4 + $0x90] sm:$0xff]
  %v983 = vld [vmem:[%s4 + $0x98] sm:$0xff]
  %v984 = vld [vmem:[%s4 + $0xa0] sm:$0xff]
  %v985 = vld [vmem:[%s4 + $0xa8] sm:$0xff]
  %v986 = vld [vmem:[%s4 + $0xb0] sm:$0xff]
  %v987 = vld [vmem:[%s4 + $0xb8] sm:$0xff]
  %v988 = vld [vmem:[%s4 + $0xc0] sm:$0xff]
  %v989 = vld [vmem:[%s4 + $0xc8] sm:$0xff]
  %v990 = vld [vmem:[%s4 + $0xd0] sm:$0xff]
  %v991 = vld [vmem:[%s4 + $0xd8] sm:$0xff]
  %v992 = vld [vmem:[%s4 + $0xe0] sm:$0xff]
  %v993 = vld [vmem:[%s4 + $0xe8] sm:$0xff]
  %v994 = vld [vmem:[%s4 + $0xf0] sm:$0xff]
  %v995 = vld [vmem:[%s4 + $0xf8] sm:$0xff]
  %v996 = vld [vmem:[%s4 + $0x100] sm:$0xff]
  %v997 = vld [vmem:[%s4 + $0x108] sm:$0xff]
  %v998 = vld [vmem:[%s4 + $0x110] sm:$0xff]
  %v999 = vld [vmem:[%s4 + $0x118] sm:$0xff]
  %v1000 = vld [vmem:[%s4 + $0x120] sm:$0xff]
  %v1001 = vld [vmem:[%s4 + $0x128] sm:$0xff]
  %v1002 = vld [vmem:[%s4 + $0x130] sm:$0xff]
  %v1003 = vld [vmem:[%s4 + $0x138] sm:$0xff]
  %v1004 = vld [vmem:[%s4 + $0x140] sm:$0xff]
  %v1005 = vld [vmem:[%s4 + $0x148] sm:$0xff]
  %v1006 = vld [vmem:[%s4 + $0x150] sm:$0xff]
  %v1007 = vld [vmem:[%s4 + $0x158] sm:$0xff]
  %v1008 = vld [vmem:[%s4 + $0x160] sm:$0xff]
  %v1009 = vld [vmem:[%s4 + $0x168] sm:$0xff]
  %v1010 = vld [vmem:[%s4 + $0x170] sm:$0xff]
  %v1011 = vld [vmem:[%s4 + $0x178] sm:$0xff]
  %v1012 = vld [vmem:[%s4 + $0x180] sm:$0xff]
  %v1013 = vld [vmem:[%s4 + $0x188] sm:$0xff]
  %v1014 = vld [vmem:[%s4 + $0x190] sm:$0xff]
  %v1015 = vld [vmem:[%s4 + $0x198] sm:$0xff]
  %v1016 = vld [vmem:[%s4 + $0x1a0] sm:$0xff]
  %v1017 = vld [vmem:[%s4 + $0x1a8] sm:$0xff]
  %v1018 = vld [vmem:[%s4 + $0x1b0] sm:$0xff]
  %v1019 = vld [vmem:[%s4 + $0x1b8] sm:$0xff]
  %v1020 = vld [vmem:[%s4 + $0x1c0] sm:$0xff]
  %v1021 = vld [vmem:[%s4 + $0x1c8] sm:$0xff]
  %v1022 = vld [vmem:[%s4 + $0x1d0] sm:$0xff]
  %v1023 = vld [vmem:[%s4 + $0x1d8] sm:$0xff]
  %v1024 = vld [vmem:[%s4 + $0x1e0] sm:$0xff]
  %v1025 = vld [vmem:[%s4 + $0x1e8] sm:$0xff]
  %v1026 = vld [vmem:[%s4 + $0x1f0] sm:$0xff]
  %v1027 = vld [vmem:[%s4 + $0x1f8] sm:$0xff]
  %vm1028 = vcmask 31744
  %v1030 = vsel %vm1028, %v931, 0
  %v1033 = vsel %vm1028, %v932, 0
  %v1036 = vsel %vm1028, %v933, 0
  %v1039 = vsel %vm1028, %v934, 0
  %v1042 = vsel %vm1028, %v935, 0
  %v1045 = vsel %vm1028, %v936, 0
  %v1048 = vsel %vm1028, %v937, 0
  %v1051 = vsel %vm1028, %v938, 0
  %v1054 = vsel %vm1028, %v939, 0
  %v1057 = vsel %vm1028, %v940, 0
  %v1060 = vsel %vm1028, %v941, 0
  %v1063 = vsel %vm1028, %v942, 0
  %v1066 = vsel %vm1028, %v943, 0
  %v1069 = vsel %vm1028, %v944, 0
  %v1072 = vsel %vm1028, %v945, 0
  %v1075 = vsel %vm1028, %v946, 0
  %v1078 = vsel %vm1028, %v947, 0
  %v1081 = vsel %vm1028, %v948, 0
  %v1084 = vsel %vm1028, %v949, 0
  %v1087 = vsel %vm1028, %v950, 0
  %v1090 = vsel %vm1028, %v951, 0
  %v1093 = vsel %vm1028, %v952, 0
  %v1096 = vsel %vm1028, %v953, 0
  %v1099 = vsel %vm1028, %v954, 0
  %v1102 = vsel %vm1028, %v955, 0
  %v1105 = vsel %vm1028, %v956, 0
  %v1108 = vsel %vm1028, %v957, 0
  %v1111 = vsel %vm1028, %v958, 0
  %v1114 = vsel %vm1028, %v959, 0
  %v1117 = vsel %vm1028, %v960, 0
  %v1120 = vsel %vm1028, %v961, 0
  %v1123 = vsel %vm1028, %v962, 0
  %vm1125 = vcmask 1041408
  %v1127 = vsel %vm1125, %v963, 0
  %1129 = vmatprep.subr.bf16.mxu0 0
  %1130 = vmatpush1.bf16.msra.mxu0 %v1127
  %1131 = vmatprep.subr.bf16.mxu0 0
  %1132 = vmatpush1.bf16.msra.mxu0 0
  %1133 = vmatprep.subr.bf16.mxu0 0
  %1134 = vmatpush1.bf16.msra.mxu0 0
  %1135 = vmatprep.subr.bf16.mxu0 0
  %1136 = vmatpush1.bf16.msra.mxu0 0
  %1137 = vmatprep.subr.bf16.mxu0 0
  %1138 = vmatpush1.bf16.msra.mxu0 0
  %1139 = vmatprep.subr.bf16.mxu0 0
  %1140 = vmatpush1.bf16.msra.mxu0 0
  %1141 = vmatprep.subr.bf16.mxu0 0
  %1142 = vmatpush1.bf16.msra.mxu0 0
  %1143 = vmatprep.subr.bf16.mxu0 0
  %1144 = vmatpush1.bf16.msra.mxu0 0
  %1145 = vmatprep.subr.bf16.mxu0 0
  %1146 = vmatpush1.bf16.msra.mxu0 0
  %1147 = vmatprep.subr.bf16.mxu0 0
  %1148 = vmatpush1.bf16.msra.mxu0 0
  %1149 = vmatprep.subr.bf16.mxu0 0
  %1150 = vmatpush1.bf16.msra.mxu0 0
  %1151 = vmatprep.subr.bf16.mxu0 0
  %1152 = vmatpush1.bf16.msra.mxu0 0
  %1153 = vmatprep.subr.bf16.mxu0 0
  %1154 = vmatpush1.bf16.msra.mxu0 0
  %1155 = vmatprep.subr.bf16.mxu0 0
  %1156 = vmatpush1.bf16.msra.mxu0 0
  %1157 = vmatprep.subr.bf16.mxu0 0
  %1158 = vmatpush1.bf16.msra.mxu0 0
  %1159 = vmatprep.subr.bf16.mxu0 0
  %1160 = vmatpush1.bf16.msra.mxu0 0
  %1161 = vmatprep.mubr.bf16.mxu0 0
  %1162 = vmatmul.mubr.bf16.gmra.mrb[0].mxu0 %v1030
  %v1163 = vpop.f32.mrb[0].mxu0
  %v1164 = vadd.f32 %v964, %v1163
  %v1165 = vpop.f32.mrb[0].mxu0
  %v1166 = vpop.f32.mrb[0].mxu0
  %v1167 = vadd.f32 %v965, %v1166
  %v1168 = vpop.f32.mrb[0].mxu0
  %1169 = vmatprep.mubr.bf16.mxu0 0
  %1170 = vmatmul.mubr.bf16.gmra.mrb[0].mxu0 %v1033
  %v1171 = vpop.f32.mrb[0].mxu0
  %v1172 = vadd.f32 %v966, %v1171
  %v1173 = vpop.f32.mrb[0].mxu0
  %v1174 = vpop.f32.mrb[0].mxu0
  %v1175 = vadd.f32 %v967, %v1174
  %v1176 = vpop.f32.mrb[0].mxu0
  %1177 = vmatprep.mubr.bf16.mxu0 0
  %1178 = vmatmul.mubr.bf16.gmra.mrb[0].mxu0 %v1036
  %v1179 = vpop.f32.mrb[0].mxu0
  %v1180 = vadd.f32 %v968, %v1179
  %v1181 = vpop.f32.mrb[0].mxu0
  %v1182 = vpop.f32.mrb[0].mxu0
  %v1183 = vadd.f32 %v969, %v1182
  %v1184 = vpop.f32.mrb[0].mxu0
  %1185 = vmatprep.mubr.bf16.mxu0 0
  %1186 = vmatmul.mubr.bf16.gmra.mrb[0].mxu0 %v1039
  %v1187 = vpop.f32.mrb[0].mxu0
  %v1188 = vadd.f32 %v970, %v1187
  %v1189 = vpop.f32.mrb[0].mxu0
  %v1190 = vpop.f32.mrb[0].mxu0
  %v1191 = vadd.f32 %v971, %v1190
  %v1192 = vpop.f32.mrb[0].mxu0
  %1193 = vmatprep.mubr.bf16.mxu0 0
  %1194 = vmatmul.mubr.bf16.gmra.mrb[0].mxu0 %v1042
  %v1195 = vpop.f32.mrb[0].mxu0
  %v1196 = vadd.f32 %v972, %v1195
  %v1197 = vpop.f32.mrb[0].mxu0
  %v1198 = vpop.f32.mrb[0].mxu0
  %v1199 = vadd.f32 %v973, %v1198
  %v1200 = vpop.f32.mrb[0].mxu0
  %1201 = vmatprep.mubr.bf16.mxu0 0
  %1202 = vmatmul.mubr.bf16.gmra.mrb[0].mxu0 %v1045
  %v1203 = vpop.f32.mrb[0].mxu0
  %v1204 = vadd.f32 %v974, %v1203
  %v1205 = vpop.f32.mrb[0].mxu0
  %v1206 = vpop.f32.mrb[0].mxu0
  %v1207 = vadd.f32 %v975, %v1206
  %v1208 = vpop.f32.mrb[0].mxu0
  %1209 = vmatprep.mubr.bf16.mxu0 0
  %1210 = vmatmul.mubr.bf16.gmra.mrb[0].mxu0 %v1048
  %v1211 = vpop.f32.mrb[0].mxu0
  %v1212 = vadd.f32 %v976, %v1211
  %v1213 = vpop.f32.mrb[0].mxu0
  %v1214 = vpop.f32.mrb[0].mxu0
  %v1215 = vadd.f32 %v977, %v1214
  %v1216 = vpop.f32.mrb[0].mxu0
  %1217 = vmatprep.mubr.bf16.mxu0 0
  %1218 = vmatmul.mubr.bf16.gmra.mrb[0].mxu0 %v1051
  %v1219 = vpop.f32.mrb[0].mxu0
  %v1220 = vadd.f32 %v978, %v1219
  %v1221 = vpop.f32.mrb[0].mxu0
  %v1222 = vpop.f32.mrb[0].mxu0
  %v1223 = vadd.f32 %v979, %v1222
  %v1224 = vpop.f32.mrb[0].mxu0
  %1225 = vmatprep.mubr.bf16.mxu0 0
  %1226 = vmatmul.mubr.bf16.gmra.mrb[0].mxu0 %v1054
  %v1227 = vpop.f32.mrb[0].mxu0
  %v1228 = vadd.f32 %v980, %v1227
  %v1229 = vpop.f32.mrb[0].mxu0
  %v1230 = vpop.f32.mrb[0].mxu0
  %v1231 = vadd.f32 %v981, %v1230
  %v1232 = vpop.f32.mrb[0].mxu0
  %1233 = vmatprep.mubr.bf16.mxu0 0
  %1234 = vmatmul.mubr.bf16.gmra.mrb[0].mxu0 %v1057
  %v1235 = vpop.f32.mrb[0].mxu0
  %v1236 = vadd.f32 %v982, %v1235
  %v1237 = vpop.f32.mrb[0].mxu0
  %v1238 = vpop.f32.mrb[0].mxu0
  %v1239 = vadd.f32 %v983, %v1238
  %v1240 = vpop.f32.mrb[0].mxu0
  %1241 = vmatprep.mubr.bf16.mxu0 0
  %1242 = vmatmul.mubr.bf16.gmra.mrb[0].mxu0 %v1060
  %v1243 = vpop.f32.mrb[0].mxu0
  %v1244 = vadd.f32 %v984, %v1243
  %v1245 = vpop.f32.mrb[0].mxu0
  %v1246 = vpop.f32.mrb[0].mxu0
  %v1247 = vadd.f32 %v985, %v1246
  %v1248 = vpop.f32.mrb[0].mxu0
  %1249 = vmatprep.mubr.bf16.mxu0 0
  %1250 = vmatmul.mubr.bf16.gmra.mrb[0].mxu0 %v1063
  %v1251 = vpop.f32.mrb[0].mxu0
  %v1252 = vadd.f32 %v986, %v1251
  %v1253 = vpop.f32.mrb[0].mxu0
  %v1254 = vpop.f32.mrb[0].mxu0
  %v1255 = vadd.f32 %v987, %v1254
  %v1256 = vpop.f32.mrb[0].mxu0
  %1257 = vmatprep.mubr.bf16.mxu0 0
  %1258 = vmatmul.mubr.bf16.gmra.mrb[0].mxu0 %v1066
  %v1259 = vpop.f32.mrb[0].mxu0
  %v1260 = vadd.f32 %v988, %v1259
  %v1261 = vpop.f32.mrb[0].mxu0
  %v1262 = vpop.f32.mrb[0].mxu0
  %v1263 = vadd.f32 %v989, %v1262
  %v1264 = vpop.f32.mrb[0].mxu0
  %1265 = vmatprep.mubr.bf16.mxu0 0
  %1266 = vmatmul.mubr.bf16.gmra.mrb[0].mxu0 %v1069
  %v1267 = vpop.f32.mrb[0].mxu0
  %v1268 = vadd.f32 %v990, %v1267
  %v1269 = vpop.f32.mrb[0].mxu0
  %v1270 = vpop.f32.mrb[0].mxu0
  %v1271 = vadd.f32 %v991, %v1270
  %v1272 = vpop.f32.mrb[0].mxu0
  %1273 = vmatprep.mubr.bf16.mxu0 0
  %1274 = vmatmul.mubr.bf16.gmra.mrb[0].mxu0 %v1072
  %v1275 = vpop.f32.mrb[0].mxu0
  %v1276 = vadd.f32 %v992, %v1275
  %v1277 = vpop.f32.mrb[0].mxu0
  %v1278 = vpop.f32.mrb[0].mxu0
  %v1279 = vadd.f32 %v993, %v1278
  %v1280 = vpop.f32.mrb[0].mxu0
  %1281 = vmatprep.mubr.bf16.mxu0 0
  %1282 = vmatmul.mubr.bf16.gmra.mrb[0].mxu0 %v1075
  %v1283 = vpop.f32.mrb[0].mxu0
  %v1284 = vadd.f32 %v994, %v1283
  %v1285 = vpop.f32.mrb[0].mxu0
  %v1286 = vpop.f32.mrb[0].mxu0
  %v1287 = vadd.f32 %v995, %v1286
  %v1288 = vpop.f32.mrb[0].mxu0
  %1289 = vmatprep.mubr.bf16.mxu0 0
  %1290 = vmatmul.mubr.bf16.gmra.mrb[0].mxu0 %v1078
  %v1291 = vpop.f32.mrb[0].mxu0
  %v1292 = vadd.f32 %v996, %v1291
  %v1293 = vpop.f32.mrb[0].mxu0
  %v1294 = vpop.f32.mrb[0].mxu0
  %v1295 = vadd.f32 %v997, %v1294
  %v1296 = vpop.f32.mrb[0].mxu0
  %1297 = vmatprep.mubr.bf16.mxu0 0
  %1298 = vmatmul.mubr.bf16.gmra.mrb[0].mxu0 %v1081
  %v1299 = vpop.f32.mrb[0].mxu0
  %v1300 = vadd.f32 %v998, %v1299
  %v1301 = vpop.f32.mrb[0].mxu0
  %v1302 = vpop.f32.mrb[0].mxu0
  %v1303 = vadd.f32 %v999, %v1302
  %v1304 = vpop.f32.mrb[0].mxu0
  %1305 = vmatprep.mubr.bf16.mxu0 0
  %1306 = vmatmul.mubr.bf16.gmra.mrb[0].mxu0 %v1084
  %v1307 = vpop.f32.mrb[0].mxu0
  %v1308 = vadd.f32 %v1000, %v1307
  %v1309 = vpop.f32.mrb[0].mxu0
  %v1310 = vpop.f32.mrb[0].mxu0
  %v1311 = vadd.f32 %v1001, %v1310
  %v1312 = vpop.f32.mrb[0].mxu0
  %1313 = vmatprep.mubr.bf16.mxu0 0
  %1314 = vmatmul.mubr.bf16.gmra.mrb[0].mxu0 %v1087
  %v1315 = vpop.f32.mrb[0].mxu0
  %v1316 = vadd.f32 %v1002, %v1315
  %v1317 = vpop.f32.mrb[0].mxu0
  %v1318 = vpop.f32.mrb[0].mxu0
  %v1319 = vadd.f32 %v1003, %v1318
  %v1320 = vpop.f32.mrb[0].mxu0
  %1321 = vmatprep.mubr.bf16.mxu0 0
  %1322 = vmatmul.mubr.bf16.gmra.mrb[0].mxu0 %v1090
  %v1323 = vpop.f32.mrb[0].mxu0
  %v1324 = vadd.f32 %v1004, %v1323
  %v1325 = vpop.f32.mrb[0].mxu0
  %v1326 = vpop.f32.mrb[0].mxu0
  %v1327 = vadd.f32 %v1005, %v1326
  %v1328 = vpop.f32.mrb[0].mxu0
  %1329 = vmatprep.mubr.bf16.mxu0 0
  %1330 = vmatmul.mubr.bf16.gmra.mrb[0].mxu0 %v1093
  %v1331 = vpop.f32.mrb[0].mxu0
  %v1332 = vadd.f32 %v1006, %v1331
  %v1333 = vpop.f32.mrb[0].mxu0
  %v1334 = vpop.f32.mrb[0].mxu0
  %v1335 = vadd.f32 %v1007, %v1334
  %v1336 = vpop.f32.mrb[0].mxu0
  %1337 = vmatprep.mubr.bf16.mxu0 0
  %1338 = vmatmul.mubr.bf16.gmra.mrb[0].mxu0 %v1096
  %v1339 = vpop.f32.mrb[0].mxu0
  %v1340 = vadd.f32 %v1008, %v1339
  %v1341 = vpop.f32.mrb[0].mxu0
  %v1342 = vpop.f32.mrb[0].mxu0
  %v1343 = vadd.f32 %v1009, %v1342
  %v1344 = vpop.f32.mrb[0].mxu0
  %1345 = vmatprep.mubr.bf16.mxu0 0
  %1346 = vmatmul.mubr.bf16.gmra.mrb[0].mxu0 %v1099
  %v1347 = vpop.f32.mrb[0].mxu0
  %v1348 = vadd.f32 %v1010, %v1347
  %v1349 = vpop.f32.mrb[0].mxu0
  %v1350 = vpop.f32.mrb[0].mxu0
  %v1351 = vadd.f32 %v1011, %v1350
  %v1352 = vpop.f32.mrb[0].mxu0
  %1353 = vmatprep.mubr.bf16.mxu0 0
  %1354 = vmatmul.mubr.bf16.gmra.mrb[0].mxu0 %v1102
  %v1355 = vpop.f32.mrb[0].mxu0
  %v1356 = vadd.f32 %v1012, %v1355
  %v1357 = vpop.f32.mrb[0].mxu0
  %v1358 = vpop.f32.mrb[0].mxu0
  %v1359 = vadd.f32 %v1013, %v1358
  %v1360 = vpop.f32.mrb[0].mxu0
  %1361 = vmatprep.mubr.bf16.mxu0 0
  %1362 = vmatmul.mubr.bf16.gmra.mrb[0].mxu0 %v1105
  %v1363 = vpop.f32.mrb[0].mxu0
  %v1364 = vadd.f32 %v1014, %v1363
  %v1365 = vpop.f32.mrb[0].mxu0
  %v1366 = vpop.f32.mrb[0].mxu0
  %v1367 = vadd.f32 %v1015, %v1366
  %v1368 = vpop.f32.mrb[0].mxu0
  %1369 = vmatprep.mubr.bf16.mxu0 0
  %1370 = vmatmul.mubr.bf16.gmra.mrb[0].mxu0 %v1108
  %v1371 = vpop.f32.mrb[0].mxu0
  %v1372 = vadd.f32 %v1016, %v1371
  %v1373 = vpop.f32.mrb[0].mxu0
  %v1374 = vpop.f32.mrb[0].mxu0
  %v1375 = vadd.f32 %v1017, %v1374
  %v1376 = vpop.f32.mrb[0].mxu0
  %1377 = vmatprep.mubr.bf16.mxu0 0
  %1378 = vmatmul.mubr.bf16.gmra.mrb[0].mxu0 %v1111
  %v1379 = vpop.f32.mrb[0].mxu0
  %v1380 = vadd.f32 %v1018, %v1379
  %v1381 = vpop.f32.mrb[0].mxu0
  %v1382 = vpop.f32.mrb[0].mxu0
  %v1383 = vadd.f32 %v1019, %v1382
  %v1384 = vpop.f32.mrb[0].mxu0
  %1385 = vmatprep.mubr.bf16.mxu0 0
  %1386 = vmatmul.mubr.bf16.gmra.mrb[0].mxu0 %v1114
  %v1387 = vpop.f32.mrb[0].mxu0
  %v1388 = vadd.f32 %v1020, %v1387
  %v1389 = vpop.f32.mrb[0].mxu0
  %v1390 = vpop.f32.mrb[0].mxu0
  %v1391 = vadd.f32 %v1021, %v1390
  %v1392 = vpop.f32.mrb[0].mxu0
  %1393 = vmatprep.mubr.bf16.mxu0 0
  %1394 = vmatmul.mubr.bf16.gmra.mrb[0].mxu0 %v1117
  %v1395 = vpop.f32.mrb[0].mxu0
  %v1396 = vadd.f32 %v1022, %v1395
  %v1397 = vpop.f32.mrb[0].mxu0
  %v1398 = vpop.f32.mrb[0].mxu0
  %v1399 = vadd.f32 %v1023, %v1398
  %v1400 = vpop.f32.mrb[0].mxu0
  %1401 = vmatprep.mubr.bf16.mxu0 0
  %1402 = vmatmul.mubr.bf16.gmra.mrb[0].mxu0 %v1120
  %v1403 = vpop.f32.mrb[0].mxu0
  %v1404 = vadd.f32 %v1024, %v1403
  %v1405 = vpop.f32.mrb[0].mxu0
  %v1406 = vpop.f32.mrb[0].mxu0
  %v1407 = vadd.f32 %v1025, %v1406
  %v1408 = vpop.f32.mrb[0].mxu0
  %1409 = vmatprep.mubr.bf16.mxu0 0
  %1410 = vmatmul.mubr.bf16.gmra.mrb[0].mxu0 %v1123
  %v1411 = vpop.f32.mrb[0].mxu0
  %v1412 = vadd.f32 %v1026, %v1411
  %v1413 = vpop.f32.mrb[0].mxu0
  %v1414 = vpop.f32.mrb[0].mxu0
  %v1415 = vadd.f32 %v1027, %v1414
  %v1416 = vpop.f32.mrb[0].mxu0
  %1417 = vdwg.mxu0
  %vm1418 = vcmask 130048
  %1419 = vst.msk [vmem:[%s5] sm:$0xff] %vm1418, %v1164
  %1420 = vst.msk [vmem:[%s5 + $0x8] sm:$0xff] %vm1418, %v1167
  %1421 = vst.msk [vmem:[%s5 + $0x10] sm:$0xff] %vm1418, %v1172
  %1422 = vst.msk [vmem:[%s5 + $0x18] sm:$0xff] %vm1418, %v1175
  %1423 = vst.msk [vmem:[%s5 + $0x20] sm:$0xff] %vm1418, %v1180
  %1424 = vst.msk [vmem:[%s5 + $0x28] sm:$0xff] %vm1418, %v1183
  %1425 = vst.msk [vmem:[%s5 + $0x30] sm:$0xff] %vm1418, %v1188
  %1426 = vst.msk [vmem:[%s5 + $0x38] sm:$0xff] %vm1418, %v1191
  %1427 = vst.msk [vmem:[%s5 + $0x40] sm:$0xff] %vm1418, %v1196
  %1428 = vst.msk [vmem:[%s5 + $0x48] sm:$0xff] %vm1418, %v1199
  %1429 = vst.msk [vmem:[%s5 + $0x50] sm:$0xff] %vm1418, %v1204
  %1430 = vst.msk [vmem:[%s5 + $0x58] sm:$0xff] %vm1418, %v1207
  %1431 = vst.msk [vmem:[%s5 + $0x60] sm:$0xff] %vm1418, %v1212
  %1432 = vst.msk [vmem:[%s5 + $0x68] sm:$0xff] %vm1418, %v1215
  %1433 = vst.msk [vmem:[%s5 + $0x70] sm:$0xff] %vm1418, %v1220
  %1434 = vst.msk [vmem:[%s5 + $0x78] sm:$0xff] %vm1418, %v1223
  %1435 = vst.msk [vmem:[%s5 + $0x80] sm:$0xff] %vm1418, %v1228
  %1436 = vst.msk [vmem:[%s5 + $0x88] sm:$0xff] %vm1418, %v1231
  %1437 = vst.msk [vmem:[%s5 + $0x90] sm:$0xff] %vm1418, %v1236
  %1438 = vst.msk [vmem:[%s5 + $0x98] sm:$0xff] %vm1418, %v1239
  %1439 = vst.msk [vmem:[%s5 + $0xa0] sm:$0xff] %vm1418, %v1244
  %1440 = vst.msk [vmem:[%s5 + $0xa8] sm:$0xff] %vm1418, %v1247
  %1441 = vst.msk [vmem:[%s5 + $0xb0] sm:$0xff] %vm1418, %v1252
  %1442 = vst.msk [vmem:[%s5 + $0xb8] sm:$0xff] %vm1418, %v1255
  %1443 = vst.msk [vmem:[%s5 + $0xc0] sm:$0xff] %vm1418, %v1260
  %1444 = vst.msk [vmem:[%s5 + $0xc8] sm:$0xff] %vm1418, %v1263
  %1445 = vst.msk [vmem:[%s5 + $0xd0] sm:$0xff] %vm1418, %v1268
  %1446 = vst.msk [vmem:[%s5 + $0xd8] sm:$0xff] %vm1418, %v1271
  %1447 = vst.msk [vmem:[%s5 + $0xe0] sm:$0xff] %vm1418, %v1276
  %1448 = vst.msk [vmem:[%s5 + $0xe8] sm:$0xff] %vm1418, %v1279
  %1449 = vst.msk [vmem:[%s5 + $0xf0] sm:$0xff] %vm1418, %v1284
  %1450 = vst.msk [vmem:[%s5 + $0xf8] sm:$0xff] %vm1418, %v1287
  %1451 = vst.msk [vmem:[%s5 + $0x100] sm:$0xff] %vm1418, %v1292
  %1452 = vst.msk [vmem:[%s5 + $0x108] sm:$0xff] %vm1418, %v1295
  %1453 = vst.msk [vmem:[%s5 + $0x110] sm:$0xff] %vm1418, %v1300
  %1454 = vst.msk [vmem:[%s5 + $0x118] sm:$0xff] %vm1418, %v1303
  %1455 = vst.msk [vmem:[%s5 + $0x120] sm:$0xff] %vm1418, %v1308
  %1456 = vst.msk [vmem:[%s5 + $0x128] sm:$0xff] %vm1418, %v1311
  %1457 = vst.msk [vmem:[%s5 + $0x130] sm:$0xff] %vm1418, %v1316
  %1458 = vst.msk [vmem:[%s5 + $0x138] sm:$0xff] %vm1418, %v1319
  %1459 = vst.msk [vmem:[%s5 + $0x140] sm:$0xff] %vm1418, %v1324
  %1460 = vst.msk [vmem:[%s5 + $0x148] sm:$0xff] %vm1418, %v1327
  %1461 = vst.msk [vmem:[%s5 + $0x150] sm:$0xff] %vm1418, %v1332
  %1462 = vst.msk [vmem:[%s5 + $0x158] sm:$0xff] %vm1418, %v1335
  %1463 = vst.msk [vmem:[%s5 + $0x160] sm:$0xff] %vm1418, %v1340
  %1464 = vst.msk [vmem:[%s5 + $0x168] sm:$0xff] %vm1418, %v1343
  %1465 = vst.msk [vmem:[%s5 + $0x170] sm:$0xff] %vm1418, %v1348
  %1466 = vst.msk [vmem:[%s5 + $0x178] sm:$0xff] %vm1418, %v1351
  %1467 = vst.msk [vmem:[%s5 + $0x180] sm:$0xff] %vm1418, %v1356
  %1468 = vst.msk [vmem:[%s5 + $0x188] sm:$0xff] %vm1418, %v1359
  %1469 = vst.msk [vmem:[%s5 + $0x190] sm:$0xff] %vm1418, %v1364
  %1470 = vst.msk [vmem:[%s5 + $0x198] sm:$0xff] %vm1418, %v1367
  %1471 = vst.msk [vmem:[%s5 + $0x1a0] sm:$0xff] %vm1418, %v1372
  %1472 = vst.msk [vmem:[%s5 + $0x1a8] sm:$0xff] %vm1418, %v1375
  %1473 = vst.msk [vmem:[%s5 + $0x1b0] sm:$0xff] %vm1418, %v1380
  %1474 = vst.msk [vmem:[%s5 + $0x1b8] sm:$0xff] %vm1418, %v1383
  %1475 = vst.msk [vmem:[%s5 + $0x1c0] sm:$0xff] %vm1418, %v1388
  %1476 = vst.msk [vmem:[%s5 + $0x1c8] sm:$0xff] %vm1418, %v1391
  %1477 = vst.msk [vmem:[%s5 + $0x1d0] sm:$0xff] %vm1418, %v1396
  %1478 = vst.msk [vmem:[%s5 + $0x1d8] sm:$0xff] %vm1418, %v1399
  %1479 = vst.msk [vmem:[%s5 + $0x1e0] sm:$0xff] %vm1418, %v1404
  %1480 = vst.msk [vmem:[%s5 + $0x1e8] sm:$0xff] %vm1418, %v1407
  %1481 = vst.msk [vmem:[%s5 + $0x1f0] sm:$0xff] %vm1418, %v1412
  %1482 = vst.msk [vmem:[%s5 + $0x1f8] sm:$0xff] %vm1418, %v1415
  // Predicated region
  $region22: #{bottleneck_mish_forward.7} parent=0 // pred_check
    _
  $region23: #{bottleneck_mish_forward.7} parent=0 // pred_check_branch
    %1484 = sbr.rel (0) target = $region25
  $region24: #{bottleneck_mish_forward.7} parent=0 // pred_region
    _
  $region25: #{bottleneck_mish_forward.7} parent=0 // pred_fallthru
    _
  // Predicated region
  $region26: #{bottleneck_mish_forward.7} parent=0 // pred_check
    _
  $region27: #{bottleneck_mish_forward.7} parent=0 // pred_check_branch
    %1486 = sbr.rel (0) target = $region29
  $region28: #{bottleneck_mish_forward.7} parent=0 // pred_region
    _
  $region29: #{bottleneck_mish_forward.7} parent=0 // pred_fallthru
    _

// kernel: bottleneck_mish_forward.6
$region0: #{bottleneck_mish_forward.6}
  #allocation0 [shape = 'u32[]', space=smem, size = 0x4, offset = 0x4, fixed_abs, tag = 'smem constant byte address 0x4 - core index']
  #allocation1 [shape = 'u32[144,128]{1,0:T(1,128)}', space=vmem, size = 0x12000, scoped, tag = 'internal scratch']
  #allocation2 [shape = 'f32[6,10,10,4]{3,2,1,0:T(8,128)}', space=vmem, size = 0x78000, scoped, tag = 'scratch operand']
  %s0 = inlined_call_operand.vmem [shape: f32[2,4,8,8,4], index: 0, kind: input, shape index: {}]
  %s1 = inlined_call_operand.vmem [shape: f32[1,4], index: 1, kind: input, shape index: {}]
  %s2 = inlined_call_operand.vmem [shape: f32[1,4], index: 2, kind: input, shape index: {}]
  %s3 = inlined_call_operand.vmem [shape: bf16[108,4], index: 3, kind: input, shape index: {}]
  %s4 = inlined_call_operand.vmem [shape: f32[2,256,4], index: 4, kind: output, shape index: {0}]
  %s5 = inlined_call_operand.vmem [shape: f32[2,1,4], index: 5, kind: output, shape index: {1}]
  %s6 = inlined_call_operand.vmem [shape: f32[2,1,4], index: 6, kind: output, shape index: {2}]
  %7 = xla_tuple %s4, %s5, %s6
  %s8 = sld [smem:[#allocation0]]
  $region65: #{bottleneck_mish_forward.6} parent=0
    _
  %s10 = ssub.s32 1, %s8
  %s11 = scalar_select 0, %s10, %s8
  loop: start=0, step=1, limit=4
  $region2: #{bottleneck_mish_forward.6} parent=0 // loop_pre_header
    _
  $region3: #{bottleneck_mish_forward.6} parent=0 // loop_header
    %s13 = sphi 0, %s17
    %p14 = scmp.ge.s32.totalorder %s13, 4
    %s23 = sphi 0, %s25
    %s26 = sphi 0, %s23
    %s27 = sphi 0, %s26
    %s43 = sphi 0, %s27
    %s47 = sphi 0, %s47
    %s49 = sphi 0, %s47
    %s50 = sphi 0, %s49
    %s64 = sphi 0, %s50
    %s68 = sphi 0, %s68
    %s70 = sphi 0, %s68
    %s71 = sphi 0, %s70
    %s85 = sphi 0, %s71
    %s89 = sphi 0, %s89
    %s91 = sphi 0, %s89
    %s92 = sphi 0, %s91
    %s106 = sphi 0, %s92
    %s112 = sphi 0, %s114
    %s115 = sphi 0, %s112
    %s116 = sphi 0, %s115
    %s132 = sphi 0, %s116
    %s138 = sphi 0, %s140
    %s141 = sphi 0, %s138
    %s142 = sphi 0, %s141
    %s158 = sphi 0, %s142
    %s164 = sphi 0, %s166
    %s167 = sphi 0, %s164
    %s168 = sphi 0, %s167
    %s184 = sphi 0, %s168
  $region4: #{bottleneck_mish_forward.6} parent=0 // loop_header_branch
    %16 = sbr.rel (%p14) target = $region8
  $region5: #{bottleneck_mish_forward.6} parent=0 // loop_body
    %s18 = ssub.s32 %s13, 1
    %s19 = ssub.s32 %s13, 2
    %s20 = sadd.s32 %s13, 1
    %s21 = ssub.s32 %s13, %s20
    %p22 = scmp.eq.s32.totalorder %s21, 0
    %s24 = sadd.s32 %s23, 1
    %s25 = scalar_select %p22, %s23, %s24
    %p28 = pneg %p22
    %p29 = scmp.eq.s32.totalorder %s13, 1
    %p30 = por %p28, %p29
    %p31 = scmp.ne.s32.totalorder %s23, %s26
    %p32 = scmp.eq.s32.totalorder %s13, 0
    %p33 = por %p31, %p32
    %p34 = scmp.ne.s32.totalorder %s23, %s26
    %p35 = scmp.eq.s32.totalorder %s18, 1
    %p36 = por %p34, %p35
    %p37 = scmp.ne.s32.totalorder %s26, %s27
    %p38 = scmp.eq.s32.totalorder %s18, 0
    %p39 = por %p37, %p38
    %p40 = scmp.ne.s32.totalorder %s26, %s27
    %p41 = scmp.eq.s32.totalorder %s19, 1
    %p42 = por %p40, %p41
    %p44 = scmp.ne.s32.totalorder %s27, %s43
    %p45 = scmp.eq.s32.totalorder %s19, 0
    %p46 = por %p44, %p45
    %s48 = sadd.s32 %s47, 1
    %p51 = scmp.eq.s32.totalorder %s13, 1
    %p52 = scmp.ne.s32.totalorder %s47, %s49
    %p53 = scmp.eq.s32.totalorder %s13, 0
    %p54 = por %p52, %p53
    %p55 = scmp.ne.s32.totalorder %s47, %s49
    %p56 = scmp.eq.s32.totalorder %s18, 1
    %p57 = por %p55, %p56
    %p58 = scmp.ne.s32.totalorder %s49, %s50
    %p59 = scmp.eq.s32.totalorder %s18, 0
    %p60 = por %p58, %p59
    %p61 = scmp.ne.s32.totalorder %s49, %s50
    %p62 = scmp.eq.s32.totalorder %s19, 1
    %p63 = por %p61, %p62
    %p65 = scmp.ne.s32.totalorder %s50, %s64
    %p66 = scmp.eq.s32.totalorder %s19, 0
    %p67 = por %p65, %p66
    %s69 = sadd.s32 %s68, 1
    %p72 = scmp.eq.s32.totalorder %s13, 1
    %p73 = scmp.ne.s32.totalorder %s68, %s70
    %p74 = scmp.eq.s32.totalorder %s13, 0
    %p75 = por %p73, %p74
    %p76 = scmp.ne.s32.totalorder %s68, %s70
    %p77 = scmp.eq.s32.totalorder %s18, 1
    %p78 = por %p76, %p77
    %p79 = scmp.ne.s32.totalorder %s70, %s71
    %p80 = scmp.eq.s32.totalorder %s18, 0
    %p81 = por %p79, %p80
    %p82 = scmp.ne.s32.totalorder %s70, %s71
    %p83 = scmp.eq.s32.totalorder %s19, 1
    %p84 = por %p82, %p83
    %p86 = scmp.ne.s32.totalorder %s71, %s85
    %p87 = scmp.eq.s32.totalorder %s19, 0
    %p88 = por %p86, %p87
    %s90 = sadd.s32 %s89, 1
    %p93 = scmp.eq.s32.totalorder %s13, 1
    %p94 = scmp.ne.s32.totalorder %s89, %s91
    %p95 = scmp.eq.s32.totalorder %s13, 0
    %p96 = por %p94, %p95
    %p97 = scmp.ne.s32.totalorder %s89, %s91
    %p98 = scmp.eq.s32.totalorder %s18, 1
    %p99 = por %p97, %p98
    %p100 = scmp.ne.s32.totalorder %s91, %s92
    %p101 = scmp.eq.s32.totalorder %s18, 0
    %p102 = por %p100, %p101
    %p103 = scmp.ne.s32.totalorder %s91, %s92
    %p104 = scmp.eq.s32.totalorder %s19, 1
    %p105 = por %p103, %p104
    %p107 = scmp.ne.s32.totalorder %s92, %s106
    %p108 = scmp.eq.s32.totalorder %s19, 0
    %p109 = por %p107, %p108
    %s110 = ssub.s32 %s13, %s20
    %p111 = scmp.eq.s32.totalorder %s110, 0
    %s113 = sadd.s32 %s112, 1
    %s114 = scalar_select %p111, %s112, %s113
    %p117 = pneg %p111
    %p118 = scmp.eq.s32.totalorder %s13, 1
    %p119 = por %p117, %p118
    %p120 = scmp.ne.s32.totalorder %s112, %s115
    %p121 = scmp.eq.s32.totalorder %s13, 0
    %p122 = por %p120, %p121
    %p123 = scmp.ne.s32.totalorder %s112, %s115
    %p124 = scmp.eq.s32.totalorder %s18, 1
    %p125 = por %p123, %p124
    %p126 = scmp.ne.s32.totalorder %s115, %s116
    %p127 = scmp.eq.s32.totalorder %s18, 0
    %p128 = por %p126, %p127
    %p129 = scmp.ne.s32.totalorder %s115, %s116
    %p130 = scmp.eq.s32.totalorder %s19, 1
    %p131 = por %p129, %p130
    %p133 = scmp.ne.s32.totalorder %s116, %s132
    %p134 = scmp.eq.s32.totalorder %s19, 0
    %p135 = por %p133, %p134
    %s136 = ssub.s32 %s13, %s20
    %p137 = scmp.eq.s32.totalorder %s136, 0
    %s139 = sadd.s32 %s138, 1
    %s140 = scalar_select %p137, %s138, %s139
    %p143 = pneg %p137
    %p144 = scmp.eq.s32.totalorder %s13, 1
    %p145 = por %p143, %p144
    %p146 = scmp.ne.s32.totalorder %s138, %s141
    %p147 = scmp.eq.s32.totalorder %s13, 0
    %p148 = por %p146, %p147
    %p149 = scmp.ne.s32.totalorder %s138, %s141
    %p150 = scmp.eq.s32.totalorder %s18, 1
    %p151 = por %p149, %p150
    %p152 = scmp.ne.s32.totalorder %s141, %s142
    %p153 = scmp.eq.s32.totalorder %s18, 0
    %p154 = por %p152, %p153
    %p155 = scmp.ne.s32.totalorder %s141, %s142
    %p156 = scmp.eq.s32.totalorder %s19, 1
    %p157 = por %p155, %p156
    %p159 = scmp.ne.s32.totalorder %s142, %s158
    %p160 = scmp.eq.s32.totalorder %s19, 0
    %p161 = por %p159, %p160
    %s162 = ssub.s32 %s13, %s20
    %p163 = scmp.eq.s32.totalorder %s162, 0
    %s165 = sadd.s32 %s164, 1
    %s166 = scalar_select %p163, %s164, %s165
    %p169 = pneg %p163
    %p170 = scmp.eq.s32.totalorder %s13, 1
    %p171 = por %p169, %p170
    %p172 = scmp.ne.s32.totalorder %s164, %s167
    %p173 = scmp.eq.s32.totalorder %s13, 0
    %p174 = por %p172, %p173
    %p175 = scmp.ne.s32.totalorder %s164, %s167
    %p176 = scmp.eq.s32.totalorder %s18, 1
    %p177 = por %p175, %p176
    %p178 = scmp.ne.s32.totalorder %s167, %s168
    %p179 = scmp.eq.s32.totalorder %s18, 0
    %p180 = por %p178, %p179
    %p181 = scmp.ne.s32.totalorder %s167, %s168
    %p182 = scmp.eq.s32.totalorder %s19, 1
    %p183 = por %p181, %p182
    %p185 = scmp.ne.s32.totalorder %s168, %s184
    %p186 = scmp.eq.s32.totalorder %s19, 0
    %p187 = por %p185, %p186
    %p188 = scmp.le.s32.totalorder 1, %s13
    %p189 = scmp.lt.s32.totalorder %s13, 3
    %p190 = pnand %p188, %p189
    %p191 = pneg %p190
    // Predicated region
    $region9: #{bottleneck_mish_forward.6} parent=5 // pred_check
      _
    $region10: #{bottleneck_mish_forward.6} parent=5 // pred_check_branch
      %193 = sbr.rel (%p190) target = $region12
    $region11: #{bottleneck_mish_forward.6} parent=5 // pred_region
      %s194 = ssub.s32 %s13, 1
      // Predicated region
      $region13: #{bottleneck_mish_forward.6} parent=11 // pred_check
        %p195 = pneg %p60
      $region14: #{bottleneck_mish_forward.6} parent=11 // pred_check_branch
        %197 = sbr.rel (%p195) target = $region16
      $region15: #{bottleneck_mish_forward.6} parent=11 // pred_region
        _
      $region16: #{bottleneck_mish_forward.6} parent=11 // pred_fallthru
        _
      // Predicated region
      $region17: #{bottleneck_mish_forward.6} parent=11 // pred_check
        %p198 = pneg %p81
      $region18: #{bottleneck_mish_forward.6} parent=11 // pred_check_branch
        %200 = sbr.rel (%p198) target = $region20
      $region19: #{bottleneck_mish_forward.6} parent=11 // pred_region
        _
      $region20: #{bottleneck_mish_forward.6} parent=11 // pred_fallthru
        _
      // Predicated region
      $region21: #{bottleneck_mish_forward.6} parent=11 // pred_check
        %p201 = pneg %p102
      $region22: #{bottleneck_mish_forward.6} parent=11 // pred_check_branch
        %203 = sbr.rel (%p201) target = $region24
      $region23: #{bottleneck_mish_forward.6} parent=11 // pred_region
        _
      $region24: #{bottleneck_mish_forward.6} parent=11 // pred_fallthru
        _
    $region12: #{bottleneck_mish_forward.6} parent=5 // pred_fallthru
      _
    %p204 = scmp.lt.s32.totalorder %s13, 2
    // Predicated region
    $region25: #{bottleneck_mish_forward.6} parent=5 // pred_check
      %p205 = pneg %p204
    $region26: #{bottleneck_mish_forward.6} parent=5 // pred_check_branch
      %207 = sbr.rel (%p205) target = $region28
    $region27: #{bottleneck_mish_forward.6} parent=5 // pred_region
      // Predicated region
      $region29: #{bottleneck_mish_forward.6} parent=27 // pred_check
        %p208 = pneg %p33
      $region30: #{bottleneck_mish_forward.6} parent=27 // pred_check_branch
        %210 = sbr.rel (%p208) target = $region32
      $region31: #{bottleneck_mish_forward.6} parent=27 // pred_region
        %p211 = scmp.lt.s32.totalorder %s13, 1
        %s212 = scalar_select %p211, %s13, 1
        %s213 = smul.addr %s212, 32
        %s214 = smul.addr %s213, 8
        %s215 = scalar_lea.vmem %s0, %s214
      $region32: #{bottleneck_mish_forward.6} parent=27 // pred_fallthru
        _
    $region28: #{bottleneck_mish_forward.6} parent=5 // pred_fallthru
      _
    %p216 = scmp.le.s32.totalorder 1, %s13
    %p217 = scmp.lt.s32.totalorder %s13, 3
    %p218 = pnand %p216, %p217
    %p219 = pneg %p218
    // Predicated region
    $region33: #{bottleneck_mish_forward.6} parent=5 // pred_check
      _
    $region34: #{bottleneck_mish_forward.6} parent=5 // pred_check_branch
      %221 = sbr.rel (%p218) target = $region36
    $region35: #{bottleneck_mish_forward.6} parent=5 // pred_region
      %s222 = ssub.s32 %s13, 1
      %p223 = scmp.lt.s32.totalorder %s18, 1
      %s224 = scalar_select %p223, %s18, 1
      %s225 = smul.addr %s224, 32
      %s226 = smul.addr %s225, 8
      %s227 = scalar_lea.vmem %s0, %s226
      %p228 = pneg %p39
      %p229 = pneg %p36
      %p230 = pneg %p60
      %p231 = pneg %p57
      %p232 = pneg %p81
      %p233 = pneg %p78
      %p234 = pneg %p102
      %p235 = pneg %p99
      %p236 = pneg %p128
      %p237 = pneg %p125
      %p238 = scmp.lt.s32.totalorder %s18, 1
      %s239 = scalar_select %p238, %s18, 1
      %s240 = smul.addr %s239, 32
      %s241 = smul.addr %s240, 8
      %s242 = scalar_lea.vmem %s4, %s241
      %p243 = pneg %p154
      %p244 = pneg %p151
      %p245 = scmp.lt.s32.totalorder %s18, 1
      %s246 = scalar_select %p245, %s18, 1
      %s247 = scalar_lea.vmem %s5, %s246
      %p248 = pneg %p180
      %p249 = pneg %p177
      %p250 = scmp.lt.s32.totalorder %s18, 1
      %s251 = scalar_select %p250, %s18, 1
      %s252 = scalar_lea.vmem %s6, %s251
      %p253 = scmp.lt.s32.totalorder %s18, 1
      %s254 = scalar_select %p253, %s18, 1
      %s255 = smul.addr %s254, 32
      %s256 = smul.addr %s255, 8
      %s257 = scalar_lea.vmem %s0, %s256
      %p258 = scmp.lt.s32.totalorder %s18, 1
      %s259 = scalar_select %p258, %s18, 1
      %s260 = smul.addr %s259, 32
      %s261 = smul.addr %s260, 8
      %s262 = scalar_lea.vmem %s4, %s261
      %p263 = scmp.lt.s32.totalorder %s18, 1
      %s264 = scalar_select %p263, %s18, 1
      %s265 = scalar_lea.vmem %s5, %s264
      %p266 = scmp.lt.s32.totalorder %s18, 1
      %s267 = scalar_select %p266, %s18, 1
      %s268 = scalar_lea.vmem %s6, %s267
      %vm270 = vcmask 31744
      %271 = vst.msk [vmem:[#allocation2] sm:$0xff] %vm270, 0.0
      %vm272 = vcmask 25600
      %273 = vst.msk [vmem:[#allocation2 + $0x8] sm:$0x3] %vm272, 0.0
      %274 = vst.msk [vmem:[#allocation2 + $0x10] sm:$0xff] %vm270, 0.0
      %275 = vst.msk [vmem:[#allocation2 + $0x18] sm:$0x3] %vm272, 0.0
      %276 = vst.msk [vmem:[#allocation2 + $0x20] sm:$0xff] %vm270, 0.0
      %277 = vst.msk [vmem:[#allocation2 + $0x28] sm:$0x3] %vm272, 0.0
      %278 = vst.msk [vmem:[#allocation2 + $0x30] sm:$0xff] %vm270, 0.0
      %279 = vst.msk [vmem:[#allocation2 + $0x38] sm:$0x3] %vm272, 0.0
      %280 = vst.msk [vmem:[#allocation2 + $0x40] sm:$0xff] %vm270, 0.0
      %281 = vst.msk [vmem:[#allocation2 + $0x48] sm:$0x3] %vm272, 0.0
      %282 = vst.msk [vmem:[#allocation2 + $0x50] sm:$0xff] %vm270, 0.0
      %283 = vst.msk [vmem:[#allocation2 + $0x58] sm:$0x3] %vm272, 0.0
      %284 = vst.msk [vmem:[#allocation2 + $0x60] sm:$0xff] %vm270, 0.0
      %285 = vst.msk [vmem:[#allocation2 + $0x68] sm:$0x3] %vm272, 0.0
      %286 = vst.msk [vmem:[#allocation2 + $0x70] sm:$0xff] %vm270, 0.0
      %287 = vst.msk [vmem:[#allocation2 + $0x78] sm:$0x3] %vm272, 0.0
      %288 = vst.msk [vmem:[#allocation2 + $0x80] sm:$0xff] %vm270, 0.0
      %289 = vst.msk [vmem:[#allocation2 + $0x88] sm:$0x3] %vm272, 0.0
      %290 = vst.msk [vmem:[#allocation2 + $0x90] sm:$0xff] %vm270, 0.0
      %291 = vst.msk [vmem:[#allocation2 + $0x98] sm:$0x3] %vm272, 0.0
      %292 = vst.msk [vmem:[#allocation2 + $0xa0] sm:$0xff] %vm270, 0.0
      %293 = vst.msk [vmem:[#allocation2 + $0xa8] sm:$0x3] %vm272, 0.0
      %294 = vst.msk [vmem:[#allocation2 + $0xb0] sm:$0xff] %vm270, 0.0
      %295 = vst.msk [vmem:[#allocation2 + $0xb8] sm:$0x3] %vm272, 0.0
      %296 = vst.msk [vmem:[#allocation2 + $0xc0] sm:$0xff] %vm270, 0.0
      %297 = vst.msk [vmem:[#allocation2 + $0xc8] sm:$0x3] %vm272, 0.0
      %298 = vst.msk [vmem:[#allocation2 + $0xd0] sm:$0xff] %vm270, 0.0
      %299 = vst.msk [vmem:[#allocation2 + $0xd8] sm:$0x3] %vm272, 0.0
      %300 = vst.msk [vmem:[#allocation2 + $0xe0] sm:$0xff] %vm270, 0.0
      %301 = vst.msk [vmem:[#allocation2 + $0xe8] sm:$0x3] %vm272, 0.0
      %302 = vst.msk [vmem:[#allocation2 + $0xf0] sm:$0xff] %vm270, 0.0
      %303 = vst.msk [vmem:[#allocation2 + $0xf8] sm:$0x3] %vm272, 0.0
      %304 = vst.msk [vmem:[#allocation2 + $0x100] sm:$0xff] %vm270, 0.0
      %305 = vst.msk [vmem:[#allocation2 + $0x108] sm:$0x3] %vm272, 0.0
      %306 = vst.msk [vmem:[#allocation2 + $0x110] sm:$0xff] %vm270, 0.0
      %307 = vst.msk [vmem:[#allocation2 + $0x118] sm:$0x3] %vm272, 0.0
      %308 = vst.msk [vmem:[#allocation2 + $0x120] sm:$0xff] %vm270, 0.0
      %309 = vst.msk [vmem:[#allocation2 + $0x128] sm:$0x3] %vm272, 0.0
      %310 = vst.msk [vmem:[#allocation2 + $0x130] sm:$0xff] %vm270, 0.0
      %311 = vst.msk [vmem:[#allocation2 + $0x138] sm:$0x3] %vm272, 0.0
      %312 = vst.msk [vmem:[#allocation2 + $0x140] sm:$0xff] %vm270, 0.0
      %313 = vst.msk [vmem:[#allocation2 + $0x148] sm:$0x3] %vm272, 0.0
      %314 = vst.msk [vmem:[#allocation2 + $0x150] sm:$0xff] %vm270, 0.0
      %315 = vst.msk [vmem:[#allocation2 + $0x158] sm:$0x3] %vm272, 0.0
      %316 = vst.msk [vmem:[#allocation2 + $0x160] sm:$0xff] %vm270, 0.0
      %317 = vst.msk [vmem:[#allocation2 + $0x168] sm:$0x3] %vm272, 0.0
      %318 = vst.msk [vmem:[#allocation2 + $0x170] sm:$0xff] %vm270, 0.0
      %319 = vst.msk [vmem:[#allocation2 + $0x178] sm:$0x3] %vm272, 0.0
      %320 = vst.msk [vmem:[#allocation2 + $0x180] sm:$0xff] %vm270, 0.0
      %321 = vst.msk [vmem:[#allocation2 + $0x188] sm:$0x3] %vm272, 0.0
      %322 = vst.msk [vmem:[#allocation2 + $0x190] sm:$0xff] %vm270, 0.0
      %323 = vst.msk [vmem:[#allocation2 + $0x198] sm:$0x3] %vm272, 0.0
      %324 = vst.msk [vmem:[#allocation2 + $0x1a0] sm:$0xff] %vm270, 0.0
      %325 = vst.msk [vmem:[#allocation2 + $0x1a8] sm:$0x3] %vm272, 0.0
      %326 = vst.msk [vmem:[#allocation2 + $0x1b0] sm:$0xff] %vm270, 0.0
      %327 = vst.msk [vmem:[#allocation2 + $0x1b8] sm:$0x3] %vm272, 0.0
      %328 = vst.msk [vmem:[#allocation2 + $0x1c0] sm:$0xff] %vm270, 0.0
      %329 = vst.msk [vmem:[#allocation2 + $0x1c8] sm:$0x3] %vm272, 0.0
      %330 = vst.msk [vmem:[#allocation2 + $0x1d0] sm:$0xff] %vm270, 0.0
      %331 = vst.msk [vmem:[#allocation2 + $0x1d8] sm:$0x3] %vm272, 0.0
      %332 = vst.msk [vmem:[#allocation2 + $0x1e0] sm:$0xff] %vm270, 0.0
      %333 = vst.msk [vmem:[#allocation2 + $0x1e8] sm:$0x3] %vm272, 0.0
      %334 = vst.msk [vmem:[#allocation2 + $0x1f0] sm:$0xff] %vm270, 0.0
      %335 = vst.msk [vmem:[#allocation2 + $0x1f8] sm:$0x3] %vm272, 0.0
      %336 = vst.msk [vmem:[#allocation2 + $0x200] sm:$0xff] %vm270, 0.0
      %337 = vst.msk [vmem:[#allocation2 + $0x208] sm:$0x3] %vm272, 0.0
      %338 = vst.msk [vmem:[#allocation2 + $0x210] sm:$0xff] %vm270, 0.0
      %339 = vst.msk [vmem:[#allocation2 + $0x218] sm:$0x3] %vm272, 0.0
      %340 = vst.msk [vmem:[#allocation2 + $0x220] sm:$0xff] %vm270, 0.0
      %341 = vst.msk [vmem:[#allocation2 + $0x228] sm:$0x3] %vm272, 0.0
      %342 = vst.msk [vmem:[#allocation2 + $0x230] sm:$0xff] %vm270, 0.0
      %343 = vst.msk [vmem:[#allocation2 + $0x238] sm:$0x3] %vm272, 0.0
      %344 = vst.msk [vmem:[#allocation2 + $0x240] sm:$0xff] %vm270, 0.0
      %345 = vst.msk [vmem:[#allocation2 + $0x248] sm:$0x3] %vm272, 0.0
      %346 = vst.msk [vmem:[#allocation2 + $0x250] sm:$0xff] %vm270, 0.0
      %347 = vst.msk [vmem:[#allocation2 + $0x258] sm:$0x3] %vm272, 0.0
      %348 = vst.msk [vmem:[#allocation2 + $0x260] sm:$0xff] %vm270, 0.0
      %349 = vst.msk [vmem:[#allocation2 + $0x268] sm:$0x3] %vm272, 0.0
      %350 = vst.msk [vmem:[#allocation2 + $0x270] sm:$0xff] %vm270, 0.0
      %351 = vst.msk [vmem:[#allocation2 + $0x278] sm:$0x3] %vm272, 0.0
      %352 = vst.msk [vmem:[#allocation2 + $0x280] sm:$0xff] %vm270, 0.0
      %353 = vst.msk [vmem:[#allocation2 + $0x288] sm:$0x3] %vm272, 0.0
      %354 = vst.msk [vmem:[#allocation2 + $0x290] sm:$0xff] %vm270, 0.0
      %355 = vst.msk [vmem:[#allocation2 + $0x298] sm:$0x3] %vm272, 0.0
      %356 = vst.msk [vmem:[#allocation2 + $0x2a0] sm:$0xff] %vm270, 0.0
      %357 = vst.msk [vmem:[#allocation2 + $0x2a8] sm:$0x3] %vm272, 0.0
      %358 = vst.msk [vmem:[#allocation2 + $0x2b0] sm:$0xff] %vm270, 0.0
      %359 = vst.msk [vmem:[#allocation2 + $0x2b8] sm:$0x3] %vm272, 0.0
      %360 = vst.msk [vmem:[#allocation2 + $0x2c0] sm:$0xff] %vm270, 0.0
      %361 = vst.msk [vmem:[#allocation2 + $0x2c8] sm:$0x3] %vm272, 0.0
      %362 = vst.msk [vmem:[#allocation2 + $0x2d0] sm:$0xff] %vm270, 0.0
      %363 = vst.msk [vmem:[#allocation2 + $0x2d8] sm:$0x3] %vm272, 0.0
      %364 = vst.msk [vmem:[#allocation2 + $0x2e0] sm:$0xff] %vm270, 0.0
      %365 = vst.msk [vmem:[#allocation2 + $0x2e8] sm:$0x3] %vm272, 0.0
      %366 = vst.msk [vmem:[#allocation2 + $0x2f0] sm:$0xff] %vm270, 0.0
      %367 = vst.msk [vmem:[#allocation2 + $0x2f8] sm:$0x3] %vm272, 0.0
      %368 = vst.msk [vmem:[#allocation2 + $0x300] sm:$0xff] %vm270, 0.0
      %369 = vst.msk [vmem:[#allocation2 + $0x308] sm:$0x3] %vm272, 0.0
      %370 = vst.msk [vmem:[#allocation2 + $0x310] sm:$0xff] %vm270, 0.0
      %371 = vst.msk [vmem:[#allocation2 + $0x318] sm:$0x3] %vm272, 0.0
      %372 = vst.msk [vmem:[#allocation2 + $0x320] sm:$0xff] %vm270, 0.0
      %373 = vst.msk [vmem:[#allocation2 + $0x328] sm:$0x3] %vm272, 0.0
      %374 = vst.msk [vmem:[#allocation2 + $0x330] sm:$0xff] %vm270, 0.0
      %375 = vst.msk [vmem:[#allocation2 + $0x338] sm:$0x3] %vm272, 0.0
      %376 = vst.msk [vmem:[#allocation2 + $0x340] sm:$0xff] %vm270, 0.0
      %377 = vst.msk [vmem:[#allocation2 + $0x348] sm:$0x3] %vm272, 0.0
      %378 = vst.msk [vmem:[#allocation2 + $0x350] sm:$0xff] %vm270, 0.0
      %379 = vst.msk [vmem:[#allocation2 + $0x358] sm:$0x3] %vm272, 0.0
      %380 = vst.msk [vmem:[#allocation2 + $0x360] sm:$0xff] %vm270, 0.0
      %381 = vst.msk [vmem:[#allocation2 + $0x368] sm:$0x3] %vm272, 0.0
      %382 = vst.msk [vmem:[#allocation2 + $0x370] sm:$0xff] %vm270, 0.0
      %383 = vst.msk [vmem:[#allocation2 + $0x378] sm:$0x3] %vm272, 0.0
      %384 = vst.msk [vmem:[#allocation2 + $0x380] sm:$0xff] %vm270, 0.0
      %385 = vst.msk [vmem:[#allocation2 + $0x388] sm:$0x3] %vm272, 0.0
      %386 = vst.msk [vmem:[#allocation2 + $0x390] sm:$0xff] %vm270, 0.0
      %387 = vst.msk [vmem:[#allocation2 + $0x398] sm:$0x3] %vm272, 0.0
      %388 = vst.msk [vmem:[#allocation2 + $0x3a0] sm:$0xff] %vm270, 0.0
      %389 = vst.msk [vmem:[#allocation2 + $0x3a8] sm:$0x3] %vm272, 0.0
      %390 = vst.msk [vmem:[#allocation2 + $0x3b0] sm:$0xff] %vm270, 0.0
      %391 = vst.msk [vmem:[#allocation2 + $0x3b8] sm:$0x3] %vm272, 0.0
      %v392 = vld [vmem:[%s1] sm:$0x1]
      %v393 = vld [vmem:[%s2] sm:$0x1]
      %v394 = vld [vmem:[%s257] sm:$0xff]
      %v395 = vld [vmem:[%s257 + $0x8] sm:$0xff]
      %v396 = vld [vmem:[%s257 + $0x10] sm:$0xff]
      %v397 = vld [vmem:[%s257 + $0x18] sm:$0xff]
      %v398 = vld [vmem:[%s257 + $0x20] sm:$0xff]
      %v399 = vld [vmem:[%s257 + $0x28] sm:$0xff]
      %v400 = vld [vmem:[%s257 + $0x30] sm:$0xff]
      %v401 = vld [vmem:[%s257 + $0x38] sm:$0xff]
      %v402 = vld [vmem:[%s257 + $0x40] sm:$0xff]
      %v403 = vld [vmem:[%s257 + $0x48] sm:$0xff]
      %v404 = vld [vmem:[%s257 + $0x50] sm:$0xff]
      %v405 = vld [vmem:[%s257 + $0x58] sm:$0xff]
      %v406 = vld [vmem:[%s257 + $0x60] sm:$0xff]
      %v407 = vld [vmem:[%s257 + $0x68] sm:$0xff]
      %v408 = vld [vmem:[%s257 + $0x70] sm:$0xff]
      %v409 = vld [vmem:[%s257 + $0x78] sm:$0xff]
      %v410 = vld [vmem:[%s257 + $0x80] sm:$0xff]
      %v411 = vld [vmem:[%s257 + $0x88] sm:$0xff]
      %v412 = vld [vmem:[%s257 + $0x90] sm:$0xff]
      %v413 = vld [vmem:[%s257 + $0x98] sm:$0xff]
      %v414 = vld [vmem:[%s257 + $0xa0] sm:$0xff]
      %v415 = vld [vmem:[%s257 + $0xa8] sm:$0xff]
      %v416 = vld [vmem:[%s257 + $0xb0] sm:$0xff]
      %v417 = vld [vmem:[%s257 + $0xb8] sm:$0xff]
      %v418 = vld [vmem:[%s257 + $0xc0] sm:$0xff]
      %v419 = vld [vmem:[%s257 + $0xc8] sm:$0xff]
      %v420 = vld [vmem:[%s257 + $0xd0] sm:$0xff]
      %v421 = vld [vmem:[%s257 + $0xd8] sm:$0xff]
      %v422 = vld [vmem:[%s257 + $0xe0] sm:$0xff]
      %v423 = vld [vmem:[%s257 + $0xe8] sm:$0xff]
      %v424 = vld [vmem:[%s257 + $0xf0] sm:$0xff]
      %v425 = vld [vmem:[%s257 + $0xf8] sm:$0xff]
      %v427 = vlaneseq
      %v428 = vshrl.u32 %v427, 7
      %v429 = vsub.s32 0, %v428
      %v430 = vrot.slane %v392, %v429
      %v432 = vmul.f32 %v394, %v430
      %v433 = vmul.f32 %v395, %v430
      %v434 = vmul.f32 %v396, %v430
      %v435 = vmul.f32 %v397, %v430
      %v436 = vmul.f32 %v398, %v430
      %v437 = vmul.f32 %v399, %v430
      %v438 = vmul.f32 %v400, %v430
      %v439 = vmul.f32 %v401, %v430
      %v440 = vmul.f32 %v402, %v430
      %v441 = vmul.f32 %v403, %v430
      %v442 = vmul.f32 %v404, %v430
      %v443 = vmul.f32 %v405, %v430
      %v444 = vmul.f32 %v406, %v430
      %v445 = vmul.f32 %v407, %v430
      %v446 = vmul.f32 %v408, %v430
      %v447 = vmul.f32 %v409, %v430
      %v448 = vmul.f32 %v410, %v430
      %v449 = vmul.f32 %v411, %v430
      %v450 = vmul.f32 %v412, %v430
      %v451 = vmul.f32 %v413, %v430
      %v452 = vmul.f32 %v414, %v430
      %v453 = vmul.f32 %v415, %v430
      %v454 = vmul.f32 %v416, %v430
      %v455 = vmul.f32 %v417, %v430
      %v456 = vmul.f32 %v418, %v430
      %v457 = vmul.f32 %v419, %v430
      %v458 = vmul.f32 %v420, %v430
      %v459 = vmul.f32 %v421, %v430
      %v460 = vmul.f32 %v422, %v430
      %v461 = vmul.f32 %v423, %v430
      %v462 = vmul.f32 %v424, %v430
      %v463 = vmul.f32 %v425, %v430
      %v465 = vlaneseq
      %v466 = vshrl.u32 %v465, 7
      %v467 = vsub.s32 0, %v466
      %v468 = vrot.slane %v393, %v467
      %v470 = vadd.f32 %v432, %v468
      %v471 = vadd.f32 %v433, %v468
      %v472 = vadd.f32 %v434, %v468
      %v473 = vadd.f32 %v435, %v468
      %v474 = vadd.f32 %v436, %v468
      %v475 = vadd.f32 %v437, %v468
      %v476 = vadd.f32 %v438, %v468
      %v477 = vadd.f32 %v439, %v468
      %v478 = vadd.f32 %v440, %v468
      %v479 = vadd.f32 %v441, %v468
      %v480 = vadd.f32 %v442, %v468
      %v481 = vadd.f32 %v443, %v468
      %v482 = vadd.f32 %v444, %v468
      %v483 = vadd.f32 %v445, %v468
      %v484 = vadd.f32 %v446, %v468
      %v485 = vadd.f32 %v447, %v468
      %v486 = vadd.f32 %v448, %v468
      %v487 = vadd.f32 %v449, %v468
      %v488 = vadd.f32 %v450, %v468
      %v489 = vadd.f32 %v451, %v468
      %v490 = vadd.f32 %v452, %v468
      %v491 = vadd.f32 %v453, %v468
      %v492 = vadd.f32 %v454, %v468
      %v493 = vadd.f32 %v455, %v468
      %v494 = vadd.f32 %v456, %v468
      %v495 = vadd.f32 %v457, %v468
      %v496 = vadd.f32 %v458, %v468
      %v497 = vadd.f32 %v459, %v468
      %v498 = vadd.f32 %v460, %v468
      %v499 = vadd.f32 %v461, %v468
      %v500 = vadd.f32 %v462, %v468
      %v501 = vadd.f32 %v463, %v468
      %v502 = vmin.f32 %v470, 20.0
      %v503 = vmin.f32 %v471, 20.0
      %v504 = vmin.f32 %v472, 20.0
      %v505 = vmin.f32 %v473, 20.0
      %v506 = vmin.f32 %v474, 20.0
      %v507 = vmin.f32 %v475, 20.0
      %v508 = vmin.f32 %v476, 20.0
      %v509 = vmin.f32 %v477, 20.0
      %v510 = vmin.f32 %v478, 20.0
      %v511 = vmin.f32 %v479, 20.0
      %v512 = vmin.f32 %v480, 20.0
      %v513 = vmin.f32 %v481, 20.0
      %v514 = vmin.f32 %v482, 20.0
      %v515 = vmin.f32 %v483, 20.0
      %v516 = vmin.f32 %v484, 20.0
      %v517 = vmin.f32 %v485, 20.0
      %v518 = vmin.f32 %v486, 20.0
      %v519 = vmin.f32 %v487, 20.0
      %v520 = vmin.f32 %v488, 20.0
      %v521 = vmin.f32 %v489, 20.0
      %v522 = vmin.f32 %v490, 20.0
      %v523 = vmin.f32 %v491, 20.0
      %v524 = vmin.f32 %v492, 20.0
      %v525 = vmin.f32 %v493, 20.0
      %v526 = vmin.f32 %v494, 20.0
      %v527 = vmin.f32 %v495, 20.0
      %v528 = vmin.f32 %v496, 20.0
      %v529 = vmin.f32 %v497, 20.0
      %v530 = vmin.f32 %v498, 20.0
      %v531 = vmin.f32 %v499, 20.0
      %v532 = vmin.f32 %v500, 20.0
      %v533 = vmin.f32 %v501, 20.0
      %v534 = vmul.f32 %v502, 1.442695
      %v535 = vpow.pop %v534
      %v536 = vmul.f32 %v503, 1.442695
      %v537 = vpow.pop %v536
      %v538 = vmul.f32 %v504, 1.442695
      %v539 = vpow.pop %v538
      %v540 = vmul.f32 %v505, 1.442695
      %v541 = vpow.pop %v540
      %v542 = vmul.f32 %v506, 1.442695
      %v543 = vpow.pop %v542
      %v544 = vmul.f32 %v507, 1.442695
      %v545 = vpow.pop %v544
      %v546 = vmul.f32 %v508, 1.442695
      %v547 = vpow.pop %v546
      %v548 = vmul.f32 %v509, 1.442695
      %v549 = vpow.pop %v548
      %v550 = vmul.f32 %v510, 1.442695
      %v551 = vpow.pop %v550
      %v552 = vmul.f32 %v511, 1.442695
      %v553 = vpow.pop %v552
      %v554 = vmul.f32 %v512, 1.442695
      %v555 = vpow.pop %v554
      %v556 = vmul.f32 %v513, 1.442695
      %v557 = vpow.pop %v556
      %v558 = vmul.f32 %v514, 1.442695
      %v559 = vpow.pop %v558
      %v560 = vmul.f32 %v515, 1.442695
      %v561 = vpow.pop %v560
      %v562 = vmul.f32 %v516, 1.442695
      %v563 = vpow.pop %v562
      %v564 = vmul.f32 %v517, 1.442695
      %v565 = vpow.pop %v564
      %v566 = vmul.f32 %v518, 1.442695
      %v567 = vpow.pop %v566
      %v568 = vmul.f32 %v519, 1.442695
      %v569 = vpow.pop %v568
      %v570 = vmul.f32 %v520, 1.442695
      %v571 = vpow.pop %v570
      %v572 = vmul.f32 %v521, 1.442695
      %v573 = vpow.pop %v572
      %v574 = vmul.f32 %v522, 1.442695
      %v575 = vpow.pop %v574
      %v576 = vmul.f32 %v523, 1.442695
      %v577 = vpow.pop %v576
      %v578 = vmul.f32 %v524, 1.442695
      %v579 = vpow.pop %v578
      %v580 = vmul.f32 %v525, 1.442695
      %v581 = vpow.pop %v580
      %v582 = vmul.f32 %v526, 1.442695
      %v583 = vpow.pop %v582
      %v584 = vmul.f32 %v527, 1.442695
      %v585 = vpow.pop %v584
      %v586 = vmul.f32 %v528, 1.442695
      %v587 = vpow.pop %v586
      %v588 = vmul.f32 %v529, 1.442695
      %v589 = vpow.pop %v588
      %v590 = vmul.f32 %v530, 1.442695
      %v591 = vpow.pop %v590
      %v592 = vmul.f32 %v531, 1.442695
      %v593 = vpow.pop %v592
      %v594 = vmul.f32 %v532, 1.442695
      %v595 = vpow.pop %v594
      %v596 = vmul.f32 %v533, 1.442695
      %v597 = vpow.pop %v596
      %v598 = vadd.f32 %v535, 2.0
      %v599 = vadd.f32 %v537, 2.0
      %v600 = vadd.f32 %v539, 2.0
      %v601 = vadd.f32 %v541, 2.0
      %v602 = vadd.f32 %v543, 2.0
      %v603 = vadd.f32 %v545, 2.0
      %v604 = vadd.f32 %v547, 2.0
      %v605 = vadd.f32 %v549, 2.0
      %v606 = vadd.f32 %v551, 2.0
      %v607 = vadd.f32 %v553, 2.0
      %v608 = vadd.f32 %v555, 2.0
      %v609 = vadd.f32 %v557, 2.0
      %v610 = vadd.f32 %v559, 2.0
      %v611 = vadd.f32 %v561, 2.0
      %v612 = vadd.f32 %v563, 2.0
      %v613 = vadd.f32 %v565, 2.0
      %v614 = vadd.f32 %v567, 2.0
      %v615 = vadd.f32 %v569, 2.0
      %v616 = vadd.f32 %v571, 2.0
      %v617 = vadd.f32 %v573, 2.0
      %v618 = vadd.f32 %v575, 2.0
      %v619 = vadd.f32 %v577, 2.0
      %v620 = vadd.f32 %v579, 2.0
      %v621 = vadd.f32 %v581, 2.0
      %v622 = vadd.f32 %v583, 2.0
      %v623 = vadd.f32 %v585, 2.0
      %v624 = vadd.f32 %v587, 2.0
      %v625 = vadd.f32 %v589, 2.0
      %v626 = vadd.f32 %v591, 2.0
      %v627 = vadd.f32 %v593, 2.0
      %v628 = vadd.f32 %v595, 2.0
      %v629 = vadd.f32 %v597, 2.0
      %v630 = vmul.f32 %v535, %v598
      %v631 = vmul.f32 %v537, %v599
      %v632 = vmul.f32 %v539, %v600
      %v633 = vmul.f32 %v541, %v601
      %v634 = vmul.f32 %v543, %v602
      %v635 = vmul.f32 %v545, %v603
      %v636 = vmul.f32 %v547, %v604
      %v637 = vmul.f32 %v549, %v605
      %v638 = vmul.f32 %v551, %v606
      %v639 = vmul.f32 %v553, %v607
      %v640 = vmul.f32 %v555, %v608
      %v641 = vmul.f32 %v557, %v609
      %v642 = vmul.f32 %v559, %v610
      %v643 = vmul.f32 %v561, %v611
      %v644 = vmul.f32 %v563, %v612
      %v645 = vmul.f32 %v565, %v613
      %v646 = vmul.f32 %v567, %v614
      %v647 = vmul.f32 %v569, %v615
      %v648 = vmul.f32 %v571, %v616
      %v649 = vmul.f32 %v573, %v617
      %v650 = vmul.f32 %v575, %v618
      %v651 = vmul.f32 %v577, %v619
      %v652 = vmul.f32 %v579, %v620
      %v653 = vmul.f32 %v581, %v621
      %v654 = vmul.f32 %v583, %v622
      %v655 = vmul.f32 %v585, %v623
      %v656 = vmul.f32 %v587, %v624
      %v657 = vmul.f32 %v589, %v625
      %v658 = vmul.f32 %v591, %v626
      %v659 = vmul.f32 %v593, %v627
      %v660 = vmul.f32 %v595, %v628
      %v661 = vmul.f32 %v597, %v629
      %vm662 = vcmp.gt.f32.partialorder %v470, 20.0
      %vm663 = vcmp.gt.f32.partialorder %v471, 20.0
      %vm664 = vcmp.gt.f32.partialorder %v472, 20.0
      %vm665 = vcmp.gt.f32.partialorder %v473, 20.0
      %vm666 = vcmp.gt.f32.partialorder %v474, 20.0
      %vm667 = vcmp.gt.f32.partialorder %v475, 20.0
      %vm668 = vcmp.gt.f32.partialorder %v476, 20.0
      %vm669 = vcmp.gt.f32.partialorder %v477, 20.0
      %vm670 = vcmp.gt.f32.partialorder %v478, 20.0
      %vm671 = vcmp.gt.f32.partialorder %v479, 20.0
      %vm672 = vcmp.gt.f32.partialorder %v480, 20.0
      %vm673 = vcmp.gt.f32.partialorder %v481, 20.0
      %vm674 = vcmp.gt.f32.partialorder %v482, 20.0
      %vm675 = vcmp.gt.f32.partialorder %v483, 20.0
      %vm676 = vcmp.gt.f32.partialorder %v484, 20.0
      %vm677 = vcmp.gt.f32.partialorder %v485, 20.0
      %vm678 = vcmp.gt.f32.partialorder %v486, 20.0
      %vm679 = vcmp.gt.f32.partialorder %v487, 20.0
      %vm680 = vcmp.gt.f32.partialorder %v488, 20.0
      %vm681 = vcmp.gt.f32.partialorder %v489, 20.0
      %vm682 = vcmp.gt.f32.partialorder %v490, 20.0
      %vm683 = vcmp.gt.f32.partialorder %v491, 20.0
      %vm684 = vcmp.gt.f32.partialorder %v492, 20.0
      %vm685 = vcmp.gt.f32.partialorder %v493, 20.0
      %vm686 = vcmp.gt.f32.partialorder %v494, 20.0
      %vm687 = vcmp.gt.f32.partialorder %v495, 20.0
      %vm688 = vcmp.gt.f32.partialorder %v496, 20.0
      %vm689 = vcmp.gt.f32.partialorder %v497, 20.0
      %vm690 = vcmp.gt.f32.partialorder %v498, 20.0
      %vm691 = vcmp.gt.f32.partialorder %v499, 20.0
      %vm692 = vcmp.gt.f32.partialorder %v500, 20.0
      %vm693 = vcmp.gt.f32.partialorder %v501, 20.0
      %v694 = vadd.f32 %v630, 2.0
      %v695 = vadd.f32 %v631, 2.0
      %v696 = vadd.f32 %v632, 2.0
      %v697 = vadd.f32 %v633, 2.0
      %v698 = vadd.f32 %v634, 2.0
      %v699 = vadd.f32 %v635, 2.0
      %v700 = vadd.f32 %v636, 2.0
      %v701 = vadd.f32 %v637, 2.0
      %v702 = vadd.f32 %v638, 2.0
      %v703 = vadd.f32 %v639, 2.0
      %v704 = vadd.f32 %v640, 2.0
      %v705 = vadd.f32 %v641, 2.0
      %v706 = vadd.f32 %v642, 2.0
      %v707 = vadd.f32 %v643, 2.0
      %v708 = vadd.f32 %v644, 2.0
      %v709 = vadd.f32 %v645, 2.0
      %v710 = vadd.f32 %v646, 2.0
      %v711 = vadd.f32 %v647, 2.0
      %v712 = vadd.f32 %v648, 2.0
      %v713 = vadd.f32 %v649, 2.0
      %v714 = vadd.f32 %v650, 2.0
      %v715 = vadd.f32 %v651, 2.0
      %v716 = vadd.f32 %v652, 2.0
      %v717 = vadd.f32 %v653, 2.0
      %v718 = vadd.f32 %v654, 2.0
      %v719 = vadd.f32 %v655, 2.0
      %v720 = vadd.f32 %v656, 2.0
      %v721 = vadd.f32 %v657, 2.0
      %v722 = vadd.f32 %v658, 2.0
      %v723 = vadd.f32 %v659, 2.0
      %v724 = vadd.f32 %v660, 2.0
      %v725 = vadd.f32 %v661, 2.0
      %v726 = vrcp.pop %v694
      %v727 = vmul.f32 %v630, %v726
      %v728 = vrcp.pop %v695
      %v729 = vmul.f32 %v631, %v728
      %v730 = vrcp.pop %v696
      %v731 = vmul.f32 %v632, %v730
      %v732 = vrcp.pop %v697
      %v733 = vmul.f32 %v633, %v732
      %v734 = vrcp.pop %v698
      %v735 = vmul.f32 %v634, %v734
      %v736 = vrcp.pop %v699
      %v737 = vmul.f32 %v635, %v736
      %v738 = vrcp.pop %v700
      %v739 = vmul.f32 %v636, %v738
      %v740 = vrcp.pop %v701
      %v741 = vmul.f32 %v637, %v740
      %v742 = vrcp.pop %v702
      %v743 = vmul.f32 %v638, %v742
      %v744 = vrcp.pop %v703
      %v745 = vmul.f32 %v639, %v744
      %v746 = vrcp.pop %v704
      %v747 = vmul.f32 %v640, %v746
      %v748 = vrcp.pop %v705
      %v749 = vmul.f32 %v641, %v748
      %v750 = vrcp.pop %v706
      %v751 = vmul.f32 %v642, %v750
      %v752 = vrcp.pop %v707
      %v753 = vmul.f32 %v643, %v752
      %v754 = vrcp.pop %v708
      %v755 = vmul.f32 %v644, %v754
      %v756 = vrcp.pop %v709
      %v757 = vmul.f32 %v645, %v756
      %v758 = vrcp.pop %v710
      %v759 = vmul.f32 %v646, %v758
      %v760 = vrcp.pop %v711
      %v761 = vmul.f32 %v647, %v760
      %v762 = vrcp.pop %v712
      %v763 = vmul.f32 %v648, %v762
      %v764 = vrcp.pop %v713
      %v765 = vmul.f32 %v649, %v764
      %v766 = vrcp.pop %v714
      %v767 = vmul.f32 %v650, %v766
      %v768 = vrcp.pop %v715
      %v769 = vmul.f32 %v651, %v768
      %v770 = vrcp.pop %v716
      %v771 = vmul.f32 %v652, %v770
      %v772 = vrcp.pop %v717
      %v773 = vmul.f32 %v653, %v772
      %v774 = vrcp.pop %v718
      %v775 = vmul.f32 %v654, %v774
      %v776 = vrcp.pop %v719
      %v777 = vmul.f32 %v655, %v776
      %v778 = vrcp.pop %v720
      %v779 = vmul.f32 %v656, %v778
      %v780 = vrcp.pop %v721
      %v781 = vmul.f32 %v657, %v780
      %v782 = vrcp.pop %v722
      %v783 = vmul.f32 %v658, %v782
      %v784 = vrcp.pop %v723
      %v785 = vmul.f32 %v659, %v784
      %v786 = vrcp.pop %v724
      %v787 = vmul.f32 %v660, %v786
      %v788 = vrcp.pop %v725
      %v789 = vmul.f32 %v661, %v788
      %v790 = vmul.f32 %v470, %v727
      %v791 = vmul.f32 %v471, %v729
      %v792 = vmul.f32 %v472, %v731
      %v793 = vmul.f32 %v473, %v733
      %v794 = vmul.f32 %v474, %v735
      %v795 = vmul.f32 %v475, %v737
      %v796 = vmul.f32 %v476, %v739
      %v797 = vmul.f32 %v477, %v741
      %v798 = vmul.f32 %v478, %v743
      %v799 = vmul.f32 %v479, %v745
      %v800 = vmul.f32 %v480, %v747
      %v801 = vmul.f32 %v481, %v749
      %v802 = vmul.f32 %v482, %v751
      %v803 = vmul.f32 %v483, %v753
      %v804 = vmul.f32 %v484, %v755
      %v805 = vmul.f32 %v485, %v757
      %v806 = vmul.f32 %v486, %v759
      %v807 = vmul.f32 %v487, %v761
      %v808 = vmul.f32 %v488, %v763
      %v809 = vmul.f32 %v489, %v765
      %v810 = vmul.f32 %v490, %v767
      %v811 = vmul.f32 %v491, %v769
      %v812 = vmul.f32 %v492, %v771
      %v813 = vmul.f32 %v493, %v773
      %v814 = vmul.f32 %v494, %v775
      %v815 = vmul.f32 %v495, %v777
      %v816 = vmul.f32 %v496, %v779
      %v817 = vmul.f32 %v497, %v781
      %v818 = vmul.f32 %v498, %v783
      %v819 = vmul.f32 %v499, %v785
      %v820 = vmul.f32 %v500, %v787
      %v821 = vmul.f32 %v501, %v789
      %v822 = vsel %vm662, %v470, %v790
      %v823 = vsel %vm663, %v471, %v791
      %v824 = vsel %vm664, %v472, %v792
      %v825 = vsel %vm665, %v473, %v793
      %v826 = vsel %vm666, %v474, %v794
      %v827 = vsel %vm667, %v475, %v795
      %v828 = vsel %vm668, %v476, %v796
      %v829 = vsel %vm669, %v477, %v797
      %v830 = vsel %vm670, %v478, %v798
      %v831 = vsel %vm671, %v479, %v799
      %v832 = vsel %vm672, %v480, %v800
      %v833 = vsel %vm673, %v481, %v801
      %v834 = vsel %vm674, %v482, %v802
      %v835 = vsel %vm675, %v483, %v803
      %v836 = vsel %vm676, %v484, %v804
      %v837 = vsel %vm677, %v485, %v805
      %v838 = vsel %vm678, %v486, %v806
      %v839 = vsel %vm679, %v487, %v807
      %v840 = vsel %vm680, %v488, %v808
      %v841 = vsel %vm681, %v489, %v809
      %v842 = vsel %vm682, %v490, %v810
      %v843 = vsel %vm683, %v491, %v811
      %v844 = vsel %vm684, %v492, %v812
      %v845 = vsel %vm685, %v493, %v813
      %v846 = vsel %vm686, %v494, %v814
      %v847 = vsel %vm687, %v495, %v815
      %v848 = vsel %vm688, %v496, %v816
      %v849 = vsel %vm689, %v497, %v817
      %v850 = vsel %vm690, %v498, %v818
      %v851 = vsel %vm691, %v499, %v819
      %v852 = vsel %vm692, %v500, %v820
      %v853 = vsel %vm693, %v501, %v821
      %s854 = scalar_lea.vmem [#allocation2], 176
      %855 = vst.msk [vmem:[%s854 + $0x1] sm:$0xff] %vm270, %v822
      %856 = vst.msk [vmem:[%s854 + $0x11] sm:$0xff] %vm270, %v823
      %857 = vst.msk [vmem:[%s854 + $0x21] sm:$0xff] %vm270, %v824
      %858 = vst.msk [vmem:[%s854 + $0x31] sm:$0xff] %vm270, %v825
      %859 = vst.msk [vmem:[%s854 + $0x41] sm:$0xff] %vm270, %v826
      %860 = vst.msk [vmem:[%s854 + $0x51] sm:$0xff] %vm270, %v827
      %861 = vst.msk [vmem:[%s854 + $0x61] sm:$0xff] %vm270, %v828
      %862 = vst.msk [vmem:[%s854 + $0x71] sm:$0xff] %vm270, %v829
      %863 = vst.msk [vmem:[%s854 + $0xa1] sm:$0xff] %vm270, %v830
      %864 = vst.msk [vmem:[%s854 + $0xb1] sm:$0xff] %vm270, %v831
      %865 = vst.msk [vmem:[%s854 + $0xc1] sm:$0xff] %vm270, %v832
      %866 = vst.msk [vmem:[%s854 + $0xd1] sm:$0xff] %vm270, %v833
      %867 = vst.msk [vmem:[%s854 + $0xe1] sm:$0xff] %vm270, %v834
      %868 = vst.msk [vmem:[%s854 + $0xf1] sm:$0xff] %vm270, %v835
      %869 = vst.msk [vmem:[%s854 + $0x101] sm:$0xff] %vm270, %v836
      %870 = vst.msk [vmem:[%s854 + $0x111] sm:$0xff] %vm270, %v837
      %871 = vst.msk [vmem:[%s854 + $0x141] sm:$0xff] %vm270, %v838
      %872 = vst.msk [vmem:[%s854 + $0x151] sm:$0xff] %vm270, %v839
      %873 = vst.msk [vmem:[%s854 + $0x161] sm:$0xff] %vm270, %v840
      %874 = vst.msk [vmem:[%s854 + $0x171] sm:$0xff] %vm270, %v841
      %875 = vst.msk [vmem:[%s854 + $0x181] sm:$0xff] %vm270, %v842
      %876 = vst.msk [vmem:[%s854 + $0x191] sm:$0xff] %vm270, %v843
      %877 = vst.msk [vmem:[%s854 + $0x1a1] sm:$0xff] %vm270, %v844
      %878 = vst.msk [vmem:[%s854 + $0x1b1] sm:$0xff] %vm270, %v845
      %879 = vst.msk [vmem:[%s854 + $0x1e1] sm:$0xff] %vm270, %v846
      %880 = vst.msk [vmem:[%s854 + $0x1f1] sm:$0xff] %vm270, %v847
      %881 = vst.msk [vmem:[%s854 + $0x201] sm:$0xff] %vm270, %v848
      %882 = vst.msk [vmem:[%s854 + $0x211] sm:$0xff] %vm270, %v849
      %883 = vst.msk [vmem:[%s854 + $0x221] sm:$0xff] %vm270, %v850
      %884 = vst.msk [vmem:[%s854 + $0x231] sm:$0xff] %vm270, %v851
      %885 = vst.msk [vmem:[%s854 + $0x241] sm:$0xff] %vm270, %v852
      %886 = vst.msk [vmem:[%s854 + $0x251] sm:$0xff] %vm270, %v853
      %v887 = vld [vmem:[#allocation2] sm:$0xff]
      %v888 = vld [vmem:[#allocation2 + $0x10] sm:$0xff]
      %v889 = vld [vmem:[#allocation2 + $0x20] sm:$0xff]
      %v890 = vld [vmem:[#allocation2 + $0x30] sm:$0xff]
      %v891 = vld [vmem:[#allocation2 + $0x40] sm:$0xff]
      %v892 = vld [vmem:[#allocation2 + $0x50] sm:$0xff]
      %v893 = vld [vmem:[#allocation2 + $0x60] sm:$0xff]
      %v894 = vld [vmem:[#allocation2 + $0x70] sm:$0xff]
      %v895 = vld [vmem:[#allocation2 + $0xa0] sm:$0xff]
      %v896 = vld [vmem:[#allocation2 + $0xb0] sm:$0xff]
      %v897 = vld [vmem:[#allocation2 + $0xc0] sm:$0xff]
      %v898 = vld [vmem:[#allocation2 + $0xd0] sm:$0xff]
      %v899 = vld [vmem:[#allocation2 + $0xe0] sm:$0xff]
      %v900 = vld [vmem:[#allocation2 + $0xf0] sm:$0xff]
      %v901 = vld [vmem:[#allocation2 + $0x100] sm:$0xff]
      %v902 = vld [vmem:[#allocation2 + $0x110] sm:$0xff]
      %v903 = vld [vmem:[#allocation2 + $0x140] sm:$0xff]
      %v904 = vld [vmem:[#allocation2 + $0x150] sm:$0xff]
      %v905 = vld [vmem:[#allocation2 + $0x160] sm:$0xff]
      %v906 = vld [vmem:[#allocation2 + $0x170] sm:$0xff]
      %v907 = vld [vmem:[#allocation2 + $0x180] sm:$0xff]
      %v908 = vld [vmem:[#allocation2 + $0x190] sm:$0xff]
      %v909 = vld [vmem:[#allocation2 + $0x1a0] sm:$0xff]
      %v910 = vld [vmem:[#allocation2 + $0x1b0] sm:$0xff]
      %v911 = vld [vmem:[#allocation2 + $0x1e0] sm:$0xff]
      %v912 = vld [vmem:[#allocation2 + $0x1f0] sm:$0xff]
      %v913 = vld [vmem:[#allocation2 + $0x200] sm:$0xff]
      %v914 = vld [vmem:[#allocation2 + $0x210] sm:$0xff]
      %v915 = vld [vmem:[#allocation2 + $0x220] sm:$0xff]
      %v916 = vld [vmem:[#allocation2 + $0x230] sm:$0xff]
      %v917 = vld [vmem:[#allocation2 + $0x240] sm:$0xff]
      %v918 = vld [vmem:[#allocation2 + $0x250] sm:$0xff]
      %v919 = vld [vmem:[#allocation2 + $0x1] sm:$0xff]
      %v920 = vld [vmem:[#allocation2 + $0x11] sm:$0xff]
      %v921 = vld [vmem:[#allocation2 + $0x21] sm:$0xff]
      %v922 = vld [vmem:[#allocation2 + $0x31] sm:$0xff]
      %v923 = vld [vmem:[#allocation2 + $0x41] sm:$0xff]
      %v924 = vld [vmem:[#allocation2 + $0x51] sm:$0xff]
      %v925 = vld [vmem:[#allocation2 + $0x61] sm:$0xff]
      %v926 = vld [vmem:[#allocation2 + $0x71] sm:$0xff]
      %v927 = vld [vmem:[#allocation2 + $0xa1] sm:$0xff]
      %v928 = vld [vmem:[#allocation2 + $0xb1] sm:$0xff]
      %v929 = vld [vmem:[#allocation2 + $0xc1] sm:$0xff]
      %v930 = vld [vmem:[#allocation2 + $0xd1] sm:$0xff]
      %v931 = vld [vmem:[#allocation2 + $0xe1] sm:$0xff]
      %v932 = vld [vmem:[#allocation2 + $0xf1] sm:$0xff]
      %v933 = vld [vmem:[#allocation2 + $0x101] sm:$0xff]
      %v934 = vld [vmem:[#allocation2 + $0x111] sm:$0xff]
      %v935 = vld [vmem:[#allocation2 + $0x141] sm:$0xff]
      %v936 = vld [vmem:[#allocation2 + $0x151] sm:$0xff]
      %v937 = vld [vmem:[#allocation2 + $0x161] sm:$0xff]
      %v938 = vld [vmem:[#allocation2 + $0x171] sm:$0xff]
      %v939 = vld [vmem:[#allocation2 + $0x181] sm:$0xff]
      %v940 = vld [vmem:[#allocation2 + $0x191] sm:$0xff]
      %v941 = vld [vmem:[#allocation2 + $0x1a1] sm:$0xff]
      %v942 = vld [vmem:[#allocation2 + $0x1b1] sm:$0xff]
      %v943 = vld [vmem:[#allocation2 + $0x1e1] sm:$0xff]
      %v944 = vld [vmem:[#allocation2 + $0x1f1] sm:$0xff]
      %v945 = vld [vmem:[#allocation2 + $0x201] sm:$0xff]
      %v946 = vld [vmem:[#allocation2 + $0x211] sm:$0xff]
      %v947 = vld [vmem:[#allocation2 + $0x221] sm:$0xff]
      %v948 = vld [vmem:[#allocation2 + $0x231] sm:$0xff]
      %v949 = vld [vmem:[#allocation2 + $0x241] sm:$0xff]
      %v950 = vld [vmem:[#allocation2 + $0x251] sm:$0xff]
      %v951 = vld [vmem:[#allocation2 + $0x2] sm:$0xff]
      %v952 = vld [vmem:[#allocation2 + $0x12] sm:$0xff]
      %v953 = vld [vmem:[#allocation2 + $0x22] sm:$0xff]
      %v954 = vld [vmem:[#allocation2 + $0x32] sm:$0xff]
      %v955 = vld [vmem:[#allocation2 + $0x42] sm:$0xff]
      %v956 = vld [vmem:[#allocation2 + $0x52] sm:$0xff]
      %v957 = vld [vmem:[#allocation2 + $0x62] sm:$0xff]
      %v958 = vld [vmem:[#allocation2 + $0x72] sm:$0xff]
      %v959 = vld [vmem:[#allocation2 + $0xa2] sm:$0xff]
      %v960 = vld [vmem:[#allocation2 + $0xb2] sm:$0xff]
      %v961 = vld [vmem:[#allocation2 + $0xc2] sm:$0xff]
      %v962 = vld [vmem:[#allocation2 + $0xd2] sm:$0xff]
      %v963 = vld [vmem:[#allocation2 + $0xe2] sm:$0xff]
      %v964 = vld [vmem:[#allocation2 + $0xf2] sm:$0xff]
      %v965 = vld [vmem:[#allocation2 + $0x102] sm:$0xff]
      %v966 = vld [vmem:[#allocation2 + $0x112] sm:$0xff]
      %v967 = vld [vmem:[#allocation2 + $0x142] sm:$0xff]
      %v968 = vld [vmem:[#allocation2 + $0x152] sm:$0xff]
      %v969 = vld [vmem:[#allocation2 + $0x162] sm:$0xff]
      %v970 = vld [vmem:[#allocation2 + $0x172] sm:$0xff]
      %v971 = vld [vmem:[#allocation2 + $0x182] sm:$0xff]
      %v972 = vld [vmem:[#allocation2 + $0x192] sm:$0xff]
      %v973 = vld [vmem:[#allocation2 + $0x1a2] sm:$0xff]
      %v974 = vld [vmem:[#allocation2 + $0x1b2] sm:$0xff]
      %v975 = vld [vmem:[#allocation2 + $0x1e2] sm:$0xff]
      %v976 = vld [vmem:[#allocation2 + $0x1f2] sm:$0xff]
      %v977 = vld [vmem:[#allocation2 + $0x202] sm:$0xff]
      %v978 = vld [vmem:[#allocation2 + $0x212] sm:$0xff]
      %v979 = vld [vmem:[#allocation2 + $0x222] sm:$0xff]
      %v980 = vld [vmem:[#allocation2 + $0x232] sm:$0xff]
      %v981 = vld [vmem:[#allocation2 + $0x242] sm:$0xff]
      %v982 = vld [vmem:[#allocation2 + $0x252] sm:$0xff]
      %s983 = scalar_lea.vmem [#allocation2], 16
      %v984 = vld [vmem:[%s983] sm:$0xff]
      %v985 = vld [vmem:[%s983 + $0x10] sm:$0xff]
      %v986 = vld [vmem:[%s983 + $0x20] sm:$0xff]
      %v987 = vld [vmem:[%s983 + $0x30] sm:$0xff]
      %v988 = vld [vmem:[%s983 + $0x40] sm:$0xff]
      %v989 = vld [vmem:[%s983 + $0x50] sm:$0xff]
      %v990 = vld [vmem:[%s983 + $0x60] sm:$0xff]
      %v991 = vld [vmem:[%s983 + $0x70] sm:$0xff]
      %v992 = vld [vmem:[%s983 + $0xa0] sm:$0xff]
      %v993 = vld [vmem:[%s983 + $0xb0] sm:$0xff]
      %v994 = vld [vmem:[%s983 + $0xc0] sm:$0xff]
      %v995 = vld [vmem:[%s983 + $0xd0] sm:$0xff]
      %v996 = vld [vmem:[%s983 + $0xe0] sm:$0xff]
      %v997 = vld [vmem:[%s983 + $0xf0] sm:$0xff]
      %v998 = vld [vmem:[%s983 + $0x100] sm:$0xff]
      %v999 = vld [vmem:[%s983 + $0x110] sm:$0xff]
      %v1000 = vld [vmem:[%s983 + $0x140] sm:$0xff]
      %v1001 = vld [vmem:[%s983 + $0x150] sm:$0xff]
      %v1002 = vld [vmem:[%s983 + $0x160] sm:$0xff]
      %v1003 = vld [vmem:[%s983 + $0x170] sm:$0xff]
      %v1004 = vld [vmem:[%s983 + $0x180] sm:$0xff]
      %v1005 = vld [vmem:[%s983 + $0x190] sm:$0xff]
      %v1006 = vld [vmem:[%s983 + $0x1a0] sm:$0xff]
      %v1007 = vld [vmem:[%s983 + $0x1b0] sm:$0xff]
      %v1008 = vld [vmem:[%s983 + $0x1e0] sm:$0xff]
      %v1009 = vld [vmem:[%s983 + $0x1f0] sm:$0xff]
      %v1010 = vld [vmem:[%s983 + $0x200] sm:$0xff]
      %v1011 = vld [vmem:[%s983 + $0x210] sm:$0xff]
      %v1012 = vld [vmem:[%s983 + $0x220] sm:$0xff]
      %v1013 = vld [vmem:[%s983 + $0x230] sm:$0xff]
      %v1014 = vld [vmem:[%s983 + $0x240] sm:$0xff]
      %v1015 = vld [vmem:[%s983 + $0x250] sm:$0xff]
      %v1016 = vld [vmem:[%s983 + $0x1] sm:$0xff]
      %v1017 = vld [vmem:[%s983 + $0x11] sm:$0xff]
      %v1018 = vld [vmem:[%s983 + $0x21] sm:$0xff]
      %v1019 = vld [vmem:[%s983 + $0x31] sm:$0xff]
      %v1020 = vld [vmem:[%s983 + $0x41] sm:$0xff]
      %v1021 = vld [vmem:[%s983 + $0x51] sm:$0xff]
      %v1022 = vld [vmem:[%s983 + $0x61] sm:$0xff]
      %v1023 = vld [vmem:[%s983 + $0x71] sm:$0xff]
      %v1024 = vld [vmem:[%s983 + $0xa1] sm:$0xff]
      %v1025 = vld [vmem:[%s983 + $0xb1] sm:$0xff]
      %v1026 = vld [vmem:[%s983 + $0xc1] sm:$0xff]
      %v1027 = vld [vmem:[%s983 + $0xd1] sm:$0xff]
      %v1028 = vld [vmem:[%s983 + $0xe1] sm:$0xff]
      %v1029 = vld [vmem:[%s983 + $0xf1] sm:$0xff]
      %v1030 = vld [vmem:[%s983 + $0x101] sm:$0xff]
      %v1031 = vld [vmem:[%s983 + $0x111] sm:$0xff]
      %v1032 = vld [vmem:[%s983 + $0x141] sm:$0xff]
      %v1033 = vld [vmem:[%s983 + $0x151] sm:$0xff]
      %v1034 = vld [vmem:[%s983 + $0x161] sm:$0xff]
      %v1035 = vld [vmem:[%s983 + $0x171] sm:$0xff]
      %v1036 = vld [vmem:[%s983 + $0x181] sm:$0xff]
      %v1037 = vld [vmem:[%s983 + $0x191] sm:$0xff]
      %v1038 = vld [vmem:[%s983 + $0x1a1] sm:$0xff]
      %v1039 = vld [vmem:[%s983 + $0x1b1] sm:$0xff]
      %v1040 = vld [vmem:[%s983 + $0x1e1] sm:$0xff]
      %v1041 = vld [vmem:[%s983 + $0x1f1] sm:$0xff]
      %v1042 = vld [vmem:[%s983 + $0x201] sm:$0xff]
      %v1043 = vld [vmem:[%s983 + $0x211] sm:$0xff]
      %v1044 = vld [vmem:[%s983 + $0x221] sm:$0xff]
      %v1045 = vld [vmem:[%s983 + $0x231] sm:$0xff]
      %v1046 = vld [vmem:[%s983 + $0x241] sm:$0xff]
      %v1047 = vld [vmem:[%s983 + $0x251] sm:$0xff]
      %v1048 = vld [vmem:[%s983 + $0x2] sm:$0xff]
      %v1049 = vld [vmem:[%s983 + $0x12] sm:$0xff]
      %v1050 = vld [vmem:[%s983 + $0x22] sm:$0xff]
      %v1051 = vld [vmem:[%s983 + $0x32] sm:$0xff]
      %v1052 = vld [vmem:[%s983 + $0x42] sm:$0xff]
      %v1053 = vld [vmem:[%s983 + $0x52] sm:$0xff]
      %v1054 = vld [vmem:[%s983 + $0x62] sm:$0xff]
      %v1055 = vld [vmem:[%s983 + $0x72] sm:$0xff]
      %v1056 = vld [vmem:[%s983 + $0xa2] sm:$0xff]
      %v1057 = vld [vmem:[%s983 + $0xb2] sm:$0xff]
      %v1058 = vld [vmem:[%s983 + $0xc2] sm:$0xff]
      %v1059 = vld [vmem:[%s983 + $0xd2] sm:$0xff]
      %v1060 = vld [vmem:[%s983 + $0xe2] sm:$0xff]
      %v1061 = vld [vmem:[%s983 + $0xf2] sm:$0xff]
      %v1062 = vld [vmem:[%s983 + $0x102] sm:$0xff]
      %v1063 = vld [vmem:[%s983 + $0x112] sm:$0xff]
      %v1064 = vld [vmem:[%s983 + $0x142] sm:$0xff]
      %v1065 = vld [vmem:[%s983 + $0x152] sm:$0xff]
      %v1066 = vld [vmem:[%s983 + $0x162] sm:$0xff]
      %v1067 = vld [vmem:[%s983 + $0x172] sm:$0xff]
      %v1068 = vld [vmem:[%s983 + $0x182] sm:$0xff]
      %v1069 = vld [vmem:[%s983 + $0x192] sm:$0xff]
      %v1070 = vld [vmem:[%s983 + $0x1a2] sm:$0xff]
      %v1071 = vld [vmem:[%s983 + $0x1b2] sm:$0xff]
      %v1072 = vld [vmem:[%s983 + $0x1e2] sm:$0xff]
      %v1073 = vld [vmem:[%s983 + $0x1f2] sm:$0xff]
      %v1074 = vld [vmem:[%s983 + $0x202] sm:$0xff]
      %v1075 = vld [vmem:[%s983 + $0x212] sm:$0xff]
      %v1076 = vld [vmem:[%s983 + $0x222] sm:$0xff]
      %v1077 = vld [vmem:[%s983 + $0x232] sm:$0xff]
      %v1078 = vld [vmem:[%s983 + $0x242] sm:$0xff]
      %v1079 = vld [vmem:[%s983 + $0x252] sm:$0xff]
      %s1080 = scalar_lea.vmem [#allocation2], 32
      %v1081 = vld [vmem:[%s1080] sm:$0xff]
      %v1082 = vld [vmem:[%s1080 + $0x10] sm:$0xff]
      %v1083 = vld [vmem:[%s1080 + $0x20] sm:$0xff]
      %v1084 = vld [vmem:[%s1080 + $0x30] sm:$0xff]
      %v1085 = vld [vmem:[%s1080 + $0x40] sm:$0xff]
      %v1086 = vld [vmem:[%s1080 + $0x50] sm:$0xff]
      %v1087 = vld [vmem:[%s1080 + $0x60] sm:$0xff]
      %v1088 = vld [vmem:[%s1080 + $0x70] sm:$0xff]
      %v1089 = vld [vmem:[%s1080 + $0xa0] sm:$0xff]
      %v1090 = vld [vmem:[%s1080 + $0xb0] sm:$0xff]
      %v1091 = vld [vmem:[%s1080 + $0xc0] sm:$0xff]
      %v1092 = vld [vmem:[%s1080 + $0xd0] sm:$0xff]
      %v1093 = vld [vmem:[%s1080 + $0xe0] sm:$0xff]
      %v1094 = vld [vmem:[%s1080 + $0xf0] sm:$0xff]
      %v1095 = vld [vmem:[%s1080 + $0x100] sm:$0xff]
      %v1096 = vld [vmem:[%s1080 + $0x110] sm:$0xff]
      %v1097 = vld [vmem:[%s1080 + $0x140] sm:$0xff]
      %v1098 = vld [vmem:[%s1080 + $0x150] sm:$0xff]
      %v1099 = vld [vmem:[%s1080 + $0x160] sm:$0xff]
      %v1100 = vld [vmem:[%s1080 + $0x170] sm:$0xff]
      %v1101 = vld [vmem:[%s1080 + $0x180] sm:$0xff]
      %v1102 = vld [vmem:[%s1080 + $0x190] sm:$0xff]
      %v1103 = vld [vmem:[%s1080 + $0x1a0] sm:$0xff]
      %v1104 = vld [vmem:[%s1080 + $0x1b0] sm:$0xff]
      %v1105 = vld [vmem:[%s1080 + $0x1e0] sm:$0xff]
      %v1106 = vld [vmem:[%s1080 + $0x1f0] sm:$0xff]
      %v1107 = vld [vmem:[%s1080 + $0x200] sm:$0xff]
      %v1108 = vld [vmem:[%s1080 + $0x210] sm:$0xff]
      %v1109 = vld [vmem:[%s1080 + $0x220] sm:$0xff]
      %v1110 = vld [vmem:[%s1080 + $0x230] sm:$0xff]
      %v1111 = vld [vmem:[%s1080 + $0x240] sm:$0xff]
      %v1112 = vld [vmem:[%s1080 + $0x250] sm:$0xff]
      %v1113 = vld [vmem:[%s1080 + $0x1] sm:$0xff]
      %v1114 = vld [vmem:[%s1080 + $0x11] sm:$0xff]
      %v1115 = vld [vmem:[%s1080 + $0x21] sm:$0xff]
      %v1116 = vld [vmem:[%s1080 + $0x31] sm:$0xff]
      %v1117 = vld [vmem:[%s1080 + $0x41] sm:$0xff]
      %v1118 = vld [vmem:[%s1080 + $0x51] sm:$0xff]
      %v1119 = vld [vmem:[%s1080 + $0x61] sm:$0xff]
      %v1120 = vld [vmem:[%s1080 + $0x71] sm:$0xff]
      %v1121 = vld [vmem:[%s1080 + $0xa1] sm:$0xff]
      %v1122 = vld [vmem:[%s1080 + $0xb1] sm:$0xff]
      %v1123 = vld [vmem:[%s1080 + $0xc1] sm:$0xff]
      %v1124 = vld [vmem:[%s1080 + $0xd1] sm:$0xff]
      %v1125 = vld [vmem:[%s1080 + $0xe1] sm:$0xff]
      %v1126 = vld [vmem:[%s1080 + $0xf1] sm:$0xff]
      %v1127 = vld [vmem:[%s1080 + $0x101] sm:$0xff]
      %v1128 = vld [vmem:[%s1080 + $0x111] sm:$0xff]
      %v1129 = vld [vmem:[%s1080 + $0x141] sm:$0xff]
      %v1130 = vld [vmem:[%s1080 + $0x151] sm:$0xff]
      %v1131 = vld [vmem:[%s1080 + $0x161] sm:$0xff]
      %v1132 = vld [vmem:[%s1080 + $0x171] sm:$0xff]
      %v1133 = vld [vmem:[%s1080 + $0x181] sm:$0xff]
      %v1134 = vld [vmem:[%s1080 + $0x191] sm:$0xff]
      %v1135 = vld [vmem:[%s1080 + $0x1a1] sm:$0xff]
      %v1136 = vld [vmem:[%s1080 + $0x1b1] sm:$0xff]
      %v1137 = vld [vmem:[%s1080 + $0x1e1] sm:$0xff]
      %v1138 = vld [vmem:[%s1080 + $0x1f1] sm:$0xff]
      %v1139 = vld [vmem:[%s1080 + $0x201] sm:$0xff]
      %v1140 = vld [vmem:[%s1080 + $0x211] sm:$0xff]
      %v1141 = vld [vmem:[%s1080 + $0x221] sm:$0xff]
      %v1142 = vld [vmem:[%s1080 + $0x231] sm:$0xff]
      %v1143 = vld [vmem:[%s1080 + $0x241] sm:$0xff]
      %v1144 = vld [vmem:[%s1080 + $0x251] sm:$0xff]
      %v1145 = vld [vmem:[%s1080 + $0x2] sm:$0xff]
      %v1146 = vld [vmem:[%s1080 + $0x12] sm:$0xff]
      %v1147 = vld [vmem:[%s1080 + $0x22] sm:$0xff]
      %v1148 = vld [vmem:[%s1080 + $0x32] sm:$0xff]
      %v1149 = vld [vmem:[%s1080 + $0x42] sm:$0xff]
      %v1150 = vld [vmem:[%s1080 + $0x52] sm:$0xff]
      %v1151 = vld [vmem:[%s1080 + $0x62] sm:$0xff]
      %v1152 = vld [vmem:[%s1080 + $0x72] sm:$0xff]
      %v1153 = vld [vmem:[%s1080 + $0xa2] sm:$0xff]
      %v1154 = vld [vmem:[%s1080 + $0xb2] sm:$0xff]
      %v1155 = vld [vmem:[%s1080 + $0xc2] sm:$0xff]
      %v1156 = vld [vmem:[%s1080 + $0xd2] sm:$0xff]
      %v1157 = vld [vmem:[%s1080 + $0xe2] sm:$0xff]
      %v1158 = vld [vmem:[%s1080 + $0xf2] sm:$0xff]
      %v1159 = vld [vmem:[%s1080 + $0x102] sm:$0xff]
      %v1160 = vld [vmem:[%s1080 + $0x112] sm:$0xff]
      %v1161 = vld [vmem:[%s1080 + $0x142] sm:$0xff]
      %v1162 = vld [vmem:[%s1080 + $0x152] sm:$0xff]
      %v1163 = vld [vmem:[%s1080 + $0x162] sm:$0xff]
      %v1164 = vld [vmem:[%s1080 + $0x172] sm:$0xff]
      %v1165 = vld [vmem:[%s1080 + $0x182] sm:$0xff]
      %v1166 = vld [vmem:[%s1080 + $0x192] sm:$0xff]
      %v1167 = vld [vmem:[%s1080 + $0x1a2] sm:$0xff]
      %v1168 = vld [vmem:[%s1080 + $0x1b2] sm:$0xff]
      %v1169 = vld [vmem:[%s1080 + $0x1e2] sm:$0xff]
      %v1170 = vld [vmem:[%s1080 + $0x1f2] sm:$0xff]
      %v1171 = vld [vmem:[%s1080 + $0x202] sm:$0xff]
      %v1172 = vld [vmem:[%s1080 + $0x212] sm:$0xff]
      %v1173 = vld [vmem:[%s1080 + $0x222] sm:$0xff]
      %v1174 = vld [vmem:[%s1080 + $0x232] sm:$0xff]
      %v1175 = vld [vmem:[%s1080 + $0x242] sm:$0xff]
      %v1176 = vld [vmem:[%s1080 + $0x252] sm:$0xff]
      %s1177 = scalar_lea.vmem [#allocation2], 160
      %v1178 = vld [vmem:[%s1177] sm:$0xff]
      %v1179 = vld [vmem:[%s1177 + $0x10] sm:$0xff]
      %v1180 = vld [vmem:[%s1177 + $0x20] sm:$0xff]
      %v1181 = vld [vmem:[%s1177 + $0x30] sm:$0xff]
      %v1182 = vld [vmem:[%s1177 + $0x40] sm:$0xff]
      %v1183 = vld [vmem:[%s1177 + $0x50] sm:$0xff]
      %v1184 = vld [vmem:[%s1177 + $0x60] sm:$0xff]
      %v1185 = vld [vmem:[%s1177 + $0x70] sm:$0xff]
      %v1186 = vld [vmem:[%s1177 + $0xa0] sm:$0xff]
      %v1187 = vld [vmem:[%s1177 + $0xb0] sm:$0xff]
      %v1188 = vld [vmem:[%s1177 + $0xc0] sm:$0xff]
      %v1189 = vld [vmem:[%s1177 + $0xd0] sm:$0xff]
      %v1190 = vld [vmem:[%s1177 + $0xe0] sm:$0xff]
      %v1191 = vld [vmem:[%s1177 + $0xf0] sm:$0xff]
      %v1192 = vld [vmem:[%s1177 + $0x100] sm:$0xff]
      %v1193 = vld [vmem:[%s1177 + $0x110] sm:$0xff]
      %v1194 = vld [vmem:[%s1177 + $0x140] sm:$0xff]
      %v1195 = vld [vmem:[%s1177 + $0x150] sm:$0xff]
      %v1196 = vld [vmem:[%s1177 + $0x160] sm:$0xff]
      %v1197 = vld [vmem:[%s1177 + $0x170] sm:$0xff]
      %v1198 = vld [vmem:[%s1177 + $0x180] sm:$0xff]
      %v1199 = vld [vmem:[%s1177 + $0x190] sm:$0xff]
      %v1200 = vld [vmem:[%s1177 + $0x1a0] sm:$0xff]
      %v1201 = vld [vmem:[%s1177 + $0x1b0] sm:$0xff]
      %v1202 = vld [vmem:[%s1177 + $0x1e0] sm:$0xff]
      %v1203 = vld [vmem:[%s1177 + $0x1f0] sm:$0xff]
      %v1204 = vld [vmem:[%s1177 + $0x200] sm:$0xff]
      %v1205 = vld [vmem:[%s1177 + $0x210] sm:$0xff]
      %v1206 = vld [vmem:[%s1177 + $0x220] sm:$0xff]
      %v1207 = vld [vmem:[%s1177 + $0x230] sm:$0xff]
      %v1208 = vld [vmem:[%s1177 + $0x240] sm:$0xff]
      %v1209 = vld [vmem:[%s1177 + $0x250] sm:$0xff]
      %v1210 = vld [vmem:[%s1177 + $0x1] sm:$0xff]
      %v1211 = vld [vmem:[%s1177 + $0x11] sm:$0xff]
      %v1212 = vld [vmem:[%s1177 + $0x21] sm:$0xff]
      %v1213 = vld [vmem:[%s1177 + $0x31] sm:$0xff]
      %v1214 = vld [vmem:[%s1177 + $0x41] sm:$0xff]
      %v1215 = vld [vmem:[%s1177 + $0x51] sm:$0xff]
      %v1216 = vld [vmem:[%s1177 + $0x61] sm:$0xff]
      %v1217 = vld [vmem:[%s1177 + $0x71] sm:$0xff]
      %v1218 = vld [vmem:[%s1177 + $0xa1] sm:$0xff]
      %v1219 = vld [vmem:[%s1177 + $0xb1] sm:$0xff]
      %v1220 = vld [vmem:[%s1177 + $0xc1] sm:$0xff]
      %v1221 = vld [vmem:[%s1177 + $0xd1] sm:$0xff]
      %v1222 = vld [vmem:[%s1177 + $0xe1] sm:$0xff]
      %v1223 = vld [vmem:[%s1177 + $0xf1] sm:$0xff]
      %v1224 = vld [vmem:[%s1177 + $0x101] sm:$0xff]
      %v1225 = vld [vmem:[%s1177 + $0x111] sm:$0xff]
      %v1226 = vld [vmem:[%s1177 + $0x141] sm:$0xff]
      %v1227 = vld [vmem:[%s1177 + $0x151] sm:$0xff]
      %v1228 = vld [vmem:[%s1177 + $0x161] sm:$0xff]
      %v1229 = vld [vmem:[%s1177 + $0x171] sm:$0xff]
      %v1230 = vld [vmem:[%s1177 + $0x181] sm:$0xff]
      %v1231 = vld [vmem:[%s1177 + $0x191] sm:$0xff]
      %v1232 = vld [vmem:[%s1177 + $0x1a1] sm:$0xff]
      %v1233 = vld [vmem:[%s1177 + $0x1b1] sm:$0xff]
      %v1234 = vld [vmem:[%s1177 + $0x1e1] sm:$0xff]
      %v1235 = vld [vmem:[%s1177 + $0x1f1] sm:$0xff]
      %v1236 = vld [vmem:[%s1177 + $0x201] sm:$0xff]
      %v1237 = vld [vmem:[%s1177 + $0x211] sm:$0xff]
      %v1238 = vld [vmem:[%s1177 + $0x221] sm:$0xff]
      %v1239 = vld [vmem:[%s1177 + $0x231] sm:$0xff]
      %v1240 = vld [vmem:[%s1177 + $0x241] sm:$0xff]
      %v1241 = vld [vmem:[%s1177 + $0x251] sm:$0xff]
      %v1242 = vld [vmem:[%s1177 + $0x2] sm:$0xff]
      %v1243 = vld [vmem:[%s1177 + $0x12] sm:$0xff]
      %v1244 = vld [vmem:[%s1177 + $0x22] sm:$0xff]
      %v1245 = vld [vmem:[%s1177 + $0x32] sm:$0xff]
      %v1246 = vld [vmem:[%s1177 + $0x42] sm:$0xff]
      %v1247 = vld [vmem:[%s1177 + $0x52] sm:$0xff]
      %v1248 = vld [vmem:[%s1177 + $0x62] sm:$0xff]
      %v1249 = vld [vmem:[%s1177 + $0x72] sm:$0xff]
      %v1250 = vld [vmem:[%s1177 + $0xa2] sm:$0xff]
      %v1251 = vld [vmem:[%s1177 + $0xb2] sm:$0xff]
      %v1252 = vld [vmem:[%s1177 + $0xc2] sm:$0xff]
      %v1253 = vld [vmem:[%s1177 + $0xd2] sm:$0xff]
      %v1254 = vld [vmem:[%s1177 + $0xe2] sm:$0xff]
      %v1255 = vld [vmem:[%s1177 + $0xf2] sm:$0xff]
      %v1256 = vld [vmem:[%s1177 + $0x102] sm:$0xff]
      %v1257 = vld [vmem:[%s1177 + $0x112] sm:$0xff]
      %v1258 = vld [vmem:[%s1177 + $0x142] sm:$0xff]
      %v1259 = vld [vmem:[%s1177 + $0x152] sm:$0xff]
      %v1260 = vld [vmem:[%s1177 + $0x162] sm:$0xff]
      %v1261 = vld [vmem:[%s1177 + $0x172] sm:$0xff]
      %v1262 = vld [vmem:[%s1177 + $0x182] sm:$0xff]
      %v1263 = vld [vmem:[%s1177 + $0x192] sm:$0xff]
      %v1264 = vld [vmem:[%s1177 + $0x1a2] sm:$0xff]
      %v1265 = vld [vmem:[%s1177 + $0x1b2] sm:$0xff]
      %v1266 = vld [vmem:[%s1177 + $0x1e2] sm:$0xff]
      %v1267 = vld [vmem:[%s1177 + $0x1f2] sm:$0xff]
      %v1268 = vld [vmem:[%s1177 + $0x202] sm:$0xff]
      %v1269 = vld [vmem:[%s1177 + $0x212] sm:$0xff]
      %v1270 = vld [vmem:[%s1177 + $0x222] sm:$0xff]
      %v1271 = vld [vmem:[%s1177 + $0x232] sm:$0xff]
      %v1272 = vld [vmem:[%s1177 + $0x242] sm:$0xff]
      %v1273 = vld [vmem:[%s1177 + $0x252] sm:$0xff]
      %v1274 = vld [vmem:[%s854] sm:$0xff]
      %v1275 = vld [vmem:[%s854 + $0x10] sm:$0xff]
      %v1276 = vld [vmem:[%s854 + $0x20] sm:$0xff]
      %v1277 = vld [vmem:[%s854 + $0x30] sm:$0xff]
      %v1278 = vld [vmem:[%s854 + $0x40] sm:$0xff]
      %v1279 = vld [vmem:[%s854 + $0x50] sm:$0xff]
      %v1280 = vld [vmem:[%s854 + $0x60] sm:$0xff]
      %v1281 = vld [vmem:[%s854 + $0x70] sm:$0xff]
      %v1282 = vld [vmem:[%s854 + $0xa0] sm:$0xff]
      %v1283 = vld [vmem:[%s854 + $0xb0] sm:$0xff]
      %v1284 = vld [vmem:[%s854 + $0xc0] sm:$0xff]
      %v1285 = vld [vmem:[%s854 + $0xd0] sm:$0xff]
      %v1286 = vld [vmem:[%s854 + $0xe0] sm:$0xff]
      %v1287 = vld [vmem:[%s854 + $0xf0] sm:$0xff]
      %v1288 = vld [vmem:[%s854 + $0x100] sm:$0xff]
      %v1289 = vld [vmem:[%s854 + $0x110] sm:$0xff]
      %v1290 = vld [vmem:[%s854 + $0x140] sm:$0xff]
      %v1291 = vld [vmem:[%s854 + $0x150] sm:$0xff]
      %v1292 = vld [vmem:[%s854 + $0x160] sm:$0xff]
      %v1293 = vld [vmem:[%s854 + $0x170] sm:$0xff]
      %v1294 = vld [vmem:[%s854 + $0x180] sm:$0xff]
      %v1295 = vld [vmem:[%s854 + $0x190] sm:$0xff]
      %v1296 = vld [vmem:[%s854 + $0x1a0] sm:$0xff]
      %v1297 = vld [vmem:[%s854 + $0x1b0] sm:$0xff]
      %v1298 = vld [vmem:[%s854 + $0x1e0] sm:$0xff]
      %v1299 = vld [vmem:[%s854 + $0x1f0] sm:$0xff]
      %v1300 = vld [vmem:[%s854 + $0x200] sm:$0xff]
      %v1301 = vld [vmem:[%s854 + $0x210] sm:$0xff]
      %v1302 = vld [vmem:[%s854 + $0x220] sm:$0xff]
      %v1303 = vld [vmem:[%s854 + $0x230] sm:$0xff]
      %v1304 = vld [vmem:[%s854 + $0x240] sm:$0xff]
      %v1305 = vld [vmem:[%s854 + $0x250] sm:$0xff]
      %v1306 = vld [vmem:[%s854 + $0x1] sm:$0xff]
      %v1307 = vld [vmem:[%s854 + $0x11] sm:$0xff]
      %v1308 = vld [vmem:[%s854 + $0x21] sm:$0xff]
      %v1309 = vld [vmem:[%s854 + $0x31] sm:$0xff]
      %v1310 = vld [vmem:[%s854 + $0x41] sm:$0xff]
      %v1311 = vld [vmem:[%s854 + $0x51] sm:$0xff]
      %v1312 = vld [vmem:[%s854 + $0x61] sm:$0xff]
      %v1313 = vld [vmem:[%s854 + $0x71] sm:$0xff]
      %v1314 = vld [vmem:[%s854 + $0xa1] sm:$0xff]
      %v1315 = vld [vmem:[%s854 + $0xb1] sm:$0xff]
      %v1316 = vld [vmem:[%s854 + $0xc1] sm:$0xff]
      %v1317 = vld [vmem:[%s854 + $0xd1] sm:$0xff]
      %v1318 = vld [vmem:[%s854 + $0xe1] sm:$0xff]
      %v1319 = vld [vmem:[%s854 + $0xf1] sm:$0xff]
      %v1320 = vld [vmem:[%s854 + $0x101] sm:$0xff]
      %v1321 = vld [vmem:[%s854 + $0x111] sm:$0xff]
      %v1322 = vld [vmem:[%s854 + $0x141] sm:$0xff]
      %v1323 = vld [vmem:[%s854 + $0x151] sm:$0xff]
      %v1324 = vld [vmem:[%s854 + $0x161] sm:$0xff]
      %v1325 = vld [vmem:[%s854 + $0x171] sm:$0xff]
      %v1326 = vld [vmem:[%s854 + $0x181] sm:$0xff]
      %v1327 = vld [vmem:[%s854 + $0x191] sm:$0xff]
      %v1328 = vld [vmem:[%s854 + $0x1a1] sm:$0xff]
      %v1329 = vld [vmem:[%s854 + $0x1b1] sm:$0xff]
      %v1330 = vld [vmem:[%s854 + $0x1e1] sm:$0xff]
      %v1331 = vld [vmem:[%s854 + $0x1f1] sm:$0xff]
      %v1332 = vld [vmem:[%s854 + $0x201] sm:$0xff]
      %v1333 = vld [vmem:[%s854 + $0x211] sm:$0xff]
      %v1334 = vld [vmem:[%s854 + $0x221] sm:$0xff]
      %v1335 = vld [vmem:[%s854 + $0x231] sm:$0xff]
      %v1336 = vld [vmem:[%s854 + $0x241] sm:$0xff]
      %v1337 = vld [vmem:[%s854 + $0x251] sm:$0xff]
      %v1338 = vld [vmem:[%s854 + $0x2] sm:$0xff]
      %v1339 = vld [vmem:[%s854 + $0x12] sm:$0xff]
      %v1340 = vld [vmem:[%s854 + $0x22] sm:$0xff]
      %v1341 = vld [vmem:[%s854 + $0x32] sm:$0xff]
      %v1342 = vld [vmem:[%s854 + $0x42] sm:$0xff]
      %v1343 = vld [vmem:[%s854 + $0x52] sm:$0xff]
      %v1344 = vld [vmem:[%s854 + $0x62] sm:$0xff]
      %v1345 = vld [vmem:[%s854 + $0x72] sm:$0xff]
      %v1346 = vld [vmem:[%s854 + $0xa2] sm:$0xff]
      %v1347 = vld [vmem:[%s854 + $0xb2] sm:$0xff]
      %v1348 = vld [vmem:[%s854 + $0xc2] sm:$0xff]
      %v1349 = vld [vmem:[%s854 + $0xd2] sm:$0xff]
      %v1350 = vld [vmem:[%s854 + $0xe2] sm:$0xff]
      %v1351 = vld [vmem:[%s854 + $0xf2] sm:$0xff]
      %v1352 = vld [vmem:[%s854 + $0x102] sm:$0xff]
      %v1353 = vld [vmem:[%s854 + $0x112] sm:$0xff]
      %v1354 = vld [vmem:[%s854 + $0x142] sm:$0xff]
      %v1355 = vld [vmem:[%s854 + $0x152] sm:$0xff]
      %v1356 = vld [vmem:[%s854 + $0x162] sm:$0xff]
      %v1357 = vld [vmem:[%s854 + $0x172] sm:$0xff]
      %v1358 = vld [vmem:[%s854 + $0x182] sm:$0xff]
      %v1359 = vld [vmem:[%s854 + $0x192] sm:$0xff]
      %v1360 = vld [vmem:[%s854 + $0x1a2] sm:$0xff]
      %v1361 = vld [vmem:[%s854 + $0x1b2] sm:$0xff]
      %v1362 = vld [vmem:[%s854 + $0x1e2] sm:$0xff]
      %v1363 = vld [vmem:[%s854 + $0x1f2] sm:$0xff]
      %v1364 = vld [vmem:[%s854 + $0x202] sm:$0xff]
      %v1365 = vld [vmem:[%s854 + $0x212] sm:$0xff]
      %v1366 = vld [vmem:[%s854 + $0x222] sm:$0xff]
      %v1367 = vld [vmem:[%s854 + $0x232] sm:$0xff]
      %v1368 = vld [vmem:[%s854 + $0x242] sm:$0xff]
      %v1369 = vld [vmem:[%s854 + $0x252] sm:$0xff]
      %s1370 = scalar_lea.vmem [#allocation2], 192
      %v1371 = vld [vmem:[%s1370] sm:$0xff]
      %v1372 = vld [vmem:[%s1370 + $0x10] sm:$0xff]
      %v1373 = vld [vmem:[%s1370 + $0x20] sm:$0xff]
      %v1374 = vld [vmem:[%s1370 + $0x30] sm:$0xff]
      %v1375 = vld [vmem:[%s1370 + $0x40] sm:$0xff]
      %v1376 = vld [vmem:[%s1370 + $0x50] sm:$0xff]
      %v1377 = vld [vmem:[%s1370 + $0x60] sm:$0xff]
      %v1378 = vld [vmem:[%s1370 + $0x70] sm:$0xff]
      %v1379 = vld [vmem:[%s1370 + $0xa0] sm:$0xff]
      %v1380 = vld [vmem:[%s1370 + $0xb0] sm:$0xff]
      %v1381 = vld [vmem:[%s1370 + $0xc0] sm:$0xff]
      %v1382 = vld [vmem:[%s1370 + $0xd0] sm:$0xff]
      %v1383 = vld [vmem:[%s1370 + $0xe0] sm:$0xff]
      %v1384 = vld [vmem:[%s1370 + $0xf0] sm:$0xff]
      %v1385 = vld [vmem:[%s1370 + $0x100] sm:$0xff]
      %v1386 = vld [vmem:[%s1370 + $0x110] sm:$0xff]
      %v1387 = vld [vmem:[%s1370 + $0x140] sm:$0xff]
      %v1388 = vld [vmem:[%s1370 + $0x150] sm:$0xff]
      %v1389 = vld [vmem:[%s1370 + $0x160] sm:$0xff]
      %v1390 = vld [vmem:[%s1370 + $0x170] sm:$0xff]
      %v1391 = vld [vmem:[%s1370 + $0x180] sm:$0xff]
      %v1392 = vld [vmem:[%s1370 + $0x190] sm:$0xff]
      %v1393 = vld [vmem:[%s1370 + $0x1a0] sm:$0xff]
      %v1394 = vld [vmem:[%s1370 + $0x1b0] sm:$0xff]
      %v1395 = vld [vmem:[%s1370 + $0x1e0] sm:$0xff]
      %v1396 = vld [vmem:[%s1370 + $0x1f0] sm:$0xff]
      %v1397 = vld [vmem:[%s1370 + $0x200] sm:$0xff]
      %v1398 = vld [vmem:[%s1370 + $0x210] sm:$0xff]
      %v1399 = vld [vmem:[%s1370 + $0x220] sm:$0xff]
      %v1400 = vld [vmem:[%s1370 + $0x230] sm:$0xff]
      %v1401 = vld [vmem:[%s1370 + $0x240] sm:$0xff]
      %v1402 = vld [vmem:[%s1370 + $0x250] sm:$0xff]
      %v1403 = vld [vmem:[%s1370 + $0x1] sm:$0xff]
      %v1404 = vld [vmem:[%s1370 + $0x11] sm:$0xff]
      %v1405 = vld [vmem:[%s1370 + $0x21] sm:$0xff]
      %v1406 = vld [vmem:[%s1370 + $0x31] sm:$0xff]
      %v1407 = vld [vmem:[%s1370 + $0x41] sm:$0xff]
      %v1408 = vld [vmem:[%s1370 + $0x51] sm:$0xff]
      %v1409 = vld [vmem:[%s1370 + $0x61] sm:$0xff]
      %v1410 = vld [vmem:[%s1370 + $0x71] sm:$0xff]
      %v1411 = vld [vmem:[%s1370 + $0xa1] sm:$0xff]
      %v1412 = vld [vmem:[%s1370 + $0xb1] sm:$0xff]
      %v1413 = vld [vmem:[%s1370 + $0xc1] sm:$0xff]
      %v1414 = vld [vmem:[%s1370 + $0xd1] sm:$0xff]
      %v1415 = vld [vmem:[%s1370 + $0xe1] sm:$0xff]
      %v1416 = vld [vmem:[%s1370 + $0xf1] sm:$0xff]
      %v1417 = vld [vmem:[%s1370 + $0x101] sm:$0xff]
      %v1418 = vld [vmem:[%s1370 + $0x111] sm:$0xff]
      %v1419 = vld [vmem:[%s1370 + $0x141] sm:$0xff]
      %v1420 = vld [vmem:[%s1370 + $0x151] sm:$0xff]
      %v1421 = vld [vmem:[%s1370 + $0x161] sm:$0xff]
      %v1422 = vld [vmem:[%s1370 + $0x171] sm:$0xff]
      %v1423 = vld [vmem:[%s1370 + $0x181] sm:$0xff]
      %v1424 = vld [vmem:[%s1370 + $0x191] sm:$0xff]
      %v1425 = vld [vmem:[%s1370 + $0x1a1] sm:$0xff]
      %v1426 = vld [vmem:[%s1370 + $0x1b1] sm:$0xff]
      %v1427 = vld [vmem:[%s1370 + $0x1e1] sm:$0xff]
      %v1428 = vld [vmem:[%s1370 + $0x1f1] sm:$0xff]
      %v1429 = vld [vmem:[%s1370 + $0x201] sm:$0xff]
      %v1430 = vld [vmem:[%s1370 + $0x211] sm:$0xff]
      %v1431 = vld [vmem:[%s1370 + $0x221] sm:$0xff]
      %v1432 = vld [vmem:[%s1370 + $0x231] sm:$0xff]
      %v1433 = vld [vmem:[%s1370 + $0x241] sm:$0xff]
      %v1434 = vld [vmem:[%s1370 + $0x251] sm:$0xff]
      %v1435 = vld [vmem:[%s1370 + $0x2] sm:$0xff]
      %v1436 = vld [vmem:[%s1370 + $0x12] sm:$0xff]
      %v1437 = vld [vmem:[%s1370 + $0x22] sm:$0xff]
      %v1438 = vld [vmem:[%s1370 + $0x32] sm:$0xff]
      %v1439 = vld [vmem:[%s1370 + $0x42] sm:$0xff]
      %v1440 = vld [vmem:[%s1370 + $0x52] sm:$0xff]
      %v1441 = vld [vmem:[%s1370 + $0x62] sm:$0xff]
      %v1442 = vld [vmem:[%s1370 + $0x72] sm:$0xff]
      %v1443 = vld [vmem:[%s1370 + $0xa2] sm:$0xff]
      %v1444 = vld [vmem:[%s1370 + $0xb2] sm:$0xff]
      %v1445 = vld [vmem:[%s1370 + $0xc2] sm:$0xff]
      %v1446 = vld [vmem:[%s1370 + $0xd2] sm:$0xff]
      %v1447 = vld [vmem:[%s1370 + $0xe2] sm:$0xff]
      %v1448 = vld [vmem:[%s1370 + $0xf2] sm:$0xff]
      %v1449 = vld [vmem:[%s1370 + $0x102] sm:$0xff]
      %v1450 = vld [vmem:[%s1370 + $0x112] sm:$0xff]
      %v1451 = vld [vmem:[%s1370 + $0x142] sm:$0xff]
      %v1452 = vld [vmem:[%s1370 + $0x152] sm:$0xff]
      %v1453 = vld [vmem:[%s1370 + $0x162] sm:$0xff]
      %v1454 = vld [vmem:[%s1370 + $0x172] sm:$0xff]
      %v1455 = vld [vmem:[%s1370 + $0x182] sm:$0xff]
      %v1456 = vld [vmem:[%s1370 + $0x192] sm:$0xff]
      %v1457 = vld [vmem:[%s1370 + $0x1a2] sm:$0xff]
      %v1458 = vld [vmem:[%s1370 + $0x1b2] sm:$0xff]
      %v1459 = vld [vmem:[%s1370 + $0x1e2] sm:$0xff]
      %v1460 = vld [vmem:[%s1370 + $0x1f2] sm:$0xff]
      %v1461 = vld [vmem:[%s1370 + $0x202] sm:$0xff]
      %v1462 = vld [vmem:[%s1370 + $0x212] sm:$0xff]
      %v1463 = vld [vmem:[%s1370 + $0x222] sm:$0xff]
      %v1464 = vld [vmem:[%s1370 + $0x232] sm:$0xff]
      %v1465 = vld [vmem:[%s1370 + $0x242] sm:$0xff]
      %v1466 = vld [vmem:[%s1370 + $0x252] sm:$0xff]
      %s1467 = scalar_lea.vmem [#allocation2], 320
      %v1468 = vld [vmem:[%s1467] sm:$0xff]
      %v1469 = vld [vmem:[%s1467 + $0x10] sm:$0xff]
      %v1470 = vld [vmem:[%s1467 + $0x20] sm:$0xff]
      %v1471 = vld [vmem:[%s1467 + $0x30] sm:$0xff]
      %v1472 = vld [vmem:[%s1467 + $0x40] sm:$0xff]
      %v1473 = vld [vmem:[%s1467 + $0x50] sm:$0xff]
      %v1474 = vld [vmem:[%s1467 + $0x60] sm:$0xff]
      %v1475 = vld [vmem:[%s1467 + $0x70] sm:$0xff]
      %v1476 = vld [vmem:[%s1467 + $0xa0] sm:$0xff]
      %v1477 = vld [vmem:[%s1467 + $0xb0] sm:$0xff]
      %v1478 = vld [vmem:[%s1467 + $0xc0] sm:$0xff]
      %v1479 = vld [vmem:[%s1467 + $0xd0] sm:$0xff]
      %v1480 = vld [vmem:[%s1467 + $0xe0] sm:$0xff]
      %v1481 = vld [vmem:[%s1467 + $0xf0] sm:$0xff]
      %v1482 = vld [vmem:[%s1467 + $0x100] sm:$0xff]
      %v1483 = vld [vmem:[%s1467 + $0x110] sm:$0xff]
      %v1484 = vld [vmem:[%s1467 + $0x140] sm:$0xff]
      %v1485 = vld [vmem:[%s1467 + $0x150] sm:$0xff]
      %v1486 = vld [vmem:[%s1467 + $0x160] sm:$0xff]
      %v1487 = vld [vmem:[%s1467 + $0x170] sm:$0xff]
      %v1488 = vld [vmem:[%s1467 + $0x180] sm:$0xff]
      %v1489 = vld [vmem:[%s1467 + $0x190] sm:$0xff]
      %v1490 = vld [vmem:[%s1467 + $0x1a0] sm:$0xff]
      %v1491 = vld [vmem:[%s1467 + $0x1b0] sm:$0xff]
      %v1492 = vld [vmem:[%s1467 + $0x1e0] sm:$0xff]
      %v1493 = vld [vmem:[%s1467 + $0x1f0] sm:$0xff]
      %v1494 = vld [vmem:[%s1467 + $0x200] sm:$0xff]
      %v1495 = vld [vmem:[%s1467 + $0x210] sm:$0xff]
      %v1496 = vld [vmem:[%s1467 + $0x220] sm:$0xff]
      %v1497 = vld [vmem:[%s1467 + $0x230] sm:$0xff]
      %v1498 = vld [vmem:[%s1467 + $0x240] sm:$0xff]
      %v1499 = vld [vmem:[%s1467 + $0x250] sm:$0xff]
      %v1500 = vld [vmem:[%s1467 + $0x1] sm:$0xff]
      %v1501 = vld [vmem:[%s1467 + $0x11] sm:$0xff]
      %v1502 = vld [vmem:[%s1467 + $0x21] sm:$0xff]
      %v1503 = vld [vmem:[%s1467 + $0x31] sm:$0xff]
      %v1504 = vld [vmem:[%s1467 + $0x41] sm:$0xff]
      %v1505 = vld [vmem:[%s1467 + $0x51] sm:$0xff]
      %v1506 = vld [vmem:[%s1467 + $0x61] sm:$0xff]
      %v1507 = vld [vmem:[%s1467 + $0x71] sm:$0xff]
      %v1508 = vld [vmem:[%s1467 + $0xa1] sm:$0xff]
      %v1509 = vld [vmem:[%s1467 + $0xb1] sm:$0xff]
      %v1510 = vld [vmem:[%s1467 + $0xc1] sm:$0xff]
      %v1511 = vld [vmem:[%s1467 + $0xd1] sm:$0xff]
      %v1512 = vld [vmem:[%s1467 + $0xe1] sm:$0xff]
      %v1513 = vld [vmem:[%s1467 + $0xf1] sm:$0xff]
      %v1514 = vld [vmem:[%s1467 + $0x101] sm:$0xff]
      %v1515 = vld [vmem:[%s1467 + $0x111] sm:$0xff]
      %v1516 = vld [vmem:[%s1467 + $0x141] sm:$0xff]
      %v1517 = vld [vmem:[%s1467 + $0x151] sm:$0xff]
      %v1518 = vld [vmem:[%s1467 + $0x161] sm:$0xff]
      %v1519 = vld [vmem:[%s1467 + $0x171] sm:$0xff]
      %v1520 = vld [vmem:[%s1467 + $0x181] sm:$0xff]
      %v1521 = vld [vmem:[%s1467 + $0x191] sm:$0xff]
      %v1522 = vld [vmem:[%s1467 + $0x1a1] sm:$0xff]
      %v1523 = vld [vmem:[%s1467 + $0x1b1] sm:$0xff]
      %v1524 = vld [vmem:[%s1467 + $0x1e1] sm:$0xff]
      %v1525 = vld [vmem:[%s1467 + $0x1f1] sm:$0xff]
      %v1526 = vld [vmem:[%s1467 + $0x201] sm:$0xff]
      %v1527 = vld [vmem:[%s1467 + $0x211] sm:$0xff]
      %v1528 = vld [vmem:[%s1467 + $0x221] sm:$0xff]
      %v1529 = vld [vmem:[%s1467 + $0x231] sm:$0xff]
      %v1530 = vld [vmem:[%s1467 + $0x241] sm:$0xff]
      %v1531 = vld [vmem:[%s1467 + $0x251] sm:$0xff]
      %v1532 = vld [vmem:[%s1467 + $0x2] sm:$0xff]
      %v1533 = vld [vmem:[%s1467 + $0x12] sm:$0xff]
      %v1534 = vld [vmem:[%s1467 + $0x22] sm:$0xff]
      %v1535 = vld [vmem:[%s1467 + $0x32] sm:$0xff]
      %v1536 = vld [vmem:[%s1467 + $0x42] sm:$0xff]
      %v1537 = vld [vmem:[%s1467 + $0x52] sm:$0xff]
      %v1538 = vld [vmem:[%s1467 + $0x62] sm:$0xff]
      %v1539 = vld [vmem:[%s1467 + $0x72] sm:$0xff]
      %v1540 = vld [vmem:[%s1467 + $0xa2] sm:$0xff]
      %v1541 = vld [vmem:[%s1467 + $0xb2] sm:$0xff]
      %v1542 = vld [vmem:[%s1467 + $0xc2] sm:$0xff]
      %v1543 = vld [vmem:[%s1467 + $0xd2] sm:$0xff]
      %v1544 = vld [vmem:[%s1467 + $0xe2] sm:$0xff]
      %v1545 = vld [vmem:[%s1467 + $0xf2] sm:$0xff]
      %v1546 = vld [vmem:[%s1467 + $0x102] sm:$0xff]
      %v1547 = vld [vmem:[%s1467 + $0x112] sm:$0xff]
      %v1548 = vld [vmem:[%s1467 + $0x142] sm:$0xff]
      %v1549 = vld [vmem:[%s1467 + $0x152] sm:$0xff]
      %v1550 = vld [vmem:[%s1467 + $0x162] sm:$0xff]
      %v1551 = vld [vmem:[%s1467 + $0x172] sm:$0xff]
      %v1552 = vld [vmem:[%s1467 + $0x182] sm:$0xff]
      %v1553 = vld [vmem:[%s1467 + $0x192] sm:$0xff]
      %v1554 = vld [vmem:[%s1467 + $0x1a2] sm:$0xff]
      %v1555 = vld [vmem:[%s1467 + $0x1b2] sm:$0xff]
      %v1556 = vld [vmem:[%s1467 + $0x1e2] sm:$0xff]
      %v1557 = vld [vmem:[%s1467 + $0x1f2] sm:$0xff]
      %v1558 = vld [vmem:[%s1467 + $0x202] sm:$0xff]
      %v1559 = vld [vmem:[%s1467 + $0x212] sm:$0xff]
      %v1560 = vld [vmem:[%s1467 + $0x222] sm:$0xff]
      %v1561 = vld [vmem:[%s1467 + $0x232] sm:$0xff]
      %v1562 = vld [vmem:[%s1467 + $0x242] sm:$0xff]
      %v1563 = vld [vmem:[%s1467 + $0x252] sm:$0xff]
      %s1564 = scalar_lea.vmem [#allocation2], 336
      %v1565 = vld [vmem:[%s1564] sm:$0xff]
      %v1566 = vld [vmem:[%s1564 + $0x10] sm:$0xff]
      %v1567 = vld [vmem:[%s1564 + $0x20] sm:$0xff]
      %v1568 = vld [vmem:[%s1564 + $0x30] sm:$0xff]
      %v1569 = vld [vmem:[%s1564 + $0x40] sm:$0xff]
      %v1570 = vld [vmem:[%s1564 + $0x50] sm:$0xff]
      %v1571 = vld [vmem:[%s1564 + $0x60] sm:$0xff]
      %v1572 = vld [vmem:[%s1564 + $0x70] sm:$0xff]
      %v1573 = vld [vmem:[%s1564 + $0xa0] sm:$0xff]
      %v1574 = vld [vmem:[%s1564 + $0xb0] sm:$0xff]
      %v1575 = vld [vmem:[%s1564 + $0xc0] sm:$0xff]
      %v1576 = vld [vmem:[%s1564 + $0xd0] sm:$0xff]
      %v1577 = vld [vmem:[%s1564 + $0xe0] sm:$0xff]
      %v1578 = vld [vmem:[%s1564 + $0xf0] sm:$0xff]
      %v1579 = vld [vmem:[%s1564 + $0x100] sm:$0xff]
      %v1580 = vld [vmem:[%s1564 + $0x110] sm:$0xff]
      %v1581 = vld [vmem:[%s1564 + $0x140] sm:$0xff]
      %v1582 = vld [vmem:[%s1564 + $0x150] sm:$0xff]
      %v1583 = vld [vmem:[%s1564 + $0x160] sm:$0xff]
      %v1584 = vld [vmem:[%s1564 + $0x170] sm:$0xff]
      %v1585 = vld [vmem:[%s1564 + $0x180] sm:$0xff]
      %v1586 = vld [vmem:[%s1564 + $0x190] sm:$0xff]
      %v1587 = vld [vmem:[%s1564 + $0x1a0] sm:$0xff]
      %v1588 = vld [vmem:[%s1564 + $0x1b0] sm:$0xff]
      %v1589 = vld [vmem:[%s1564 + $0x1e0] sm:$0xff]
      %v1590 = vld [vmem:[%s1564 + $0x1f0] sm:$0xff]
      %v1591 = vld [vmem:[%s1564 + $0x200] sm:$0xff]
      %v1592 = vld [vmem:[%s1564 + $0x210] sm:$0xff]
      %v1593 = vld [vmem:[%s1564 + $0x220] sm:$0xff]
      %v1594 = vld [vmem:[%s1564 + $0x230] sm:$0xff]
      %v1595 = vld [vmem:[%s1564 + $0x240] sm:$0xff]
      %v1596 = vld [vmem:[%s1564 + $0x250] sm:$0xff]
      %v1597 = vld [vmem:[%s1564 + $0x1] sm:$0xff]
      %v1598 = vld [vmem:[%s1564 + $0x11] sm:$0xff]
      %v1599 = vld [vmem:[%s1564 + $0x21] sm:$0xff]
      %v1600 = vld [vmem:[%s1564 + $0x31] sm:$0xff]
      %v1601 = vld [vmem:[%s1564 + $0x41] sm:$0xff]
      %v1602 = vld [vmem:[%s1564 + $0x51] sm:$0xff]
      %v1603 = vld [vmem:[%s1564 + $0x61] sm:$0xff]
      %v1604 = vld [vmem:[%s1564 + $0x71] sm:$0xff]
      %v1605 = vld [vmem:[%s1564 + $0xa1] sm:$0xff]
      %v1606 = vld [vmem:[%s1564 + $0xb1] sm:$0xff]
      %v1607 = vld [vmem:[%s1564 + $0xc1] sm:$0xff]
      %v1608 = vld [vmem:[%s1564 + $0xd1] sm:$0xff]
      %v1609 = vld [vmem:[%s1564 + $0xe1] sm:$0xff]
      %v1610 = vld [vmem:[%s1564 + $0xf1] sm:$0xff]
      %v1611 = vld [vmem:[%s1564 + $0x101] sm:$0xff]
      %v1612 = vld [vmem:[%s1564 + $0x111] sm:$0xff]
      %v1613 = vld [vmem:[%s1564 + $0x141] sm:$0xff]
      %v1614 = vld [vmem:[%s1564 + $0x151] sm:$0xff]
      %v1615 = vld [vmem:[%s1564 + $0x161] sm:$0xff]
      %v1616 = vld [vmem:[%s1564 + $0x171] sm:$0xff]
      %v1617 = vld [vmem:[%s1564 + $0x181] sm:$0xff]
      %v1618 = vld [vmem:[%s1564 + $0x191] sm:$0xff]
      %v1619 = vld [vmem:[%s1564 + $0x1a1] sm:$0xff]
      %v1620 = vld [vmem:[%s1564 + $0x1b1] sm:$0xff]
      %v1621 = vld [vmem:[%s1564 + $0x1e1] sm:$0xff]
      %v1622 = vld [vmem:[%s1564 + $0x1f1] sm:$0xff]
      %v1623 = vld [vmem:[%s1564 + $0x201] sm:$0xff]
      %v1624 = vld [vmem:[%s1564 + $0x211] sm:$0xff]
      %v1625 = vld [vmem:[%s1564 + $0x221] sm:$0xff]
      %v1626 = vld [vmem:[%s1564 + $0x231] sm:$0xff]
      %v1627 = vld [vmem:[%s1564 + $0x241] sm:$0xff]
      %v1628 = vld [vmem:[%s1564 + $0x251] sm:$0xff]
      %v1629 = vld [vmem:[%s1564 + $0x2] sm:$0xff]
      %v1630 = vld [vmem:[%s1564 + $0x12] sm:$0xff]
      %v1631 = vld [vmem:[%s1564 + $0x22] sm:$0xff]
      %v1632 = vld [vmem:[%s1564 + $0x32] sm:$0xff]
      %v1633 = vld [vmem:[%s1564 + $0x42] sm:$0xff]
      %v1634 = vld [vmem:[%s1564 + $0x52] sm:$0xff]
      %v1635 = vld [vmem:[%s1564 + $0x62] sm:$0xff]
      %v1636 = vld [vmem:[%s1564 + $0x72] sm:$0xff]
      %v1637 = vld [vmem:[%s1564 + $0xa2] sm:$0xff]
      %v1638 = vld [vmem:[%s1564 + $0xb2] sm:$0xff]
      %v1639 = vld [vmem:[%s1564 + $0xc2] sm:$0xff]
      %v1640 = vld [vmem:[%s1564 + $0xd2] sm:$0xff]
      %v1641 = vld [vmem:[%s1564 + $0xe2] sm:$0xff]
      %v1642 = vld [vmem:[%s1564 + $0xf2] sm:$0xff]
      %v1643 = vld [vmem:[%s1564 + $0x102] sm:$0xff]
      %v1644 = vld [vmem:[%s1564 + $0x112] sm:$0xff]
      %v1645 = vld [vmem:[%s1564 + $0x142] sm:$0xff]
      %v1646 = vld [vmem:[%s1564 + $0x152] sm:$0xff]
      %v1647 = vld [vmem:[%s1564 + $0x162] sm:$0xff]
      %v1648 = vld [vmem:[%s1564 + $0x172] sm:$0xff]
      %v1649 = vld [vmem:[%s1564 + $0x182] sm:$0xff]
      %v1650 = vld [vmem:[%s1564 + $0x192] sm:$0xff]
      %v1651 = vld [vmem:[%s1564 + $0x1a2] sm:$0xff]
      %v1652 = vld [vmem:[%s1564 + $0x1b2] sm:$0xff]
      %v1653 = vld [vmem:[%s1564 + $0x1e2] sm:$0xff]
      %v1654 = vld [vmem:[%s1564 + $0x1f2] sm:$0xff]
      %v1655 = vld [vmem:[%s1564 + $0x202] sm:$0xff]
      %v1656 = vld [vmem:[%s1564 + $0x212] sm:$0xff]
      %v1657 = vld [vmem:[%s1564 + $0x222] sm:$0xff]
      %v1658 = vld [vmem:[%s1564 + $0x232] sm:$0xff]
      %v1659 = vld [vmem:[%s1564 + $0x242] sm:$0xff]
      %v1660 = vld [vmem:[%s1564 + $0x252] sm:$0xff]
      %s1661 = scalar_lea.vmem [#allocation2], 352
      %v1662 = vld [vmem:[%s1661] sm:$0xff]
      %v1663 = vld [vmem:[%s1661 + $0x10] sm:$0xff]
      %v1664 = vld [vmem:[%s1661 + $0x20] sm:$0xff]
      %v1665 = vld [vmem:[%s1661 + $0x30] sm:$0xff]
      %v1666 = vld [vmem:[%s1661 + $0x40] sm:$0xff]
      %v1667 = vld [vmem:[%s1661 + $0x50] sm:$0xff]
      %v1668 = vld [vmem:[%s1661 + $0x60] sm:$0xff]
      %v1669 = vld [vmem:[%s1661 + $0x70] sm:$0xff]
      %v1670 = vld [vmem:[%s1661 + $0xa0] sm:$0xff]
      %v1671 = vld [vmem:[%s1661 + $0xb0] sm:$0xff]
      %v1672 = vld [vmem:[%s1661 + $0xc0] sm:$0xff]
      %v1673 = vld [vmem:[%s1661 + $0xd0] sm:$0xff]
      %v1674 = vld [vmem:[%s1661 + $0xe0] sm:$0xff]
      %v1675 = vld [vmem:[%s1661 + $0xf0] sm:$0xff]
      %v1676 = vld [vmem:[%s1661 + $0x100] sm:$0xff]
      %v1677 = vld [vmem:[%s1661 + $0x110] sm:$0xff]
      %v1678 = vld [vmem:[%s1661 + $0x140] sm:$0xff]
      %v1679 = vld [vmem:[%s1661 + $0x150] sm:$0xff]
      %v1680 = vld [vmem:[%s1661 + $0x160] sm:$0xff]
      %v1681 = vld [vmem:[%s1661 + $0x170] sm:$0xff]
      %v1682 = vld [vmem:[%s1661 + $0x180] sm:$0xff]
      %v1683 = vld [vmem:[%s1661 + $0x190] sm:$0xff]
      %v1684 = vld [vmem:[%s1661 + $0x1a0] sm:$0xff]
      %v1685 = vld [vmem:[%s1661 + $0x1b0] sm:$0xff]
      %v1686 = vld [vmem:[%s1661 + $0x1e0] sm:$0xff]
      %v1687 = vld [vmem:[%s1661 + $0x1f0] sm:$0xff]
      %v1688 = vld [vmem:[%s1661 + $0x200] sm:$0xff]
      %v1689 = vld [vmem:[%s1661 + $0x210] sm:$0xff]
      %v1690 = vld [vmem:[%s1661 + $0x220] sm:$0xff]
      %v1691 = vld [vmem:[%s1661 + $0x230] sm:$0xff]
      %v1692 = vld [vmem:[%s1661 + $0x240] sm:$0xff]
      %v1693 = vld [vmem:[%s1661 + $0x250] sm:$0xff]
      %v1694 = vld [vmem:[%s1661 + $0x1] sm:$0xff]
      %v1695 = vld [vmem:[%s1661 + $0x11] sm:$0xff]
      %v1696 = vld [vmem:[%s1661 + $0x21] sm:$0xff]
      %v1697 = vld [vmem:[%s1661 + $0x31] sm:$0xff]
      %v1698 = vld [vmem:[%s1661 + $0x41] sm:$0xff]
      %v1699 = vld [vmem:[%s1661 + $0x51] sm:$0xff]
      %v1700 = vld [vmem:[%s1661 + $0x61] sm:$0xff]
      %v1701 = vld [vmem:[%s1661 + $0x71] sm:$0xff]
      %v1702 = vld [vmem:[%s1661 + $0xa1] sm:$0xff]
      %v1703 = vld [vmem:[%s1661 + $0xb1] sm:$0xff]
      %v1704 = vld [vmem:[%s1661 + $0xc1] sm:$0xff]
      %v1705 = vld [vmem:[%s1661 + $0xd1] sm:$0xff]
      %v1706 = vld [vmem:[%s1661 + $0xe1] sm:$0xff]
      %v1707 = vld [vmem:[%s1661 + $0xf1] sm:$0xff]
      %v1708 = vld [vmem:[%s1661 + $0x101] sm:$0xff]
      %v1709 = vld [vmem:[%s1661 + $0x111] sm:$0xff]
      %v1710 = vld [vmem:[%s1661 + $0x141] sm:$0xff]
      %v1711 = vld [vmem:[%s1661 + $0x151] sm:$0xff]
      %v1712 = vld [vmem:[%s1661 + $0x161] sm:$0xff]
      %v1713 = vld [vmem:[%s1661 + $0x171] sm:$0xff]
      %v1714 = vld [vmem:[%s1661 + $0x181] sm:$0xff]
      %v1715 = vld [vmem:[%s1661 + $0x191] sm:$0xff]
      %v1716 = vld [vmem:[%s1661 + $0x1a1] sm:$0xff]
      %v1717 = vld [vmem:[%s1661 + $0x1b1] sm:$0xff]
      %v1718 = vld [vmem:[%s1661 + $0x1e1] sm:$0xff]
      %v1719 = vld [vmem:[%s1661 + $0x1f1] sm:$0xff]
      %v1720 = vld [vmem:[%s1661 + $0x201] sm:$0xff]
      %v1721 = vld [vmem:[%s1661 + $0x211] sm:$0xff]
      %v1722 = vld [vmem:[%s1661 + $0x221] sm:$0xff]
      %v1723 = vld [vmem:[%s1661 + $0x231] sm:$0xff]
      %v1724 = vld [vmem:[%s1661 + $0x241] sm:$0xff]
      %v1725 = vld [vmem:[%s1661 + $0x251] sm:$0xff]
      %v1726 = vld [vmem:[%s1661 + $0x2] sm:$0xff]
      %v1727 = vld [vmem:[%s1661 + $0x12] sm:$0xff]
      %v1728 = vld [vmem:[%s1661 + $0x22] sm:$0xff]
      %v1729 = vld [vmem:[%s1661 + $0x32] sm:$0xff]
      %v1730 = vld [vmem:[%s1661 + $0x42] sm:$0xff]
      %v1731 = vld [vmem:[%s1661 + $0x52] sm:$0xff]
      %v1732 = vld [vmem:[%s1661 + $0x62] sm:$0xff]
      %v1733 = vld [vmem:[%s1661 + $0x72] sm:$0xff]
      %v1734 = vld [vmem:[%s1661 + $0xa2] sm:$0xff]
      %v1735 = vld [vmem:[%s1661 + $0xb2] sm:$0xff]
      %v1736 = vld [vmem:[%s1661 + $0xc2] sm:$0xff]
      %v1737 = vld [vmem:[%s1661 + $0xd2] sm:$0xff]
      %v1738 = vld [vmem:[%s1661 + $0xe2] sm:$0xff]
      %v1739 = vld [vmem:[%s1661 + $0xf2] sm:$0xff]
      %v1740 = vld [vmem:[%s1661 + $0x102] sm:$0xff]
      %v1741 = vld [vmem:[%s1661 + $0x112] sm:$0xff]
      %v1742 = vld [vmem:[%s1661 + $0x142] sm:$0xff]
      %v1743 = vld [vmem:[%s1661 + $0x152] sm:$0xff]
      %v1744 = vld [vmem:[%s1661 + $0x162] sm:$0xff]
      %v1745 = vld [vmem:[%s1661 + $0x172] sm:$0xff]
      %v1746 = vld [vmem:[%s1661 + $0x182] sm:$0xff]
      %v1747 = vld [vmem:[%s1661 + $0x192] sm:$0xff]
      %v1748 = vld [vmem:[%s1661 + $0x1a2] sm:$0xff]
      %v1749 = vld [vmem:[%s1661 + $0x1b2] sm:$0xff]
      %v1750 = vld [vmem:[%s1661 + $0x1e2] sm:$0xff]
      %v1751 = vld [vmem:[%s1661 + $0x1f2] sm:$0xff]
      %v1752 = vld [vmem:[%s1661 + $0x202] sm:$0xff]
      %v1753 = vld [vmem:[%s1661 + $0x212] sm:$0xff]
      %v1754 = vld [vmem:[%s1661 + $0x222] sm:$0xff]
      %v1755 = vld [vmem:[%s1661 + $0x232] sm:$0xff]
      %v1756 = vld [vmem:[%s1661 + $0x242] sm:$0xff]
      %v1757 = vld [vmem:[%s1661 + $0x252] sm:$0xff]
      %1790 = vrot.lane.b32.xlu0 %v919, 4
      %v1791 = vpop.permute.xlu0 %1790
      %1792 = vrot.lane.b32.xlu0 %v920, 4
      %v1793 = vpop.permute.xlu0 %1792
      %1794 = vrot.lane.b32.xlu0 %v921, 4
      %v1795 = vpop.permute.xlu0 %1794
      %1796 = vrot.lane.b32.xlu0 %v922, 4
      %v1797 = vpop.permute.xlu0 %1796
      %1798 = vrot.lane.b32.xlu0 %v923, 4
      %v1799 = vpop.permute.xlu0 %1798
      %1800 = vrot.lane.b32.xlu0 %v924, 4
      %v1801 = vpop.permute.xlu0 %1800
      %1802 = vrot.lane.b32.xlu0 %v925, 4
      %v1803 = vpop.permute.xlu0 %1802
      %1804 = vrot.lane.b32.xlu0 %v926, 4
      %v1805 = vpop.permute.xlu0 %1804
      %1806 = vrot.lane.b32.xlu0 %v927, 4
      %v1807 = vpop.permute.xlu0 %1806
      %1808 = vrot.lane.b32.xlu0 %v928, 4
      %v1809 = vpop.permute.xlu0 %1808
      %1810 = vrot.lane.b32.xlu0 %v929, 4
      %v1811 = vpop.permute.xlu0 %1810
      %1812 = vrot.lane.b32.xlu0 %v930, 4
      %v1813 = vpop.permute.xlu0 %1812
      %1814 = vrot.lane.b32.xlu0 %v931, 4
      %v1815 = vpop.permute.xlu0 %1814
      %1816 = vrot.lane.b32.xlu0 %v932, 4
      %v1817 = vpop.permute.xlu0 %1816
      %1818 = vrot.lane.b32.xlu0 %v933, 4
      %v1819 = vpop.permute.xlu0 %1818
      %1820 = vrot.lane.b32.xlu0 %v934, 4
      %v1821 = vpop.permute.xlu0 %1820
      %1822 = vrot.lane.b32.xlu0 %v935, 4
      %v1823 = vpop.permute.xlu0 %1822
      %1824 = vrot.lane.b32.xlu0 %v936, 4
      %v1825 = vpop.permute.xlu0 %1824
      %1826 = vrot.lane.b32.xlu0 %v937, 4
      %v1827 = vpop.permute.xlu0 %1826
      %1828 = vrot.lane.b32.xlu0 %v938, 4
      %v1829 = vpop.permute.xlu0 %1828
      %1830 = vrot.lane.b32.xlu0 %v939, 4
      %v1831 = vpop.permute.xlu0 %1830
      %1832 = vrot.lane.b32.xlu0 %v940, 4
      %v1833 = vpop.permute.xlu0 %1832
      %1834 = vrot.lane.b32.xlu0 %v941, 4
      %v1835 = vpop.permute.xlu0 %1834
      %1836 = vrot.lane.b32.xlu0 %v942, 4
      %v1837 = vpop.permute.xlu0 %1836
      %1838 = vrot.lane.b32.xlu0 %v943, 4
      %v1839 = vpop.permute.xlu0 %1838
      %1840 = vrot.lane.b32.xlu0 %v944, 4
      %v1841 = vpop.permute.xlu0 %1840
      %1842 = vrot.lane.b32.xlu0 %v945, 4
      %v1843 = vpop.permute.xlu0 %1842
      %1844 = vrot.lane.b32.xlu0 %v946, 4
      %v1845 = vpop.permute.xlu0 %1844
      %1846 = vrot.lane.b32.xlu0 %v947, 4
      %v1847 = vpop.permute.xlu0 %1846
      %1848 = vrot.lane.b32.xlu0 %v948, 4
      %v1849 = vpop.permute.xlu0 %1848
      %1850 = vrot.lane.b32.xlu0 %v949, 4
      %v1851 = vpop.permute.xlu0 %1850
      %1852 = vrot.lane.b32.xlu0 %v950, 4
      %v1853 = vpop.permute.xlu0 %1852
      %1918 = vrot.lane.b32.xlu0 %v951, 8
      %v1919 = vpop.permute.xlu0 %1918
      %1920 = vrot.lane.b32.xlu0 %v952, 8
      %v1921 = vpop.permute.xlu0 %1920
      %1922 = vrot.lane.b32.xlu0 %v953, 8
      %v1923 = vpop.permute.xlu0 %1922
      %1924 = vrot.lane.b32.xlu0 %v954, 8
      %v1925 = vpop.permute.xlu0 %1924
      %1926 = vrot.lane.b32.xlu0 %v955, 8
      %v1927 = vpop.permute.xlu0 %1926
      %1928 = vrot.lane.b32.xlu0 %v956, 8
      %v1929 = vpop.permute.xlu0 %1928
      %1930 = vrot.lane.b32.xlu0 %v957, 8
      %v1931 = vpop.permute.xlu0 %1930
      %1932 = vrot.lane.b32.xlu0 %v958, 8
      %v1933 = vpop.permute.xlu0 %1932
      %1934 = vrot.lane.b32.xlu0 %v959, 8
      %v1935 = vpop.permute.xlu0 %1934
      %1936 = vrot.lane.b32.xlu0 %v960, 8
      %v1937 = vpop.permute.xlu0 %1936
      %1938 = vrot.lane.b32.xlu0 %v961, 8
      %v1939 = vpop.permute.xlu0 %1938
      %1940 = vrot.lane.b32.xlu0 %v962, 8
      %v1941 = vpop.permute.xlu0 %1940
      %1942 = vrot.lane.b32.xlu0 %v963, 8
      %v1943 = vpop.permute.xlu0 %1942
      %1944 = vrot.lane.b32.xlu0 %v964, 8
      %v1945 = vpop.permute.xlu0 %1944
      %1946 = vrot.lane.b32.xlu0 %v965, 8
      %v1947 = vpop.permute.xlu0 %1946
      %1948 = vrot.lane.b32.xlu0 %v966, 8
      %v1949 = vpop.permute.xlu0 %1948
      %1950 = vrot.lane.b32.xlu0 %v967, 8
      %v1951 = vpop.permute.xlu0 %1950
      %1952 = vrot.lane.b32.xlu0 %v968, 8
      %v1953 = vpop.permute.xlu0 %1952
      %1954 = vrot.lane.b32.xlu0 %v969, 8
      %v1955 = vpop.permute.xlu0 %1954
      %1956 = vrot.lane.b32.xlu0 %v970, 8
      %v1957 = vpop.permute.xlu0 %1956
      %1958 = vrot.lane.b32.xlu0 %v971, 8
      %v1959 = vpop.permute.xlu0 %1958
      %1960 = vrot.lane.b32.xlu0 %v972, 8
      %v1961 = vpop.permute.xlu0 %1960
      %1962 = vrot.lane.b32.xlu0 %v973, 8
      %v1963 = vpop.permute.xlu0 %1962
      %1964 = vrot.lane.b32.xlu0 %v974, 8
      %v1965 = vpop.permute.xlu0 %1964
      %1966 = vrot.lane.b32.xlu0 %v975, 8
      %v1967 = vpop.permute.xlu0 %1966
      %1968 = vrot.lane.b32.xlu0 %v976, 8
      %v1969 = vpop.permute.xlu0 %1968
      %1970 = vrot.lane.b32.xlu0 %v977, 8
      %v1971 = vpop.permute.xlu0 %1970
      %1972 = vrot.lane.b32.xlu0 %v978, 8
      %v1973 = vpop.permute.xlu0 %1972
      %1974 = vrot.lane.b32.xlu0 %v979, 8
      %v1975 = vpop.permute.xlu0 %1974
      %1976 = vrot.lane.b32.xlu0 %v980, 8
      %v1977 = vpop.permute.xlu0 %1976
      %1978 = vrot.lane.b32.xlu0 %v981, 8
      %v1979 = vpop.permute.xlu0 %1978
      %1980 = vrot.lane.b32.xlu0 %v982, 8
      %v1981 = vpop.permute.xlu0 %1980
      %2046 = vrot.lane.b32.xlu0 %v984, 12
      %v2047 = vpop.permute.xlu0 %2046
      %2048 = vrot.lane.b32.xlu0 %v985, 12
      %v2049 = vpop.permute.xlu0 %2048
      %2050 = vrot.lane.b32.xlu0 %v986, 12
      %v2051 = vpop.permute.xlu0 %2050
      %2052 = vrot.lane.b32.xlu0 %v987, 12
      %v2053 = vpop.permute.xlu0 %2052
      %2054 = vrot.lane.b32.xlu0 %v988, 12
      %v2055 = vpop.permute.xlu0 %2054
      %2056 = vrot.lane.b32.xlu0 %v989, 12
      %v2057 = vpop.permute.xlu0 %2056
      %2058 = vrot.lane.b32.xlu0 %v990, 12
      %v2059 = vpop.permute.xlu0 %2058
      %2060 = vrot.lane.b32.xlu0 %v991, 12
      %v2061 = vpop.permute.xlu0 %2060
      %2062 = vrot.lane.b32.xlu0 %v992, 12
      %v2063 = vpop.permute.xlu0 %2062
      %2064 = vrot.lane.b32.xlu0 %v993, 12
      %v2065 = vpop.permute.xlu0 %2064
      %2066 = vrot.lane.b32.xlu0 %v994, 12
      %v2067 = vpop.permute.xlu0 %2066
      %2068 = vrot.lane.b32.xlu0 %v995, 12
      %v2069 = vpop.permute.xlu0 %2068
      %2070 = vrot.lane.b32.xlu0 %v996, 12
      %v2071 = vpop.permute.xlu0 %2070
      %2072 = vrot.lane.b32.xlu0 %v997, 12
      %v2073 = vpop.permute.xlu0 %2072
      %2074 = vrot.lane.b32.xlu0 %v998, 12
      %v2075 = vpop.permute.xlu0 %2074
      %2076 = vrot.lane.b32.xlu0 %v999, 12
      %v2077 = vpop.permute.xlu0 %2076
      %2078 = vrot.lane.b32.xlu0 %v1000, 12
      %v2079 = vpop.permute.xlu0 %2078
      %2080 = vrot.lane.b32.xlu0 %v1001, 12
      %v2081 = vpop.permute.xlu0 %2080
      %2082 = vrot.lane.b32.xlu0 %v1002, 12
      %v2083 = vpop.permute.xlu0 %2082
      %2084 = vrot.lane.b32.xlu0 %v1003, 12
      %v2085 = vpop.permute.xlu0 %2084
      %2086 = vrot.lane.b32.xlu0 %v1004, 12
      %v2087 = vpop.permute.xlu0 %2086
      %2088 = vrot.lane.b32.xlu0 %v1005, 12
      %v2089 = vpop.permute.xlu0 %2088
      %2090 = vrot.lane.b32.xlu0 %v1006, 12
      %v2091 = vpop.permute.xlu0 %2090
      %2092 = vrot.lane.b32.xlu0 %v1007, 12
      %v2093 = vpop.permute.xlu0 %2092
      %2094 = vrot.lane.b32.xlu0 %v1008, 12
      %v2095 = vpop.permute.xlu0 %2094
      %2096 = vrot.lane.b32.xlu0 %v1009, 12
      %v2097 = vpop.permute.xlu0 %2096
      %2098 = vrot.lane.b32.xlu0 %v1010, 12
      %v2099 = vpop.permute.xlu0 %2098
      %2100 = vrot.lane.b32.xlu0 %v1011, 12
      %v2101 = vpop.permute.xlu0 %2100
      %2102 = vrot.lane.b32.xlu0 %v1012, 12
      %v2103 = vpop.permute.xlu0 %2102
      %2104 = vrot.lane.b32.xlu0 %v1013, 12
      %v2105 = vpop.permute.xlu0 %2104
      %2106 = vrot.lane.b32.xlu0 %v1014, 12
      %v2107 = vpop.permute.xlu0 %2106
      %2108 = vrot.lane.b32.xlu0 %v1015, 12
      %v2109 = vpop.permute.xlu0 %2108
      %2174 = vrot.lane.b32.xlu0 %v1016, 16
      %v2175 = vpop.permute.xlu0 %2174
      %2176 = vrot.lane.b32.xlu0 %v1017, 16
      %v2177 = vpop.permute.xlu0 %2176
      %2178 = vrot.lane.b32.xlu0 %v1018, 16
      %v2179 = vpop.permute.xlu0 %2178
      %2180 = vrot.lane.b32.xlu0 %v1019, 16
      %v2181 = vpop.permute.xlu0 %2180
      %2182 = vrot.lane.b32.xlu0 %v1020, 16
      %v2183 = vpop.permute.xlu0 %2182
      %2184 = vrot.lane.b32.xlu0 %v1021, 16
      %v2185 = vpop.permute.xlu0 %2184
      %2186 = vrot.lane.b32.xlu0 %v1022, 16
      %v2187 = vpop.permute.xlu0 %2186
      %2188 = vrot.lane.b32.xlu0 %v1023, 16
      %v2189 = vpop.permute.xlu0 %2188
      %2190 = vrot.lane.b32.xlu0 %v1024, 16
      %v2191 = vpop.permute.xlu0 %2190
      %2192 = vrot.lane.b32.xlu0 %v1025, 16
      %v2193 = vpop.permute.xlu0 %2192
      %2194 = vrot.lane.b32.xlu0 %v1026, 16
      %v2195 = vpop.permute.xlu0 %2194
      %2196 = vrot.lane.b32.xlu0 %v1027, 16
      %v2197 = vpop.permute.xlu0 %2196
      %2198 = vrot.lane.b32.xlu0 %v1028, 16
      %v2199 = vpop.permute.xlu0 %2198
      %2200 = vrot.lane.b32.xlu0 %v1029, 16
      %v2201 = vpop.permute.xlu0 %2200
      %2202 = vrot.lane.b32.xlu0 %v1030, 16
      %v2203 = vpop.permute.xlu0 %2202
      %2204 = vrot.lane.b32.xlu0 %v1031, 16
      %v2205 = vpop.permute.xlu0 %2204
      %2206 = vrot.lane.b32.xlu0 %v1032, 16
      %v2207 = vpop.permute.xlu0 %2206
      %2208 = vrot.lane.b32.xlu0 %v1033, 16
      %v2209 = vpop.permute.xlu0 %2208
      %2210 = vrot.lane.b32.xlu0 %v1034, 16
      %v2211 = vpop.permute.xlu0 %2210
      %2212 = vrot.lane.b32.xlu0 %v1035, 16
      %v2213 = vpop.permute.xlu0 %2212
      %2214 = vrot.lane.b32.xlu0 %v1036, 16
      %v2215 = vpop.permute.xlu0 %2214
      %2216 = vrot.lane.b32.xlu0 %v1037, 16
      %v2217 = vpop.permute.xlu0 %2216
      %2218 = vrot.lane.b32.xlu0 %v1038, 16
      %v2219 = vpop.permute.xlu0 %2218
      %2220 = vrot.lane.b32.xlu0 %v1039, 16
      %v2221 = vpop.permute.xlu0 %2220
      %2222 = vrot.lane.b32.xlu0 %v1040, 16
      %v2223 = vpop.permute.xlu0 %2222
      %2224 = vrot.lane.b32.xlu0 %v1041, 16
      %v2225 = vpop.permute.xlu0 %2224
      %2226 = vrot.lane.b32.xlu0 %v1042, 16
      %v2227 = vpop.permute.xlu0 %2226
      %2228 = vrot.lane.b32.xlu0 %v1043, 16
      %v2229 = vpop.permute.xlu0 %2228
      %2230 = vrot.lane.b32.xlu0 %v1044, 16
      %v2231 = vpop.permute.xlu0 %2230
      %2232 = vrot.lane.b32.xlu0 %v1045, 16
      %v2233 = vpop.permute.xlu0 %2232
      %2234 = vrot.lane.b32.xlu0 %v1046, 16
      %v2235 = vpop.permute.xlu0 %2234
      %2236 = vrot.lane.b32.xlu0 %v1047, 16
      %v2237 = vpop.permute.xlu0 %2236
      %2302 = vrot.lane.b32.xlu0 %v1048, 20
      %v2303 = vpop.permute.xlu0 %2302
      %2304 = vrot.lane.b32.xlu0 %v1049, 20
      %v2305 = vpop.permute.xlu0 %2304
      %2306 = vrot.lane.b32.xlu0 %v1050, 20
      %v2307 = vpop.permute.xlu0 %2306
      %2308 = vrot.lane.b32.xlu0 %v1051, 20
      %v2309 = vpop.permute.xlu0 %2308
      %2310 = vrot.lane.b32.xlu0 %v1052, 20
      %v2311 = vpop.permute.xlu0 %2310
      %2312 = vrot.lane.b32.xlu0 %v1053, 20
      %v2313 = vpop.permute.xlu0 %2312
      %2314 = vrot.lane.b32.xlu0 %v1054, 20
      %v2315 = vpop.permute.xlu0 %2314
      %2316 = vrot.lane.b32.xlu0 %v1055, 20
      %v2317 = vpop.permute.xlu0 %2316
      %2318 = vrot.lane.b32.xlu0 %v1056, 20
      %v2319 = vpop.permute.xlu0 %2318
      %2320 = vrot.lane.b32.xlu0 %v1057, 20
      %v2321 = vpop.permute.xlu0 %2320
      %2322 = vrot.lane.b32.xlu0 %v1058, 20
      %v2323 = vpop.permute.xlu0 %2322
      %2324 = vrot.lane.b32.xlu0 %v1059, 20
      %v2325 = vpop.permute.xlu0 %2324
      %2326 = vrot.lane.b32.xlu0 %v1060, 20
      %v2327 = vpop.permute.xlu0 %2326
      %2328 = vrot.lane.b32.xlu0 %v1061, 20
      %v2329 = vpop.permute.xlu0 %2328
      %2330 = vrot.lane.b32.xlu0 %v1062, 20
      %v2331 = vpop.permute.xlu0 %2330
      %2332 = vrot.lane.b32.xlu0 %v1063, 20
      %v2333 = vpop.permute.xlu0 %2332
      %2334 = vrot.lane.b32.xlu0 %v1064, 20
      %v2335 = vpop.permute.xlu0 %2334
      %2336 = vrot.lane.b32.xlu0 %v1065, 20
      %v2337 = vpop.permute.xlu0 %2336
      %2338 = vrot.lane.b32.xlu0 %v1066, 20
      %v2339 = vpop.permute.xlu0 %2338
      %2340 = vrot.lane.b32.xlu0 %v1067, 20
      %v2341 = vpop.permute.xlu0 %2340
      %2342 = vrot.lane.b32.xlu0 %v1068, 20
      %v2343 = vpop.permute.xlu0 %2342
      %2344 = vrot.lane.b32.xlu0 %v1069, 20
      %v2345 = vpop.permute.xlu0 %2344
      %2346 = vrot.lane.b32.xlu0 %v1070, 20
      %v2347 = vpop.permute.xlu0 %2346
      %2348 = vrot.lane.b32.xlu0 %v1071, 20
      %v2349 = vpop.permute.xlu0 %2348
      %2350 = vrot.lane.b32.xlu0 %v1072, 20
      %v2351 = vpop.permute.xlu0 %2350
      %2352 = vrot.lane.b32.xlu0 %v1073, 20
      %v2353 = vpop.permute.xlu0 %2352
      %2354 = vrot.lane.b32.xlu0 %v1074, 20
      %v2355 = vpop.permute.xlu0 %2354
      %2356 = vrot.lane.b32.xlu0 %v1075, 20
      %v2357 = vpop.permute.xlu0 %2356
      %2358 = vrot.lane.b32.xlu0 %v1076, 20
      %v2359 = vpop.permute.xlu0 %2358
      %2360 = vrot.lane.b32.xlu0 %v1077, 20
      %v2361 = vpop.permute.xlu0 %2360
      %2362 = vrot.lane.b32.xlu0 %v1078, 20
      %v2363 = vpop.permute.xlu0 %2362
      %2364 = vrot.lane.b32.xlu0 %v1079, 20
      %v2365 = vpop.permute.xlu0 %2364
      %2430 = vrot.lane.b32.xlu0 %v1081, 24
      %v2431 = vpop.permute.xlu0 %2430
      %2432 = vrot.lane.b32.xlu0 %v1082, 24
      %v2433 = vpop.permute.xlu0 %2432
      %2434 = vrot.lane.b32.xlu0 %v1083, 24
      %v2435 = vpop.permute.xlu0 %2434
      %2436 = vrot.lane.b32.xlu0 %v1084, 24
      %v2437 = vpop.permute.xlu0 %2436
      %2438 = vrot.lane.b32.xlu0 %v1085, 24
      %v2439 = vpop.permute.xlu0 %2438
      %2440 = vrot.lane.b32.xlu0 %v1086, 24
      %v2441 = vpop.permute.xlu0 %2440
      %2442 = vrot.lane.b32.xlu0 %v1087, 24
      %v2443 = vpop.permute.xlu0 %2442
      %2444 = vrot.lane.b32.xlu0 %v1088, 24
      %v2445 = vpop.permute.xlu0 %2444
      %2446 = vrot.lane.b32.xlu0 %v1089, 24
      %v2447 = vpop.permute.xlu0 %2446
      %2448 = vrot.lane.b32.xlu0 %v1090, 24
      %v2449 = vpop.permute.xlu0 %2448
      %2450 = vrot.lane.b32.xlu0 %v1091, 24
      %v2451 = vpop.permute.xlu0 %2450
      %2452 = vrot.lane.b32.xlu0 %v1092, 24
      %v2453 = vpop.permute.xlu0 %2452
      %2454 = vrot.lane.b32.xlu0 %v1093, 24
      %v2455 = vpop.permute.xlu0 %2454
      %2456 = vrot.lane.b32.xlu0 %v1094, 24
      %v2457 = vpop.permute.xlu0 %2456
      %2458 = vrot.lane.b32.xlu0 %v1095, 24
      %v2459 = vpop.permute.xlu0 %2458
      %2460 = vrot.lane.b32.xlu0 %v1096, 24
      %v2461 = vpop.permute.xlu0 %2460
      %2462 = vrot.lane.b32.xlu0 %v1097, 24
      %v2463 = vpop.permute.xlu0 %2462
      %2464 = vrot.lane.b32.xlu0 %v1098, 24
      %v2465 = vpop.permute.xlu0 %2464
      %2466 = vrot.lane.b32.xlu0 %v1099, 24
      %v2467 = vpop.permute.xlu0 %2466
      %2468 = vrot.lane.b32.xlu0 %v1100, 24
      %v2469 = vpop.permute.xlu0 %2468
      %2470 = vrot.lane.b32.xlu0 %v1101, 24
      %v2471 = vpop.permute.xlu0 %2470
      %2472 = vrot.lane.b32.xlu0 %v1102, 24
      %v2473 = vpop.permute.xlu0 %2472
      %2474 = vrot.lane.b32.xlu0 %v1103, 24
      %v2475 = vpop.permute.xlu0 %2474
      %2476 = vrot.lane.b32.xlu0 %v1104, 24
      %v2477 = vpop.permute.xlu0 %2476
      %2478 = vrot.lane.b32.xlu0 %v1105, 24
      %v2479 = vpop.permute.xlu0 %2478
      %2480 = vrot.lane.b32.xlu0 %v1106, 24
      %v2481 = vpop.permute.xlu0 %2480
      %2482 = vrot.lane.b32.xlu0 %v1107, 24
      %v2483 = vpop.permute.xlu0 %2482
      %2484 = vrot.lane.b32.xlu0 %v1108, 24
      %v2485 = vpop.permute.xlu0 %2484
      %2486 = vrot.lane.b32.xlu0 %v1109, 24
      %v2487 = vpop.permute.xlu0 %2486
      %2488 = vrot.lane.b32.xlu0 %v1110, 24
      %v2489 = vpop.permute.xlu0 %2488
      %2490 = vrot.lane.b32.xlu0 %v1111, 24
      %v2491 = vpop.permute.xlu0 %2490
      %2492 = vrot.lane.b32.xlu0 %v1112, 24
      %v2493 = vpop.permute.xlu0 %2492
      %2558 = vrot.lane.b32.xlu0 %v1113, 28
      %v2559 = vpop.permute.xlu0 %2558
      %2560 = vrot.lane.b32.xlu0 %v1114, 28
      %v2561 = vpop.permute.xlu0 %2560
      %2562 = vrot.lane.b32.xlu0 %v1115, 28
      %v2563 = vpop.permute.xlu0 %2562
      %2564 = vrot.lane.b32.xlu0 %v1116, 28
      %v2565 = vpop.permute.xlu0 %2564
      %2566 = vrot.lane.b32.xlu0 %v1117, 28
      %v2567 = vpop.permute.xlu0 %2566
      %2568 = vrot.lane.b32.xlu0 %v1118, 28
      %v2569 = vpop.permute.xlu0 %2568
      %2570 = vrot.lane.b32.xlu0 %v1119, 28
      %v2571 = vpop.permute.xlu0 %2570
      %2572 = vrot.lane.b32.xlu0 %v1120, 28
      %v2573 = vpop.permute.xlu0 %2572
      %2574 = vrot.lane.b32.xlu0 %v1121, 28
      %v2575 = vpop.permute.xlu0 %2574
      %2576 = vrot.lane.b32.xlu0 %v1122, 28
      %v2577 = vpop.permute.xlu0 %2576
      %2578 = vrot.lane.b32.xlu0 %v1123, 28
      %v2579 = vpop.permute.xlu0 %2578
      %2580 = vrot.lane.b32.xlu0 %v1124, 28
      %v2581 = vpop.permute.xlu0 %2580
      %2582 = vrot.lane.b32.xlu0 %v1125, 28
      %v2583 = vpop.permute.xlu0 %2582
      %2584 = vrot.lane.b32.xlu0 %v1126, 28
      %v2585 = vpop.permute.xlu0 %2584
      %2586 = vrot.lane.b32.xlu0 %v1127, 28
      %v2587 = vpop.permute.xlu0 %2586
      %2588 = vrot.lane.b32.xlu0 %v1128, 28
      %v2589 = vpop.permute.xlu0 %2588
      %2590 = vrot.lane.b32.xlu0 %v1129, 28
      %v2591 = vpop.permute.xlu0 %2590
      %2592 = vrot.lane.b32.xlu0 %v1130, 28
      %v2593 = vpop.permute.xlu0 %2592
      %2594 = vrot.lane.b32.xlu0 %v1131, 28
      %v2595 = vpop.permute.xlu0 %2594
      %2596 = vrot.lane.b32.xlu0 %v1132, 28
      %v2597 = vpop.permute.xlu0 %2596
      %2598 = vrot.lane.b32.xlu0 %v1133, 28
      %v2599 = vpop.permute.xlu0 %2598
      %2600 = vrot.lane.b32.xlu0 %v1134, 28
      %v2601 = vpop.permute.xlu0 %2600
      %2602 = vrot.lane.b32.xlu0 %v1135, 28
      %v2603 = vpop.permute.xlu0 %2602
      %2604 = vrot.lane.b32.xlu0 %v1136, 28
      %v2605 = vpop.permute.xlu0 %2604
      %2606 = vrot.lane.b32.xlu0 %v1137, 28
      %v2607 = vpop.permute.xlu0 %2606
      %2608 = vrot.lane.b32.xlu0 %v1138, 28
      %v2609 = vpop.permute.xlu0 %2608
      %2610 = vrot.lane.b32.xlu0 %v1139, 28
      %v2611 = vpop.permute.xlu0 %2610
      %2612 = vrot.lane.b32.xlu0 %v1140, 28
      %v2613 = vpop.permute.xlu0 %2612
      %2614 = vrot.lane.b32.xlu0 %v1141, 28
      %v2615 = vpop.permute.xlu0 %2614
      %2616 = vrot.lane.b32.xlu0 %v1142, 28
      %v2617 = vpop.permute.xlu0 %2616
      %2618 = vrot.lane.b32.xlu0 %v1143, 28
      %v2619 = vpop.permute.xlu0 %2618
      %2620 = vrot.lane.b32.xlu0 %v1144, 28
      %v2621 = vpop.permute.xlu0 %2620
      %2686 = vrot.lane.b32.xlu0 %v1145, 32
      %v2687 = vpop.permute.xlu0 %2686
      %2688 = vrot.lane.b32.xlu0 %v1146, 32
      %v2689 = vpop.permute.xlu0 %2688
      %2690 = vrot.lane.b32.xlu0 %v1147, 32
      %v2691 = vpop.permute.xlu0 %2690
      %2692 = vrot.lane.b32.xlu0 %v1148, 32
      %v2693 = vpop.permute.xlu0 %2692
      %2694 = vrot.lane.b32.xlu0 %v1149, 32
      %v2695 = vpop.permute.xlu0 %2694
      %2696 = vrot.lane.b32.xlu0 %v1150, 32
      %v2697 = vpop.permute.xlu0 %2696
      %2698 = vrot.lane.b32.xlu0 %v1151, 32
      %v2699 = vpop.permute.xlu0 %2698
      %2700 = vrot.lane.b32.xlu0 %v1152, 32
      %v2701 = vpop.permute.xlu0 %2700
      %2702 = vrot.lane.b32.xlu0 %v1153, 32
      %v2703 = vpop.permute.xlu0 %2702
      %2704 = vrot.lane.b32.xlu0 %v1154, 32
      %v2705 = vpop.permute.xlu0 %2704
      %2706 = vrot.lane.b32.xlu0 %v1155, 32
      %v2707 = vpop.permute.xlu0 %2706
      %2708 = vrot.lane.b32.xlu0 %v1156, 32
      %v2709 = vpop.permute.xlu0 %2708
      %2710 = vrot.lane.b32.xlu0 %v1157, 32
      %v2711 = vpop.permute.xlu0 %2710
      %2712 = vrot.lane.b32.xlu0 %v1158, 32
      %v2713 = vpop.permute.xlu0 %2712
      %2714 = vrot.lane.b32.xlu0 %v1159, 32
      %v2715 = vpop.permute.xlu0 %2714
      %2716 = vrot.lane.b32.xlu0 %v1160, 32
      %v2717 = vpop.permute.xlu0 %2716
      %2718 = vrot.lane.b32.xlu0 %v1161, 32
      %v2719 = vpop.permute.xlu0 %2718
      %2720 = vrot.lane.b32.xlu0 %v1162, 32
      %v2721 = vpop.permute.xlu0 %2720
      %2722 = vrot.lane.b32.xlu0 %v1163, 32
      %v2723 = vpop.permute.xlu0 %2722
      %2724 = vrot.lane.b32.xlu0 %v1164, 32
      %v2725 = vpop.permute.xlu0 %2724
      %2726 = vrot.lane.b32.xlu0 %v1165, 32
      %v2727 = vpop.permute.xlu0 %2726
      %2728 = vrot.lane.b32.xlu0 %v1166, 32
      %v2729 = vpop.permute.xlu0 %2728
      %2730 = vrot.lane.b32.xlu0 %v1167, 32
      %v2731 = vpop.permute.xlu0 %2730
      %2732 = vrot.lane.b32.xlu0 %v1168, 32
      %v2733 = vpop.permute.xlu0 %2732
      %2734 = vrot.lane.b32.xlu0 %v1169, 32
      %v2735 = vpop.permute.xlu0 %2734
      %2736 = vrot.lane.b32.xlu0 %v1170, 32
      %v2737 = vpop.permute.xlu0 %2736
      %2738 = vrot.lane.b32.xlu0 %v1171, 32
      %v2739 = vpop.permute.xlu0 %2738
      %2740 = vrot.lane.b32.xlu0 %v1172, 32
      %v2741 = vpop.permute.xlu0 %2740
      %2742 = vrot.lane.b32.xlu0 %v1173, 32
      %v2743 = vpop.permute.xlu0 %2742
      %2744 = vrot.lane.b32.xlu0 %v1174, 32
      %v2745 = vpop.permute.xlu0 %2744
      %2746 = vrot.lane.b32.xlu0 %v1175, 32
      %v2747 = vpop.permute.xlu0 %2746
      %2748 = vrot.lane.b32.xlu0 %v1176, 32
      %v2749 = vpop.permute.xlu0 %2748
      %2814 = vrot.lane.b32.xlu0 %v1178, 36
      %v2815 = vpop.permute.xlu0 %2814
      %2816 = vrot.lane.b32.xlu0 %v1179, 36
      %v2817 = vpop.permute.xlu0 %2816
      %2818 = vrot.lane.b32.xlu0 %v1180, 36
      %v2819 = vpop.permute.xlu0 %2818
      %2820 = vrot.lane.b32.xlu0 %v1181, 36
      %v2821 = vpop.permute.xlu0 %2820
      %2822 = vrot.lane.b32.xlu0 %v1182, 36
      %v2823 = vpop.permute.xlu0 %2822
      %2824 = vrot.lane.b32.xlu0 %v1183, 36
      %v2825 = vpop.permute.xlu0 %2824
      %2826 = vrot.lane.b32.xlu0 %v1184, 36
      %v2827 = vpop.permute.xlu0 %2826
      %2828 = vrot.lane.b32.xlu0 %v1185, 36
      %v2829 = vpop.permute.xlu0 %2828
      %2830 = vrot.lane.b32.xlu0 %v1186, 36
      %v2831 = vpop.permute.xlu0 %2830
      %2832 = vrot.lane.b32.xlu0 %v1187, 36
      %v2833 = vpop.permute.xlu0 %2832
      %2834 = vrot.lane.b32.xlu0 %v1188, 36
      %v2835 = vpop.permute.xlu0 %2834
      %2836 = vrot.lane.b32.xlu0 %v1189, 36
      %v2837 = vpop.permute.xlu0 %2836
      %2838 = vrot.lane.b32.xlu0 %v1190, 36
      %v2839 = vpop.permute.xlu0 %2838
      %2840 = vrot.lane.b32.xlu0 %v1191, 36
      %v2841 = vpop.permute.xlu0 %2840
      %2842 = vrot.lane.b32.xlu0 %v1192, 36
      %v2843 = vpop.permute.xlu0 %2842
      %2844 = vrot.lane.b32.xlu0 %v1193, 36
      %v2845 = vpop.permute.xlu0 %2844
      %2846 = vrot.lane.b32.xlu0 %v1194, 36
      %v2847 = vpop.permute.xlu0 %2846
      %2848 = vrot.lane.b32.xlu0 %v1195, 36
      %v2849 = vpop.permute.xlu0 %2848
      %2850 = vrot.lane.b32.xlu0 %v1196, 36
      %v2851 = vpop.permute.xlu0 %2850
      %2852 = vrot.lane.b32.xlu0 %v1197, 36
      %v2853 = vpop.permute.xlu0 %2852
      %2854 = vrot.lane.b32.xlu0 %v1198, 36
      %v2855 = vpop.permute.xlu0 %2854
      %2856 = vrot.lane.b32.xlu0 %v1199, 36
      %v2857 = vpop.permute.xlu0 %2856
      %2858 = vrot.lane.b32.xlu0 %v1200, 36
      %v2859 = vpop.permute.xlu0 %2858
      %2860 = vrot.lane.b32.xlu0 %v1201, 36
      %v2861 = vpop.permute.xlu0 %2860
      %2862 = vrot.lane.b32.xlu0 %v1202, 36
      %v2863 = vpop.permute.xlu0 %2862
      %2864 = vrot.lane.b32.xlu0 %v1203, 36
      %v2865 = vpop.permute.xlu0 %2864
      %2866 = vrot.lane.b32.xlu0 %v1204, 36
      %v2867 = vpop.permute.xlu0 %2866
      %2868 = vrot.lane.b32.xlu0 %v1205, 36
      %v2869 = vpop.permute.xlu0 %2868
      %2870 = vrot.lane.b32.xlu0 %v1206, 36
      %v2871 = vpop.permute.xlu0 %2870
      %2872 = vrot.lane.b32.xlu0 %v1207, 36
      %v2873 = vpop.permute.xlu0 %2872
      %2874 = vrot.lane.b32.xlu0 %v1208, 36
      %v2875 = vpop.permute.xlu0 %2874
      %2876 = vrot.lane.b32.xlu0 %v1209, 36
      %v2877 = vpop.permute.xlu0 %2876
      %2942 = vrot.lane.b32.xlu0 %v1210, 40
      %v2943 = vpop.permute.xlu0 %2942
      %2944 = vrot.lane.b32.xlu0 %v1211, 40
      %v2945 = vpop.permute.xlu0 %2944
      %2946 = vrot.lane.b32.xlu0 %v1212, 40
      %v2947 = vpop.permute.xlu0 %2946
      %2948 = vrot.lane.b32.xlu0 %v1213, 40
      %v2949 = vpop.permute.xlu0 %2948
      %2950 = vrot.lane.b32.xlu0 %v1214, 40
      %v2951 = vpop.permute.xlu0 %2950
      %2952 = vrot.lane.b32.xlu0 %v1215, 40
      %v2953 = vpop.permute.xlu0 %2952
      %2954 = vrot.lane.b32.xlu0 %v1216, 40
      %v2955 = vpop.permute.xlu0 %2954
      %2956 = vrot.lane.b32.xlu0 %v1217, 40
      %v2957 = vpop.permute.xlu0 %2956
      %2958 = vrot.lane.b32.xlu0 %v1218, 40
      %v2959 = vpop.permute.xlu0 %2958
      %2960 = vrot.lane.b32.xlu0 %v1219, 40
      %v2961 = vpop.permute.xlu0 %2960
      %2962 = vrot.lane.b32.xlu0 %v1220, 40
      %v2963 = vpop.permute.xlu0 %2962
      %2964 = vrot.lane.b32.xlu0 %v1221, 40
      %v2965 = vpop.permute.xlu0 %2964
      %2966 = vrot.lane.b32.xlu0 %v1222, 40
      %v2967 = vpop.permute.xlu0 %2966
      %2968 = vrot.lane.b32.xlu0 %v1223, 40
      %v2969 = vpop.permute.xlu0 %2968
      %2970 = vrot.lane.b32.xlu0 %v1224, 40
      %v2971 = vpop.permute.xlu0 %2970
      %2972 = vrot.lane.b32.xlu0 %v1225, 40
      %v2973 = vpop.permute.xlu0 %2972
      %2974 = vrot.lane.b32.xlu0 %v1226, 40
      %v2975 = vpop.permute.xlu0 %2974
      %2976 = vrot.lane.b32.xlu0 %v1227, 40
      %v2977 = vpop.permute.xlu0 %2976
      %2978 = vrot.lane.b32.xlu0 %v1228, 40
      %v2979 = vpop.permute.xlu0 %2978
      %2980 = vrot.lane.b32.xlu0 %v1229, 40
      %v2981 = vpop.permute.xlu0 %2980
      %2982 = vrot.lane.b32.xlu0 %v1230, 40
      %v2983 = vpop.permute.xlu0 %2982
      %2984 = vrot.lane.b32.xlu0 %v1231, 40
      %v2985 = vpop.permute.xlu0 %2984
      %2986 = vrot.lane.b32.xlu0 %v1232, 40
      %v2987 = vpop.permute.xlu0 %2986
      %2988 = vrot.lane.b32.xlu0 %v1233, 40
      %v2989 = vpop.permute.xlu0 %2988
      %2990 = vrot.lane.b32.xlu0 %v1234, 40
      %v2991 = vpop.permute.xlu0 %2990
      %2992 = vrot.lane.b32.xlu0 %v1235, 40
      %v2993 = vpop.permute.xlu0 %2992
      %2994 = vrot.lane.b32.xlu0 %v1236, 40
      %v2995 = vpop.permute.xlu0 %2994
      %2996 = vrot.lane.b32.xlu0 %v1237, 40
      %v2997 = vpop.permute.xlu0 %2996
      %2998 = vrot.lane.b32.xlu0 %v1238, 40
      %v2999 = vpop.permute.xlu0 %2998
      %3000 = vrot.lane.b32.xlu0 %v1239, 40
      %v3001 = vpop.permute.xlu0 %3000
      %3002 = vrot.lane.b32.xlu0 %v1240, 40
      %v3003 = vpop.permute.xlu0 %3002
      %3004 = vrot.lane.b32.xlu0 %v1241, 40
      %v3005 = vpop.permute.xlu0 %3004
      %3070 = vrot.lane.b32.xlu0 %v1242, 44
      %v3071 = vpop.permute.xlu0 %3070
      %3072 = vrot.lane.b32.xlu0 %v1243, 44
      %v3073 = vpop.permute.xlu0 %3072
      %3074 = vrot.lane.b32.xlu0 %v1244, 44
      %v3075 = vpop.permute.xlu0 %3074
      %3076 = vrot.lane.b32.xlu0 %v1245, 44
      %v3077 = vpop.permute.xlu0 %3076
      %3078 = vrot.lane.b32.xlu0 %v1246, 44
      %v3079 = vpop.permute.xlu0 %3078
      %3080 = vrot.lane.b32.xlu0 %v1247, 44
      %v3081 = vpop.permute.xlu0 %3080
      %3082 = vrot.lane.b32.xlu0 %v1248, 44
      %v3083 = vpop.permute.xlu0 %3082
      %3084 = vrot.lane.b32.xlu0 %v1249, 44
      %v3085 = vpop.permute.xlu0 %3084
      %3086 = vrot.lane.b32.xlu0 %v1250, 44
      %v3087 = vpop.permute.xlu0 %3086
      %3088 = vrot.lane.b32.xlu0 %v1251, 44
      %v3089 = vpop.permute.xlu0 %3088
      %3090 = vrot.lane.b32.xlu0 %v1252, 44
      %v3091 = vpop.permute.xlu0 %3090
      %3092 = vrot.lane.b32.xlu0 %v1253, 44
      %v3093 = vpop.permute.xlu0 %3092
      %3094 = vrot.lane.b32.xlu0 %v1254, 44
      %v3095 = vpop.permute.xlu0 %3094
      %3096 = vrot.lane.b32.xlu0 %v1255, 44
      %v3097 = vpop.permute.xlu0 %3096
      %3098 = vrot.lane.b32.xlu0 %v1256, 44
      %v3099 = vpop.permute.xlu0 %3098
      %3100 = vrot.lane.b32.xlu0 %v1257, 44
      %v3101 = vpop.permute.xlu0 %3100
      %3102 = vrot.lane.b32.xlu0 %v1258, 44
      %v3103 = vpop.permute.xlu0 %3102
      %3104 = vrot.lane.b32.xlu0 %v1259, 44
      %v3105 = vpop.permute.xlu0 %3104
      %3106 = vrot.lane.b32.xlu0 %v1260, 44
      %v3107 = vpop.permute.xlu0 %3106
      %3108 = vrot.lane.b32.xlu0 %v1261, 44
      %v3109 = vpop.permute.xlu0 %3108
      %3110 = vrot.lane.b32.xlu0 %v1262, 44
      %v3111 = vpop.permute.xlu0 %3110
      %3112 = vrot.lane.b32.xlu0 %v1263, 44
      %v3113 = vpop.permute.xlu0 %3112
      %3114 = vrot.lane.b32.xlu0 %v1264, 44
      %v3115 = vpop.permute.xlu0 %3114
      %3116 = vrot.lane.b32.xlu0 %v1265, 44
      %v3117 = vpop.permute.xlu0 %3116
      %3118 = vrot.lane.b32.xlu0 %v1266, 44
      %v3119 = vpop.permute.xlu0 %3118
      %3120 = vrot.lane.b32.xlu0 %v1267, 44
      %v3121 = vpop.permute.xlu0 %3120
      %3122 = vrot.lane.b32.xlu0 %v1268, 44
      %v3123 = vpop.permute.xlu0 %3122
      %3124 = vrot.lane.b32.xlu0 %v1269, 44
      %v3125 = vpop.permute.xlu0 %3124
      %3126 = vrot.lane.b32.xlu0 %v1270, 44
      %v3127 = vpop.permute.xlu0 %3126
      %3128 = vrot.lane.b32.xlu0 %v1271, 44
      %v3129 = vpop.permute.xlu0 %3128
      %3130 = vrot.lane.b32.xlu0 %v1272, 44
      %v3131 = vpop.permute.xlu0 %3130
      %3132 = vrot.lane.b32.xlu0 %v1273, 44
      %v3133 = vpop.permute.xlu0 %3132
      %3198 = vrot.lane.b32.xlu0 %v1274, 48
      %v3199 = vpop.permute.xlu0 %3198
      %3200 = vrot.lane.b32.xlu0 %v1275, 48
      %v3201 = vpop.permute.xlu0 %3200
      %3202 = vrot.lane.b32.xlu0 %v1276, 48
      %v3203 = vpop.permute.xlu0 %3202
      %3204 = vrot.lane.b32.xlu0 %v1277, 48
      %v3205 = vpop.permute.xlu0 %3204
      %3206 = vrot.lane.b32.xlu0 %v1278, 48
      %v3207 = vpop.permute.xlu0 %3206
      %3208 = vrot.lane.b32.xlu0 %v1279, 48
      %v3209 = vpop.permute.xlu0 %3208
      %3210 = vrot.lane.b32.xlu0 %v1280, 48
      %v3211 = vpop.permute.xlu0 %3210
      %3212 = vrot.lane.b32.xlu0 %v1281, 48
      %v3213 = vpop.permute.xlu0 %3212
      %3214 = vrot.lane.b32.xlu0 %v1282, 48
      %v3215 = vpop.permute.xlu0 %3214
      %3216 = vrot.lane.b32.xlu0 %v1283, 48
      %v3217 = vpop.permute.xlu0 %3216
      %3218 = vrot.lane.b32.xlu0 %v1284, 48
      %v3219 = vpop.permute.xlu0 %3218
      %3220 = vrot.lane.b32.xlu0 %v1285, 48
      %v3221 = vpop.permute.xlu0 %3220
      %3222 = vrot.lane.b32.xlu0 %v1286, 48
      %v3223 = vpop.permute.xlu0 %3222
      %3224 = vrot.lane.b32.xlu0 %v1287, 48
      %v3225 = vpop.permute.xlu0 %3224
      %3226 = vrot.lane.b32.xlu0 %v1288, 48
      %v3227 = vpop.permute.xlu0 %3226
      %3228 = vrot.lane.b32.xlu0 %v1289, 48
      %v3229 = vpop.permute.xlu0 %3228
      %3230 = vrot.lane.b32.xlu0 %v1290, 48
      %v3231 = vpop.permute.xlu0 %3230
      %3232 = vrot.lane.b32.xlu0 %v1291, 48
      %v3233 = vpop.permute.xlu0 %3232
      %3234 = vrot.lane.b32.xlu0 %v1292, 48
      %v3235 = vpop.permute.xlu0 %3234
      %3236 = vrot.lane.b32.xlu0 %v1293, 48
      %v3237 = vpop.permute.xlu0 %3236
      %3238 = vrot.lane.b32.xlu0 %v1294, 48
      %v3239 = vpop.permute.xlu0 %3238
      %3240 = vrot.lane.b32.xlu0 %v1295, 48
      %v3241 = vpop.permute.xlu0 %3240
      %3242 = vrot.lane.b32.xlu0 %v1296, 48
      %v3243 = vpop.permute.xlu0 %3242
      %3244 = vrot.lane.b32.xlu0 %v1297, 48
      %v3245 = vpop.permute.xlu0 %3244
      %3246 = vrot.lane.b32.xlu0 %v1298, 48
      %v3247 = vpop.permute.xlu0 %3246
      %3248 = vrot.lane.b32.xlu0 %v1299, 48
      %v3249 = vpop.permute.xlu0 %3248
      %3250 = vrot.lane.b32.xlu0 %v1300, 48
      %v3251 = vpop.permute.xlu0 %3250
      %3252 = vrot.lane.b32.xlu0 %v1301, 48
      %v3253 = vpop.permute.xlu0 %3252
      %3254 = vrot.lane.b32.xlu0 %v1302, 48
      %v3255 = vpop.permute.xlu0 %3254
      %3256 = vrot.lane.b32.xlu0 %v1303, 48
      %v3257 = vpop.permute.xlu0 %3256
      %3258 = vrot.lane.b32.xlu0 %v1304, 48
      %v3259 = vpop.permute.xlu0 %3258
      %3260 = vrot.lane.b32.xlu0 %v1305, 48
      %v3261 = vpop.permute.xlu0 %3260
      %3326 = vrot.lane.b32.xlu0 %v1306, 52
      %v3327 = vpop.permute.xlu0 %3326
      %3328 = vrot.lane.b32.xlu0 %v1307, 52
      %v3329 = vpop.permute.xlu0 %3328
      %3330 = vrot.lane.b32.xlu0 %v1308, 52
      %v3331 = vpop.permute.xlu0 %3330
      %3332 = vrot.lane.b32.xlu0 %v1309, 52
      %v3333 = vpop.permute.xlu0 %3332
      %3334 = vrot.lane.b32.xlu0 %v1310, 52
      %v3335 = vpop.permute.xlu0 %3334
      %3336 = vrot.lane.b32.xlu0 %v1311, 52
      %v3337 = vpop.permute.xlu0 %3336
      %3338 = vrot.lane.b32.xlu0 %v1312, 52
      %v3339 = vpop.permute.xlu0 %3338
      %3340 = vrot.lane.b32.xlu0 %v1313, 52
      %v3341 = vpop.permute.xlu0 %3340
      %3342 = vrot.lane.b32.xlu0 %v1314, 52
      %v3343 = vpop.permute.xlu0 %3342
      %3344 = vrot.lane.b32.xlu0 %v1315, 52
      %v3345 = vpop.permute.xlu0 %3344
      %3346 = vrot.lane.b32.xlu0 %v1316, 52
      %v3347 = vpop.permute.xlu0 %3346
      %3348 = vrot.lane.b32.xlu0 %v1317, 52
      %v3349 = vpop.permute.xlu0 %3348
      %3350 = vrot.lane.b32.xlu0 %v1318, 52
      %v3351 = vpop.permute.xlu0 %3350
      %3352 = vrot.lane.b32.xlu0 %v1319, 52
      %v3353 = vpop.permute.xlu0 %3352
      %3354 = vrot.lane.b32.xlu0 %v1320, 52
      %v3355 = vpop.permute.xlu0 %3354
      %3356 = vrot.lane.b32.xlu0 %v1321, 52
      %v3357 = vpop.permute.xlu0 %3356
      %3358 = vrot.lane.b32.xlu0 %v1322, 52
      %v3359 = vpop.permute.xlu0 %3358
      %3360 = vrot.lane.b32.xlu0 %v1323, 52
      %v3361 = vpop.permute.xlu0 %3360
      %3362 = vrot.lane.b32.xlu0 %v1324, 52
      %v3363 = vpop.permute.xlu0 %3362
      %3364 = vrot.lane.b32.xlu0 %v1325, 52
      %v3365 = vpop.permute.xlu0 %3364
      %3366 = vrot.lane.b32.xlu0 %v1326, 52
      %v3367 = vpop.permute.xlu0 %3366
      %3368 = vrot.lane.b32.xlu0 %v1327, 52
      %v3369 = vpop.permute.xlu0 %3368
      %3370 = vrot.lane.b32.xlu0 %v1328, 52
      %v3371 = vpop.permute.xlu0 %3370
      %3372 = vrot.lane.b32.xlu0 %v1329, 52
      %v3373 = vpop.permute.xlu0 %3372
      %3374 = vrot.lane.b32.xlu0 %v1330, 52
      %v3375 = vpop.permute.xlu0 %3374
      %3376 = vrot.lane.b32.xlu0 %v1331, 52
      %v3377 = vpop.permute.xlu0 %3376
      %3378 = vrot.lane.b32.xlu0 %v1332, 52
      %v3379 = vpop.permute.xlu0 %3378
      %3380 = vrot.lane.b32.xlu0 %v1333, 52
      %v3381 = vpop.permute.xlu0 %3380
      %3382 = vrot.lane.b32.xlu0 %v1334, 52
      %v3383 = vpop.permute.xlu0 %3382
      %3384 = vrot.lane.b32.xlu0 %v1335, 52
      %v3385 = vpop.permute.xlu0 %3384
      %3386 = vrot.lane.b32.xlu0 %v1336, 52
      %v3387 = vpop.permute.xlu0 %3386
      %3388 = vrot.lane.b32.xlu0 %v1337, 52
      %v3389 = vpop.permute.xlu0 %3388
      %3454 = vrot.lane.b32.xlu0 %v1338, 56
      %v3455 = vpop.permute.xlu0 %3454
      %3456 = vrot.lane.b32.xlu0 %v1339, 56
      %v3457 = vpop.permute.xlu0 %3456
      %3458 = vrot.lane.b32.xlu0 %v1340, 56
      %v3459 = vpop.permute.xlu0 %3458
      %3460 = vrot.lane.b32.xlu0 %v1341, 56
      %v3461 = vpop.permute.xlu0 %3460
      %3462 = vrot.lane.b32.xlu0 %v1342, 56
      %v3463 = vpop.permute.xlu0 %3462
      %3464 = vrot.lane.b32.xlu0 %v1343, 56
      %v3465 = vpop.permute.xlu0 %3464
      %3466 = vrot.lane.b32.xlu0 %v1344, 56
      %v3467 = vpop.permute.xlu0 %3466
      %3468 = vrot.lane.b32.xlu0 %v1345, 56
      %v3469 = vpop.permute.xlu0 %3468
      %3470 = vrot.lane.b32.xlu0 %v1346, 56
      %v3471 = vpop.permute.xlu0 %3470
      %3472 = vrot.lane.b32.xlu0 %v1347, 56
      %v3473 = vpop.permute.xlu0 %3472
      %3474 = vrot.lane.b32.xlu0 %v1348, 56
      %v3475 = vpop.permute.xlu0 %3474
      %3476 = vrot.lane.b32.xlu0 %v1349, 56
      %v3477 = vpop.permute.xlu0 %3476
      %3478 = vrot.lane.b32.xlu0 %v1350, 56
      %v3479 = vpop.permute.xlu0 %3478
      %3480 = vrot.lane.b32.xlu0 %v1351, 56
      %v3481 = vpop.permute.xlu0 %3480
      %3482 = vrot.lane.b32.xlu0 %v1352, 56
      %v3483 = vpop.permute.xlu0 %3482
      %3484 = vrot.lane.b32.xlu0 %v1353, 56
      %v3485 = vpop.permute.xlu0 %3484
      %3486 = vrot.lane.b32.xlu0 %v1354, 56
      %v3487 = vpop.permute.xlu0 %3486
      %3488 = vrot.lane.b32.xlu0 %v1355, 56
      %v3489 = vpop.permute.xlu0 %3488
      %3490 = vrot.lane.b32.xlu0 %v1356, 56
      %v3491 = vpop.permute.xlu0 %3490
      %3492 = vrot.lane.b32.xlu0 %v1357, 56
      %v3493 = vpop.permute.xlu0 %3492
      %3494 = vrot.lane.b32.xlu0 %v1358, 56
      %v3495 = vpop.permute.xlu0 %3494
      %3496 = vrot.lane.b32.xlu0 %v1359, 56
      %v3497 = vpop.permute.xlu0 %3496
      %3498 = vrot.lane.b32.xlu0 %v1360, 56
      %v3499 = vpop.permute.xlu0 %3498
      %3500 = vrot.lane.b32.xlu0 %v1361, 56
      %v3501 = vpop.permute.xlu0 %3500
      %3502 = vrot.lane.b32.xlu0 %v1362, 56
      %v3503 = vpop.permute.xlu0 %3502
      %3504 = vrot.lane.b32.xlu0 %v1363, 56
      %v3505 = vpop.permute.xlu0 %3504
      %3506 = vrot.lane.b32.xlu0 %v1364, 56
      %v3507 = vpop.permute.xlu0 %3506
      %3508 = vrot.lane.b32.xlu0 %v1365, 56
      %v3509 = vpop.permute.xlu0 %3508
      %3510 = vrot.lane.b32.xlu0 %v1366, 56
      %v3511 = vpop.permute.xlu0 %3510
      %3512 = vrot.lane.b32.xlu0 %v1367, 56
      %v3513 = vpop.permute.xlu0 %3512
      %3514 = vrot.lane.b32.xlu0 %v1368, 56
      %v3515 = vpop.permute.xlu0 %3514
      %3516 = vrot.lane.b32.xlu0 %v1369, 56
      %v3517 = vpop.permute.xlu0 %3516
      %3582 = vrot.lane.b32.xlu0 %v1371, 60
      %v3583 = vpop.permute.xlu0 %3582
      %3584 = vrot.lane.b32.xlu0 %v1372, 60
      %v3585 = vpop.permute.xlu0 %3584
      %3586 = vrot.lane.b32.xlu0 %v1373, 60
      %v3587 = vpop.permute.xlu0 %3586
      %3588 = vrot.lane.b32.xlu0 %v1374, 60
      %v3589 = vpop.permute.xlu0 %3588
      %3590 = vrot.lane.b32.xlu0 %v1375, 60
      %v3591 = vpop.permute.xlu0 %3590
      %3592 = vrot.lane.b32.xlu0 %v1376, 60
      %v3593 = vpop.permute.xlu0 %3592
      %3594 = vrot.lane.b32.xlu0 %v1377, 60
      %v3595 = vpop.permute.xlu0 %3594
      %3596 = vrot.lane.b32.xlu0 %v1378, 60
      %v3597 = vpop.permute.xlu0 %3596
      %3598 = vrot.lane.b32.xlu0 %v1379, 60
      %v3599 = vpop.permute.xlu0 %3598
      %3600 = vrot.lane.b32.xlu0 %v1380, 60
      %v3601 = vpop.permute.xlu0 %3600
      %3602 = vrot.lane.b32.xlu0 %v1381, 60
      %v3603 = vpop.permute.xlu0 %3602
      %3604 = vrot.lane.b32.xlu0 %v1382, 60
      %v3605 = vpop.permute.xlu0 %3604
      %3606 = vrot.lane.b32.xlu0 %v1383, 60
      %v3607 = vpop.permute.xlu0 %3606
      %3608 = vrot.lane.b32.xlu0 %v1384, 60
      %v3609 = vpop.permute.xlu0 %3608
      %3610 = vrot.lane.b32.xlu0 %v1385, 60
      %v3611 = vpop.permute.xlu0 %3610
      %3612 = vrot.lane.b32.xlu0 %v1386, 60
      %v3613 = vpop.permute.xlu0 %3612
      %3614 = vrot.lane.b32.xlu0 %v1387, 60
      %v3615 = vpop.permute.xlu0 %3614
      %3616 = vrot.lane.b32.xlu0 %v1388, 60
      %v3617 = vpop.permute.xlu0 %3616
      %3618 = vrot.lane.b32.xlu0 %v1389, 60
      %v3619 = vpop.permute.xlu0 %3618
      %3620 = vrot.lane.b32.xlu0 %v1390, 60
      %v3621 = vpop.permute.xlu0 %3620
      %3622 = vrot.lane.b32.xlu0 %v1391, 60
      %v3623 = vpop.permute.xlu0 %3622
      %3624 = vrot.lane.b32.xlu0 %v1392, 60
      %v3625 = vpop.permute.xlu0 %3624
      %3626 = vrot.lane.b32.xlu0 %v1393, 60
      %v3627 = vpop.permute.xlu0 %3626
      %3628 = vrot.lane.b32.xlu0 %v1394, 60
      %v3629 = vpop.permute.xlu0 %3628
      %3630 = vrot.lane.b32.xlu0 %v1395, 60
      %v3631 = vpop.permute.xlu0 %3630
      %3632 = vrot.lane.b32.xlu0 %v1396, 60
      %v3633 = vpop.permute.xlu0 %3632
      %3634 = vrot.lane.b32.xlu0 %v1397, 60
      %v3635 = vpop.permute.xlu0 %3634
      %3636 = vrot.lane.b32.xlu0 %v1398, 60
      %v3637 = vpop.permute.xlu0 %3636
      %3638 = vrot.lane.b32.xlu0 %v1399, 60
      %v3639 = vpop.permute.xlu0 %3638
      %3640 = vrot.lane.b32.xlu0 %v1400, 60
      %v3641 = vpop.permute.xlu0 %3640
      %3642 = vrot.lane.b32.xlu0 %v1401, 60
      %v3643 = vpop.permute.xlu0 %3642
      %3644 = vrot.lane.b32.xlu0 %v1402, 60
      %v3645 = vpop.permute.xlu0 %3644
      %v3678 = vsel %vm270, %v887, %v1791
      %v3679 = vsel %vm270, %v888, %v1793
      %v3680 = vsel %vm270, %v889, %v1795
      %v3681 = vsel %vm270, %v890, %v1797
      %v3682 = vsel %vm270, %v891, %v1799
      %v3683 = vsel %vm270, %v892, %v1801
      %v3684 = vsel %vm270, %v893, %v1803
      %v3685 = vsel %vm270, %v894, %v1805
      %v3686 = vsel %vm270, %v895, %v1807
      %v3687 = vsel %vm270, %v896, %v1809
      %v3688 = vsel %vm270, %v897, %v1811
      %v3689 = vsel %vm270, %v898, %v1813
      %v3690 = vsel %vm270, %v899, %v1815
      %v3691 = vsel %vm270, %v900, %v1817
      %v3692 = vsel %vm270, %v901, %v1819
      %v3693 = vsel %vm270, %v902, %v1821
      %v3694 = vsel %vm270, %v903, %v1823
      %v3695 = vsel %vm270, %v904, %v1825
      %v3696 = vsel %vm270, %v905, %v1827
      %v3697 = vsel %vm270, %v906, %v1829
      %v3698 = vsel %vm270, %v907, %v1831
      %v3699 = vsel %vm270, %v908, %v1833
      %v3700 = vsel %vm270, %v909, %v1835
      %v3701 = vsel %vm270, %v910, %v1837
      %v3702 = vsel %vm270, %v911, %v1839
      %v3703 = vsel %vm270, %v912, %v1841
      %v3704 = vsel %vm270, %v913, %v1843
      %v3705 = vsel %vm270, %v914, %v1845
      %v3706 = vsel %vm270, %v915, %v1847
      %v3707 = vsel %vm270, %v916, %v1849
      %v3708 = vsel %vm270, %v917, %v1851
      %v3709 = vsel %vm270, %v918, %v1853
      %vm3710 = vcmask 64512
      %v3711 = vsel %vm3710, %v3678, %v1919
      %v3712 = vsel %vm3710, %v3679, %v1921
      %v3713 = vsel %vm3710, %v3680, %v1923
      %v3714 = vsel %vm3710, %v3681, %v1925
      %v3715 = vsel %vm3710, %v3682, %v1927
      %v3716 = vsel %vm3710, %v3683, %v1929
      %v3717 = vsel %vm3710, %v3684, %v1931
      %v3718 = vsel %vm3710, %v3685, %v1933
      %v3719 = vsel %vm3710, %v3686, %v1935
      %v3720 = vsel %vm3710, %v3687, %v1937
      %v3721 = vsel %vm3710, %v3688, %v1939
      %v3722 = vsel %vm3710, %v3689, %v1941
      %v3723 = vsel %vm3710, %v3690, %v1943
      %v3724 = vsel %vm3710, %v3691, %v1945
      %v3725 = vsel %vm3710, %v3692, %v1947
      %v3726 = vsel %vm3710, %v3693, %v1949
      %v3727 = vsel %vm3710, %v3694, %v1951
      %v3728 = vsel %vm3710, %v3695, %v1953
      %v3729 = vsel %vm3710, %v3696, %v1955
      %v3730 = vsel %vm3710, %v3697, %v1957
      %v3731 = vsel %vm3710, %v3698, %v1959
      %v3732 = vsel %vm3710, %v3699, %v1961
      %v3733 = vsel %vm3710, %v3700, %v1963
      %v3734 = vsel %vm3710, %v3701, %v1965
      %v3735 = vsel %vm3710, %v3702, %v1967
      %v3736 = vsel %vm3710, %v3703, %v1969
      %v3737 = vsel %vm3710, %v3704, %v1971
      %v3738 = vsel %vm3710, %v3705, %v1973
      %v3739 = vsel %vm3710, %v3706, %v1975
      %v3740 = vsel %vm3710, %v3707, %v1977
      %v3741 = vsel %vm3710, %v3708, %v1979
      %v3742 = vsel %vm3710, %v3709, %v1981
      %vm3743 = vcmask 97280
      %v3744 = vsel %vm3743, %v3711, %v2047
      %v3745 = vsel %vm3743, %v3712, %v2049
      %v3746 = vsel %vm3743, %v3713, %v2051
      %v3747 = vsel %vm3743, %v3714, %v2053
      %v3748 = vsel %vm3743, %v3715, %v2055
      %v3749 = vsel %vm3743, %v3716, %v2057
      %v3750 = vsel %vm3743, %v3717, %v2059
      %v3751 = vsel %vm3743, %v3718, %v2061
      %v3752 = vsel %vm3743, %v3719, %v2063
      %v3753 = vsel %vm3743, %v3720, %v2065
      %v3754 = vsel %vm3743, %v3721, %v2067
      %v3755 = vsel %vm3743, %v3722, %v2069
      %v3756 = vsel %vm3743, %v3723, %v2071
      %v3757 = vsel %vm3743, %v3724, %v2073
      %v3758 = vsel %vm3743, %v3725, %v2075
      %v3759 = vsel %vm3743, %v3726, %v2077
      %v3760 = vsel %vm3743, %v3727, %v2079
      %v3761 = vsel %vm3743, %v3728, %v2081
      %v3762 = vsel %vm3743, %v3729, %v2083
      %v3763 = vsel %vm3743, %v3730, %v2085
      %v3764 = vsel %vm3743, %v3731, %v2087
      %v3765 = vsel %vm3743, %v3732, %v2089
      %v3766 = vsel %vm3743, %v3733, %v2091
      %v3767 = vsel %vm3743, %v3734, %v2093
      %v3768 = vsel %vm3743, %v3735, %v2095
      %v3769 = vsel %vm3743, %v3736, %v2097
      %v3770 = vsel %vm3743, %v3737, %v2099
      %v3771 = vsel %vm3743, %v3738, %v2101
      %v3772 = vsel %vm3743, %v3739, %v2103
      %v3773 = vsel %vm3743, %v3740, %v2105
      %v3774 = vsel %vm3743, %v3741, %v2107
      %v3775 = vsel %vm3743, %v3742, %v2109
      %vm3776 = vcmask 130048
      %v3777 = vsel %vm3776, %v3744, %v2175
      %v3778 = vsel %vm3776, %v3745, %v2177
      %v3779 = vsel %vm3776, %v3746, %v2179
      %v3780 = vsel %vm3776, %v3747, %v2181
      %v3781 = vsel %vm3776, %v3748, %v2183
      %v3782 = vsel %vm3776, %v3749, %v2185
      %v3783 = vsel %vm3776, %v3750, %v2187
      %v3784 = vsel %vm3776, %v3751, %v2189
      %v3785 = vsel %vm3776, %v3752, %v2191
      %v3786 = vsel %vm3776, %v3753, %v2193
      %v3787 = vsel %vm3776, %v3754, %v2195
      %v3788 = vsel %vm3776, %v3755, %v2197
      %v3789 = vsel %vm3776, %v3756, %v2199
      %v3790 = vsel %vm3776, %v3757, %v2201
      %v3791 = vsel %vm3776, %v3758, %v2203
      %v3792 = vsel %vm3776, %v3759, %v2205
      %v3793 = vsel %vm3776, %v3760, %v2207
      %v3794 = vsel %vm3776, %v3761, %v2209
      %v3795 = vsel %vm3776, %v3762, %v2211
      %v3796 = vsel %vm3776, %v3763, %v2213
      %v3797 = vsel %vm3776, %v3764, %v2215
      %v3798 = vsel %vm3776, %v3765, %v2217
      %v3799 = vsel %vm3776, %v3766, %v2219
      %v3800 = vsel %vm3776, %v3767, %v2221
      %v3801 = vsel %vm3776, %v3768, %v2223
      %v3802 = vsel %vm3776, %v3769, %v2225
      %v3803 = vsel %vm3776, %v3770, %v2227
      %v3804 = vsel %vm3776, %v3771, %v2229
      %v3805 = vsel %vm3776, %v3772, %v2231
      %v3806 = vsel %vm3776, %v3773, %v2233
      %v3807 = vsel %vm3776, %v3774, %v2235
      %v3808 = vsel %vm3776, %v3775, %v2237
      %vm3809 = vcmask 162816
      %v3810 = vsel %vm3809, %v3777, %v2303
      %v3811 = vsel %vm3809, %v3778, %v2305
      %v3812 = vsel %vm3809, %v3779, %v2307
      %v3813 = vsel %vm3809, %v3780, %v2309
      %v3814 = vsel %vm3809, %v3781, %v2311
      %v3815 = vsel %vm3809, %v3782, %v2313
      %v3816 = vsel %vm3809, %v3783, %v2315
      %v3817 = vsel %vm3809, %v3784, %v2317
      %v3818 = vsel %vm3809, %v3785, %v2319
      %v3819 = vsel %vm3809, %v3786, %v2321
      %v3820 = vsel %vm3809, %v3787, %v2323
      %v3821 = vsel %vm3809, %v3788, %v2325
      %v3822 = vsel %vm3809, %v3789, %v2327
      %v3823 = vsel %vm3809, %v3790, %v2329
      %v3824 = vsel %vm3809, %v3791, %v2331
      %v3825 = vsel %vm3809, %v3792, %v2333
      %v3826 = vsel %vm3809, %v3793, %v2335
      %v3827 = vsel %vm3809, %v3794, %v2337
      %v3828 = vsel %vm3809, %v3795, %v2339
      %v3829 = vsel %vm3809, %v3796, %v2341
      %v3830 = vsel %vm3809, %v3797, %v2343
      %v3831 = vsel %vm3809, %v3798, %v2345
      %v3832 = vsel %vm3809, %v3799, %v2347
      %v3833 = vsel %vm3809, %v3800, %v2349
      %v3834 = vsel %vm3809, %v3801, %v2351
      %v3835 = vsel %vm3809, %v3802, %v2353
      %v3836 = vsel %vm3809, %v3803, %v2355
      %v3837 = vsel %vm3809, %v3804, %v2357
      %v3838 = vsel %vm3809, %v3805, %v2359
      %v3839 = vsel %vm3809, %v3806, %v2361
      %v3840 = vsel %vm3809, %v3807, %v2363
      %v3841 = vsel %vm3809, %v3808, %v2365
      %vm3842 = vcmask 195584
      %v3843 = vsel %vm3842, %v3810, %v2431
      %v3844 = vsel %vm3842, %v3811, %v2433
      %v3845 = vsel %vm3842, %v3812, %v2435
      %v3846 = vsel %vm3842, %v3813, %v2437
      %v3847 = vsel %vm3842, %v3814, %v2439
      %v3848 = vsel %vm3842, %v3815, %v2441
      %v3849 = vsel %vm3842, %v3816, %v2443
      %v3850 = vsel %vm3842, %v3817, %v2445
      %v3851 = vsel %vm3842, %v3818, %v2447
      %v3852 = vsel %vm3842, %v3819, %v2449
      %v3853 = vsel %vm3842, %v3820, %v2451
      %v3854 = vsel %vm3842, %v3821, %v2453
      %v3855 = vsel %vm3842, %v3822, %v2455
      %v3856 = vsel %vm3842, %v3823, %v2457
      %v3857 = vsel %vm3842, %v3824, %v2459
      %v3858 = vsel %vm3842, %v3825, %v2461
      %v3859 = vsel %vm3842, %v3826, %v2463
      %v3860 = vsel %vm3842, %v3827, %v2465
      %v3861 = vsel %vm3842, %v3828, %v2467
      %v3862 = vsel %vm3842, %v3829, %v2469
      %v3863 = vsel %vm3842, %v3830, %v2471
      %v3864 = vsel %vm3842, %v3831, %v2473
      %v3865 = vsel %vm3842, %v3832, %v2475
      %v3866 = vsel %vm3842, %v3833, %v2477
      %v3867 = vsel %vm3842, %v3834, %v2479
      %v3868 = vsel %vm3842, %v3835, %v2481
      %v3869 = vsel %vm3842, %v3836, %v2483
      %v3870 = vsel %vm3842, %v3837, %v2485
      %v3871 = vsel %vm3842, %v3838, %v2487
      %v3872 = vsel %vm3842, %v3839, %v2489
      %v3873 = vsel %vm3842, %v3840, %v2491
      %v3874 = vsel %vm3842, %v3841, %v2493
      %vm3875 = vcmask 228352
      %v3876 = vsel %vm3875, %v3843, %v2559
      %v3877 = vsel %vm3875, %v3844, %v2561
      %v3878 = vsel %vm3875, %v3845, %v2563
      %v3879 = vsel %vm3875, %v3846, %v2565
      %v3880 = vsel %vm3875, %v3847, %v2567
      %v3881 = vsel %vm3875, %v3848, %v2569
      %v3882 = vsel %vm3875, %v3849, %v2571
      %v3883 = vsel %vm3875, %v3850, %v2573
      %v3884 = vsel %vm3875, %v3851, %v2575
      %v3885 = vsel %vm3875, %v3852, %v2577
      %v3886 = vsel %vm3875, %v3853, %v2579
      %v3887 = vsel %vm3875, %v3854, %v2581
      %v3888 = vsel %vm3875, %v3855, %v2583
      %v3889 = vsel %vm3875, %v3856, %v2585
      %v3890 = vsel %vm3875, %v3857, %v2587
      %v3891 = vsel %vm3875, %v3858, %v2589
      %v3892 = vsel %vm3875, %v3859, %v2591
      %v3893 = vsel %vm3875, %v3860, %v2593
      %v3894 = vsel %vm3875, %v3861, %v2595
      %v3895 = vsel %vm3875, %v3862, %v2597
      %v3896 = vsel %vm3875, %v3863, %v2599
      %v3897 = vsel %vm3875, %v3864, %v2601
      %v3898 = vsel %vm3875, %v3865, %v2603
      %v3899 = vsel %vm3875, %v3866, %v2605
      %v3900 = vsel %vm3875, %v3867, %v2607
      %v3901 = vsel %vm3875, %v3868, %v2609
      %v3902 = vsel %vm3875, %v3869, %v2611
      %v3903 = vsel %vm3875, %v3870, %v2613
      %v3904 = vsel %vm3875, %v3871, %v2615
      %v3905 = vsel %vm3875, %v3872, %v2617
      %v3906 = vsel %vm3875, %v3873, %v2619
      %v3907 = vsel %vm3875, %v3874, %v2621
      %vm3908 = vcmask 261120
      %v3909 = vsel %vm3908, %v3876, %v2687
      %v3910 = vsel %vm3908, %v3877, %v2689
      %v3911 = vsel %vm3908, %v3878, %v2691
      %v3912 = vsel %vm3908, %v3879, %v2693
      %v3913 = vsel %vm3908, %v3880, %v2695
      %v3914 = vsel %vm3908, %v3881, %v2697
      %v3915 = vsel %vm3908, %v3882, %v2699
      %v3916 = vsel %vm3908, %v3883, %v2701
      %v3917 = vsel %vm3908, %v3884, %v2703
      %v3918 = vsel %vm3908, %v3885, %v2705
      %v3919 = vsel %vm3908, %v3886, %v2707
      %v3920 = vsel %vm3908, %v3887, %v2709
      %v3921 = vsel %vm3908, %v3888, %v2711
      %v3922 = vsel %vm3908, %v3889, %v2713
      %v3923 = vsel %vm3908, %v3890, %v2715
      %v3924 = vsel %vm3908, %v3891, %v2717
      %v3925 = vsel %vm3908, %v3892, %v2719
      %v3926 = vsel %vm3908, %v3893, %v2721
      %v3927 = vsel %vm3908, %v3894, %v2723
      %v3928 = vsel %vm3908, %v3895, %v2725
      %v3929 = vsel %vm3908, %v3896, %v2727
      %v3930 = vsel %vm3908, %v3897, %v2729
      %v3931 = vsel %vm3908, %v3898, %v2731
      %v3932 = vsel %vm3908, %v3899, %v2733
      %v3933 = vsel %vm3908, %v3900, %v2735
      %v3934 = vsel %vm3908, %v3901, %v2737
      %v3935 = vsel %vm3908, %v3902, %v2739
      %v3936 = vsel %vm3908, %v3903, %v2741
      %v3937 = vsel %vm3908, %v3904, %v2743
      %v3938 = vsel %vm3908, %v3905, %v2745
      %v3939 = vsel %vm3908, %v3906, %v2747
      %v3940 = vsel %vm3908, %v3907, %v2749
      %vm3941 = vcmask 293888
      %v3942 = vsel %vm3941, %v3909, %v2815
      %v3943 = vsel %vm3941, %v3910, %v2817
      %v3944 = vsel %vm3941, %v3911, %v2819
      %v3945 = vsel %vm3941, %v3912, %v2821
      %v3946 = vsel %vm3941, %v3913, %v2823
      %v3947 = vsel %vm3941, %v3914, %v2825
      %v3948 = vsel %vm3941, %v3915, %v2827
      %v3949 = vsel %vm3941, %v3916, %v2829
      %v3950 = vsel %vm3941, %v3917, %v2831
      %v3951 = vsel %vm3941, %v3918, %v2833
      %v3952 = vsel %vm3941, %v3919, %v2835
      %v3953 = vsel %vm3941, %v3920, %v2837
      %v3954 = vsel %vm3941, %v3921, %v2839
      %v3955 = vsel %vm3941, %v3922, %v2841
      %v3956 = vsel %vm3941, %v3923, %v2843
      %v3957 = vsel %vm3941, %v3924, %v2845
      %v3958 = vsel %vm3941, %v3925, %v2847
      %v3959 = vsel %vm3941, %v3926, %v2849
      %v3960 = vsel %vm3941, %v3927, %v2851
      %v3961 = vsel %vm3941, %v3928, %v2853
      %v3962 = vsel %vm3941, %v3929, %v2855
      %v3963 = vsel %vm3941, %v3930, %v2857
      %v3964 = vsel %vm3941, %v3931, %v2859
      %v3965 = vsel %vm3941, %v3932, %v2861
      %v3966 = vsel %vm3941, %v3933, %v2863
      %v3967 = vsel %vm3941, %v3934, %v2865
      %v3968 = vsel %vm3941, %v3935, %v2867
      %v3969 = vsel %vm3941, %v3936, %v2869
      %v3970 = vsel %vm3941, %v3937, %v2871
      %v3971 = vsel %vm3941, %v3938, %v2873
      %v3972 = vsel %vm3941, %v3939, %v2875
      %v3973 = vsel %vm3941, %v3940, %v2877
      %vm3974 = vcmask 326656
      %v3975 = vsel %vm3974, %v3942, %v2943
      %v3976 = vsel %vm3974, %v3943, %v2945
      %v3977 = vsel %vm3974, %v3944, %v2947
      %v3978 = vsel %vm3974, %v3945, %v2949
      %v3979 = vsel %vm3974, %v3946, %v2951
      %v3980 = vsel %vm3974, %v3947, %v2953
      %v3981 = vsel %vm3974, %v3948, %v2955
      %v3982 = vsel %vm3974, %v3949, %v2957
      %v3983 = vsel %vm3974, %v3950, %v2959
      %v3984 = vsel %vm3974, %v3951, %v2961
      %v3985 = vsel %vm3974, %v3952, %v2963
      %v3986 = vsel %vm3974, %v3953, %v2965
      %v3987 = vsel %vm3974, %v3954, %v2967
      %v3988 = vsel %vm3974, %v3955, %v2969
      %v3989 = vsel %vm3974, %v3956, %v2971
      %v3990 = vsel %vm3974, %v3957, %v2973
      %v3991 = vsel %vm3974, %v3958, %v2975
      %v3992 = vsel %vm3974, %v3959, %v2977
      %v3993 = vsel %vm3974, %v3960, %v2979
      %v3994 = vsel %vm3974, %v3961, %v2981
      %v3995 = vsel %vm3974, %v3962, %v2983
      %v3996 = vsel %vm3974, %v3963, %v2985
      %v3997 = vsel %vm3974, %v3964, %v2987
      %v3998 = vsel %vm3974, %v3965, %v2989
      %v3999 = vsel %vm3974, %v3966, %v2991
      %v4000 = vsel %vm3974, %v3967, %v2993
      %v4001 = vsel %vm3974, %v3968, %v2995
      %v4002 = vsel %vm3974, %v3969, %v2997
      %v4003 = vsel %vm3974, %v3970, %v2999
      %v4004 = vsel %vm3974, %v3971, %v3001
      %v4005 = vsel %vm3974, %v3972, %v3003
      %v4006 = vsel %vm3974, %v3973, %v3005
      %vm4007 = vcmask 359424
      %v4008 = vsel %vm4007, %v3975, %v3071
      %v4009 = vsel %vm4007, %v3976, %v3073
      %v4010 = vsel %vm4007, %v3977, %v3075
      %v4011 = vsel %vm4007, %v3978, %v3077
      %v4012 = vsel %vm4007, %v3979, %v3079
      %v4013 = vsel %vm4007, %v3980, %v3081
      %v4014 = vsel %vm4007, %v3981, %v3083
      %v4015 = vsel %vm4007, %v3982, %v3085
      %v4016 = vsel %vm4007, %v3983, %v3087
      %v4017 = vsel %vm4007, %v3984, %v3089
      %v4018 = vsel %vm4007, %v3985, %v3091
      %v4019 = vsel %vm4007, %v3986, %v3093
      %v4020 = vsel %vm4007, %v3987, %v3095
      %v4021 = vsel %vm4007, %v3988, %v3097
      %v4022 = vsel %vm4007, %v3989, %v3099
      %v4023 = vsel %vm4007, %v3990, %v3101
      %v4024 = vsel %vm4007, %v3991, %v3103
      %v4025 = vsel %vm4007, %v3992, %v3105
      %v4026 = vsel %vm4007, %v3993, %v3107
      %v4027 = vsel %vm4007, %v3994, %v3109
      %v4028 = vsel %vm4007, %v3995, %v3111
      %v4029 = vsel %vm4007, %v3996, %v3113
      %v4030 = vsel %vm4007, %v3997, %v3115
      %v4031 = vsel %vm4007, %v3998, %v3117
      %v4032 = vsel %vm4007, %v3999, %v3119
      %v4033 = vsel %vm4007, %v4000, %v3121
      %v4034 = vsel %vm4007, %v4001, %v3123
      %v4035 = vsel %vm4007, %v4002, %v3125
      %v4036 = vsel %vm4007, %v4003, %v3127
      %v4037 = vsel %vm4007, %v4004, %v3129
      %v4038 = vsel %vm4007, %v4005, %v3131
      %v4039 = vsel %vm4007, %v4006, %v3133
      %vm4040 = vcmask 392192
      %v4041 = vsel %vm4040, %v4008, %v3199
      %v4042 = vsel %vm4040, %v4009, %v3201
      %v4043 = vsel %vm4040, %v4010, %v3203
      %v4044 = vsel %vm4040, %v4011, %v3205
      %v4045 = vsel %vm4040, %v4012, %v3207
      %v4046 = vsel %vm4040, %v4013, %v3209
      %v4047 = vsel %vm4040, %v4014, %v3211
      %v4048 = vsel %vm4040, %v4015, %v3213
      %v4049 = vsel %vm4040, %v4016, %v3215
      %v4050 = vsel %vm4040, %v4017, %v3217
      %v4051 = vsel %vm4040, %v4018, %v3219
      %v4052 = vsel %vm4040, %v4019, %v3221
      %v4053 = vsel %vm4040, %v4020, %v3223
      %v4054 = vsel %vm4040, %v4021, %v3225
      %v4055 = vsel %vm4040, %v4022, %v3227
      %v4056 = vsel %vm4040, %v4023, %v3229
      %v4057 = vsel %vm4040, %v4024, %v3231
      %v4058 = vsel %vm4040, %v4025, %v3233
      %v4059 = vsel %vm4040, %v4026, %v3235
      %v4060 = vsel %vm4040, %v4027, %v3237
      %v4061 = vsel %vm4040, %v4028, %v3239
      %v4062 = vsel %vm4040, %v4029, %v3241
      %v4063 = vsel %vm4040, %v4030, %v3243
      %v4064 = vsel %vm4040, %v4031, %v3245
      %v4065 = vsel %vm4040, %v4032, %v3247
      %v4066 = vsel %vm4040, %v4033, %v3249
      %v4067 = vsel %vm4040, %v4034, %v3251
      %v4068 = vsel %vm4040, %v4035, %v3253
      %v4069 = vsel %vm4040, %v4036, %v3255
      %v4070 = vsel %vm4040, %v4037, %v3257
      %v4071 = vsel %vm4040, %v4038, %v3259
      %v4072 = vsel %vm4040, %v4039, %v3261
      %vm4073 = vcmask 424960
      %v4074 = vsel %vm4073, %v4041, %v3327
      %v4075 = vsel %vm4073, %v4042, %v3329
      %v4076 = vsel %vm4073, %v4043, %v3331
      %v4077 = vsel %vm4073, %v4044, %v3333
      %v4078 = vsel %vm4073, %v4045, %v3335
      %v4079 = vsel %vm4073, %v4046, %v3337
      %v4080 = vsel %vm4073, %v4047, %v3339
      %v4081 = vsel %vm4073, %v4048, %v3341
      %v4082 = vsel %vm4073, %v4049, %v3343
      %v4083 = vsel %vm4073, %v4050, %v3345
      %v4084 = vsel %vm4073, %v4051, %v3347
      %v4085 = vsel %vm4073, %v4052, %v3349
      %v4086 = vsel %vm4073, %v4053, %v3351
      %v4087 = vsel %vm4073, %v4054, %v3353
      %v4088 = vsel %vm4073, %v4055, %v3355
      %v4089 = vsel %vm4073, %v4056, %v3357
      %v4090 = vsel %vm4073, %v4057, %v3359
      %v4091 = vsel %vm4073, %v4058, %v3361
      %v4092 = vsel %vm4073, %v4059, %v3363
      %v4093 = vsel %vm4073, %v4060, %v3365
      %v4094 = vsel %vm4073, %v4061, %v3367
      %v4095 = vsel %vm4073, %v4062, %v3369
      %v4096 = vsel %vm4073, %v4063, %v3371
      %v4097 = vsel %vm4073, %v4064, %v3373
      %v4098 = vsel %vm4073, %v4065, %v3375
      %v4099 = vsel %vm4073, %v4066, %v3377
      %v4100 = vsel %vm4073, %v4067, %v3379
      %v4101 = vsel %vm4073, %v4068, %v3381
      %v4102 = vsel %vm4073, %v4069, %v3383
      %v4103 = vsel %vm4073, %v4070, %v3385
      %v4104 = vsel %vm4073, %v4071, %v3387
      %v4105 = vsel %vm4073, %v4072, %v3389
      %vm4106 = vcmask 457728
      %v4107 = vsel %vm4106, %v4074, %v3455
      %v4108 = vsel %vm4106, %v4075, %v3457
      %v4109 = vsel %vm4106, %v4076, %v3459
      %v4110 = vsel %vm4106, %v4077, %v3461
      %v4111 = vsel %vm4106, %v4078, %v3463
      %v4112 = vsel %vm4106, %v4079, %v3465
      %v4113 = vsel %vm4106, %v4080, %v3467
      %v4114 = vsel %vm4106, %v4081, %v3469
      %v4115 = vsel %vm4106, %v4082, %v3471
      %v4116 = vsel %vm4106, %v4083, %v3473
      %v4117 = vsel %vm4106, %v4084, %v3475
      %v4118 = vsel %vm4106, %v4085, %v3477
      %v4119 = vsel %vm4106, %v4086, %v3479
      %v4120 = vsel %vm4106, %v4087, %v3481
      %v4121 = vsel %vm4106, %v4088, %v3483
      %v4122 = vsel %vm4106, %v4089, %v3485
      %v4123 = vsel %vm4106, %v4090, %v3487
      %v4124 = vsel %vm4106, %v4091, %v3489
      %v4125 = vsel %vm4106, %v4092, %v3491
      %v4126 = vsel %vm4106, %v4093, %v3493
      %v4127 = vsel %vm4106, %v4094, %v3495
      %v4128 = vsel %vm4106, %v4095, %v3497
      %v4129 = vsel %vm4106, %v4096, %v3499
      %v4130 = vsel %vm4106, %v4097, %v3501
      %v4131 = vsel %vm4106, %v4098, %v3503
      %v4132 = vsel %vm4106, %v4099, %v3505
      %v4133 = vsel %vm4106, %v4100, %v3507
      %v4134 = vsel %vm4106, %v4101, %v3509
      %v4135 = vsel %vm4106, %v4102, %v3511
      %v4136 = vsel %vm4106, %v4103, %v3513
      %v4137 = vsel %vm4106, %v4104, %v3515
      %v4138 = vsel %vm4106, %v4105, %v3517
      %vm4139 = vcmask 490496
      %v4140 = vsel %vm4139, %v4107, %v3583
      %v4141 = vsel %vm4139, %v4108, %v3585
      %v4142 = vsel %vm4139, %v4109, %v3587
      %v4143 = vsel %vm4139, %v4110, %v3589
      %v4144 = vsel %vm4139, %v4111, %v3591
      %v4145 = vsel %vm4139, %v4112, %v3593
      %v4146 = vsel %vm4139, %v4113, %v3595
      %v4147 = vsel %vm4139, %v4114, %v3597
      %v4148 = vsel %vm4139, %v4115, %v3599
      %v4149 = vsel %vm4139, %v4116, %v3601
      %v4150 = vsel %vm4139, %v4117, %v3603
      %v4151 = vsel %vm4139, %v4118, %v3605
      %v4152 = vsel %vm4139, %v4119, %v3607
      %v4153 = vsel %vm4139, %v4120, %v3609
      %v4154 = vsel %vm4139, %v4121, %v3611
      %v4155 = vsel %vm4139, %v4122, %v3613
      %v4156 = vsel %vm4139, %v4123, %v3615
      %v4157 = vsel %vm4139, %v4124, %v3617
      %v4158 = vsel %vm4139, %v4125, %v3619
      %v4159 = vsel %vm4139, %v4126, %v3621
      %v4160 = vsel %vm4139, %v4127, %v3623
      %v4161 = vsel %vm4139, %v4128, %v3625
      %v4162 = vsel %vm4139, %v4129, %v3627
      %v4163 = vsel %vm4139, %v4130, %v3629
      %v4164 = vsel %vm4139, %v4131, %v3631
      %v4165 = vsel %vm4139, %v4132, %v3633
      %v4166 = vsel %vm4139, %v4133, %v3635
      %v4167 = vsel %vm4139, %v4134, %v3637
      %v4168 = vsel %vm4139, %v4135, %v3639
      %v4169 = vsel %vm4139, %v4136, %v3641
      %v4170 = vsel %vm4139, %v4137, %v3643
      %v4171 = vsel %vm4139, %v4138, %v3645
      %4204 = vrot.lane.b32.xlu0 %v1435, 4
      %v4205 = vpop.permute.xlu0 %4204
      %4206 = vrot.lane.b32.xlu0 %v1436, 4
      %v4207 = vpop.permute.xlu0 %4206
      %4208 = vrot.lane.b32.xlu0 %v1437, 4
      %v4209 = vpop.permute.xlu0 %4208
      %4210 = vrot.lane.b32.xlu0 %v1438, 4
      %v4211 = vpop.permute.xlu0 %4210
      %4212 = vrot.lane.b32.xlu0 %v1439, 4
      %v4213 = vpop.permute.xlu0 %4212
      %4214 = vrot.lane.b32.xlu0 %v1440, 4
      %v4215 = vpop.permute.xlu0 %4214
      %4216 = vrot.lane.b32.xlu0 %v1441, 4
      %v4217 = vpop.permute.xlu0 %4216
      %4218 = vrot.lane.b32.xlu0 %v1442, 4
      %v4219 = vpop.permute.xlu0 %4218
      %4220 = vrot.lane.b32.xlu0 %v1443, 4
      %v4221 = vpop.permute.xlu0 %4220
      %4222 = vrot.lane.b32.xlu0 %v1444, 4
      %v4223 = vpop.permute.xlu0 %4222
      %4224 = vrot.lane.b32.xlu0 %v1445, 4
      %v4225 = vpop.permute.xlu0 %4224
      %4226 = vrot.lane.b32.xlu0 %v1446, 4
      %v4227 = vpop.permute.xlu0 %4226
      %4228 = vrot.lane.b32.xlu0 %v1447, 4
      %v4229 = vpop.permute.xlu0 %4228
      %4230 = vrot.lane.b32.xlu0 %v1448, 4
      %v4231 = vpop.permute.xlu0 %4230
      %4232 = vrot.lane.b32.xlu0 %v1449, 4
      %v4233 = vpop.permute.xlu0 %4232
      %4234 = vrot.lane.b32.xlu0 %v1450, 4
      %v4235 = vpop.permute.xlu0 %4234
      %4236 = vrot.lane.b32.xlu0 %v1451, 4
      %v4237 = vpop.permute.xlu0 %4236
      %4238 = vrot.lane.b32.xlu0 %v1452, 4
      %v4239 = vpop.permute.xlu0 %4238
      %4240 = vrot.lane.b32.xlu0 %v1453, 4
      %v4241 = vpop.permute.xlu0 %4240
      %4242 = vrot.lane.b32.xlu0 %v1454, 4
      %v4243 = vpop.permute.xlu0 %4242
      %4244 = vrot.lane.b32.xlu0 %v1455, 4
      %v4245 = vpop.permute.xlu0 %4244
      %4246 = vrot.lane.b32.xlu0 %v1456, 4
      %v4247 = vpop.permute.xlu0 %4246
      %4248 = vrot.lane.b32.xlu0 %v1457, 4
      %v4249 = vpop.permute.xlu0 %4248
      %4250 = vrot.lane.b32.xlu0 %v1458, 4
      %v4251 = vpop.permute.xlu0 %4250
      %4252 = vrot.lane.b32.xlu0 %v1459, 4
      %v4253 = vpop.permute.xlu0 %4252
      %4254 = vrot.lane.b32.xlu0 %v1460, 4
      %v4255 = vpop.permute.xlu0 %4254
      %4256 = vrot.lane.b32.xlu0 %v1461, 4
      %v4257 = vpop.permute.xlu0 %4256
      %4258 = vrot.lane.b32.xlu0 %v1462, 4
      %v4259 = vpop.permute.xlu0 %4258
      %4260 = vrot.lane.b32.xlu0 %v1463, 4
      %v4261 = vpop.permute.xlu0 %4260
      %4262 = vrot.lane.b32.xlu0 %v1464, 4
      %v4263 = vpop.permute.xlu0 %4262
      %4264 = vrot.lane.b32.xlu0 %v1465, 4
      %v4265 = vpop.permute.xlu0 %4264
      %4266 = vrot.lane.b32.xlu0 %v1466, 4
      %v4267 = vpop.permute.xlu0 %4266
      %4332 = vrot.lane.b32.xlu0 %v1468, 8
      %v4333 = vpop.permute.xlu0 %4332
      %4334 = vrot.lane.b32.xlu0 %v1469, 8
      %v4335 = vpop.permute.xlu0 %4334
      %4336 = vrot.lane.b32.xlu0 %v1470, 8
      %v4337 = vpop.permute.xlu0 %4336
      %4338 = vrot.lane.b32.xlu0 %v1471, 8
      %v4339 = vpop.permute.xlu0 %4338
      %4340 = vrot.lane.b32.xlu0 %v1472, 8
      %v4341 = vpop.permute.xlu0 %4340
      %4342 = vrot.lane.b32.xlu0 %v1473, 8
      %v4343 = vpop.permute.xlu0 %4342
      %4344 = vrot.lane.b32.xlu0 %v1474, 8
      %v4345 = vpop.permute.xlu0 %4344
      %4346 = vrot.lane.b32.xlu0 %v1475, 8
      %v4347 = vpop.permute.xlu0 %4346
      %4348 = vrot.lane.b32.xlu0 %v1476, 8
      %v4349 = vpop.permute.xlu0 %4348
      %4350 = vrot.lane.b32.xlu0 %v1477, 8
      %v4351 = vpop.permute.xlu0 %4350
      %4352 = vrot.lane.b32.xlu0 %v1478, 8
      %v4353 = vpop.permute.xlu0 %4352
      %4354 = vrot.lane.b32.xlu0 %v1479, 8
      %v4355 = vpop.permute.xlu0 %4354
      %4356 = vrot.lane.b32.xlu0 %v1480, 8
      %v4357 = vpop.permute.xlu0 %4356
      %4358 = vrot.lane.b32.xlu0 %v1481, 8
      %v4359 = vpop.permute.xlu0 %4358
      %4360 = vrot.lane.b32.xlu0 %v1482, 8
      %v4361 = vpop.permute.xlu0 %4360
      %4362 = vrot.lane.b32.xlu0 %v1483, 8
      %v4363 = vpop.permute.xlu0 %4362
      %4364 = vrot.lane.b32.xlu0 %v1484, 8
      %v4365 = vpop.permute.xlu0 %4364
      %4366 = vrot.lane.b32.xlu0 %v1485, 8
      %v4367 = vpop.permute.xlu0 %4366
      %4368 = vrot.lane.b32.xlu0 %v1486, 8
      %v4369 = vpop.permute.xlu0 %4368
      %4370 = vrot.lane.b32.xlu0 %v1487, 8
      %v4371 = vpop.permute.xlu0 %4370
      %4372 = vrot.lane.b32.xlu0 %v1488, 8
      %v4373 = vpop.permute.xlu0 %4372
      %4374 = vrot.lane.b32.xlu0 %v1489, 8
      %v4375 = vpop.permute.xlu0 %4374
      %4376 = vrot.lane.b32.xlu0 %v1490, 8
      %v4377 = vpop.permute.xlu0 %4376
      %4378 = vrot.lane.b32.xlu0 %v1491, 8
      %v4379 = vpop.permute.xlu0 %4378
      %4380 = vrot.lane.b32.xlu0 %v1492, 8
      %v4381 = vpop.permute.xlu0 %4380
      %4382 = vrot.lane.b32.xlu0 %v1493, 8
      %v4383 = vpop.permute.xlu0 %4382
      %4384 = vrot.lane.b32.xlu0 %v1494, 8
      %v4385 = vpop.permute.xlu0 %4384
      %4386 = vrot.lane.b32.xlu0 %v1495, 8
      %v4387 = vpop.permute.xlu0 %4386
      %4388 = vrot.lane.b32.xlu0 %v1496, 8
      %v4389 = vpop.permute.xlu0 %4388
      %4390 = vrot.lane.b32.xlu0 %v1497, 8
      %v4391 = vpop.permute.xlu0 %4390
      %4392 = vrot.lane.b32.xlu0 %v1498, 8
      %v4393 = vpop.permute.xlu0 %4392
      %4394 = vrot.lane.b32.xlu0 %v1499, 8
      %v4395 = vpop.permute.xlu0 %4394
      %4460 = vrot.lane.b32.xlu0 %v1500, 12
      %v4461 = vpop.permute.xlu0 %4460
      %4462 = vrot.lane.b32.xlu0 %v1501, 12
      %v4463 = vpop.permute.xlu0 %4462
      %4464 = vrot.lane.b32.xlu0 %v1502, 12
      %v4465 = vpop.permute.xlu0 %4464
      %4466 = vrot.lane.b32.xlu0 %v1503, 12
      %v4467 = vpop.permute.xlu0 %4466
      %4468 = vrot.lane.b32.xlu0 %v1504, 12
      %v4469 = vpop.permute.xlu0 %4468
      %4470 = vrot.lane.b32.xlu0 %v1505, 12
      %v4471 = vpop.permute.xlu0 %4470
      %4472 = vrot.lane.b32.xlu0 %v1506, 12
      %v4473 = vpop.permute.xlu0 %4472
      %4474 = vrot.lane.b32.xlu0 %v1507, 12
      %v4475 = vpop.permute.xlu0 %4474
      %4476 = vrot.lane.b32.xlu0 %v1508, 12
      %v4477 = vpop.permute.xlu0 %4476
      %4478 = vrot.lane.b32.xlu0 %v1509, 12
      %v4479 = vpop.permute.xlu0 %4478
      %4480 = vrot.lane.b32.xlu0 %v1510, 12
      %v4481 = vpop.permute.xlu0 %4480
      %4482 = vrot.lane.b32.xlu0 %v1511, 12
      %v4483 = vpop.permute.xlu0 %4482
      %4484 = vrot.lane.b32.xlu0 %v1512, 12
      %v4485 = vpop.permute.xlu0 %4484
      %4486 = vrot.lane.b32.xlu0 %v1513, 12
      %v4487 = vpop.permute.xlu0 %4486
      %4488 = vrot.lane.b32.xlu0 %v1514, 12
      %v4489 = vpop.permute.xlu0 %4488
      %4490 = vrot.lane.b32.xlu0 %v1515, 12
      %v4491 = vpop.permute.xlu0 %4490
      %4492 = vrot.lane.b32.xlu0 %v1516, 12
      %v4493 = vpop.permute.xlu0 %4492
      %4494 = vrot.lane.b32.xlu0 %v1517, 12
      %v4495 = vpop.permute.xlu0 %4494
      %4496 = vrot.lane.b32.xlu0 %v1518, 12
      %v4497 = vpop.permute.xlu0 %4496
      %4498 = vrot.lane.b32.xlu0 %v1519, 12
      %v4499 = vpop.permute.xlu0 %4498
      %4500 = vrot.lane.b32.xlu0 %v1520, 12
      %v4501 = vpop.permute.xlu0 %4500
      %4502 = vrot.lane.b32.xlu0 %v1521, 12
      %v4503 = vpop.permute.xlu0 %4502
      %4504 = vrot.lane.b32.xlu0 %v1522, 12
      %v4505 = vpop.permute.xlu0 %4504
      %4506 = vrot.lane.b32.xlu0 %v1523, 12
      %v4507 = vpop.permute.xlu0 %4506
      %4508 = vrot.lane.b32.xlu0 %v1524, 12
      %v4509 = vpop.permute.xlu0 %4508
      %4510 = vrot.lane.b32.xlu0 %v1525, 12
      %v4511 = vpop.permute.xlu0 %4510
      %4512 = vrot.lane.b32.xlu0 %v1526, 12
      %v4513 = vpop.permute.xlu0 %4512
      %4514 = vrot.lane.b32.xlu0 %v1527, 12
      %v4515 = vpop.permute.xlu0 %4514
      %4516 = vrot.lane.b32.xlu0 %v1528, 12
      %v4517 = vpop.permute.xlu0 %4516
      %4518 = vrot.lane.b32.xlu0 %v1529, 12
      %v4519 = vpop.permute.xlu0 %4518
      %4520 = vrot.lane.b32.xlu0 %v1530, 12
      %v4521 = vpop.permute.xlu0 %4520
      %4522 = vrot.lane.b32.xlu0 %v1531, 12
      %v4523 = vpop.permute.xlu0 %4522
      %4588 = vrot.lane.b32.xlu0 %v1532, 16
      %v4589 = vpop.permute.xlu0 %4588
      %4590 = vrot.lane.b32.xlu0 %v1533, 16
      %v4591 = vpop.permute.xlu0 %4590
      %4592 = vrot.lane.b32.xlu0 %v1534, 16
      %v4593 = vpop.permute.xlu0 %4592
      %4594 = vrot.lane.b32.xlu0 %v1535, 16
      %v4595 = vpop.permute.xlu0 %4594
      %4596 = vrot.lane.b32.xlu0 %v1536, 16
      %v4597 = vpop.permute.xlu0 %4596
      %4598 = vrot.lane.b32.xlu0 %v1537, 16
      %v4599 = vpop.permute.xlu0 %4598
      %4600 = vrot.lane.b32.xlu0 %v1538, 16
      %v4601 = vpop.permute.xlu0 %4600
      %4602 = vrot.lane.b32.xlu0 %v1539, 16
      %v4603 = vpop.permute.xlu0 %4602
      %4604 = vrot.lane.b32.xlu0 %v1540, 16
      %v4605 = vpop.permute.xlu0 %4604
      %4606 = vrot.lane.b32.xlu0 %v1541, 16
      %v4607 = vpop.permute.xlu0 %4606
      %4608 = vrot.lane.b32.xlu0 %v1542, 16
      %v4609 = vpop.permute.xlu0 %4608
      %4610 = vrot.lane.b32.xlu0 %v1543, 16
      %v4611 = vpop.permute.xlu0 %4610
      %4612 = vrot.lane.b32.xlu0 %v1544, 16
      %v4613 = vpop.permute.xlu0 %4612
      %4614 = vrot.lane.b32.xlu0 %v1545, 16
      %v4615 = vpop.permute.xlu0 %4614
      %4616 = vrot.lane.b32.xlu0 %v1546, 16
      %v4617 = vpop.permute.xlu0 %4616
      %4618 = vrot.lane.b32.xlu0 %v1547, 16
      %v4619 = vpop.permute.xlu0 %4618
      %4620 = vrot.lane.b32.xlu0 %v1548, 16
      %v4621 = vpop.permute.xlu0 %4620
      %4622 = vrot.lane.b32.xlu0 %v1549, 16
      %v4623 = vpop.permute.xlu0 %4622
      %4624 = vrot.lane.b32.xlu0 %v1550, 16
      %v4625 = vpop.permute.xlu0 %4624
      %4626 = vrot.lane.b32.xlu0 %v1551, 16
      %v4627 = vpop.permute.xlu0 %4626
      %4628 = vrot.lane.b32.xlu0 %v1552, 16
      %v4629 = vpop.permute.xlu0 %4628
      %4630 = vrot.lane.b32.xlu0 %v1553, 16
      %v4631 = vpop.permute.xlu0 %4630
      %4632 = vrot.lane.b32.xlu0 %v1554, 16
      %v4633 = vpop.permute.xlu0 %4632
      %4634 = vrot.lane.b32.xlu0 %v1555, 16
      %v4635 = vpop.permute.xlu0 %4634
      %4636 = vrot.lane.b32.xlu0 %v1556, 16
      %v4637 = vpop.permute.xlu0 %4636
      %4638 = vrot.lane.b32.xlu0 %v1557, 16
      %v4639 = vpop.permute.xlu0 %4638
      %4640 = vrot.lane.b32.xlu0 %v1558, 16
      %v4641 = vpop.permute.xlu0 %4640
      %4642 = vrot.lane.b32.xlu0 %v1559, 16
      %v4643 = vpop.permute.xlu0 %4642
      %4644 = vrot.lane.b32.xlu0 %v1560, 16
      %v4645 = vpop.permute.xlu0 %4644
      %4646 = vrot.lane.b32.xlu0 %v1561, 16
      %v4647 = vpop.permute.xlu0 %4646
      %4648 = vrot.lane.b32.xlu0 %v1562, 16
      %v4649 = vpop.permute.xlu0 %4648
      %4650 = vrot.lane.b32.xlu0 %v1563, 16
      %v4651 = vpop.permute.xlu0 %4650
      %4716 = vrot.lane.b32.xlu0 %v1565, 20
      %v4717 = vpop.permute.xlu0 %4716
      %4718 = vrot.lane.b32.xlu0 %v1566, 20
      %v4719 = vpop.permute.xlu0 %4718
      %4720 = vrot.lane.b32.xlu0 %v1567, 20
      %v4721 = vpop.permute.xlu0 %4720
      %4722 = vrot.lane.b32.xlu0 %v1568, 20
      %v4723 = vpop.permute.xlu0 %4722
      %4724 = vrot.lane.b32.xlu0 %v1569, 20
      %v4725 = vpop.permute.xlu0 %4724
      %4726 = vrot.lane.b32.xlu0 %v1570, 20
      %v4727 = vpop.permute.xlu0 %4726
      %4728 = vrot.lane.b32.xlu0 %v1571, 20
      %v4729 = vpop.permute.xlu0 %4728
      %4730 = vrot.lane.b32.xlu0 %v1572, 20
      %v4731 = vpop.permute.xlu0 %4730
      %4732 = vrot.lane.b32.xlu0 %v1573, 20
      %v4733 = vpop.permute.xlu0 %4732
      %4734 = vrot.lane.b32.xlu0 %v1574, 20
      %v4735 = vpop.permute.xlu0 %4734
      %4736 = vrot.lane.b32.xlu0 %v1575, 20
      %v4737 = vpop.permute.xlu0 %4736
      %4738 = vrot.lane.b32.xlu0 %v1576, 20
      %v4739 = vpop.permute.xlu0 %4738
      %4740 = vrot.lane.b32.xlu0 %v1577, 20
      %v4741 = vpop.permute.xlu0 %4740
      %4742 = vrot.lane.b32.xlu0 %v1578, 20
      %v4743 = vpop.permute.xlu0 %4742
      %4744 = vrot.lane.b32.xlu0 %v1579, 20
      %v4745 = vpop.permute.xlu0 %4744
      %4746 = vrot.lane.b32.xlu0 %v1580, 20
      %v4747 = vpop.permute.xlu0 %4746
      %4748 = vrot.lane.b32.xlu0 %v1581, 20
      %v4749 = vpop.permute.xlu0 %4748
      %4750 = vrot.lane.b32.xlu0 %v1582, 20
      %v4751 = vpop.permute.xlu0 %4750
      %4752 = vrot.lane.b32.xlu0 %v1583, 20
      %v4753 = vpop.permute.xlu0 %4752
      %4754 = vrot.lane.b32.xlu0 %v1584, 20
      %v4755 = vpop.permute.xlu0 %4754
      %4756 = vrot.lane.b32.xlu0 %v1585, 20
      %v4757 = vpop.permute.xlu0 %4756
      %4758 = vrot.lane.b32.xlu0 %v1586, 20
      %v4759 = vpop.permute.xlu0 %4758
      %4760 = vrot.lane.b32.xlu0 %v1587, 20
      %v4761 = vpop.permute.xlu0 %4760
      %4762 = vrot.lane.b32.xlu0 %v1588, 20
      %v4763 = vpop.permute.xlu0 %4762
      %4764 = vrot.lane.b32.xlu0 %v1589, 20
      %v4765 = vpop.permute.xlu0 %4764
      %4766 = vrot.lane.b32.xlu0 %v1590, 20
      %v4767 = vpop.permute.xlu0 %4766
      %4768 = vrot.lane.b32.xlu0 %v1591, 20
      %v4769 = vpop.permute.xlu0 %4768
      %4770 = vrot.lane.b32.xlu0 %v1592, 20
      %v4771 = vpop.permute.xlu0 %4770
      %4772 = vrot.lane.b32.xlu0 %v1593, 20
      %v4773 = vpop.permute.xlu0 %4772
      %4774 = vrot.lane.b32.xlu0 %v1594, 20
      %v4775 = vpop.permute.xlu0 %4774
      %4776 = vrot.lane.b32.xlu0 %v1595, 20
      %v4777 = vpop.permute.xlu0 %4776
      %4778 = vrot.lane.b32.xlu0 %v1596, 20
      %v4779 = vpop.permute.xlu0 %4778
      %4844 = vrot.lane.b32.xlu0 %v1597, 24
      %v4845 = vpop.permute.xlu0 %4844
      %4846 = vrot.lane.b32.xlu0 %v1598, 24
      %v4847 = vpop.permute.xlu0 %4846
      %4848 = vrot.lane.b32.xlu0 %v1599, 24
      %v4849 = vpop.permute.xlu0 %4848
      %4850 = vrot.lane.b32.xlu0 %v1600, 24
      %v4851 = vpop.permute.xlu0 %4850
      %4852 = vrot.lane.b32.xlu0 %v1601, 24
      %v4853 = vpop.permute.xlu0 %4852
      %4854 = vrot.lane.b32.xlu0 %v1602, 24
      %v4855 = vpop.permute.xlu0 %4854
      %4856 = vrot.lane.b32.xlu0 %v1603, 24
      %v4857 = vpop.permute.xlu0 %4856
      %4858 = vrot.lane.b32.xlu0 %v1604, 24
      %v4859 = vpop.permute.xlu0 %4858
      %4860 = vrot.lane.b32.xlu0 %v1605, 24
      %v4861 = vpop.permute.xlu0 %4860
      %4862 = vrot.lane.b32.xlu0 %v1606, 24
      %v4863 = vpop.permute.xlu0 %4862
      %4864 = vrot.lane.b32.xlu0 %v1607, 24
      %v4865 = vpop.permute.xlu0 %4864
      %4866 = vrot.lane.b32.xlu0 %v1608, 24
      %v4867 = vpop.permute.xlu0 %4866
      %4868 = vrot.lane.b32.xlu0 %v1609, 24
      %v4869 = vpop.permute.xlu0 %4868
      %4870 = vrot.lane.b32.xlu0 %v1610, 24
      %v4871 = vpop.permute.xlu0 %4870
      %4872 = vrot.lane.b32.xlu0 %v1611, 24
      %v4873 = vpop.permute.xlu0 %4872
      %4874 = vrot.lane.b32.xlu0 %v1612, 24
      %v4875 = vpop.permute.xlu0 %4874
      %4876 = vrot.lane.b32.xlu0 %v1613, 24
      %v4877 = vpop.permute.xlu0 %4876
      %4878 = vrot.lane.b32.xlu0 %v1614, 24
      %v4879 = vpop.permute.xlu0 %4878
      %4880 = vrot.lane.b32.xlu0 %v1615, 24
      %v4881 = vpop.permute.xlu0 %4880
      %4882 = vrot.lane.b32.xlu0 %v1616, 24
      %v4883 = vpop.permute.xlu0 %4882
      %4884 = vrot.lane.b32.xlu0 %v1617, 24
      %v4885 = vpop.permute.xlu0 %4884
      %4886 = vrot.lane.b32.xlu0 %v1618, 24
      %v4887 = vpop.permute.xlu0 %4886
      %4888 = vrot.lane.b32.xlu0 %v1619, 24
      %v4889 = vpop.permute.xlu0 %4888
      %4890 = vrot.lane.b32.xlu0 %v1620, 24
      %v4891 = vpop.permute.xlu0 %4890
      %4892 = vrot.lane.b32.xlu0 %v1621, 24
      %v4893 = vpop.permute.xlu0 %4892
      %4894 = vrot.lane.b32.xlu0 %v1622, 24
      %v4895 = vpop.permute.xlu0 %4894
      %4896 = vrot.lane.b32.xlu0 %v1623, 24
      %v4897 = vpop.permute.xlu0 %4896
      %4898 = vrot.lane.b32.xlu0 %v1624, 24
      %v4899 = vpop.permute.xlu0 %4898
      %4900 = vrot.lane.b32.xlu0 %v1625, 24
      %v4901 = vpop.permute.xlu0 %4900
      %4902 = vrot.lane.b32.xlu0 %v1626, 24
      %v4903 = vpop.permute.xlu0 %4902
      %4904 = vrot.lane.b32.xlu0 %v1627, 24
      %v4905 = vpop.permute.xlu0 %4904
      %4906 = vrot.lane.b32.xlu0 %v1628, 24
      %v4907 = vpop.permute.xlu0 %4906
      %4972 = vrot.lane.b32.xlu0 %v1629, 28
      %v4973 = vpop.permute.xlu0 %4972
      %4974 = vrot.lane.b32.xlu0 %v1630, 28
      %v4975 = vpop.permute.xlu0 %4974
      %4976 = vrot.lane.b32.xlu0 %v1631, 28
      %v4977 = vpop.permute.xlu0 %4976
      %4978 = vrot.lane.b32.xlu0 %v1632, 28
      %v4979 = vpop.permute.xlu0 %4978
      %4980 = vrot.lane.b32.xlu0 %v1633, 28
      %v4981 = vpop.permute.xlu0 %4980
      %4982 = vrot.lane.b32.xlu0 %v1634, 28
      %v4983 = vpop.permute.xlu0 %4982
      %4984 = vrot.lane.b32.xlu0 %v1635, 28
      %v4985 = vpop.permute.xlu0 %4984
      %4986 = vrot.lane.b32.xlu0 %v1636, 28
      %v4987 = vpop.permute.xlu0 %4986
      %4988 = vrot.lane.b32.xlu0 %v1637, 28
      %v4989 = vpop.permute.xlu0 %4988
      %4990 = vrot.lane.b32.xlu0 %v1638, 28
      %v4991 = vpop.permute.xlu0 %4990
      %4992 = vrot.lane.b32.xlu0 %v1639, 28
      %v4993 = vpop.permute.xlu0 %4992
      %4994 = vrot.lane.b32.xlu0 %v1640, 28
      %v4995 = vpop.permute.xlu0 %4994
      %4996 = vrot.lane.b32.xlu0 %v1641, 28
      %v4997 = vpop.permute.xlu0 %4996
      %4998 = vrot.lane.b32.xlu0 %v1642, 28
      %v4999 = vpop.permute.xlu0 %4998
      %5000 = vrot.lane.b32.xlu0 %v1643, 28
      %v5001 = vpop.permute.xlu0 %5000
      %5002 = vrot.lane.b32.xlu0 %v1644, 28
      %v5003 = vpop.permute.xlu0 %5002
      %5004 = vrot.lane.b32.xlu0 %v1645, 28
      %v5005 = vpop.permute.xlu0 %5004
      %5006 = vrot.lane.b32.xlu0 %v1646, 28
      %v5007 = vpop.permute.xlu0 %5006
      %5008 = vrot.lane.b32.xlu0 %v1647, 28
      %v5009 = vpop.permute.xlu0 %5008
      %5010 = vrot.lane.b32.xlu0 %v1648, 28
      %v5011 = vpop.permute.xlu0 %5010
      %5012 = vrot.lane.b32.xlu0 %v1649, 28
      %v5013 = vpop.permute.xlu0 %5012
      %5014 = vrot.lane.b32.xlu0 %v1650, 28
      %v5015 = vpop.permute.xlu0 %5014
      %5016 = vrot.lane.b32.xlu0 %v1651, 28
      %v5017 = vpop.permute.xlu0 %5016
      %5018 = vrot.lane.b32.xlu0 %v1652, 28
      %v5019 = vpop.permute.xlu0 %5018
      %5020 = vrot.lane.b32.xlu0 %v1653, 28
      %v5021 = vpop.permute.xlu0 %5020
      %5022 = vrot.lane.b32.xlu0 %v1654, 28
      %v5023 = vpop.permute.xlu0 %5022
      %5024 = vrot.lane.b32.xlu0 %v1655, 28
      %v5025 = vpop.permute.xlu0 %5024
      %5026 = vrot.lane.b32.xlu0 %v1656, 28
      %v5027 = vpop.permute.xlu0 %5026
      %5028 = vrot.lane.b32.xlu0 %v1657, 28
      %v5029 = vpop.permute.xlu0 %5028
      %5030 = vrot.lane.b32.xlu0 %v1658, 28
      %v5031 = vpop.permute.xlu0 %5030
      %5032 = vrot.lane.b32.xlu0 %v1659, 28
      %v5033 = vpop.permute.xlu0 %5032
      %5034 = vrot.lane.b32.xlu0 %v1660, 28
      %v5035 = vpop.permute.xlu0 %5034
      %5100 = vrot.lane.b32.xlu0 %v1662, 32
      %v5101 = vpop.permute.xlu0 %5100
      %5102 = vrot.lane.b32.xlu0 %v1663, 32
      %v5103 = vpop.permute.xlu0 %5102
      %5104 = vrot.lane.b32.xlu0 %v1664, 32
      %v5105 = vpop.permute.xlu0 %5104
      %5106 = vrot.lane.b32.xlu0 %v1665, 32
      %v5107 = vpop.permute.xlu0 %5106
      %5108 = vrot.lane.b32.xlu0 %v1666, 32
      %v5109 = vpop.permute.xlu0 %5108
      %5110 = vrot.lane.b32.xlu0 %v1667, 32
      %v5111 = vpop.permute.xlu0 %5110
      %5112 = vrot.lane.b32.xlu0 %v1668, 32
      %v5113 = vpop.permute.xlu0 %5112
      %5114 = vrot.lane.b32.xlu0 %v1669, 32
      %v5115 = vpop.permute.xlu0 %5114
      %5116 = vrot.lane.b32.xlu0 %v1670, 32
      %v5117 = vpop.permute.xlu0 %5116
      %5118 = vrot.lane.b32.xlu0 %v1671, 32
      %v5119 = vpop.permute.xlu0 %5118
      %5120 = vrot.lane.b32.xlu0 %v1672, 32
      %v5121 = vpop.permute.xlu0 %5120
      %5122 = vrot.lane.b32.xlu0 %v1673, 32
      %v5123 = vpop.permute.xlu0 %5122
      %5124 = vrot.lane.b32.xlu0 %v1674, 32
      %v5125 = vpop.permute.xlu0 %5124
      %5126 = vrot.lane.b32.xlu0 %v1675, 32
      %v5127 = vpop.permute.xlu0 %5126
      %5128 = vrot.lane.b32.xlu0 %v1676, 32
      %v5129 = vpop.permute.xlu0 %5128
      %5130 = vrot.lane.b32.xlu0 %v1677, 32
      %v5131 = vpop.permute.xlu0 %5130
      %5132 = vrot.lane.b32.xlu0 %v1678, 32
      %v5133 = vpop.permute.xlu0 %5132
      %5134 = vrot.lane.b32.xlu0 %v1679, 32
      %v5135 = vpop.permute.xlu0 %5134
      %5136 = vrot.lane.b32.xlu0 %v1680, 32
      %v5137 = vpop.permute.xlu0 %5136
      %5138 = vrot.lane.b32.xlu0 %v1681, 32
      %v5139 = vpop.permute.xlu0 %5138
      %5140 = vrot.lane.b32.xlu0 %v1682, 32
      %v5141 = vpop.permute.xlu0 %5140
      %5142 = vrot.lane.b32.xlu0 %v1683, 32
      %v5143 = vpop.permute.xlu0 %5142
      %5144 = vrot.lane.b32.xlu0 %v1684, 32
      %v5145 = vpop.permute.xlu0 %5144
      %5146 = vrot.lane.b32.xlu0 %v1685, 32
      %v5147 = vpop.permute.xlu0 %5146
      %5148 = vrot.lane.b32.xlu0 %v1686, 32
      %v5149 = vpop.permute.xlu0 %5148
      %5150 = vrot.lane.b32.xlu0 %v1687, 32
      %v5151 = vpop.permute.xlu0 %5150
      %5152 = vrot.lane.b32.xlu0 %v1688, 32
      %v5153 = vpop.permute.xlu0 %5152
      %5154 = vrot.lane.b32.xlu0 %v1689, 32
      %v5155 = vpop.permute.xlu0 %5154
      %5156 = vrot.lane.b32.xlu0 %v1690, 32
      %v5157 = vpop.permute.xlu0 %5156
      %5158 = vrot.lane.b32.xlu0 %v1691, 32
      %v5159 = vpop.permute.xlu0 %5158
      %5160 = vrot.lane.b32.xlu0 %v1692, 32
      %v5161 = vpop.permute.xlu0 %5160
      %5162 = vrot.lane.b32.xlu0 %v1693, 32
      %v5163 = vpop.permute.xlu0 %5162
      %5228 = vrot.lane.b32.xlu0 %v1694, 36
      %v5229 = vpop.permute.xlu0 %5228
      %5230 = vrot.lane.b32.xlu0 %v1695, 36
      %v5231 = vpop.permute.xlu0 %5230
      %5232 = vrot.lane.b32.xlu0 %v1696, 36
      %v5233 = vpop.permute.xlu0 %5232
      %5234 = vrot.lane.b32.xlu0 %v1697, 36
      %v5235 = vpop.permute.xlu0 %5234
      %5236 = vrot.lane.b32.xlu0 %v1698, 36
      %v5237 = vpop.permute.xlu0 %5236
      %5238 = vrot.lane.b32.xlu0 %v1699, 36
      %v5239 = vpop.permute.xlu0 %5238
      %5240 = vrot.lane.b32.xlu0 %v1700, 36
      %v5241 = vpop.permute.xlu0 %5240
      %5242 = vrot.lane.b32.xlu0 %v1701, 36
      %v5243 = vpop.permute.xlu0 %5242
      %5244 = vrot.lane.b32.xlu0 %v1702, 36
      %v5245 = vpop.permute.xlu0 %5244
      %5246 = vrot.lane.b32.xlu0 %v1703, 36
      %v5247 = vpop.permute.xlu0 %5246
      %5248 = vrot.lane.b32.xlu0 %v1704, 36
      %v5249 = vpop.permute.xlu0 %5248
      %5250 = vrot.lane.b32.xlu0 %v1705, 36
      %v5251 = vpop.permute.xlu0 %5250
      %5252 = vrot.lane.b32.xlu0 %v1706, 36
      %v5253 = vpop.permute.xlu0 %5252
      %5254 = vrot.lane.b32.xlu0 %v1707, 36
      %v5255 = vpop.permute.xlu0 %5254
      %5256 = vrot.lane.b32.xlu0 %v1708, 36
      %v5257 = vpop.permute.xlu0 %5256
      %5258 = vrot.lane.b32.xlu0 %v1709, 36
      %v5259 = vpop.permute.xlu0 %5258
      %5260 = vrot.lane.b32.xlu0 %v1710, 36
      %v5261 = vpop.permute.xlu0 %5260
      %5262 = vrot.lane.b32.xlu0 %v1711, 36
      %v5263 = vpop.permute.xlu0 %5262
      %5264 = vrot.lane.b32.xlu0 %v1712, 36
      %v5265 = vpop.permute.xlu0 %5264
      %5266 = vrot.lane.b32.xlu0 %v1713, 36
      %v5267 = vpop.permute.xlu0 %5266
      %5268 = vrot.lane.b32.xlu0 %v1714, 36
      %v5269 = vpop.permute.xlu0 %5268
      %5270 = vrot.lane.b32.xlu0 %v1715, 36
      %v5271 = vpop.permute.xlu0 %5270
      %5272 = vrot.lane.b32.xlu0 %v1716, 36
      %v5273 = vpop.permute.xlu0 %5272
      %5274 = vrot.lane.b32.xlu0 %v1717, 36
      %v5275 = vpop.permute.xlu0 %5274
      %5276 = vrot.lane.b32.xlu0 %v1718, 36
      %v5277 = vpop.permute.xlu0 %5276
      %5278 = vrot.lane.b32.xlu0 %v1719, 36
      %v5279 = vpop.permute.xlu0 %5278
      %5280 = vrot.lane.b32.xlu0 %v1720, 36
      %v5281 = vpop.permute.xlu0 %5280
      %5282 = vrot.lane.b32.xlu0 %v1721, 36
      %v5283 = vpop.permute.xlu0 %5282
      %5284 = vrot.lane.b32.xlu0 %v1722, 36
      %v5285 = vpop.permute.xlu0 %5284
      %5286 = vrot.lane.b32.xlu0 %v1723, 36
      %v5287 = vpop.permute.xlu0 %5286
      %5288 = vrot.lane.b32.xlu0 %v1724, 36
      %v5289 = vpop.permute.xlu0 %5288
      %5290 = vrot.lane.b32.xlu0 %v1725, 36
      %v5291 = vpop.permute.xlu0 %5290
      %5356 = vrot.lane.b32.xlu0 %v1726, 40
      %v5357 = vpop.permute.xlu0 %5356
      %5358 = vrot.lane.b32.xlu0 %v1727, 40
      %v5359 = vpop.permute.xlu0 %5358
      %5360 = vrot.lane.b32.xlu0 %v1728, 40
      %v5361 = vpop.permute.xlu0 %5360
      %5362 = vrot.lane.b32.xlu0 %v1729, 40
      %v5363 = vpop.permute.xlu0 %5362
      %5364 = vrot.lane.b32.xlu0 %v1730, 40
      %v5365 = vpop.permute.xlu0 %5364
      %5366 = vrot.lane.b32.xlu0 %v1731, 40
      %v5367 = vpop.permute.xlu0 %5366
      %5368 = vrot.lane.b32.xlu0 %v1732, 40
      %v5369 = vpop.permute.xlu0 %5368
      %5370 = vrot.lane.b32.xlu0 %v1733, 40
      %v5371 = vpop.permute.xlu0 %5370
      %5372 = vrot.lane.b32.xlu0 %v1734, 40
      %v5373 = vpop.permute.xlu0 %5372
      %5374 = vrot.lane.b32.xlu0 %v1735, 40
      %v5375 = vpop.permute.xlu0 %5374
      %5376 = vrot.lane.b32.xlu0 %v1736, 40
      %v5377 = vpop.permute.xlu0 %5376
      %5378 = vrot.lane.b32.xlu0 %v1737, 40
      %v5379 = vpop.permute.xlu0 %5378
      %5380 = vrot.lane.b32.xlu0 %v1738, 40
      %v5381 = vpop.permute.xlu0 %5380
      %5382 = vrot.lane.b32.xlu0 %v1739, 40
      %v5383 = vpop.permute.xlu0 %5382
      %5384 = vrot.lane.b32.xlu0 %v1740, 40
      %v5385 = vpop.permute.xlu0 %5384
      %5386 = vrot.lane.b32.xlu0 %v1741, 40
      %v5387 = vpop.permute.xlu0 %5386
      %5388 = vrot.lane.b32.xlu0 %v1742, 40
      %v5389 = vpop.permute.xlu0 %5388
      %5390 = vrot.lane.b32.xlu0 %v1743, 40
      %v5391 = vpop.permute.xlu0 %5390
      %5392 = vrot.lane.b32.xlu0 %v1744, 40
      %v5393 = vpop.permute.xlu0 %5392
      %5394 = vrot.lane.b32.xlu0 %v1745, 40
      %v5395 = vpop.permute.xlu0 %5394
      %5396 = vrot.lane.b32.xlu0 %v1746, 40
      %v5397 = vpop.permute.xlu0 %5396
      %5398 = vrot.lane.b32.xlu0 %v1747, 40
      %v5399 = vpop.permute.xlu0 %5398
      %5400 = vrot.lane.b32.xlu0 %v1748, 40
      %v5401 = vpop.permute.xlu0 %5400
      %5402 = vrot.lane.b32.xlu0 %v1749, 40
      %v5403 = vpop.permute.xlu0 %5402
      %5404 = vrot.lane.b32.xlu0 %v1750, 40
      %v5405 = vpop.permute.xlu0 %5404
      %5406 = vrot.lane.b32.xlu0 %v1751, 40
      %v5407 = vpop.permute.xlu0 %5406
      %5408 = vrot.lane.b32.xlu0 %v1752, 40
      %v5409 = vpop.permute.xlu0 %5408
      %5410 = vrot.lane.b32.xlu0 %v1753, 40
      %v5411 = vpop.permute.xlu0 %5410
      %5412 = vrot.lane.b32.xlu0 %v1754, 40
      %v5413 = vpop.permute.xlu0 %5412
      %5414 = vrot.lane.b32.xlu0 %v1755, 40
      %v5415 = vpop.permute.xlu0 %5414
      %5416 = vrot.lane.b32.xlu0 %v1756, 40
      %v5417 = vpop.permute.xlu0 %5416
      %5418 = vrot.lane.b32.xlu0 %v1757, 40
      %v5419 = vpop.permute.xlu0 %5418
      %v5452 = vsel %vm270, %v1403, %v4205
      %v5453 = vsel %vm270, %v1404, %v4207
      %v5454 = vsel %vm270, %v1405, %v4209
      %v5455 = vsel %vm270, %v1406, %v4211
      %v5456 = vsel %vm270, %v1407, %v4213
      %v5457 = vsel %vm270, %v1408, %v4215
      %v5458 = vsel %vm270, %v1409, %v4217
      %v5459 = vsel %vm270, %v1410, %v4219
      %v5460 = vsel %vm270, %v1411, %v4221
      %v5461 = vsel %vm270, %v1412, %v4223
      %v5462 = vsel %vm270, %v1413, %v4225
      %v5463 = vsel %vm270, %v1414, %v4227
      %v5464 = vsel %vm270, %v1415, %v4229
      %v5465 = vsel %vm270, %v1416, %v4231
      %v5466 = vsel %vm270, %v1417, %v4233
      %v5467 = vsel %vm270, %v1418, %v4235
      %v5468 = vsel %vm270, %v1419, %v4237
      %v5469 = vsel %vm270, %v1420, %v4239
      %v5470 = vsel %vm270, %v1421, %v4241
      %v5471 = vsel %vm270, %v1422, %v4243
      %v5472 = vsel %vm270, %v1423, %v4245
      %v5473 = vsel %vm270, %v1424, %v4247
      %v5474 = vsel %vm270, %v1425, %v4249
      %v5475 = vsel %vm270, %v1426, %v4251
      %v5476 = vsel %vm270, %v1427, %v4253
      %v5477 = vsel %vm270, %v1428, %v4255
      %v5478 = vsel %vm270, %v1429, %v4257
      %v5479 = vsel %vm270, %v1430, %v4259
      %v5480 = vsel %vm270, %v1431, %v4261
      %v5481 = vsel %vm270, %v1432, %v4263
      %v5482 = vsel %vm270, %v1433, %v4265
      %v5483 = vsel %vm270, %v1434, %v4267
      %v5484 = vsel %vm3710, %v5452, %v4333
      %v5485 = vsel %vm3710, %v5453, %v4335
      %v5486 = vsel %vm3710, %v5454, %v4337
      %v5487 = vsel %vm3710, %v5455, %v4339
      %v5488 = vsel %vm3710, %v5456, %v4341
      %v5489 = vsel %vm3710, %v5457, %v4343
      %v5490 = vsel %vm3710, %v5458, %v4345
      %v5491 = vsel %vm3710, %v5459, %v4347
      %v5492 = vsel %vm3710, %v5460, %v4349
      %v5493 = vsel %vm3710, %v5461, %v4351
      %v5494 = vsel %vm3710, %v5462, %v4353
      %v5495 = vsel %vm3710, %v5463, %v4355
      %v5496 = vsel %vm3710, %v5464, %v4357
      %v5497 = vsel %vm3710, %v5465, %v4359
      %v5498 = vsel %vm3710, %v5466, %v4361
      %v5499 = vsel %vm3710, %v5467, %v4363
      %v5500 = vsel %vm3710, %v5468, %v4365
      %v5501 = vsel %vm3710, %v5469, %v4367
      %v5502 = vsel %vm3710, %v5470, %v4369
      %v5503 = vsel %vm3710, %v5471, %v4371
      %v5504 = vsel %vm3710, %v5472, %v4373
      %v5505 = vsel %vm3710, %v5473, %v4375
      %v5506 = vsel %vm3710, %v5474, %v4377
      %v5507 = vsel %vm3710, %v5475, %v4379
      %v5508 = vsel %vm3710, %v5476, %v4381
      %v5509 = vsel %vm3710, %v5477, %v4383
      %v5510 = vsel %vm3710, %v5478, %v4385
      %v5511 = vsel %vm3710, %v5479, %v4387
      %v5512 = vsel %vm3710, %v5480, %v4389
      %v5513 = vsel %vm3710, %v5481, %v4391
      %v5514 = vsel %vm3710, %v5482, %v4393
      %v5515 = vsel %vm3710, %v5483, %v4395
      %v5516 = vsel %vm3743, %v5484, %v4461
      %v5517 = vsel %vm3743, %v5485, %v4463
      %v5518 = vsel %vm3743, %v5486, %v4465
      %v5519 = vsel %vm3743, %v5487, %v4467
      %v5520 = vsel %vm3743, %v5488, %v4469
      %v5521 = vsel %vm3743, %v5489, %v4471
      %v5522 = vsel %vm3743, %v5490, %v4473
      %v5523 = vsel %vm3743, %v5491, %v4475
      %v5524 = vsel %vm3743, %v5492, %v4477
      %v5525 = vsel %vm3743, %v5493, %v4479
      %v5526 = vsel %vm3743, %v5494, %v4481
      %v5527 = vsel %vm3743, %v5495, %v4483
      %v5528 = vsel %vm3743, %v5496, %v4485
      %v5529 = vsel %vm3743, %v5497, %v4487
      %v5530 = vsel %vm3743, %v5498, %v4489
      %v5531 = vsel %vm3743, %v5499, %v4491
      %v5532 = vsel %vm3743, %v5500, %v4493
      %v5533 = vsel %vm3743, %v5501, %v4495
      %v5534 = vsel %vm3743, %v5502, %v4497
      %v5535 = vsel %vm3743, %v5503, %v4499
      %v5536 = vsel %vm3743, %v5504, %v4501
      %v5537 = vsel %vm3743, %v5505, %v4503
      %v5538 = vsel %vm3743, %v5506, %v4505
      %v5539 = vsel %vm3743, %v5507, %v4507
      %v5540 = vsel %vm3743, %v5508, %v4509
      %v5541 = vsel %vm3743, %v5509, %v4511
      %v5542 = vsel %vm3743, %v5510, %v4513
      %v5543 = vsel %vm3743, %v5511, %v4515
      %v5544 = vsel %vm3743, %v5512, %v4517
      %v5545 = vsel %vm3743, %v5513, %v4519
      %v5546 = vsel %vm3743, %v5514, %v4521
      %v5547 = vsel %vm3743, %v5515, %v4523
      %v5548 = vsel %vm3776, %v5516, %v4589
      %v5549 = vsel %vm3776, %v5517, %v4591
      %v5550 = vsel %vm3776, %v5518, %v4593
      %v5551 = vsel %vm3776, %v5519, %v4595
      %v5552 = vsel %vm3776, %v5520, %v4597
      %v5553 = vsel %vm3776, %v5521, %v4599
      %v5554 = vsel %vm3776, %v5522, %v4601
      %v5555 = vsel %vm3776, %v5523, %v4603
      %v5556 = vsel %vm3776, %v5524, %v4605
      %v5557 = vsel %vm3776, %v5525, %v4607
      %v5558 = vsel %vm3776, %v5526, %v4609
      %v5559 = vsel %vm3776, %v5527, %v4611
      %v5560 = vsel %vm3776, %v5528, %v4613
      %v5561 = vsel %vm3776, %v5529, %v4615
      %v5562 = vsel %vm3776, %v5530, %v4617
      %v5563 = vsel %vm3776, %v5531, %v4619
      %v5564 = vsel %vm3776, %v5532, %v4621
      %v5565 = vsel %vm3776, %v5533, %v4623
      %v5566 = vsel %vm3776, %v5534, %v4625
      %v5567 = vsel %vm3776, %v5535, %v4627
      %v5568 = vsel %vm3776, %v5536, %v4629
      %v5569 = vsel %vm3776, %v5537, %v4631
      %v5570 = vsel %vm3776, %v5538, %v4633
      %v5571 = vsel %vm3776, %v5539, %v4635
      %v5572 = vsel %vm3776, %v5540, %v4637
      %v5573 = vsel %vm3776, %v5541, %v4639
      %v5574 = vsel %vm3776, %v5542, %v4641
      %v5575 = vsel %vm3776, %v5543, %v4643
      %v5576 = vsel %vm3776, %v5544, %v4645
      %v5577 = vsel %vm3776, %v5545, %v4647
      %v5578 = vsel %vm3776, %v5546, %v4649
      %v5579 = vsel %vm3776, %v5547, %v4651
      %v5580 = vsel %vm3809, %v5548, %v4717
      %v5581 = vsel %vm3809, %v5549, %v4719
      %v5582 = vsel %vm3809, %v5550, %v4721
      %v5583 = vsel %vm3809, %v5551, %v4723
      %v5584 = vsel %vm3809, %v5552, %v4725
      %v5585 = vsel %vm3809, %v5553, %v4727
      %v5586 = vsel %vm3809, %v5554, %v4729
      %v5587 = vsel %vm3809, %v5555, %v4731
      %v5588 = vsel %vm3809, %v5556, %v4733
      %v5589 = vsel %vm3809, %v5557, %v4735
      %v5590 = vsel %vm3809, %v5558, %v4737
      %v5591 = vsel %vm3809, %v5559, %v4739
      %v5592 = vsel %vm3809, %v5560, %v4741
      %v5593 = vsel %vm3809, %v5561, %v4743
      %v5594 = vsel %vm3809, %v5562, %v4745
      %v5595 = vsel %vm3809, %v5563, %v4747
      %v5596 = vsel %vm3809, %v5564, %v4749
      %v5597 = vsel %vm3809, %v5565, %v4751
      %v5598 = vsel %vm3809, %v5566, %v4753
      %v5599 = vsel %vm3809, %v5567, %v4755
      %v5600 = vsel %vm3809, %v5568, %v4757
      %v5601 = vsel %vm3809, %v5569, %v4759
      %v5602 = vsel %vm3809, %v5570, %v4761
      %v5603 = vsel %vm3809, %v5571, %v4763
      %v5604 = vsel %vm3809, %v5572, %v4765
      %v5605 = vsel %vm3809, %v5573, %v4767
      %v5606 = vsel %vm3809, %v5574, %v4769
      %v5607 = vsel %vm3809, %v5575, %v4771
      %v5608 = vsel %vm3809, %v5576, %v4773
      %v5609 = vsel %vm3809, %v5577, %v4775
      %v5610 = vsel %vm3809, %v5578, %v4777
      %v5611 = vsel %vm3809, %v5579, %v4779
      %v5612 = vsel %vm3842, %v5580, %v4845
      %v5613 = vsel %vm3842, %v5581, %v4847
      %v5614 = vsel %vm3842, %v5582, %v4849
      %v5615 = vsel %vm3842, %v5583, %v4851
      %v5616 = vsel %vm3842, %v5584, %v4853
      %v5617 = vsel %vm3842, %v5585, %v4855
      %v5618 = vsel %vm3842, %v5586, %v4857
      %v5619 = vsel %vm3842, %v5587, %v4859
      %v5620 = vsel %vm3842, %v5588, %v4861
      %v5621 = vsel %vm3842, %v5589, %v4863
      %v5622 = vsel %vm3842, %v5590, %v4865
      %v5623 = vsel %vm3842, %v5591, %v4867
      %v5624 = vsel %vm3842, %v5592, %v4869
      %v5625 = vsel %vm3842, %v5593, %v4871
      %v5626 = vsel %vm3842, %v5594, %v4873
      %v5627 = vsel %vm3842, %v5595, %v4875
      %v5628 = vsel %vm3842, %v5596, %v4877
      %v5629 = vsel %vm3842, %v5597, %v4879
      %v5630 = vsel %vm3842, %v5598, %v4881
      %v5631 = vsel %vm3842, %v5599, %v4883
      %v5632 = vsel %vm3842, %v5600, %v4885
      %v5633 = vsel %vm3842, %v5601, %v4887
      %v5634 = vsel %vm3842, %v5602, %v4889
      %v5635 = vsel %vm3842, %v5603, %v4891
      %v5636 = vsel %vm3842, %v5604, %v4893
      %v5637 = vsel %vm3842, %v5605, %v4895
      %v5638 = vsel %vm3842, %v5606, %v4897
      %v5639 = vsel %vm3842, %v5607, %v4899
      %v5640 = vsel %vm3842, %v5608, %v4901
      %v5641 = vsel %vm3842, %v5609, %v4903
      %v5642 = vsel %vm3842, %v5610, %v4905
      %v5643 = vsel %vm3842, %v5611, %v4907
      %v5644 = vsel %vm3875, %v5612, %v4973
      %v5645 = vsel %vm3875, %v5613, %v4975
      %v5646 = vsel %vm3875, %v5614, %v4977
      %v5647 = vsel %vm3875, %v5615, %v4979
      %v5648 = vsel %vm3875, %v5616, %v4981
      %v5649 = vsel %vm3875, %v5617, %v4983
      %v5650 = vsel %vm3875, %v5618, %v4985
      %v5651 = vsel %vm3875, %v5619, %v4987
      %v5652 = vsel %vm3875, %v5620, %v4989
      %v5653 = vsel %vm3875, %v5621, %v4991
      %v5654 = vsel %vm3875, %v5622, %v4993
      %v5655 = vsel %vm3875, %v5623, %v4995
      %v5656 = vsel %vm3875, %v5624, %v4997
      %v5657 = vsel %vm3875, %v5625, %v4999
      %v5658 = vsel %vm3875, %v5626, %v5001
      %v5659 = vsel %vm3875, %v5627, %v5003
      %v5660 = vsel %vm3875, %v5628, %v5005
      %v5661 = vsel %vm3875, %v5629, %v5007
      %v5662 = vsel %vm3875, %v5630, %v5009
      %v5663 = vsel %vm3875, %v5631, %v5011
      %v5664 = vsel %vm3875, %v5632, %v5013
      %v5665 = vsel %vm3875, %v5633, %v5015
      %v5666 = vsel %vm3875, %v5634, %v5017
      %v5667 = vsel %vm3875, %v5635, %v5019
      %v5668 = vsel %vm3875, %v5636, %v5021
      %v5669 = vsel %vm3875, %v5637, %v5023
      %v5670 = vsel %vm3875, %v5638, %v5025
      %v5671 = vsel %vm3875, %v5639, %v5027
      %v5672 = vsel %vm3875, %v5640, %v5029
      %v5673 = vsel %vm3875, %v5641, %v5031
      %v5674 = vsel %vm3875, %v5642, %v5033
      %v5675 = vsel %vm3875, %v5643, %v5035
      %v5676 = vsel %vm3908, %v5644, %v5101
      %v5677 = vsel %vm3908, %v5645, %v5103
      %v5678 = vsel %vm3908, %v5646, %v5105
      %v5679 = vsel %vm3908, %v5647, %v5107
      %v5680 = vsel %vm3908, %v5648, %v5109
      %v5681 = vsel %vm3908, %v5649, %v5111
      %v5682 = vsel %vm3908, %v5650, %v5113
      %v5683 = vsel %vm3908, %v5651, %v5115
      %v5684 = vsel %vm3908, %v5652, %v5117
      %v5685 = vsel %vm3908, %v5653, %v5119
      %v5686 = vsel %vm3908, %v5654, %v5121
      %v5687 = vsel %vm3908, %v5655, %v5123
      %v5688 = vsel %vm3908, %v5656, %v5125
      %v5689 = vsel %vm3908, %v5657, %v5127
      %v5690 = vsel %vm3908, %v5658, %v5129
      %v5691 = vsel %vm3908, %v5659, %v5131
      %v5692 = vsel %vm3908, %v5660, %v5133
      %v5693 = vsel %vm3908, %v5661, %v5135
      %v5694 = vsel %vm3908, %v5662, %v5137
      %v5695 = vsel %vm3908, %v5663, %v5139
      %v5696 = vsel %vm3908, %v5664, %v5141
      %v5697 = vsel %vm3908, %v5665, %v5143
      %v5698 = vsel %vm3908, %v5666, %v5145
      %v5699 = vsel %vm3908, %v5667, %v5147
      %v5700 = vsel %vm3908, %v5668, %v5149
      %v5701 = vsel %vm3908, %v5669, %v5151
      %v5702 = vsel %vm3908, %v5670, %v5153
      %v5703 = vsel %vm3908, %v5671, %v5155
      %v5704 = vsel %vm3908, %v5672, %v5157
      %v5705 = vsel %vm3908, %v5673, %v5159
      %v5706 = vsel %vm3908, %v5674, %v5161
      %v5707 = vsel %vm3908, %v5675, %v5163
      %v5708 = vsel %vm3941, %v5676, %v5229
      %v5709 = vsel %vm3941, %v5677, %v5231
      %v5710 = vsel %vm3941, %v5678, %v5233
      %v5711 = vsel %vm3941, %v5679, %v5235
      %v5712 = vsel %vm3941, %v5680, %v5237
      %v5713 = vsel %vm3941, %v5681, %v5239
      %v5714 = vsel %vm3941, %v5682, %v5241
      %v5715 = vsel %vm3941, %v5683, %v5243
      %v5716 = vsel %vm3941, %v5684, %v5245
      %v5717 = vsel %vm3941, %v5685, %v5247
      %v5718 = vsel %vm3941, %v5686, %v5249
      %v5719 = vsel %vm3941, %v5687, %v5251
      %v5720 = vsel %vm3941, %v5688, %v5253
      %v5721 = vsel %vm3941, %v5689, %v5255
      %v5722 = vsel %vm3941, %v5690, %v5257
      %v5723 = vsel %vm3941, %v5691, %v5259
      %v5724 = vsel %vm3941, %v5692, %v5261
      %v5725 = vsel %vm3941, %v5693, %v5263
      %v5726 = vsel %vm3941, %v5694, %v5265
      %v5727 = vsel %vm3941, %v5695, %v5267
      %v5728 = vsel %vm3941, %v5696, %v5269
      %v5729 = vsel %vm3941, %v5697, %v5271
      %v5730 = vsel %vm3941, %v5698, %v5273
      %v5731 = vsel %vm3941, %v5699, %v5275
      %v5732 = vsel %vm3941, %v5700, %v5277
      %v5733 = vsel %vm3941, %v5701, %v5279
      %v5734 = vsel %vm3941, %v5702, %v5281
      %v5735 = vsel %vm3941, %v5703, %v5283
      %v5736 = vsel %vm3941, %v5704, %v5285
      %v5737 = vsel %vm3941, %v5705, %v5287
      %v5738 = vsel %vm3941, %v5706, %v5289
      %v5739 = vsel %vm3941, %v5707, %v5291
      %v5740 = vsel %vm3974, %v5708, %v5357
      %v5741 = vsel %vm3974, %v5709, %v5359
      %v5742 = vsel %vm3974, %v5710, %v5361
      %v5743 = vsel %vm3974, %v5711, %v5363
      %v5744 = vsel %vm3974, %v5712, %v5365
      %v5745 = vsel %vm3974, %v5713, %v5367
      %v5746 = vsel %vm3974, %v5714, %v5369
      %v5747 = vsel %vm3974, %v5715, %v5371
      %v5748 = vsel %vm3974, %v5716, %v5373
      %v5749 = vsel %vm3974, %v5717, %v5375
      %v5750 = vsel %vm3974, %v5718, %v5377
      %v5751 = vsel %vm3974, %v5719, %v5379
      %v5752 = vsel %vm3974, %v5720, %v5381
      %v5753 = vsel %vm3974, %v5721, %v5383
      %v5754 = vsel %vm3974, %v5722, %v5385
      %v5755 = vsel %vm3974, %v5723, %v5387
      %v5756 = vsel %vm3974, %v5724, %v5389
      %v5757 = vsel %vm3974, %v5725, %v5391
      %v5758 = vsel %vm3974, %v5726, %v5393
      %v5759 = vsel %vm3974, %v5727, %v5395
      %v5760 = vsel %vm3974, %v5728, %v5397
      %v5761 = vsel %vm3974, %v5729, %v5399
      %v5762 = vsel %vm3974, %v5730, %v5401
      %v5763 = vsel %vm3974, %v5731, %v5403
      %v5764 = vsel %vm3974, %v5732, %v5405
      %v5765 = vsel %vm3974, %v5733, %v5407
      %v5766 = vsel %vm3974, %v5734, %v5409
      %v5767 = vsel %vm3974, %v5735, %v5411
      %v5768 = vsel %vm3974, %v5736, %v5413
      %v5769 = vsel %vm3974, %v5737, %v5415
      %v5770 = vsel %vm3974, %v5738, %v5417
      %v5771 = vsel %vm3974, %v5739, %v5419
      %5804 = vrot.lane.b32.xlu0 %v5740, 64
      %v5805 = vpop.permute.xlu0 %5804
      %5806 = vrot.lane.b32.xlu0 %v5741, 64
      %v5807 = vpop.permute.xlu0 %5806
      %5808 = vrot.lane.b32.xlu0 %v5742, 64
      %v5809 = vpop.permute.xlu0 %5808
      %5810 = vrot.lane.b32.xlu0 %v5743, 64
      %v5811 = vpop.permute.xlu0 %5810
      %5812 = vrot.lane.b32.xlu0 %v5744, 64
      %v5813 = vpop.permute.xlu0 %5812
      %5814 = vrot.lane.b32.xlu0 %v5745, 64
      %v5815 = vpop.permute.xlu0 %5814
      %5816 = vrot.lane.b32.xlu0 %v5746, 64
      %v5817 = vpop.permute.xlu0 %5816
      %5818 = vrot.lane.b32.xlu0 %v5747, 64
      %v5819 = vpop.permute.xlu0 %5818
      %5820 = vrot.lane.b32.xlu0 %v5748, 64
      %v5821 = vpop.permute.xlu0 %5820
      %5822 = vrot.lane.b32.xlu0 %v5749, 64
      %v5823 = vpop.permute.xlu0 %5822
      %5824 = vrot.lane.b32.xlu0 %v5750, 64
      %v5825 = vpop.permute.xlu0 %5824
      %5826 = vrot.lane.b32.xlu0 %v5751, 64
      %v5827 = vpop.permute.xlu0 %5826
      %5828 = vrot.lane.b32.xlu0 %v5752, 64
      %v5829 = vpop.permute.xlu0 %5828
      %5830 = vrot.lane.b32.xlu0 %v5753, 64
      %v5831 = vpop.permute.xlu0 %5830
      %5832 = vrot.lane.b32.xlu0 %v5754, 64
      %v5833 = vpop.permute.xlu0 %5832
      %5834 = vrot.lane.b32.xlu0 %v5755, 64
      %v5835 = vpop.permute.xlu0 %5834
      %5836 = vrot.lane.b32.xlu0 %v5756, 64
      %v5837 = vpop.permute.xlu0 %5836
      %5838 = vrot.lane.b32.xlu0 %v5757, 64
      %v5839 = vpop.permute.xlu0 %5838
      %5840 = vrot.lane.b32.xlu0 %v5758, 64
      %v5841 = vpop.permute.xlu0 %5840
      %5842 = vrot.lane.b32.xlu0 %v5759, 64
      %v5843 = vpop.permute.xlu0 %5842
      %5844 = vrot.lane.b32.xlu0 %v5760, 64
      %v5845 = vpop.permute.xlu0 %5844
      %5846 = vrot.lane.b32.xlu0 %v5761, 64
      %v5847 = vpop.permute.xlu0 %5846
      %5848 = vrot.lane.b32.xlu0 %v5762, 64
      %v5849 = vpop.permute.xlu0 %5848
      %5850 = vrot.lane.b32.xlu0 %v5763, 64
      %v5851 = vpop.permute.xlu0 %5850
      %5852 = vrot.lane.b32.xlu0 %v5764, 64
      %v5853 = vpop.permute.xlu0 %5852
      %5854 = vrot.lane.b32.xlu0 %v5765, 64
      %v5855 = vpop.permute.xlu0 %5854
      %5856 = vrot.lane.b32.xlu0 %v5766, 64
      %v5857 = vpop.permute.xlu0 %5856
      %5858 = vrot.lane.b32.xlu0 %v5767, 64
      %v5859 = vpop.permute.xlu0 %5858
      %5860 = vrot.lane.b32.xlu0 %v5768, 64
      %v5861 = vpop.permute.xlu0 %5860
      %5862 = vrot.lane.b32.xlu0 %v5769, 64
      %v5863 = vpop.permute.xlu0 %5862
      %5864 = vrot.lane.b32.xlu0 %v5770, 64
      %v5865 = vpop.permute.xlu0 %5864
      %5866 = vrot.lane.b32.xlu0 %v5771, 64
      %v5867 = vpop.permute.xlu0 %5866
      %vm5900 = vcmask 523264
      %v5901 = vsel %vm5900, %v4140, %v5805
      %v5902 = vsel %vm5900, %v4141, %v5807
      %v5903 = vsel %vm5900, %v4142, %v5809
      %v5904 = vsel %vm5900, %v4143, %v5811
      %v5905 = vsel %vm5900, %v4144, %v5813
      %v5906 = vsel %vm5900, %v4145, %v5815
      %v5907 = vsel %vm5900, %v4146, %v5817
      %v5908 = vsel %vm5900, %v4147, %v5819
      %v5909 = vsel %vm5900, %v4148, %v5821
      %v5910 = vsel %vm5900, %v4149, %v5823
      %v5911 = vsel %vm5900, %v4150, %v5825
      %v5912 = vsel %vm5900, %v4151, %v5827
      %v5913 = vsel %vm5900, %v4152, %v5829
      %v5914 = vsel %vm5900, %v4153, %v5831
      %v5915 = vsel %vm5900, %v4154, %v5833
      %v5916 = vsel %vm5900, %v4155, %v5835
      %v5917 = vsel %vm5900, %v4156, %v5837
      %v5918 = vsel %vm5900, %v4157, %v5839
      %v5919 = vsel %vm5900, %v4158, %v5841
      %v5920 = vsel %vm5900, %v4159, %v5843
      %v5921 = vsel %vm5900, %v4160, %v5845
      %v5922 = vsel %vm5900, %v4161, %v5847
      %v5923 = vsel %vm5900, %v4162, %v5849
      %v5924 = vsel %vm5900, %v4163, %v5851
      %v5925 = vsel %vm5900, %v4164, %v5853
      %v5926 = vsel %vm5900, %v4165, %v5855
      %v5927 = vsel %vm5900, %v4166, %v5857
      %v5928 = vsel %vm5900, %v4167, %v5859
      %v5929 = vsel %vm5900, %v4168, %v5861
      %v5930 = vsel %vm5900, %v4169, %v5863
      %v5931 = vsel %vm5900, %v4170, %v5865
      %v5932 = vsel %vm5900, %v4171, %v5867
      %v5933 = vpack.c.bf16 %v5902, %v5901
      %v5934 = vpack.c.bf16 %v5904, %v5903
      %v5935 = vpack.c.bf16 %v5906, %v5905
      %v5936 = vpack.c.bf16 %v5908, %v5907
      %v5937 = vpack.c.bf16 %v5910, %v5909
      %v5938 = vpack.c.bf16 %v5912, %v5911
      %v5939 = vpack.c.bf16 %v5914, %v5913
      %v5940 = vpack.c.bf16 %v5916, %v5915
      %v5941 = vpack.c.bf16 %v5918, %v5917
      %v5942 = vpack.c.bf16 %v5920, %v5919
      %v5943 = vpack.c.bf16 %v5922, %v5921
      %v5944 = vpack.c.bf16 %v5924, %v5923
      %v5945 = vpack.c.bf16 %v5926, %v5925
      %v5946 = vpack.c.bf16 %v5928, %v5927
      %v5947 = vpack.c.bf16 %v5930, %v5929
      %v5948 = vpack.c.bf16 %v5932, %v5931
      %v5949 = vld [vmem:[%s3] sm:$0xf]
      %v5950 = vld [vmem:[%s3 + $0x4] sm:$0xf]
      %v5951 = vld [vmem:[%s3 + $0x8] sm:$0xf]
      %v5952 = vld [vmem:[%s3 + $0xc] sm:$0xf]
      %v5953 = vld [vmem:[%s3 + $0x10] sm:$0xf]
      %v5954 = vld [vmem:[%s3 + $0x14] sm:$0xf]
      %v5955 = vld [vmem:[%s3 + $0x18] sm:$0xf]
      %v5956 = vld [vmem:[%s3 + $0x1c] sm:$0xf]
      %v5957 = vld [vmem:[%s3 + $0x20] sm:$0xf]
      %v5958 = vld [vmem:[%s3 + $0x24] sm:$0xf]
      %v5959 = vld [vmem:[%s3 + $0x28] sm:$0xf]
      %v5960 = vld [vmem:[%s3 + $0x2c] sm:$0xf]
      %v5961 = vld [vmem:[%s3 + $0x30] sm:$0xf]
      %v5962 = vld [vmem:[%s3 + $0x34] sm:$0x3]
      %v5977 = vunpack.c.l.b16 %v5949
      %v5978 = vunpack.c.l.b16 %v5950
      %v5979 = vunpack.c.l.b16 %v5951
      %v5980 = vunpack.c.l.b16 %v5952
      %v5981 = vunpack.c.l.b16 %v5953
      %v5982 = vunpack.c.l.b16 %v5954
      %v5983 = vunpack.c.l.b16 %v5955
      %v5984 = vunpack.c.l.b16 %v5956
      %v5985 = vunpack.c.l.b16 %v5957
      %v5986 = vunpack.c.l.b16 %v5958
      %v5987 = vunpack.c.l.b16 %v5959
      %v5988 = vunpack.c.l.b16 %v5960
      %v5989 = vunpack.c.l.b16 %v5961
      %v5990 = vunpack.c.l.b16 %v5962
      %v5991 = vpack.c.b16 %v5978, %v5977
      %v5992 = vpack.c.b16 %v5980, %v5979
      %v5993 = vpack.c.b16 %v5982, %v5981
      %v5994 = vpack.c.b16 %v5984, %v5983
      %v5995 = vpack.c.b16 %v5986, %v5985
      %v5996 = vpack.c.b16 %v5988, %v5987
      %v5997 = vpack.c.b16 %v5990, %v5989
      %vm6004 = vcmask 883712
      %v6006 = vsel %vm6004, %v5933, 0
      %v6009 = vsel %vm6004, %v5934, 0
      %v6012 = vsel %vm6004, %v5935, 0
      %v6015 = vsel %vm6004, %v5936, 0
      %v6018 = vsel %vm6004, %v5937, 0
      %v6021 = vsel %vm6004, %v5938, 0
      %v6024 = vsel %vm6004, %v5939, 0
      %v6027 = vsel %vm6004, %v5940, 0
      %v6030 = vsel %vm6004, %v5941, 0
      %v6033 = vsel %vm6004, %v5942, 0
      %v6036 = vsel %vm6004, %v5943, 0
      %v6039 = vsel %vm6004, %v5944, 0
      %v6042 = vsel %vm6004, %v5945, 0
      %v6045 = vsel %vm6004, %v5946, 0
      %v6048 = vsel %vm6004, %v5947, 0
      %v6051 = vsel %vm6004, %v5948, 0
      %vm6053 = vcmask 1045504
      %v6055 = vsel %vm6053, %v5997, 0
      %6057 = vmatprep.subr.bf16.mxu0 0
      %6058 = vmatpush1.bf16.msra.mxu0 %v5991
      %6059 = vmatprep.subr.bf16.mxu0 0
      %6060 = vmatpush1.bf16.msra.mxu0 %v5992
      %6061 = vmatprep.subr.bf16.mxu0 0
      %6062 = vmatpush1.bf16.msra.mxu0 %v5993
      %6063 = vmatprep.subr.bf16.mxu0 0
      %6064 = vmatpush1.bf16.msra.mxu0 %v5994
      %6065 = vmatprep.subr.bf16.mxu0 0
      %6066 = vmatpush1.bf16.msra.mxu0 %v5995
      %6067 = vmatprep.subr.bf16.mxu0 0
      %6068 = vmatpush1.bf16.msra.mxu0 %v5996
      %6069 = vmatprep.subr.bf16.mxu0 0
      %6070 = vmatpush1.bf16.msra.mxu0 %v6055
      %6071 = vmatprep.subr.bf16.mxu0 0
      %6072 = vmatpush1.bf16.msra.mxu0 0
      %6073 = vmatprep.subr.bf16.mxu0 0
      %6074 = vmatpush1.bf16.msra.mxu0 0
      %6075 = vmatprep.subr.bf16.mxu0 0
      %6076 = vmatpush1.bf16.msra.mxu0 0
      %6077 = vmatprep.subr.bf16.mxu0 0
      %6078 = vmatpush1.bf16.msra.mxu0 0
      %6079 = vmatprep.subr.bf16.mxu0 0
      %6080 = vmatpush1.bf16.msra.mxu0 0
      %6081 = vmatprep.subr.bf16.mxu0 0
      %6082 = vmatpush1.bf16.msra.mxu0 0
      %6083 = vmatprep.subr.bf16.mxu0 0
      %6084 = vmatpush1.bf16.msra.mxu0 0
      %6085 = vmatprep.subr.bf16.mxu0 0
      %6086 = vmatpush1.bf16.msra.mxu0 0
      %6087 = vmatprep.subr.bf16.mxu0 0
      %6088 = vmatpush1.bf16.msra.mxu0 0
      %6089 = vmatprep.mubr.bf16.mxu0 0
      %6090 = vmatmul.mubr.bf16.gmra.mrb[0].mxu0 %v6006
      %v6091 = vpop.f32.mrb[0].mxu0
      %v6092 = vadd.f32 0.0, %v6091
      %v6093 = vpop.f32.mrb[0].mxu0
      %v6094 = vpop.f32.mrb[0].mxu0
      %v6095 = vadd.f32 0.0, %v6094
      %v6096 = vpop.f32.mrb[0].mxu0
      %6097 = vmatprep.mubr.bf16.mxu0 0
      %6098 = vmatmul.mubr.bf16.gmra.mrb[0].mxu0 %v6009
      %v6099 = vpop.f32.mrb[0].mxu0
      %v6100 = vadd.f32 0.0, %v6099
      %v6101 = vpop.f32.mrb[0].mxu0
      %v6102 = vpop.f32.mrb[0].mxu0
      %v6103 = vadd.f32 0.0, %v6102
      %v6104 = vpop.f32.mrb[0].mxu0
      %6105 = vmatprep.mubr.bf16.mxu0 0
      %6106 = vmatmul.mubr.bf16.gmra.mrb[0].mxu0 %v6012
      %v6107 = vpop.f32.mrb[0].mxu0
      %v6108 = vadd.f32 0.0, %v6107
      %v6109 = vpop.f32.mrb[0].mxu0
      %v6110 = vpop.f32.mrb[0].mxu0
      %v6111 = vadd.f32 0.0, %v6110
      %v6112 = vpop.f32.mrb[0].mxu0
      %6113 = vmatprep.mubr.bf16.mxu0 0
      %6114 = vmatmul.mubr.bf16.gmra.mrb[0].mxu0 %v6015
      %v6115 = vpop.f32.mrb[0].mxu0
      %v6116 = vadd.f32 0.0, %v6115
      %v6117 = vpop.f32.mrb[0].mxu0
      %v6118 = vpop.f32.mrb[0].mxu0
      %v6119 = vadd.f32 0.0, %v6118
      %v6120 = vpop.f32.mrb[0].mxu0
      %6121 = vmatprep.mubr.bf16.mxu0 0
      %6122 = vmatmul.mubr.bf16.gmra.mrb[0].mxu0 %v6018
      %v6123 = vpop.f32.mrb[0].mxu0
      %v6124 = vadd.f32 0.0, %v6123
      %v6125 = vpop.f32.mrb[0].mxu0
      %v6126 = vpop.f32.mrb[0].mxu0
      %v6127 = vadd.f32 0.0, %v6126
      %v6128 = vpop.f32.mrb[0].mxu0
      %6129 = vmatprep.mubr.bf16.mxu0 0
      %6130 = vmatmul.mubr.bf16.gmra.mrb[0].mxu0 %v6021
      %v6131 = vpop.f32.mrb[0].mxu0
      %v6132 = vadd.f32 0.0, %v6131
      %v6133 = vpop.f32.mrb[0].mxu0
      %v6134 = vpop.f32.mrb[0].mxu0
      %v6135 = vadd.f32 0.0, %v6134
      %v6136 = vpop.f32.mrb[0].mxu0
      %6137 = vmatprep.mubr.bf16.mxu0 0
      %6138 = vmatmul.mubr.bf16.gmra.mrb[0].mxu0 %v6024
      %v6139 = vpop.f32.mrb[0].mxu0
      %v6140 = vadd.f32 0.0, %v6139
      %v6141 = vpop.f32.mrb[0].mxu0
      %v6142 = vpop.f32.mrb[0].mxu0
      %v6143 = vadd.f32 0.0, %v6142
      %v6144 = vpop.f32.mrb[0].mxu0
      %6145 = vmatprep.mubr.bf16.mxu0 0
      %6146 = vmatmul.mubr.bf16.gmra.mrb[0].mxu0 %v6027
      %v6147 = vpop.f32.mrb[0].mxu0
      %v6148 = vadd.f32 0.0, %v6147
      %v6149 = vpop.f32.mrb[0].mxu0
      %v6150 = vpop.f32.mrb[0].mxu0
      %v6151 = vadd.f32 0.0, %v6150
      %v6152 = vpop.f32.mrb[0].mxu0
      %6153 = vmatprep.mubr.bf16.mxu0 0
      %6154 = vmatmul.mubr.bf16.gmra.mrb[0].mxu0 %v6030
      %v6155 = vpop.f32.mrb[0].mxu0
      %v6156 = vadd.f32 0.0, %v6155
      %v6157 = vpop.f32.mrb[0].mxu0
      %v6158 = vpop.f32.mrb[0].mxu0
      %v6159 = vadd.f32 0.0, %v6158
      %v6160 = vpop.f32.mrb[0].mxu0
      %6161 = vmatprep.mubr.bf16.mxu0 0
      %6162 = vmatmul.mubr.bf16.gmra.mrb[0].mxu0 %v6033
      %v6163 = vpop.f32.mrb[0].mxu0
      %v6164 = vadd.f32 0.0, %v6163
      %v6165 = vpop.f32.mrb[0].mxu0
      %v6166 = vpop.f32.mrb[0].mxu0
      %v6167 = vadd.f32 0.0, %v6166
      %v6168 = vpop.f32.mrb[0].mxu0
      %6169 = vmatprep.mubr.bf16.mxu0 0
      %6170 = vmatmul.mubr.bf16.gmra.mrb[0].mxu0 %v6036
      %v6171 = vpop.f32.mrb[0].mxu0
      %v6172 = vadd.f32 0.0, %v6171
      %v6173 = vpop.f32.mrb[0].mxu0
      %v6174 = vpop.f32.mrb[0].mxu0
      %v6175 = vadd.f32 0.0, %v6174
      %v6176 = vpop.f32.mrb[0].mxu0
      %6177 = vmatprep.mubr.bf16.mxu0 0
      %6178 = vmatmul.mubr.bf16.gmra.mrb[0].mxu0 %v6039
      %v6179 = vpop.f32.mrb[0].mxu0
      %v6180 = vadd.f32 0.0, %v6179
      %v6181 = vpop.f32.mrb[0].mxu0
      %v6182 = vpop.f32.mrb[0].mxu0
      %v6183 = vadd.f32 0.0, %v6182
      %v6184 = vpop.f32.mrb[0].mxu0
      %6185 = vmatprep.mubr.bf16.mxu0 0
      %6186 = vmatmul.mubr.bf16.gmra.mrb[0].mxu0 %v6042
      %v6187 = vpop.f32.mrb[0].mxu0
      %v6188 = vadd.f32 0.0, %v6187
      %v6189 = vpop.f32.mrb[0].mxu0
      %v6190 = vpop.f32.mrb[0].mxu0
      %v6191 = vadd.f32 0.0, %v6190
      %v6192 = vpop.f32.mrb[0].mxu0
      %6193 = vmatprep.mubr.bf16.mxu0 0
      %6194 = vmatmul.mubr.bf16.gmra.mrb[0].mxu0 %v6045
      %v6195 = vpop.f32.mrb[0].mxu0
      %v6196 = vadd.f32 0.0, %v6195
      %v6197 = vpop.f32.mrb[0].mxu0
      %v6198 = vpop.f32.mrb[0].mxu0
      %v6199 = vadd.f32 0.0, %v6198
      %v6200 = vpop.f32.mrb[0].mxu0
      %6201 = vmatprep.mubr.bf16.mxu0 0
      %6202 = vmatmul.mubr.bf16.gmra.mrb[0].mxu0 %v6048
      %v6203 = vpop.f32.mrb[0].mxu0
      %v6204 = vadd.f32 0.0, %v6203
      %v6205 = vpop.f32.mrb[0].mxu0
      %v6206 = vpop.f32.mrb[0].mxu0
      %v6207 = vadd.f32 0.0, %v6206
      %v6208 = vpop.f32.mrb[0].mxu0
      %6209 = vmatprep.mubr.bf16.mxu0 0
      %6210 = vmatmul.mubr.bf16.gmra.mrb[0].mxu0 %v6051
      %v6211 = vpop.f32.mrb[0].mxu0
      %v6212 = vadd.f32 0.0, %v6211
      %v6213 = vpop.f32.mrb[0].mxu0
      %v6214 = vpop.f32.mrb[0].mxu0
      %v6215 = vadd.f32 0.0, %v6214
      %v6216 = vpop.f32.mrb[0].mxu0
      %6217 = vdwg.mxu0
      %6218 = vst.msk [vmem:[%s262] sm:$0xff] %vm270, %v6092
      %6219 = vst.msk [vmem:[%s262 + $0x8] sm:$0xff] %vm270, %v6095
      %6220 = vst.msk [vmem:[%s262 + $0x10] sm:$0xff] %vm270, %v6100
      %6221 = vst.msk [vmem:[%s262 + $0x18] sm:$0xff] %vm270, %v6103
      %6222 = vst.msk [vmem:[%s262 + $0x20] sm:$0xff] %vm270, %v6108
      %6223 = vst.msk [vmem:[%s262 + $0x28] sm:$0xff] %vm270, %v6111
      %6224 = vst.msk [vmem:[%s262 + $0x30] sm:$0xff] %vm270, %v6116
      %6225 = vst.msk [vmem:[%s262 + $0x38] sm:$0xff] %vm270, %v6119
      %6226 = vst.msk [vmem:[%s262 + $0x40] sm:$0xff] %vm270, %v6124
      %6227 = vst.msk [vmem:[%s262 + $0x48] sm:$0xff] %vm270, %v6127
      %6228 = vst.msk [vmem:[%s262 + $0x50] sm:$0xff] %vm270, %v6132
      %6229 = vst.msk [vmem:[%s262 + $0x58] sm:$0xff] %vm270, %v6135
      %6230 = vst.msk [vmem:[%s262 + $0x60] sm:$0xff] %vm270, %v6140
      %6231 = vst.msk [vmem:[%s262 + $0x68] sm:$0xff] %vm270, %v6143
      %6232 = vst.msk [vmem:[%s262 + $0x70] sm:$0xff] %vm270, %v6148
      %6233 = vst.msk [vmem:[%s262 + $0x78] sm:$0xff] %vm270, %v6151
      %6234 = vst.msk [vmem:[%s262 + $0x80] sm:$0xff] %vm270, %v6156
      %6235 = vst.msk [vmem:[%s262 + $0x88] sm:$0xff] %vm270, %v6159
      %6236 = vst.msk [vmem:[%s262 + $0x90] sm:$0xff] %vm270, %v6164
      %6237 = vst.msk [vmem:[%s262 + $0x98] sm:$0xff] %vm270, %v6167
      %6238 = vst.msk [vmem:[%s262 + $0xa0] sm:$0xff] %vm270, %v6172
      %6239 = vst.msk [vmem:[%s262 + $0xa8] sm:$0xff] %vm270, %v6175
      %6240 = vst.msk [vmem:[%s262 + $0xb0] sm:$0xff] %vm270, %v6180
      %6241 = vst.msk [vmem:[%s262 + $0xb8] sm:$0xff] %vm270, %v6183
      %6242 = vst.msk [vmem:[%s262 + $0xc0] sm:$0xff] %vm270, %v6188
      %6243 = vst.msk [vmem:[%s262 + $0xc8] sm:$0xff] %vm270, %v6191
      %6244 = vst.msk [vmem:[%s262 + $0xd0] sm:$0xff] %vm270, %v6196
      %6245 = vst.msk [vmem:[%s262 + $0xd8] sm:$0xff] %vm270, %v6199
      %6246 = vst.msk [vmem:[%s262 + $0xe0] sm:$0xff] %vm270, %v6204
      %6247 = vst.msk [vmem:[%s262 + $0xe8] sm:$0xff] %vm270, %v6207
      %6248 = vst.msk [vmem:[%s262 + $0xf0] sm:$0xff] %vm270, %v6212
      %6249 = vst.msk [vmem:[%s262 + $0xf8] sm:$0xff] %vm270, %v6215
      %v6250 = vsel %vm270, %v6092, 0.0
      %v6251 = vsel %vm270, %v6095, 0.0
      %v6252 = vadd.f32 %v6250, %v6251
      %v6253 = vsel %vm270, %v6100, 0.0
      %v6254 = vadd.f32 %v6252, %v6253
      %v6255 = vsel %vm270, %v6103, 0.0
      %v6256 = vadd.f32 %v6254, %v6255
      %v6257 = vsel %vm270, %v6108, 0.0
      %v6258 = vadd.f32 %v6256, %v6257
      %v6259 = vsel %vm270, %v6111, 0.0
      %v6260 = vadd.f32 %v6258, %v6259
      %v6261 = vsel %vm270, %v6116, 0.0
      %v6262 = vadd.f32 %v6260, %v6261
      %v6263 = vsel %vm270, %v6119, 0.0
      %v6264 = vadd.f32 %v6262, %v6263
      %v6265 = vsel %vm270, %v6124, 0.0
      %v6266 = vadd.f32 %v6264, %v6265
      %v6267 = vsel %vm270, %v6127, 0.0
      %v6268 = vadd.f32 %v6266, %v6267
      %v6269 = vsel %vm270, %v6132, 0.0
      %v6270 = vadd.f32 %v6268, %v6269
      %v6271 = vsel %vm270, %v6135, 0.0
      %v6272 = vadd.f32 %v6270, %v6271
      %v6273 = vsel %vm270, %v6140, 0.0
      %v6274 = vadd.f32 %v6272, %v6273
      %v6275 = vsel %vm270, %v6143, 0.0
      %v6276 = vadd.f32 %v6274, %v6275
      %v6277 = vsel %vm270, %v6148, 0.0
      %v6278 = vadd.f32 %v6276, %v6277
      %v6279 = vsel %vm270, %v6151, 0.0
      %v6280 = vadd.f32 %v6278, %v6279
      %v6281 = vsel %vm270, %v6156, 0.0
      %v6282 = vadd.f32 %v6280, %v6281
      %v6283 = vsel %vm270, %v6159, 0.0
      %v6284 = vadd.f32 %v6282, %v6283
      %v6285 = vsel %vm270, %v6164, 0.0
      %v6286 = vadd.f32 %v6284, %v6285
      %v6287 = vsel %vm270, %v6167, 0.0
      %v6288 = vadd.f32 %v6286, %v6287
      %v6289 = vsel %vm270, %v6172, 0.0
      %v6290 = vadd.f32 %v6288, %v6289
      %v6291 = vsel %vm270, %v6175, 0.0
      %v6292 = vadd.f32 %v6290, %v6291
      %v6293 = vsel %vm270, %v6180, 0.0
      %v6294 = vadd.f32 %v6292, %v6293
      %v6295 = vsel %vm270, %v6183, 0.0
      %v6296 = vadd.f32 %v6294, %v6295
      %v6297 = vsel %vm270, %v6188, 0.0
      %v6298 = vadd.f32 %v6296, %v6297
      %v6299 = vsel %vm270, %v6191, 0.0
      %v6300 = vadd.f32 %v6298, %v6299
      %v6301 = vsel %vm270, %v6196, 0.0
      %v6302 = vadd.f32 %v6300, %v6301
      %v6303 = vsel %vm270, %v6199, 0.0
      %v6304 = vadd.f32 %v6302, %v6303
      %v6305 = vsel %vm270, %v6204, 0.0
      %v6306 = vadd.f32 %v6304, %v6305
      %v6307 = vsel %vm270, %v6207, 0.0
      %v6308 = vadd.f32 %v6306, %v6307
      %v6309 = vsel %vm270, %v6212, 0.0
      %v6310 = vadd.f32 %v6308, %v6309
      %v6311 = vsel %vm270, %v6215, 0.0
      %v6312 = vadd.f32 %v6310, %v6311
      %v6313 = vrot.slane %v6312, 4
      %v6314 = vadd.f32 %v6312, %v6313
      %v6315 = vrot.slane %v6314, 2
      %v6316 = vadd.f32 %v6314, %v6315
      %v6317 = vrot.slane %v6316, 1
      %v6318 = vadd.f32 %v6316, %v6317
      %vm6319 = vcmask 24576
      %6320 = vst.msk [vmem:[%s265] sm:$0x1] %vm6319, %v6318
      %v6321 = vmul.f32 %v6092, %v6092
      %v6322 = vmul.f32 %v6095, %v6095
      %v6323 = vmul.f32 %v6100, %v6100
      %v6324 = vmul.f32 %v6103, %v6103
      %v6325 = vmul.f32 %v6108, %v6108
      %v6326 = vmul.f32 %v6111, %v6111
      %v6327 = vmul.f32 %v6116, %v6116
      %v6328 = vmul.f32 %v6119, %v6119
      %v6329 = vmul.f32 %v6124, %v6124
      %v6330 = vmul.f32 %v6127, %v6127
      %v6331 = vmul.f32 %v6132, %v6132
      %v6332 = vmul.f32 %v6135, %v6135
      %v6333 = vmul.f32 %v6140, %v6140
      %v6334 = vmul.f32 %v6143, %v6143
      %v6335 = vmul.f32 %v6148, %v6148
      %v6336 = vmul.f32 %v6151, %v6151
      %v6337 = vmul.f32 %v6156, %v6156
      %v6338 = vmul.f32 %v6159, %v6159
      %v6339 = vmul.f32 %v6164, %v6164
      %v6340 = vmul.f32 %v6167, %v6167
      %v6341 = vmul.f32 %v6172, %v6172
      %v6342 = vmul.f32 %v6175, %v6175
      %v6343 = vmul.f32 %v6180, %v6180
      %v6344 = vmul.f32 %v6183, %v6183
      %v6345 = vmul.f32 %v6188, %v6188
      %v6346 = vmul.f32 %v6191, %v6191
      %v6347 = vmul.f32 %v6196, %v6196
      %v6348 = vmul.f32 %v6199, %v6199
      %v6349 = vmul.f32 %v6204, %v6204
      %v6350 = vmul.f32 %v6207, %v6207
      %v6351 = vmul.f32 %v6212, %v6212
      %v6352 = vmul.f32 %v6215, %v6215
      %v6353 = vsel %vm270, %v6321, 0.0
      %v6354 = vsel %vm270, %v6322, 0.0
      %v6355 = vadd.f32 %v6353, %v6354
      %v6356 = vsel %vm270, %v6323, 0.0
      %v6357 = vadd.f32 %v6355, %v6356
      %v6358 = vsel %vm270, %v6324, 0.0
      %v6359 = vadd.f32 %v6357, %v6358
      %v6360 = vsel %vm270, %v6325, 0.0
      %v6361 = vadd.f32 %v6359, %v6360
      %v6362 = vsel %vm270, %v6326, 0.0
      %v6363 = vadd.f32 %v6361, %v6362
      %v6364 = vsel %vm270, %v6327, 0.0
      %v6365 = vadd.f32 %v6363, %v6364
      %v6366 = vsel %vm270, %v6328, 0.0
      %v6367 = vadd.f32 %v6365, %v6366
      %v6368 = vsel %vm270, %v6329, 0.0
      %v6369 = vadd.f32 %v6367, %v6368
      %v6370 = vsel %vm270, %v6330, 0.0
      %v6371 = vadd.f32 %v6369, %v6370
      %v6372 = vsel %vm270, %v6331, 0.0
      %v6373 = vadd.f32 %v6371, %v6372
      %v6374 = vsel %vm270, %v6332, 0.0
      %v6375 = vadd.f32 %v6373, %v6374
      %v6376 = vsel %vm270, %v6333, 0.0
      %v6377 = vadd.f32 %v6375, %v6376
      %v6378 = vsel %vm270, %v6334, 0.0
      %v6379 = vadd.f32 %v6377, %v6378
      %v6380 = vsel %vm270, %v6335, 0.0
      %v6381 = vadd.f32 %v6379, %v6380
      %v6382 = vsel %vm270, %v6336, 0.0
      %v6383 = vadd.f32 %v6381, %v6382
      %v6384 = vsel %vm270, %v6337, 0.0
      %v6385 = vadd.f32 %v6383, %v6384
      %v6386 = vsel %vm270, %v6338, 0.0
      %v6387 = vadd.f32 %v6385, %v6386
      %v6388 = vsel %vm270, %v6339, 0.0
      %v6389 = vadd.f32 %v6387, %v6388
      %v6390 = vsel %vm270, %v6340, 0.0
      %v6391 = vadd.f32 %v6389, %v6390
      %v6392 = vsel %vm270, %v6341, 0.0
      %v6393 = vadd.f32 %v6391, %v6392
      %v6394 = vsel %vm270, %v6342, 0.0
      %v6395 = vadd.f32 %v6393, %v6394
      %v6396 = vsel %vm270, %v6343, 0.0
      %v6397 = vadd.f32 %v6395, %v6396
      %v6398 = vsel %vm270, %v6344, 0.0
      %v6399 = vadd.f32 %v6397, %v6398
      %v6400 = vsel %vm270, %v6345, 0.0
      %v6401 = vadd.f32 %v6399, %v6400
      %v6402 = vsel %vm270, %v6346, 0.0
      %v6403 = vadd.f32 %v6401, %v6402
      %v6404 = vsel %vm270, %v6347, 0.0
      %v6405 = vadd.f32 %v6403, %v6404
      %v6406 = vsel %vm270, %v6348, 0.0
      %v6407 = vadd.f32 %v6405, %v6406
      %v6408 = vsel %vm270, %v6349, 0.0
      %v6409 = vadd.f32 %v6407, %v6408
      %v6410 = vsel %vm270, %v6350, 0.0
      %v6411 = vadd.f32 %v6409, %v6410
      %v6412 = vsel %vm270, %v6351, 0.0
      %v6413 = vadd.f32 %v6411, %v6412
      %v6414 = vsel %vm270, %v6352, 0.0
      %v6415 = vadd.f32 %v6413, %v6414
      %v6416 = vrot.slane %v6415, 4
      %v6417 = vadd.f32 %v6415, %v6416
      %v6418 = vrot.slane %v6417, 2
      %v6419 = vadd.f32 %v6417, %v6418
      %v6420 = vrot.slane %v6419, 1
      %v6421 = vadd.f32 %v6419, %v6420
      %6422 = vst.msk [vmem:[%s268] sm:$0x1] %vm6319, %v6421
      %p6423 = scmp.lt.s32.totalorder %s18, 1
      %s6424 = scalar_select %p6423, %s18, 1
      %s6425 = smul.addr %s6424, 32
      %s6426 = smul.addr %s6425, 8
      %s6427 = scalar_lea.vmem %s4, %s6426
      %p6428 = scmp.lt.s32.totalorder %s18, 1
      %s6429 = scalar_select %p6428, %s18, 1
      %s6430 = scalar_lea.vmem %s5, %s6429
      %p6431 = scmp.lt.s32.totalorder %s18, 1
      %s6432 = scalar_select %p6431, %s18, 1
      %s6433 = scalar_lea.vmem %s6, %s6432
      // Predicated region
      $region37: #{bottleneck_mish_forward.6} parent=35 // pred_check
        %p6434 = pneg %p125
      $region38: #{bottleneck_mish_forward.6} parent=35 // pred_check_branch
        %6436 = sbr.rel (%p6434) target = $region40
      $region39: #{bottleneck_mish_forward.6} parent=35 // pred_region
        _
      $region40: #{bottleneck_mish_forward.6} parent=35 // pred_fallthru
        _
      // Predicated region
      $region41: #{bottleneck_mish_forward.6} parent=35 // pred_check
        %p6437 = pneg %p151
      $region42: #{bottleneck_mish_forward.6} parent=35 // pred_check_branch
        %6439 = sbr.rel (%p6437) target = $region44
      $region43: #{bottleneck_mish_forward.6} parent=35 // pred_region
        _
      $region44: #{bottleneck_mish_forward.6} parent=35 // pred_fallthru
        _
      // Predicated region
      $region45: #{bottleneck_mish_forward.6} parent=35 // pred_check
        %p6440 = pneg %p177
      $region46: #{bottleneck_mish_forward.6} parent=35 // pred_check_branch
        %6442 = sbr.rel (%p6440) target = $region48
      $region47: #{bottleneck_mish_forward.6} parent=35 // pred_region
        _
      $region48: #{bottleneck_mish_forward.6} parent=35 // pred_fallthru
        _
    $region36: #{bottleneck_mish_forward.6} parent=5 // pred_fallthru
      _
    %p6443 = scmp.le.s32.totalorder 2, %s13
    // Predicated region
    $region49: #{bottleneck_mish_forward.6} parent=5 // pred_check
      %p6444 = pneg %p6443
    $region50: #{bottleneck_mish_forward.6} parent=5 // pred_check_branch
      %6446 = sbr.rel (%p6444) target = $region52
    $region51: #{bottleneck_mish_forward.6} parent=5 // pred_region
      %s6447 = ssub.s32 %s13, 2
      // Predicated region
      $region53: #{bottleneck_mish_forward.6} parent=51 // pred_check
        %p6448 = pneg %p131
      $region54: #{bottleneck_mish_forward.6} parent=51 // pred_check_branch
        %6450 = sbr.rel (%p6448) target = $region56
      $region55: #{bottleneck_mish_forward.6} parent=51 // pred_region
        %p6451 = scmp.lt.s32.totalorder %s19, 1
        %s6452 = scalar_select %p6451, %s19, 1
        %s6453 = smul.addr %s6452, 32
        %s6454 = smul.addr %s6453, 8
        %s6455 = scalar_lea.vmem %s4, %s6454
      $region56: #{bottleneck_mish_forward.6} parent=51 // pred_fallthru
        _
      // Predicated region
      $region57: #{bottleneck_mish_forward.6} parent=51 // pred_check
        %p6456 = pneg %p157
      $region58: #{bottleneck_mish_forward.6} parent=51 // pred_check_branch
        %6458 = sbr.rel (%p6456) target = $region60
      $region59: #{bottleneck_mish_forward.6} parent=51 // pred_region
        %p6459 = scmp.lt.s32.totalorder %s19, 1
        %s6460 = scalar_select %p6459, %s19, 1
        %s6461 = scalar_lea.vmem %s5, %s6460
      $region60: #{bottleneck_mish_forward.6} parent=51 // pred_fallthru
        _
      // Predicated region
      $region61: #{bottleneck_mish_forward.6} parent=51 // pred_check
        %p6462 = pneg %p183
      $region62: #{bottleneck_mish_forward.6} parent=51 // pred_check_branch
        %6464 = sbr.rel (%p6462) target = $region64
      $region63: #{bottleneck_mish_forward.6} parent=51 // pred_region
        %p6465 = scmp.lt.s32.totalorder %s19, 1
        %s6466 = scalar_select %p6465, %s19, 1
        %s6467 = scalar_lea.vmem %s6, %s6466
      $region64: #{bottleneck_mish_forward.6} parent=51 // pred_fallthru
        _
    $region52: #{bottleneck_mish_forward.6} parent=5 // pred_fallthru
      _
  $region6: #{bottleneck_mish_forward.6} parent=0 // loop_footer
    %s17 = sadd.s32 1, %s13
  $region7: #{bottleneck_mish_forward.6} parent=0 // loop_footer_branch
    %12 = sbr.rel target = $region3
  $region8: #{bottleneck_mish_forward.6} parent=0 // loop_exit
    _

</llo_original>
